<compile_context>
chip_gen: v7x
topology: tpu7x:2x2x1
jax: 0.10.0
libtpu: 0.0.40
codegen_flags: <defaults>
</compile_context>

<pallas_src>
import functools

import jax
import jax.numpy as jnp
from jax import lax
from jax.experimental import pallas as pl
from jax.experimental.pallas import tpu as pltpu

EPS = 1e-5          # PyTorch BatchNorm default eps
LANE = 128          # MXU N width used for the matmul (zero-padded weight lanes)
CH = 128            # rows per in-register accumulator chunk (16 f32 vregs)
TARGET_TM = 4096    # target rows per grid tile (rounded to a multiple of the halo)


def _round_up(x, m):
    return (x + m - 1) // m * m


# ---------------------------------------------------------------------------
# Pass 1: streamed 4D conv (shifted-window, chunked accumulation) + BN stats
# ---------------------------------------------------------------------------
def _conv_stats_kernel(xa_ref, xh_ref, m_ref, w_ref, y_ref, s_ref, ss_ref,
                       xw_ref, *, offsets, tm, halo):
    i = pl.program_id(1)

    @pl.when(i == 0)
    def _init_stats():
        s_ref[...] = jnp.zeros_like(s_ref)
        ss_ref[...] = jnp.zeros_like(ss_ref)

    # Stage this tile plus its halo into one contiguous bf16 window; every tap
    # shift below is a static, 16-aligned row offset into this scratch.
    xw_ref[0:tm, :] = xa_ref[...]
    xw_ref[tm:tm + halo, :] = xh_ref[...]

    cout = y_ref.shape[-1]
    n_chunks = tm // CH

    def chunk_body(c, carry):
        r0 = pl.multiple_of(c * CH, CH)
        # In-register f32 accumulator for CH rows (initialized by the first tap).
        acc = jnp.dot(xw_ref[pl.ds(r0 + offsets[0], CH), :], w_ref[0],
                      preferred_element_type=jnp.float32)
        for j in range(1, len(offsets)):                 # static unroll: K^2 taps
            win = xw_ref[pl.ds(r0 + offsets[j], CH), :]  # 16-aligned bf16 window
            acc = acc + jnp.dot(win, w_ref[j],
                                preferred_element_type=jnp.float32)
        # Single store per chunk, only the real output channels (no 128-lane pad).
        y_ref[pl.ds(r0, CH), :] = acc[:, :cout]
        # Fused masked BN statistics on the same in-register chunk.  Padded lanes
        # of acc are exactly zero (weight padding is zero), so full-lane sums are safe.
        m = m_ref[pl.ds(r0, CH), :]                      # (CH, 1) f32 validity mask
        am = acc * m
        s_ref[...] += jnp.sum(am, axis=0, keepdims=True)
        ss_ref[...] += jnp.sum(am * acc, axis=0, keepdims=True)
        return carry

    lax.fori_loop(0, n_chunks, chunk_body, 0)


# ---------------------------------------------------------------------------
# Pass 2: y * scale + shift, ReLU  (fully parallel over row tiles, Cout-wide)
# ---------------------------------------------------------------------------
def _bn_relu_kernel(y_ref, scale_ref, shift_ref, o_ref):
    o_ref[...] = jnp.maximum(y_ref[...] * scale_ref[...] + shift_ref[...], 0.0)


@functools.partial(jax.jit, static_argnames=("padding",))
def conv_layer_forward(x, weight, gamma, beta, padding):
    """ConvLayer.forward: Conv4d(bias=False) -> BatchNorm4D (batch stats) -> ReLU."""
    B, Cin, D1, D2, D3, D4 = x.shape
    Cout, _, K, _, _, _ = weight.shape
    p = padding
    Do1, Do2, Do3, Do4 = (D1 + 2 * p - K + 1, D2 + 2 * p - K + 1,
                          D3 + 2 * p - K + 1, D4 + 2 * p - K + 1)
    D1p, D2p = D1 + 2 * p, D2 + 2 * p
    D4r = _round_up(Do4, 16)            # bf16 sublane pack -> all row shifts 16-aligned

    KKC = K * K * Cin                   # contraction dim: (k3, k4) taps folded in
    Cpad = _round_up(Cout, LANE)        # MXU N width (weights zero-padded)

    # ---- glue: pad, channels-last, fold (k3, k4) taps into the lane dim (9x copy) ----
    xp = jnp.pad(x, ((0, 0), (0, 0), (p, p), (p, p), (p, p), (p, p)))
    xp = jnp.transpose(xp, (0, 2, 3, 4, 5, 1))      # (B, D1p, D2p, D3p, D4p, Cin)
    cols = [xp[:, :, :, k3:k3 + Do3, k4:k4 + Do4, :]
            for k3 in range(K) for k4 in range(K)]
    x34 = jnp.concatenate(cols, axis=-1)            # (B, D1p, D2p, Do3, Do4, K^2*Cin)
    x34 = jnp.pad(x34, ((0, 0), (0, 0), (0, 0), (0, 0), (0, D4r - Do4), (0, 0)))

    S2 = Do3 * D4r                                  # flat-row stride of d2
    S1 = D2p * S2                                   # flat-row stride of d1
    rows_v = B * D1p * S1

    # static row shifts for the remaining (k1, k2) kernel taps
    offsets = tuple(k1 * S1 + k2 * S2 for k1 in range(K) for k2 in range(K))
    o_max = max(offsets)
    halo = _round_up(o_max, CH)                     # halo rows fetched per tile
    tm = halo * max(1, TARGET_TM // halo)           # tile rows (multiple of halo, CH)
    assert tm % CH == 0 and tm % halo == 0 and halo >= o_max
    hb = tm // halo                                 # halo-block stride in halo units

    num_tiles = pl.cdiv(rows_v, tm)
    NC = 2 if num_tiles >= 2 else 1                 # v7x: 2 TCs; harmless on v5e/v6e
    tpc = pl.cdiv(num_tiles, NC)                    # tiles per core
    num_tiles = NC * tpc
    rows_round = num_tiles * tm
    rows_x = rows_round + halo                      # extra halo rows for the last tile

    x_flat = x34.reshape(rows_v, KKC).astype(jnp.bfloat16)
    x_flat = jnp.pad(x_flat, ((0, rows_x - rows_v), (0, 0)))

    # validity mask: 1 for real output positions, 0 for padded-volume border rows
    v1 = jnp.arange(D1p) < Do1
    v2 = jnp.arange(D2p) < Do2
    v4 = jnp.arange(D4r) < Do4
    mvol = v1[:, None, None] & v2[None, :, None] & v4[None, None, :]   # (D1p,D2p,D4r)
    mask = jnp.broadcast_to(mvol[None, :, :, None, :], (B, D1p, D2p, Do3, D4r))
    mask = mask.reshape(rows_v, 1).astype(jnp.float32)
    mask = jnp.pad(mask, ((0, rows_round - rows_v), (0, 0)))

    # weight (Cout, Cin, K,K,K,K) -> (K^2 shift taps, K^2*Cin, Cpad), bf16
    w_r = jnp.transpose(weight, (2, 3, 4, 5, 1, 0)).reshape(K * K, KKC, Cout)
    w_r = jnp.pad(w_r, ((0, 0), (0, 0), (0, Cpad - Cout))).astype(jnp.bfloat16)

    # ---- pass 1: conv + masked per-channel sum / sum-of-squares ----
    flops1 = 2 * rows_round * KKC * Cpad * (K * K)
    bytes1 = ((rows_round + num_tiles * halo) * KKC * 2 + rows_round * 4
              + w_r.size * 2 + rows_round * Cout * 4)
    y_flat, s, ss = pl.pallas_call(
        functools.partial(_conv_stats_kernel, offsets=offsets, tm=tm, halo=halo),
        out_shape=(
            jax.ShapeDtypeStruct((rows_round, Cout), jnp.float32),
            jax.ShapeDtypeStruct((1, NC * Cpad), jnp.float32),
            jax.ShapeDtypeStruct((1, NC * Cpad), jnp.float32),
        ),
        grid=(NC, tpc),
        in_specs=[
            pl.BlockSpec((tm, KKC), lambda c, i: (c * tpc + i, 0)),        # tile rows
            pl.BlockSpec((halo, KKC), lambda c, i: ((c * tpc + i + 1) * hb, 0)),  # halo
            pl.BlockSpec((tm, 1), lambda c, i: (c * tpc + i, 0)),          # validity
            pl.BlockSpec((K * K, KKC, Cpad), lambda c, i: (0, 0, 0)),      # weights
        ],
        out_specs=(
            pl.BlockSpec((tm, Cout), lambda c, i: (c * tpc + i, 0)),
            pl.BlockSpec((1, Cpad), lambda c, i: (0, c)),   # per-core resident stats
            pl.BlockSpec((1, Cpad), lambda c, i: (0, c)),
        ),
        scratch_shapes=[pltpu.VMEM((tm + halo, KKC), jnp.bfloat16)],
        compiler_params=pltpu.CompilerParams(
            dimension_semantics=("parallel", "arbitrary"),
            vmem_limit_bytes=32 * 1024 * 1024),
        cost_estimate=pl.CostEstimate(flops=flops1, transcendentals=0,
                                      bytes_accessed=bytes1),
    )(x_flat, x_flat, mask, w_r)

    # ---- finalize BN (tiny glue): reduce per-core partials, per-channel scale/shift ----
    # NOTE: ss/n - mean^2 in f32 can cancel for very large n; clamped to 0 here.
    n = float(B * Do1 * Do2 * Do3 * Do4)
    s_c = jnp.sum(s.reshape(NC, Cpad), axis=0)[:Cout]
    ss_c = jnp.sum(ss.reshape(NC, Cpad), axis=0)[:Cout]
    mean = s_c / n
    var = jnp.maximum(ss_c / n - mean * mean, 0.0)          # biased variance (train)
    scale = (gamma.astype(jnp.float32) * lax.rsqrt(var + EPS))
    shift = beta.astype(jnp.float32) - mean * scale
    scale = scale.reshape(1, Cout)
    shift = shift.reshape(1, Cout)

    # ---- pass 2: normalize + affine + ReLU, fully parallel over row tiles ----
    out_flat = pl.pallas_call(
        _bn_relu_kernel,
        out_shape=jax.ShapeDtypeStruct((rows_round, Cout), jnp.float32),
        grid=(num_tiles,),
        in_specs=[
            pl.BlockSpec((tm, Cout), lambda i: (i, 0)),
            pl.BlockSpec((1, Cout), lambda i: (0, 0)),
            pl.BlockSpec((1, Cout), lambda i: (0, 0)),
        ],
        out_specs=pl.BlockSpec((tm, Cout), lambda i: (i, 0)),
        compiler_params=pltpu.CompilerParams(
            dimension_semantics=("parallel",),
            vmem_limit_bytes=32 * 1024 * 1024),
        cost_estimate=pl.CostEstimate(flops=2 * rows_round * Cout,
                                      transcendentals=0,
                                      bytes_accessed=2 * rows_round * Cout * 4),
    )(y_flat, scale, shift)

    # ---- glue: drop padded rows, back to (B, Cout, D1..D4) ----
    out = out_flat[:rows_v, :].reshape(B, D1p, D2p, Do3, D4r, Cout)
    out = out[:, :Do1, :Do2, :, :Do4, :]
    return jnp.transpose(out, (0, 5, 1, 2, 3, 4))


def _reference(x, weight, gamma, beta, padding):
    """Pure-JAX f32 reference: direct shifted-sum 4D conv + train-mode BN + ReLU."""
    B, Cin, D1, D2, D3, D4 = x.shape
    Cout = weight.shape[0]
    K = weight.shape[2]
    p = padding
    xp = jnp.pad(x, ((0, 0), (0, 0), (p, p), (p, p), (p, p), (p, p)))
    y = jnp.zeros((B, Cout, D1, D2, D3, D4), jnp.float32)
    for k1 in range(K):
        for k2 in range(K):
            for k3 in range(K):
                for k4 in range(K):
                    xs = xp[:, :, k1:k1 + D1, k2:k2 + D2, k3:k3 + D3, k4:k4 + D4]
                    y = y + jnp.einsum(
                        "bcijkl,oc->boijkl", xs, weight[:, :, k1, k2, k3, k4],
                        preferred_element_type=jnp.float32,
                        precision=jax.lax.Precision.HIGHEST,
                    )
    mean = jnp.mean(y, axis=(0, 2, 3, 4, 5), keepdims=True)
    var = jnp.mean((y - mean) ** 2, axis=(0, 2, 3, 4, 5), keepdims=True)
    y_hat = (y - mean) / jnp.sqrt(var + EPS)
    g = gamma.reshape(1, Cout, 1, 1, 1, 1)
    b = beta.reshape(1, Cout, 1, 1, 1, 1)
    return jnp.maximum(y_hat * g + b, 0.0)


if __name__ == "__main__":
    # Small shapes consistent with the module: ConvLayer(in=2, out=4, kernel=3, padding=1)
    B, Cin, Cout, K, PAD = 2, 2, 4, 3, 1
    D1 = D2 = D3 = D4 = 6

    key = jax.random.PRNGKey(0)
    kx, kw = jax.random.split(key)

    x = jax.random.normal(kx, (B, Cin, D1, D2, D3, D4), dtype=jnp.float32)
    fan_in = Cin * K ** 4
    weight = jax.random.normal(kw, (Cout, Cin, K, K, K, K), dtype=jnp.float32) / jnp.sqrt(fan_in)
    gamma = jnp.ones((Cout,), jnp.float32)   # nn.BatchNorm init
    beta = jnp.zeros((Cout,), jnp.float32)
    # TODO(synk): BatchNorm running-stat buffer updates (training side effect) are not
    # replicated; only the forward output (which uses batch statistics) is computed.

    out = conv_layer_forward(x, weight, gamma, beta, padding=PAD)
    out = jax.block_until_ready(out)
    assert out.shape == (B, Cout, D1, D2, D3, D4)

    # Tight check: same math with bf16-quantized operands (matches the kernel's
    # bf16 MXU inputs / f32 accumulation).
    xq = x.astype(jnp.bfloat16).astype(jnp.float32)
    wq = weight.astype(jnp.bfloat16).astype(jnp.float32)
    ref_q = _reference(xq, wq, gamma, beta, PAD)
    err_q = float(jnp.max(jnp.abs(out - ref_q)))
    assert jnp.allclose(out, ref_q, atol=2e-3, rtol=2e-3), err_q

    # Module-semantics check vs full-f32 reference; looser tolerance is solely due
    # to the bf16 matmul operands.
    ref = _reference(x, weight, gamma, beta, PAD)
    err = float(jnp.max(jnp.abs(out - ref)))
    assert jnp.allclose(out, ref, atol=6e-2, rtol=6e-2), err

    print("KERNEL_OK")
</pallas_src>

<mosaic_0001>
module attributes {stable_mosaic.version = 11 : i64} {
  func.func @_conv_stats_kernel(%arg0: i32, %arg1: i32, %arg2: memref<3584x18xbf16, #tpu.memory_space<vmem>>, %arg3: memref<1792x18xbf16, #tpu.memory_space<vmem>>, %arg4: memref<3584x1xf32, #tpu.memory_space<vmem>>, %arg5: memref<9x18x128xbf16, #tpu.memory_space<vmem>>, %arg6: memref<3584x4xf32, #tpu.memory_space<vmem>>, %arg7: memref<1x128xf32, #tpu.memory_space<vmem>>, %arg8: memref<1x128xf32, #tpu.memory_space<vmem>>, %arg9: memref<5376x18xbf16, #tpu.memory_space<vmem>>) attributes {dimension_semantics = [#tpu.dimension_semantics<parallel>, #tpu.dimension_semantics<arbitrary>], iteration_bounds = array<i64: 2, 2>, scalar_prefetch = 0 : i64, scratch_operands = 1 : i64, tpu.core_type = #tpu.core_type<tc>, window_params = [{transform_indices = @transform_0, window_bounds = array<i64: 3584, 18>}, {transform_indices = @transform_1, window_bounds = array<i64: 1792, 18>}, {transform_indices = @transform_2, window_bounds = array<i64: 3584, 1>}, {pipeline_mode = #tpu.pipeline_mode<synchronous>, transform_indices = @transform_3, window_bounds = array<i64: 9, 18, 128>}, {transform_indices = @transform_4, window_bounds = array<i64: 3584, 4>}, {transform_indices = @transform_5, window_bounds = array<i64: 1, 128>}, {transform_indices = @transform_6, window_bounds = array<i64: 1, 128>}]} {
    %c0_i32 = arith.constant 0 : i32
    %0 = arith.cmpi eq, %arg1, %c0_i32 : i32
    %1 = arith.extui %0 : i1 to i32
    %c0_i32_0 = arith.constant 0 : i32
    %2 = arith.cmpi ne, %1, %c0_i32_0 : i32
    scf.if %2 {
      %cst = arith.constant 0.000000e+00 : f32
      %8 = vector.broadcast %cst : f32 to vector<1x128xf32>
      %c0_9 = arith.constant 0 : index
      %c0_10 = arith.constant 0 : index
      %9 = vector.load %arg7[%c0_9, %c0_10] : memref<1x128xf32, #tpu.memory_space<vmem>>, vector<1x128xf32>
      tpu.vector_store %arg7[%c0_9, %c0_10], %8 {strides = array<i32>} : memref<1x128xf32, #tpu.memory_space<vmem>>, vector<1x128xf32>,
      %cst_11 = arith.constant 0.000000e+00 : f32
      %10 = vector.broadcast %cst_11 : f32 to vector<1x128xf32>
      %c0_12 = arith.constant 0 : index
      %c0_13 = arith.constant 0 : index
      %11 = vector.load %arg8[%c0_12, %c0_13] : memref<1x128xf32, #tpu.memory_space<vmem>>, vector<1x128xf32>
      tpu.vector_store %arg8[%c0_12, %c0_13], %10 {strides = array<i32>} : memref<1x128xf32, #tpu.memory_space<vmem>>, vector<1x128xf32>,
    } else {
    }
    %c0 = arith.constant 0 : index
    %c0_1 = arith.constant 0 : index
    %3 = vector.load %arg2[%c0, %c0_1] : memref<3584x18xbf16, #tpu.memory_space<vmem>>, vector<3584x18xbf16>
    %c0_2 = arith.constant 0 : index
    %c0_3 = arith.constant 0 : index
    %4 = vector.load %arg9[%c0_2, %c0_3] : memref<5376x18xbf16, #tpu.memory_space<vmem>>, vector<3584x18xbf16>
    tpu.vector_store %arg9[%c0_2, %c0_3], %3 {strides = array<i32>} : memref<5376x18xbf16, #tpu.memory_space<vmem>>, vector<3584x18xbf16>,
    %c0_4 = arith.constant 0 : index
    %c0_5 = arith.constant 0 : index
    %5 = vector.load %arg3[%c0_4, %c0_5] : memref<1792x18xbf16, #tpu.memory_space<vmem>>, vector<1792x18xbf16>
    %c3584 = arith.constant 3584 : index
    %c0_6 = arith.constant 0 : index
    %6 = vector.load %arg9[%c3584, %c0_6] : memref<5376x18xbf16, #tpu.memory_space<vmem>>, vector<1792x18xbf16>
    tpu.vector_store %arg9[%c3584, %c0_6], %5 {strides = array<i32>} : memref<5376x18xbf16, #tpu.memory_space<vmem>>, vector<1792x18xbf16>,
    %c0_i32_7 = arith.constant 0 : i32
    %c28_i32 = arith.constant 28 : i32
    %7 = arith.addi %c0_i32_7, %c28_i32 : i32
    %c1_i32 = arith.constant 1 : i32
    scf.for %arg10 = %c0_i32_7 to %7 step %c1_i32  : i32 {
      %c128_i32 = arith.constant 128 : i32
      %8 = arith.muli %arg10, %c128_i32 : i32
      %9 = tpu.assume_multiple %8, 128 : i32
      %c0_i32_9 = arith.constant 0 : i32
      %10 = arith.addi %9, %c0_i32_9 : i32
      %11 = arith.index_cast %10 : i32 to index
      %c0_10 = arith.constant 0 : index
      %12 = vector.load %arg9[%11, %c0_10] : memref<5376x18xbf16, #tpu.memory_space<vmem>>, vector<128x18xbf16>
      %c0_11 = arith.constant 0 : index
      %c0_12 = arith.constant 0 : index
      %c0_13 = arith.constant 0 : index
      %13 = vector.load %arg5[%c0_11, %c0_12, %c0_13] : memref<9x18x128xbf16, #tpu.memory_space<vmem>>, vector<1x18x128xbf16>
      %14 = vector.shape_cast %13 : vector<1x18x128xbf16> to vector<18x128xbf16>
      %cst = arith.constant dense<0.000000e+00> : vector<128x128xf32>
      %15 = tpu.matmul %12, %14, %cst {dimension_numbers = #tpu.dot_dimension_numbers<[1], [0], [0], [1], [0, 0, 1, 1], [], []>} : vector<128x18xbf16>, vector<18x128xbf16>, vector<128x128xf32> -> vector<128x128xf32>
      %c96_i32 = arith.constant 96 : i32
      %16 = arith.addi %9, %c96_i32 : i32
      %17 = arith.index_cast %16 : i32 to index
      %c0_14 = arith.constant 0 : index
      %18 = vector.load %arg9[%17, %c0_14] : memref<5376x18xbf16, #tpu.memory_space<vmem>>, vector<128x18xbf16>
      %c1 = arith.constant 1 : index
      %c0_15 = arith.constant 0 : index
      %c0_16 = arith.constant 0 : index
      %19 = vector.load %arg5[%c1, %c0_15, %c0_16] : memref<9x18x128xbf16, #tpu.memory_space<vmem>>, vector<1x18x128xbf16>
      %20 = vector.shape_cast %19 : vector<1x18x128xbf16> to vector<18x128xbf16>
      %cst_17 = arith.constant dense<0.000000e+00> : vector<128x128xf32>
      %21 = tpu.matmul %18, %20, %cst_17 {dimension_numbers = #tpu.dot_dimension_numbers<[1], [0], [0], [1], [0, 0, 1, 1], [], []>} : vector<128x18xbf16>, vector<18x128xbf16>, vector<128x128xf32> -> vector<128x128xf32>
      %22 = arith.addf %15, %21 : vector<128x128xf32>
      %c192_i32 = arith.constant 192 : i32
      %23 = arith.addi %9, %c192_i32 : i32
      %24 = arith.index_cast %23 : i32 to index
      %c0_18 = arith.constant 0 : index
      %25 = vector.load %arg9[%24, %c0_18] : memref<5376x18xbf16, #tpu.memory_space<vmem>>, vector<128x18xbf16>
      %c2 = arith.constant 2 : index
      %c0_19 = arith.constant 0 : index
      %c0_20 = arith.constant 0 : index
      %26 = vector.load %arg5[%c2, %c0_19, %c0_20] : memref<9x18x128xbf16, #tpu.memory_space<vmem>>, vector<1x18x128xbf16>
      %27 = vector.shape_cast %26 : vector<1x18x128xbf16> to vector<18x128xbf16>
      %cst_21 = arith.constant dense<0.000000e+00> : vector<128x128xf32>
      %28 = tpu.matmul %25, %27, %cst_21 {dimension_numbers = #tpu.dot_dimension_numbers<[1], [0], [0], [1], [0, 0, 1, 1], [], []>} : vector<128x18xbf16>, vector<18x128xbf16>, vector<128x128xf32> -> vector<128x128xf32>
      %29 = arith.addf %22, %28 : vector<128x128xf32>
      %c768_i32 = arith.constant 768 : i32
      %30 = arith.addi %9, %c768_i32 : i32
      %31 = arith.index_cast %30 : i32 to index
      %c0_22 = arith.constant 0 : index
      %32 = vector.load %arg9[%31, %c0_22] : memref<5376x18xbf16, #tpu.memory_space<vmem>>, vector<128x18xbf16>
      %c3 = arith.constant 3 : index
      %c0_23 = arith.constant 0 : index
      %c0_24 = arith.constant 0 : index
      %33 = vector.load %arg5[%c3, %c0_23, %c0_24] : memref<9x18x128xbf16, #tpu.memory_space<vmem>>, vector<1x18x128xbf16>
      %34 = vector.shape_cast %33 : vector<1x18x128xbf16> to vector<18x128xbf16>
      %cst_25 = arith.constant dense<0.000000e+00> : vector<128x128xf32>
      %35 = tpu.matmul %32, %34, %cst_25 {dimension_numbers = #tpu.dot_dimension_numbers<[1], [0], [0], [1], [0, 0, 1, 1], [], []>} : vector<128x18xbf16>, vector<18x128xbf16>, vector<128x128xf32> -> vector<128x128xf32>
      %36 = arith.addf %29, %35 : vector<128x128xf32>
      %c864_i32 = arith.constant 864 : i32
      %37 = arith.addi %9, %c864_i32 : i32
      %38 = arith.index_cast %37 : i32 to index
      %c0_26 = arith.constant 0 : index
      %39 = vector.load %arg9[%38, %c0_26] : memref<5376x18xbf16, #tpu.memory_space<vmem>>, vector<128x18xbf16>
      %c4 = arith.constant 4 : index
      %c0_27 = arith.constant 0 : index
      %c0_28 = arith.constant 0 : index
      %40 = vector.load %arg5[%c4, %c0_27, %c0_28] : memref<9x18x128xbf16, #tpu.memory_space<vmem>>, vector<1x18x128xbf16>
      %41 = vector.shape_cast %40 : vector<1x18x128xbf16> to vector<18x128xbf16>
      %cst_29 = arith.constant dense<0.000000e+00> : vector<128x128xf32>
      %42 = tpu.matmul %39, %41, %cst_29 {dimension_numbers = #tpu.dot_dimension_numbers<[1], [0], [0], [1], [0, 0, 1, 1], [], []>} : vector<128x18xbf16>, vector<18x128xbf16>, vector<128x128xf32> -> vector<128x128xf32>
      %43 = arith.addf %36, %42 : vector<128x128xf32>
      %c960_i32 = arith.constant 960 : i32
      %44 = arith.addi %9, %c960_i32 : i32
      %45 = arith.index_cast %44 : i32 to index
      %c0_30 = arith.constant 0 : index
      %46 = vector.load %arg9[%45, %c0_30] : memref<5376x18xbf16, #tpu.memory_space<vmem>>, vector<128x18xbf16>
      %c5 = arith.constant 5 : index
      %c0_31 = arith.constant 0 : index
      %c0_32 = arith.constant 0 : index
      %47 = vector.load %arg5[%c5, %c0_31, %c0_32] : memref<9x18x128xbf16, #tpu.memory_space<vmem>>, vector<1x18x128xbf16>
      %48 = vector.shape_cast %47 : vector<1x18x128xbf16> to vector<18x128xbf16>
      %cst_33 = arith.constant dense<0.000000e+00> : vector<128x128xf32>
      %49 = tpu.matmul %46, %48, %cst_33 {dimension_numbers = #tpu.dot_dimension_numbers<[1], [0], [0], [1], [0, 0, 1, 1], [], []>} : vector<128x18xbf16>, vector<18x128xbf16>, vector<128x128xf32> -> vector<128x128xf32>
      %50 = arith.addf %43, %49 : vector<128x128xf32>
      %c1536_i32 = arith.constant 1536 : i32
      %51 = arith.addi %9, %c1536_i32 : i32
      %52 = arith.index_cast %51 : i32 to index
      %c0_34 = arith.constant 0 : index
      %53 = vector.load %arg9[%52, %c0_34] : memref<5376x18xbf16, #tpu.memory_space<vmem>>, vector<128x18xbf16>
      %c6 = arith.constant 6 : index
      %c0_35 = arith.constant 0 : index
      %c0_36 = arith.constant 0 : index
      %54 = vector.load %arg5[%c6, %c0_35, %c0_36] : memref<9x18x128xbf16, #tpu.memory_space<vmem>>, vector<1x18x128xbf16>
      %55 = vector.shape_cast %54 : vector<1x18x128xbf16> to vector<18x128xbf16>
      %cst_37 = arith.constant dense<0.000000e+00> : vector<128x128xf32>
      %56 = tpu.matmul %53, %55, %cst_37 {dimension_numbers = #tpu.dot_dimension_numbers<[1], [0], [0], [1], [0, 0, 1, 1], [], []>} : vector<128x18xbf16>, vector<18x128xbf16>, vector<128x128xf32> -> vector<128x128xf32>
      %57 = arith.addf %50, %56 : vector<128x128xf32>
      %c1632_i32 = arith.constant 1632 : i32
      %58 = arith.addi %9, %c1632_i32 : i32
      %59 = arith.index_cast %58 : i32 to index
      %c0_38 = arith.constant 0 : index
      %60 = vector.load %arg9[%59, %c0_38] : memref<5376x18xbf16, #tpu.memory_space<vmem>>, vector<128x18xbf16>
      %c7 = arith.constant 7 : index
      %c0_39 = arith.constant 0 : index
      %c0_40 = arith.constant 0 : index
      %61 = vector.load %arg5[%c7, %c0_39, %c0_40] : memref<9x18x128xbf16, #tpu.memory_space<vmem>>, vector<1x18x128xbf16>
      %62 = vector.shape_cast %61 : vector<1x18x128xbf16> to vector<18x128xbf16>
      %cst_41 = arith.constant dense<0.000000e+00> : vector<128x128xf32>
      %63 = tpu.matmul %60, %62, %cst_41 {dimension_numbers = #tpu.dot_dimension_numbers<[1], [0], [0], [1], [0, 0, 1, 1], [], []>} : vector<128x18xbf16>, vector<18x128xbf16>, vector<128x128xf32> -> vector<128x128xf32>
      %64 = arith.addf %57, %63 : vector<128x128xf32>
      %c1728_i32 = arith.constant 1728 : i32
      %65 = arith.addi %9, %c1728_i32 : i32
      %66 = arith.index_cast %65 : i32 to index
      %c0_42 = arith.constant 0 : index
      %67 = vector.load %arg9[%66, %c0_42] : memref<5376x18xbf16, #tpu.memory_space<vmem>>, vector<128x18xbf16>
      %c8 = arith.constant 8 : index
      %c0_43 = arith.constant 0 : index
      %c0_44 = arith.constant 0 : index
      %68 = vector.load %arg5[%c8, %c0_43, %c0_44] : memref<9x18x128xbf16, #tpu.memory_space<vmem>>, vector<1x18x128xbf16>
      %69 = vector.shape_cast %68 : vector<1x18x128xbf16> to vector<18x128xbf16>
      %cst_45 = arith.constant dense<0.000000e+00> : vector<128x128xf32>
      %70 = tpu.matmul %67, %69, %cst_45 {dimension_numbers = #tpu.dot_dimension_numbers<[1], [0], [0], [1], [0, 0, 1, 1], [], []>} : vector<128x18xbf16>, vector<18x128xbf16>, vector<128x128xf32> -> vector<128x128xf32>
      %71 = arith.addf %64, %70 : vector<128x128xf32>
      %72 = vector.extract_strided_slice %71 {offsets = [0, 0], sizes = [128, 4], strides = [1, 1]} : vector<128x128xf32> to vector<128x4xf32>
      %73 = arith.index_cast %9 : i32 to index
      %c0_46 = arith.constant 0 : index
      %74 = vector.load %arg6[%73, %c0_46] : memref<3584x4xf32, #tpu.memory_space<vmem>>, vector<128x4xf32>
      tpu.vector_store %arg6[%73, %c0_46], %72 {strides = array<i32>} : memref<3584x4xf32, #tpu.memory_space<vmem>>, vector<128x4xf32>,
      %75 = arith.index_cast %9 : i32 to index
      %c0_47 = arith.constant 0 : index
      %76 = vector.load %arg4[%75, %c0_47] : memref<3584x1xf32, #tpu.memory_space<vmem>>, vector<128x1xf32>
      %77 = vector.broadcast %76 : vector<128x1xf32> to vector<128x128xf32>
      %78 = arith.mulf %71, %77 : vector<128x128xf32>
      %c0_48 = arith.constant 0 : index
      %c0_49 = arith.constant 0 : index
      %79 = vector.load %arg7[%c0_48, %c0_49] : memref<1x128xf32, #tpu.memory_space<vmem>>, vector<1x128xf32>
      %cst_50 = arith.constant dense<0.000000e+00> : vector<128xf32>
      %80 = vector.multi_reduction <add>, %78, %cst_50 [0] : vector<128x128xf32> to vector<128xf32>
      %81 = vector.shape_cast %80 : vector<128xf32> to vector<1x128xf32>
      %82 = arith.addf %79, %81 : vector<1x128xf32>
      %c0_51 = arith.constant 0 : index
      %c0_52 = arith.constant 0 : index
      %83 = vector.load %arg7[%c0_51, %c0_52] : memref<1x128xf32, #tpu.memory_space<vmem>>, vector<1x128xf32>
      tpu.vector_store %arg7[%c0_51, %c0_52], %82 {strides = array<i32>} : memref<1x128xf32, #tpu.memory_space<vmem>>, vector<1x128xf32>,
      %c0_53 = arith.constant 0 : index
      %c0_54 = arith.constant 0 : index
      %84 = vector.load %arg8[%c0_53, %c0_54] : memref<1x128xf32, #tpu.memory_space<vmem>>, vector<1x128xf32>
      %85 = arith.mulf %78, %71 : vector<128x128xf32>
      %cst_55 = arith.constant dense<0.000000e+00> : vector<128xf32>
      %86 = vector.multi_reduction <add>, %85, %cst_55 [0] : vector<128x128xf32> to vector<128xf32>
      %87 = vector.shape_cast %86 : vector<128xf32> to vector<1x128xf32>
      %88 = arith.addf %84, %87 : vector<1x128xf32>
      %c0_56 = arith.constant 0 : index
      %c0_57 = arith.constant 0 : index
      %89 = vector.load %arg8[%c0_56, %c0_57] : memref<1x128xf32, #tpu.memory_space<vmem>>, vector<1x128xf32>
      tpu.vector_store %arg8[%c0_56, %c0_57], %88 {strides = array<i32>} : memref<1x128xf32, #tpu.memory_space<vmem>>, vector<1x128xf32>,
    }
    %c28_i32_8 = arith.constant 28 : i32
    return
  }
  func.func @transform_0(%arg0: i32, %arg1: i32) -> (i32, i32) {
    %c2_i32 = arith.constant 2 : i32
    %0 = arith.muli %arg0, %c2_i32 : i32
    %1 = arith.addi %0, %arg1 : i32
    %c0_i32 = arith.constant 0 : i32
    %c0_i32_0 = arith.constant 0 : i32
    return %1, %c0_i32 : i32, i32
  }
  func.func @transform_1(%arg0: i32, %arg1: i32) -> (i32, i32) {
    %c2_i32 = arith.constant 2 : i32
    %0 = arith.muli %arg0, %c2_i32 : i32
    %1 = arith.addi %0, %arg1 : i32
    %c1_i32 = arith.constant 1 : i32
    %2 = arith.addi %1, %c1_i32 : i32
    %c2_i32_0 = arith.constant 2 : i32
    %3 = arith.muli %2, %c2_i32_0 : i32
    %c0_i32 = arith.constant 0 : i32
    %c0_i32_1 = arith.constant 0 : i32
    return %3, %c0_i32 : i32, i32
  }
  func.func @transform_2(%arg0: i32, %arg1: i32) -> (i32, i32) {
    %c2_i32 = arith.constant 2 : i32
    %0 = arith.muli %arg0, %c2_i32 : i32
    %1 = arith.addi %0, %arg1 : i32
    %c0_i32 = arith.constant 0 : i32
    %c0_i32_0 = arith.constant 0 : i32
    return %1, %c0_i32 : i32, i32
  }
  func.func @transform_3(%arg0: i32, %arg1: i32) -> (i32, i32, i32) {
    %c0_i32 = arith.constant 0 : i32
    %c0_i32_0 = arith.constant 0 : i32
    %c0_i32_1 = arith.constant 0 : i32
    %c0_i32_2 = arith.constant 0 : i32
    return %c0_i32, %c0_i32_0, %c0_i32_1 : i32, i32, i32
  }
  func.func @transform_4(%arg0: i32, %arg1: i32) -> (i32, i32) {
    %c2_i32 = arith.constant 2 : i32
    %0 = arith.muli %arg0, %c2_i32 : i32
    %1 = arith.addi %0, %arg1 : i32
    %c0_i32 = arith.constant 0 : i32
    %c0_i32_0 = arith.constant 0 : i32
    return %1, %c0_i32 : i32, i32
  }
  func.func @transform_5(%arg0: i32, %arg1: i32) -> (i32, i32) {
    %c0_i32 = arith.constant 0 : i32
    %c0_i32_0 = arith.constant 0 : i32
    return %c0_i32, %arg0 : i32, i32
  }
  func.func @transform_6(%arg0: i32, %arg1: i32) -> (i32, i32) {
    %c0_i32 = arith.constant 0 : i32
    %c0_i32_0 = arith.constant 0 : i32
    return %c0_i32, %arg0 : i32, i32
  }
}

module attributes {stable_mosaic.version = 11 : i64} {
  func.func @_bn_relu_kernel(%arg0: i32, %arg1: memref<3584x4xf32, #tpu.memory_space<vmem>>, %arg2: memref<1x4xf32, #tpu.memory_space<vmem>>, %arg3: memref<1x4xf32, #tpu.memory_space<vmem>>, %arg4: memref<3584x4xf32, #tpu.memory_space<vmem>>) attributes {dimension_semantics = [#tpu.dimension_semantics<parallel>], iteration_bounds = array<i64: 4>, scalar_prefetch = 0 : i64, scratch_operands = 0 : i64, tpu.core_type = #tpu.core_type<tc>, window_params = [{transform_indices = @transform_0, window_bounds = array<i64: 3584, 4>}, {pipeline_mode = #tpu.pipeline_mode<synchronous>, transform_indices = @transform_1, window_bounds = array<i64: 1, 4>}, {pipeline_mode = #tpu.pipeline_mode<synchronous>, transform_indices = @transform_2, window_bounds = array<i64: 1, 4>}, {transform_indices = @transform_3, window_bounds = array<i64: 3584, 4>}]} {
    %c0 = arith.constant 0 : index
    %c0_0 = arith.constant 0 : index
    %0 = vector.load %arg1[%c0, %c0_0] : memref<3584x4xf32, #tpu.memory_space<vmem>>, vector<3584x4xf32>
    %c0_1 = arith.constant 0 : index
    %c0_2 = arith.constant 0 : index
    %1 = vector.load %arg2[%c0_1, %c0_2] : memref<1x4xf32, #tpu.memory_space<vmem>>, vector<1x4xf32>
    %2 = vector.broadcast %1 : vector<1x4xf32> to vector<3584x4xf32>
    %3 = arith.mulf %0, %2 : vector<3584x4xf32>
    %c0_3 = arith.constant 0 : index
    %c0_4 = arith.constant 0 : index
    %4 = vector.load %arg3[%c0_3, %c0_4] : memref<1x4xf32, #tpu.memory_space<vmem>>, vector<1x4xf32>
    %5 = vector.broadcast %4 : vector<1x4xf32> to vector<3584x4xf32>
    %6 = arith.addf %3, %5 : vector<3584x4xf32>
    %cst = arith.constant 0.000000e+00 : f32
    %7 = vector.broadcast %cst : f32 to vector<3584x4xf32>
    %8 = arith.maximumf %6, %7 : vector<3584x4xf32>
    %c0_5 = arith.constant 0 : index
    %c0_6 = arith.constant 0 : index
    %9 = vector.load %arg4[%c0_5, %c0_6] : memref<3584x4xf32, #tpu.memory_space<vmem>>, vector<3584x4xf32>
    tpu.vector_store %arg4[%c0_5, %c0_6], %8 {strides = array<i32>} : memref<3584x4xf32, #tpu.memory_space<vmem>>, vector<3584x4xf32>,
    return
  }
  func.func @transform_0(%arg0: i32) -> (i32, i32) {
    %c0_i32 = arith.constant 0 : i32
    %c0_i32_0 = arith.constant 0 : i32
    return %arg0, %c0_i32 : i32, i32
  }
  func.func @transform_1(%arg0: i32) -> (i32, i32) {
    %c0_i32 = arith.constant 0 : i32
    %c0_i32_0 = arith.constant 0 : i32
    %c0_i32_1 = arith.constant 0 : i32
    return %c0_i32, %c0_i32_0 : i32, i32
  }
  func.func @transform_2(%arg0: i32) -> (i32, i32) {
    %c0_i32 = arith.constant 0 : i32
    %c0_i32_0 = arith.constant 0 : i32
    %c0_i32_1 = arith.constant 0 : i32
    return %c0_i32, %c0_i32_0 : i32, i32
  }
  func.func @transform_3(%arg0: i32) -> (i32, i32) {
    %c0_i32 = arith.constant 0 : i32
    %c0_i32_0 = arith.constant 0 : i32
    return %arg0, %c0_i32 : i32, i32
  }
}

</mosaic_0001>

<llo_original>
// kernel: conv_layer_forward.3
$region0: #{conv_layer_forward.3}
  #allocation0 [shape = 'u32[]', space=smem, size = 0x4, offset = 0x4, fixed_abs, tag = 'smem constant byte address 0x4 - core index']
  #allocation1 [shape = 'u32[144,128]{1,0:T(1,128)}', space=vmem, size = 0x12000, scoped, tag = 'internal scratch']
  %s0 = inlined_call_operand.vmem [shape: f32[14336,4], index: 0, kind: input, shape index: {}]
  %s1 = inlined_call_operand.vmem [shape: f32[1,4], index: 1, kind: input, shape index: {}]
  %s2 = inlined_call_operand.vmem [shape: f32[1,4], index: 2, kind: input, shape index: {}]
  %s3 = inlined_call_operand.vmem [shape: f32[14336,4], index: 3, kind: output, shape index: {}]
  %s4 = sld [smem:[#allocation0]]
  $region45: #{conv_layer_forward.3} parent=0
    _
  %s6 = ssub.s32 1, %s4
  %s7 = scalar_select 0, %s6, %s4
  loop: start=0, step=1, limit=6
  $region2: #{conv_layer_forward.3} parent=0 // loop_pre_header
    _
  $region3: #{conv_layer_forward.3} parent=0 // loop_header
    %s9 = sphi 0, %s13
    %p10 = scmp.ge.s32.totalorder %s9, 6
    %s19 = sphi 0, %s21
    %s22 = sphi 0, %s19
    %s23 = sphi 0, %s22
    %s39 = sphi 0, %s23
    %s43 = sphi 0, %s43
    %s45 = sphi 0, %s43
    %s46 = sphi 0, %s45
    %s60 = sphi 0, %s46
    %s64 = sphi 0, %s64
    %s66 = sphi 0, %s64
    %s67 = sphi 0, %s66
    %s81 = sphi 0, %s67
    %s87 = sphi 0, %s89
    %s90 = sphi 0, %s87
    %s91 = sphi 0, %s90
    %s107 = sphi 0, %s91
  $region4: #{conv_layer_forward.3} parent=0 // loop_header_branch
    %12 = sbr.rel (%p10) target = $region8
  $region5: #{conv_layer_forward.3} parent=0 // loop_body
    %s14 = ssub.s32 %s9, 1
    %s15 = ssub.s32 %s9, 2
    %s16 = sadd.s32 %s9, 1
    %s17 = ssub.s32 %s9, %s16
    %p18 = scmp.eq.s32.totalorder %s17, 0
    %s20 = sadd.s32 %s19, 1
    %s21 = scalar_select %p18, %s19, %s20
    %p24 = pneg %p18
    %p25 = scmp.eq.s32.totalorder %s9, 3
    %p26 = por %p24, %p25
    %p27 = scmp.ne.s32.totalorder %s19, %s22
    %p28 = scmp.eq.s32.totalorder %s9, 0
    %p29 = por %p27, %p28
    %p30 = scmp.ne.s32.totalorder %s19, %s22
    %p31 = scmp.eq.s32.totalorder %s14, 3
    %p32 = por %p30, %p31
    %p33 = scmp.ne.s32.totalorder %s22, %s23
    %p34 = scmp.eq.s32.totalorder %s14, 0
    %p35 = por %p33, %p34
    %p36 = scmp.ne.s32.totalorder %s22, %s23
    %p37 = scmp.eq.s32.totalorder %s15, 3
    %p38 = por %p36, %p37
    %p40 = scmp.ne.s32.totalorder %s23, %s39
    %p41 = scmp.eq.s32.totalorder %s15, 0
    %p42 = por %p40, %p41
    %s44 = sadd.s32 %s43, 1
    %p47 = scmp.eq.s32.totalorder %s9, 3
    %p48 = scmp.ne.s32.totalorder %s43, %s45
    %p49 = scmp.eq.s32.totalorder %s9, 0
    %p50 = por %p48, %p49
    %p51 = scmp.ne.s32.totalorder %s43, %s45
    %p52 = scmp.eq.s32.totalorder %s14, 3
    %p53 = por %p51, %p52
    %p54 = scmp.ne.s32.totalorder %s45, %s46
    %p55 = scmp.eq.s32.totalorder %s14, 0
    %p56 = por %p54, %p55
    %p57 = scmp.ne.s32.totalorder %s45, %s46
    %p58 = scmp.eq.s32.totalorder %s15, 3
    %p59 = por %p57, %p58
    %p61 = scmp.ne.s32.totalorder %s46, %s60
    %p62 = scmp.eq.s32.totalorder %s15, 0
    %p63 = por %p61, %p62
    %s65 = sadd.s32 %s64, 1
    %p68 = scmp.eq.s32.totalorder %s9, 3
    %p69 = scmp.ne.s32.totalorder %s64, %s66
    %p70 = scmp.eq.s32.totalorder %s9, 0
    %p71 = por %p69, %p70
    %p72 = scmp.ne.s32.totalorder %s64, %s66
    %p73 = scmp.eq.s32.totalorder %s14, 3
    %p74 = por %p72, %p73
    %p75 = scmp.ne.s32.totalorder %s66, %s67
    %p76 = scmp.eq.s32.totalorder %s14, 0
    %p77 = por %p75, %p76
    %p78 = scmp.ne.s32.totalorder %s66, %s67
    %p79 = scmp.eq.s32.totalorder %s15, 3
    %p80 = por %p78, %p79
    %p82 = scmp.ne.s32.totalorder %s67, %s81
    %p83 = scmp.eq.s32.totalorder %s15, 0
    %p84 = por %p82, %p83
    %s85 = ssub.s32 %s9, %s16
    %p86 = scmp.eq.s32.totalorder %s85, 0
    %s88 = sadd.s32 %s87, 1
    %s89 = scalar_select %p86, %s87, %s88
    %p92 = pneg %p86
    %p93 = scmp.eq.s32.totalorder %s9, 3
    %p94 = por %p92, %p93
    %p95 = scmp.ne.s32.totalorder %s87, %s90
    %p96 = scmp.eq.s32.totalorder %s9, 0
    %p97 = por %p95, %p96
    %p98 = scmp.ne.s32.totalorder %s87, %s90
    %p99 = scmp.eq.s32.totalorder %s14, 3
    %p100 = por %p98, %p99
    %p101 = scmp.ne.s32.totalorder %s90, %s91
    %p102 = scmp.eq.s32.totalorder %s14, 0
    %p103 = por %p101, %p102
    %p104 = scmp.ne.s32.totalorder %s90, %s91
    %p105 = scmp.eq.s32.totalorder %s15, 3
    %p106 = por %p104, %p105
    %p108 = scmp.ne.s32.totalorder %s91, %s107
    %p109 = scmp.eq.s32.totalorder %s15, 0
    %p110 = por %p108, %p109
    %p111 = scmp.le.s32.totalorder 1, %s9
    %p112 = scmp.lt.s32.totalorder %s9, 5
    %p113 = pnand %p111, %p112
    %p114 = pneg %p113
    // Predicated region
    $region9: #{conv_layer_forward.3} parent=5 // pred_check
      _
    $region10: #{conv_layer_forward.3} parent=5 // pred_check_branch
      %116 = sbr.rel (%p113) target = $region12
    $region11: #{conv_layer_forward.3} parent=5 // pred_region
      %s117 = ssub.s32 %s9, 1
      // Predicated region
      $region13: #{conv_layer_forward.3} parent=11 // pred_check
        %p118 = pneg %p56
      $region14: #{conv_layer_forward.3} parent=11 // pred_check_branch
        %120 = sbr.rel (%p118) target = $region16
      $region15: #{conv_layer_forward.3} parent=11 // pred_region
        _
      $region16: #{conv_layer_forward.3} parent=11 // pred_fallthru
        _
      // Predicated region
      $region17: #{conv_layer_forward.3} parent=11 // pred_check
        %p121 = pneg %p77
      $region18: #{conv_layer_forward.3} parent=11 // pred_check_branch
        %123 = sbr.rel (%p121) target = $region20
      $region19: #{conv_layer_forward.3} parent=11 // pred_region
        _
      $region20: #{conv_layer_forward.3} parent=11 // pred_fallthru
        _
    $region12: #{conv_layer_forward.3} parent=5 // pred_fallthru
      _
    %p124 = scmp.lt.s32.totalorder %s9, 4
    // Predicated region
    $region21: #{conv_layer_forward.3} parent=5 // pred_check
      %p125 = pneg %p124
    $region22: #{conv_layer_forward.3} parent=5 // pred_check_branch
      %127 = sbr.rel (%p125) target = $region24
    $region23: #{conv_layer_forward.3} parent=5 // pred_region
      // Predicated region
      $region25: #{conv_layer_forward.3} parent=23 // pred_check
        %p128 = pneg %p29
      $region26: #{conv_layer_forward.3} parent=23 // pred_check_branch
        %130 = sbr.rel (%p128) target = $region28
      $region27: #{conv_layer_forward.3} parent=23 // pred_region
        %s131 = smul.u32 448, %s9
        %p132 = scmp.lt.s32.totalorder %s131, 1791
        %s133 = scalar_select %p132, %s131, 1791
        %s134 = smul.addr %s133, 8
        %s135 = scalar_lea.vmem %s0, %s134
        %s136 = smul.u32 448, %s9
      $region28: #{conv_layer_forward.3} parent=23 // pred_fallthru
        _
    $region24: #{conv_layer_forward.3} parent=5 // pred_fallthru
      _
    %p137 = scmp.le.s32.totalorder 1, %s9
    %p138 = scmp.lt.s32.totalorder %s9, 5
    %p139 = pnand %p137, %p138
    %p140 = pneg %p139
    // Predicated region
    $region29: #{conv_layer_forward.3} parent=5 // pred_check
      _
    $region30: #{conv_layer_forward.3} parent=5 // pred_check_branch
      %142 = sbr.rel (%p139) target = $region32
    $region31: #{conv_layer_forward.3} parent=5 // pred_region
      %s143 = ssub.s32 %s9, 1
      %s144 = smul.u32 448, %s14
      %p145 = scmp.lt.s32.totalorder %s144, 1791
      %s146 = scalar_select %p145, %s144, 1791
      %s147 = smul.addr %s146, 8
      %s148 = scalar_lea.vmem %s0, %s147
      %p149 = pneg %p35
      %p150 = pneg %p32
      %p151 = pneg %p56
      %p152 = pneg %p53
      %p153 = pneg %p77
      %p154 = pneg %p74
      %p155 = pneg %p103
      %p156 = pneg %p100
      %s157 = smul.u32 448, %s14
      %p158 = scmp.lt.s32.totalorder %s157, 1791
      %s159 = scalar_select %p158, %s157, 1791
      %s160 = smul.addr %s159, 8
      %s161 = scalar_lea.vmem %s3, %s160
      %s162 = smul.u32 448, %s14
      %p163 = scmp.lt.s32.totalorder %s162, 1791
      %s164 = scalar_select %p163, %s162, 1791
      %s165 = smul.addr %s164, 8
      %s166 = scalar_lea.vmem %s0, %s165
      %s167 = smul.u32 448, %s14
      %s168 = smul.u32 448, %s14
      %p169 = scmp.lt.s32.totalorder %s168, 1791
      %s170 = scalar_select %p169, %s168, 1791
      %s171 = smul.addr %s170, 8
      %s172 = scalar_lea.vmem %s3, %s171
      %s173 = smul.u32 448, %s14
      %v174 = vld [vmem:[%s166] sm:$0xff]
      %v175 = vld [vmem:[%s166 + $0x8] sm:$0xff]
      %v176 = vld [vmem:[%s166 + $0x10] sm:$0xff]
      %v177 = vld [vmem:[%s166 + $0x18] sm:$0xff]
      %v178 = vld [vmem:[%s166 + $0x20] sm:$0xff]
      %v179 = vld [vmem:[%s166 + $0x28] sm:$0xff]
      %v180 = vld [vmem:[%s166 + $0x30] sm:$0xff]
      %v181 = vld [vmem:[%s166 + $0x38] sm:$0xff]
      %v182 = vld [vmem:[%s166 + $0x40] sm:$0xff]
      %v183 = vld [vmem:[%s166 + $0x48] sm:$0xff]
      %v184 = vld [vmem:[%s166 + $0x50] sm:$0xff]
      %v185 = vld [vmem:[%s166 + $0x58] sm:$0xff]
      %v186 = vld [vmem:[%s166 + $0x60] sm:$0xff]
      %v187 = vld [vmem:[%s166 + $0x68] sm:$0xff]
      %v188 = vld [vmem:[%s166 + $0x70] sm:$0xff]
      %v189 = vld [vmem:[%s166 + $0x78] sm:$0xff]
      %v190 = vld [vmem:[%s166 + $0x80] sm:$0xff]
      %v191 = vld [vmem:[%s166 + $0x88] sm:$0xff]
      %v192 = vld [vmem:[%s166 + $0x90] sm:$0xff]
      %v193 = vld [vmem:[%s166 + $0x98] sm:$0xff]
      %v194 = vld [vmem:[%s166 + $0xa0] sm:$0xff]
      %v195 = vld [vmem:[%s166 + $0xa8] sm:$0xff]
      %v196 = vld [vmem:[%s166 + $0xb0] sm:$0xff]
      %v197 = vld [vmem:[%s166 + $0xb8] sm:$0xff]
      %v198 = vld [vmem:[%s166 + $0xc0] sm:$0xff]
      %v199 = vld [vmem:[%s166 + $0xc8] sm:$0xff]
      %v200 = vld [vmem:[%s166 + $0xd0] sm:$0xff]
      %v201 = vld [vmem:[%s166 + $0xd8] sm:$0xff]
      %v202 = vld [vmem:[%s166 + $0xe0] sm:$0xff]
      %v203 = vld [vmem:[%s166 + $0xe8] sm:$0xff]
      %v204 = vld [vmem:[%s166 + $0xf0] sm:$0xff]
      %v205 = vld [vmem:[%s166 + $0xf8] sm:$0xff]
      %v206 = vld [vmem:[%s166 + $0x100] sm:$0xff]
      %v207 = vld [vmem:[%s166 + $0x108] sm:$0xff]
      %v208 = vld [vmem:[%s166 + $0x110] sm:$0xff]
      %v209 = vld [vmem:[%s166 + $0x118] sm:$0xff]
      %v210 = vld [vmem:[%s166 + $0x120] sm:$0xff]
      %v211 = vld [vmem:[%s166 + $0x128] sm:$0xff]
      %v212 = vld [vmem:[%s166 + $0x130] sm:$0xff]
      %v213 = vld [vmem:[%s166 + $0x138] sm:$0xff]
      %v214 = vld [vmem:[%s166 + $0x140] sm:$0xff]
      %v215 = vld [vmem:[%s166 + $0x148] sm:$0xff]
      %v216 = vld [vmem:[%s166 + $0x150] sm:$0xff]
      %v217 = vld [vmem:[%s166 + $0x158] sm:$0xff]
      %v218 = vld [vmem:[%s166 + $0x160] sm:$0xff]
      %v219 = vld [vmem:[%s166 + $0x168] sm:$0xff]
      %v220 = vld [vmem:[%s166 + $0x170] sm:$0xff]
      %v221 = vld [vmem:[%s166 + $0x178] sm:$0xff]
      %v222 = vld [vmem:[%s166 + $0x180] sm:$0xff]
      %v223 = vld [vmem:[%s166 + $0x188] sm:$0xff]
      %v224 = vld [vmem:[%s166 + $0x190] sm:$0xff]
      %v225 = vld [vmem:[%s166 + $0x198] sm:$0xff]
      %v226 = vld [vmem:[%s166 + $0x1a0] sm:$0xff]
      %v227 = vld [vmem:[%s166 + $0x1a8] sm:$0xff]
      %v228 = vld [vmem:[%s166 + $0x1b0] sm:$0xff]
      %v229 = vld [vmem:[%s166 + $0x1b8] sm:$0xff]
      %v230 = vld [vmem:[%s166 + $0x1c0] sm:$0xff]
      %v231 = vld [vmem:[%s166 + $0x1c8] sm:$0xff]
      %v232 = vld [vmem:[%s166 + $0x1d0] sm:$0xff]
      %v233 = vld [vmem:[%s166 + $0x1d8] sm:$0xff]
      %v234 = vld [vmem:[%s166 + $0x1e0] sm:$0xff]
      %v235 = vld [vmem:[%s166 + $0x1e8] sm:$0xff]
      %v236 = vld [vmem:[%s166 + $0x1f0] sm:$0xff]
      %v237 = vld [vmem:[%s166 + $0x1f8] sm:$0xff]
      %v238 = vld [vmem:[%s166 + $0x200] sm:$0xff]
      %v239 = vld [vmem:[%s166 + $0x208] sm:$0xff]
      %v240 = vld [vmem:[%s166 + $0x210] sm:$0xff]
      %v241 = vld [vmem:[%s166 + $0x218] sm:$0xff]
      %v242 = vld [vmem:[%s166 + $0x220] sm:$0xff]
      %v243 = vld [vmem:[%s166 + $0x228] sm:$0xff]
      %v244 = vld [vmem:[%s166 + $0x230] sm:$0xff]
      %v245 = vld [vmem:[%s166 + $0x238] sm:$0xff]
      %v246 = vld [vmem:[%s166 + $0x240] sm:$0xff]
      %v247 = vld [vmem:[%s166 + $0x248] sm:$0xff]
      %v248 = vld [vmem:[%s166 + $0x250] sm:$0xff]
      %v249 = vld [vmem:[%s166 + $0x258] sm:$0xff]
      %v250 = vld [vmem:[%s166 + $0x260] sm:$0xff]
      %v251 = vld [vmem:[%s166 + $0x268] sm:$0xff]
      %v252 = vld [vmem:[%s166 + $0x270] sm:$0xff]
      %v253 = vld [vmem:[%s166 + $0x278] sm:$0xff]
      %v254 = vld [vmem:[%s166 + $0x280] sm:$0xff]
      %v255 = vld [vmem:[%s166 + $0x288] sm:$0xff]
      %v256 = vld [vmem:[%s166 + $0x290] sm:$0xff]
      %v257 = vld [vmem:[%s166 + $0x298] sm:$0xff]
      %v258 = vld [vmem:[%s166 + $0x2a0] sm:$0xff]
      %v259 = vld [vmem:[%s166 + $0x2a8] sm:$0xff]
      %v260 = vld [vmem:[%s166 + $0x2b0] sm:$0xff]
      %v261 = vld [vmem:[%s166 + $0x2b8] sm:$0xff]
      %v262 = vld [vmem:[%s166 + $0x2c0] sm:$0xff]
      %v263 = vld [vmem:[%s166 + $0x2c8] sm:$0xff]
      %v264 = vld [vmem:[%s166 + $0x2d0] sm:$0xff]
      %v265 = vld [vmem:[%s166 + $0x2d8] sm:$0xff]
      %v266 = vld [vmem:[%s166 + $0x2e0] sm:$0xff]
      %v267 = vld [vmem:[%s166 + $0x2e8] sm:$0xff]
      %v268 = vld [vmem:[%s166 + $0x2f0] sm:$0xff]
      %v269 = vld [vmem:[%s166 + $0x2f8] sm:$0xff]
      %v270 = vld [vmem:[%s166 + $0x300] sm:$0xff]
      %v271 = vld [vmem:[%s166 + $0x308] sm:$0xff]
      %v272 = vld [vmem:[%s166 + $0x310] sm:$0xff]
      %v273 = vld [vmem:[%s166 + $0x318] sm:$0xff]
      %v274 = vld [vmem:[%s166 + $0x320] sm:$0xff]
      %v275 = vld [vmem:[%s166 + $0x328] sm:$0xff]
      %v276 = vld [vmem:[%s166 + $0x330] sm:$0xff]
      %v277 = vld [vmem:[%s166 + $0x338] sm:$0xff]
      %v278 = vld [vmem:[%s166 + $0x340] sm:$0xff]
      %v279 = vld [vmem:[%s166 + $0x348] sm:$0xff]
      %v280 = vld [vmem:[%s166 + $0x350] sm:$0xff]
      %v281 = vld [vmem:[%s166 + $0x358] sm:$0xff]
      %v282 = vld [vmem:[%s166 + $0x360] sm:$0xff]
      %v283 = vld [vmem:[%s166 + $0x368] sm:$0xff]
      %v284 = vld [vmem:[%s166 + $0x370] sm:$0xff]
      %v285 = vld [vmem:[%s166 + $0x378] sm:$0xff]
      %v286 = vld [vmem:[%s166 + $0x380] sm:$0xff]
      %v287 = vld [vmem:[%s166 + $0x388] sm:$0xff]
      %v288 = vld [vmem:[%s166 + $0x390] sm:$0xff]
      %v289 = vld [vmem:[%s166 + $0x398] sm:$0xff]
      %v290 = vld [vmem:[%s166 + $0x3a0] sm:$0xff]
      %v291 = vld [vmem:[%s166 + $0x3a8] sm:$0xff]
      %v292 = vld [vmem:[%s166 + $0x3b0] sm:$0xff]
      %v293 = vld [vmem:[%s166 + $0x3b8] sm:$0xff]
      %v294 = vld [vmem:[%s166 + $0x3c0] sm:$0xff]
      %v295 = vld [vmem:[%s166 + $0x3c8] sm:$0xff]
      %v296 = vld [vmem:[%s166 + $0x3d0] sm:$0xff]
      %v297 = vld [vmem:[%s166 + $0x3d8] sm:$0xff]
      %v298 = vld [vmem:[%s166 + $0x3e0] sm:$0xff]
      %v299 = vld [vmem:[%s166 + $0x3e8] sm:$0xff]
      %v300 = vld [vmem:[%s166 + $0x3f0] sm:$0xff]
      %v301 = vld [vmem:[%s166 + $0x3f8] sm:$0xff]
      %v302 = vld [vmem:[%s166 + $0x400] sm:$0xff]
      %v303 = vld [vmem:[%s166 + $0x408] sm:$0xff]
      %v304 = vld [vmem:[%s166 + $0x410] sm:$0xff]
      %v305 = vld [vmem:[%s166 + $0x418] sm:$0xff]
      %v306 = vld [vmem:[%s166 + $0x420] sm:$0xff]
      %v307 = vld [vmem:[%s166 + $0x428] sm:$0xff]
      %v308 = vld [vmem:[%s166 + $0x430] sm:$0xff]
      %v309 = vld [vmem:[%s166 + $0x438] sm:$0xff]
      %v310 = vld [vmem:[%s166 + $0x440] sm:$0xff]
      %v311 = vld [vmem:[%s166 + $0x448] sm:$0xff]
      %v312 = vld [vmem:[%s166 + $0x450] sm:$0xff]
      %v313 = vld [vmem:[%s166 + $0x458] sm:$0xff]
      %v314 = vld [vmem:[%s166 + $0x460] sm:$0xff]
      %v315 = vld [vmem:[%s166 + $0x468] sm:$0xff]
      %v316 = vld [vmem:[%s166 + $0x470] sm:$0xff]
      %v317 = vld [vmem:[%s166 + $0x478] sm:$0xff]
      %v318 = vld [vmem:[%s166 + $0x480] sm:$0xff]
      %v319 = vld [vmem:[%s166 + $0x488] sm:$0xff]
      %v320 = vld [vmem:[%s166 + $0x490] sm:$0xff]
      %v321 = vld [vmem:[%s166 + $0x498] sm:$0xff]
      %v322 = vld [vmem:[%s166 + $0x4a0] sm:$0xff]
      %v323 = vld [vmem:[%s166 + $0x4a8] sm:$0xff]
      %v324 = vld [vmem:[%s166 + $0x4b0] sm:$0xff]
      %v325 = vld [vmem:[%s166 + $0x4b8] sm:$0xff]
      %v326 = vld [vmem:[%s166 + $0x4c0] sm:$0xff]
      %v327 = vld [vmem:[%s166 + $0x4c8] sm:$0xff]
      %v328 = vld [vmem:[%s166 + $0x4d0] sm:$0xff]
      %v329 = vld [vmem:[%s166 + $0x4d8] sm:$0xff]
      %v330 = vld [vmem:[%s166 + $0x4e0] sm:$0xff]
      %v331 = vld [vmem:[%s166 + $0x4e8] sm:$0xff]
      %v332 = vld [vmem:[%s166 + $0x4f0] sm:$0xff]
      %v333 = vld [vmem:[%s166 + $0x4f8] sm:$0xff]
      %v334 = vld [vmem:[%s166 + $0x500] sm:$0xff]
      %v335 = vld [vmem:[%s166 + $0x508] sm:$0xff]
      %v336 = vld [vmem:[%s166 + $0x510] sm:$0xff]
      %v337 = vld [vmem:[%s166 + $0x518] sm:$0xff]
      %v338 = vld [vmem:[%s166 + $0x520] sm:$0xff]
      %v339 = vld [vmem:[%s166 + $0x528] sm:$0xff]
      %v340 = vld [vmem:[%s166 + $0x530] sm:$0xff]
      %v341 = vld [vmem:[%s166 + $0x538] sm:$0xff]
      %v342 = vld [vmem:[%s166 + $0x540] sm:$0xff]
      %v343 = vld [vmem:[%s166 + $0x548] sm:$0xff]
      %v344 = vld [vmem:[%s166 + $0x550] sm:$0xff]
      %v345 = vld [vmem:[%s166 + $0x558] sm:$0xff]
      %v346 = vld [vmem:[%s166 + $0x560] sm:$0xff]
      %v347 = vld [vmem:[%s166 + $0x568] sm:$0xff]
      %v348 = vld [vmem:[%s166 + $0x570] sm:$0xff]
      %v349 = vld [vmem:[%s166 + $0x578] sm:$0xff]
      %v350 = vld [vmem:[%s166 + $0x580] sm:$0xff]
      %v351 = vld [vmem:[%s166 + $0x588] sm:$0xff]
      %v352 = vld [vmem:[%s166 + $0x590] sm:$0xff]
      %v353 = vld [vmem:[%s166 + $0x598] sm:$0xff]
      %v354 = vld [vmem:[%s166 + $0x5a0] sm:$0xff]
      %v355 = vld [vmem:[%s166 + $0x5a8] sm:$0xff]
      %v356 = vld [vmem:[%s166 + $0x5b0] sm:$0xff]
      %v357 = vld [vmem:[%s166 + $0x5b8] sm:$0xff]
      %v358 = vld [vmem:[%s166 + $0x5c0] sm:$0xff]
      %v359 = vld [vmem:[%s166 + $0x5c8] sm:$0xff]
      %v360 = vld [vmem:[%s166 + $0x5d0] sm:$0xff]
      %v361 = vld [vmem:[%s166 + $0x5d8] sm:$0xff]
      %v362 = vld [vmem:[%s166 + $0x5e0] sm:$0xff]
      %v363 = vld [vmem:[%s166 + $0x5e8] sm:$0xff]
      %v364 = vld [vmem:[%s166 + $0x5f0] sm:$0xff]
      %v365 = vld [vmem:[%s166 + $0x5f8] sm:$0xff]
      %v366 = vld [vmem:[%s166 + $0x600] sm:$0xff]
      %v367 = vld [vmem:[%s166 + $0x608] sm:$0xff]
      %v368 = vld [vmem:[%s166 + $0x610] sm:$0xff]
      %v369 = vld [vmem:[%s166 + $0x618] sm:$0xff]
      %v370 = vld [vmem:[%s166 + $0x620] sm:$0xff]
      %v371 = vld [vmem:[%s166 + $0x628] sm:$0xff]
      %v372 = vld [vmem:[%s166 + $0x630] sm:$0xff]
      %v373 = vld [vmem:[%s166 + $0x638] sm:$0xff]
      %v374 = vld [vmem:[%s166 + $0x640] sm:$0xff]
      %v375 = vld [vmem:[%s166 + $0x648] sm:$0xff]
      %v376 = vld [vmem:[%s166 + $0x650] sm:$0xff]
      %v377 = vld [vmem:[%s166 + $0x658] sm:$0xff]
      %v378 = vld [vmem:[%s166 + $0x660] sm:$0xff]
      %v379 = vld [vmem:[%s166 + $0x668] sm:$0xff]
      %v380 = vld [vmem:[%s166 + $0x670] sm:$0xff]
      %v381 = vld [vmem:[%s166 + $0x678] sm:$0xff]
      %v382 = vld [vmem:[%s166 + $0x680] sm:$0xff]
      %v383 = vld [vmem:[%s166 + $0x688] sm:$0xff]
      %v384 = vld [vmem:[%s166 + $0x690] sm:$0xff]
      %v385 = vld [vmem:[%s166 + $0x698] sm:$0xff]
      %v386 = vld [vmem:[%s166 + $0x6a0] sm:$0xff]
      %v387 = vld [vmem:[%s166 + $0x6a8] sm:$0xff]
      %v388 = vld [vmem:[%s166 + $0x6b0] sm:$0xff]
      %v389 = vld [vmem:[%s166 + $0x6b8] sm:$0xff]
      %v390 = vld [vmem:[%s166 + $0x6c0] sm:$0xff]
      %v391 = vld [vmem:[%s166 + $0x6c8] sm:$0xff]
      %v392 = vld [vmem:[%s166 + $0x6d0] sm:$0xff]
      %v393 = vld [vmem:[%s166 + $0x6d8] sm:$0xff]
      %v394 = vld [vmem:[%s166 + $0x6e0] sm:$0xff]
      %v395 = vld [vmem:[%s166 + $0x6e8] sm:$0xff]
      %v396 = vld [vmem:[%s166 + $0x6f0] sm:$0xff]
      %v397 = vld [vmem:[%s166 + $0x6f8] sm:$0xff]
      %v398 = vld [vmem:[%s166 + $0x700] sm:$0xff]
      %v399 = vld [vmem:[%s166 + $0x708] sm:$0xff]
      %v400 = vld [vmem:[%s166 + $0x710] sm:$0xff]
      %v401 = vld [vmem:[%s166 + $0x718] sm:$0xff]
      %v402 = vld [vmem:[%s166 + $0x720] sm:$0xff]
      %v403 = vld [vmem:[%s166 + $0x728] sm:$0xff]
      %v404 = vld [vmem:[%s166 + $0x730] sm:$0xff]
      %v405 = vld [vmem:[%s166 + $0x738] sm:$0xff]
      %v406 = vld [vmem:[%s166 + $0x740] sm:$0xff]
      %v407 = vld [vmem:[%s166 + $0x748] sm:$0xff]
      %v408 = vld [vmem:[%s166 + $0x750] sm:$0xff]
      %v409 = vld [vmem:[%s166 + $0x758] sm:$0xff]
      %v410 = vld [vmem:[%s166 + $0x760] sm:$0xff]
      %v411 = vld [vmem:[%s166 + $0x768] sm:$0xff]
      %v412 = vld [vmem:[%s166 + $0x770] sm:$0xff]
      %v413 = vld [vmem:[%s166 + $0x778] sm:$0xff]
      %v414 = vld [vmem:[%s166 + $0x780] sm:$0xff]
      %v415 = vld [vmem:[%s166 + $0x788] sm:$0xff]
      %v416 = vld [vmem:[%s166 + $0x790] sm:$0xff]
      %v417 = vld [vmem:[%s166 + $0x798] sm:$0xff]
      %v418 = vld [vmem:[%s166 + $0x7a0] sm:$0xff]
      %v419 = vld [vmem:[%s166 + $0x7a8] sm:$0xff]
      %v420 = vld [vmem:[%s166 + $0x7b0] sm:$0xff]
      %v421 = vld [vmem:[%s166 + $0x7b8] sm:$0xff]
      %v422 = vld [vmem:[%s166 + $0x7c0] sm:$0xff]
      %v423 = vld [vmem:[%s166 + $0x7c8] sm:$0xff]
      %v424 = vld [vmem:[%s166 + $0x7d0] sm:$0xff]
      %v425 = vld [vmem:[%s166 + $0x7d8] sm:$0xff]
      %v426 = vld [vmem:[%s166 + $0x7e0] sm:$0xff]
      %v427 = vld [vmem:[%s166 + $0x7e8] sm:$0xff]
      %v428 = vld [vmem:[%s166 + $0x7f0] sm:$0xff]
      %v429 = vld [vmem:[%s166 + $0x7f8] sm:$0xff]
      %v430 = vld [vmem:[%s166 + $0x800] sm:$0xff]
      %v431 = vld [vmem:[%s166 + $0x808] sm:$0xff]
      %v432 = vld [vmem:[%s166 + $0x810] sm:$0xff]
      %v433 = vld [vmem:[%s166 + $0x818] sm:$0xff]
      %v434 = vld [vmem:[%s166 + $0x820] sm:$0xff]
      %v435 = vld [vmem:[%s166 + $0x828] sm:$0xff]
      %v436 = vld [vmem:[%s166 + $0x830] sm:$0xff]
      %v437 = vld [vmem:[%s166 + $0x838] sm:$0xff]
      %v438 = vld [vmem:[%s166 + $0x840] sm:$0xff]
      %v439 = vld [vmem:[%s166 + $0x848] sm:$0xff]
      %v440 = vld [vmem:[%s166 + $0x850] sm:$0xff]
      %v441 = vld [vmem:[%s166 + $0x858] sm:$0xff]
      %v442 = vld [vmem:[%s166 + $0x860] sm:$0xff]
      %v443 = vld [vmem:[%s166 + $0x868] sm:$0xff]
      %v444 = vld [vmem:[%s166 + $0x870] sm:$0xff]
      %v445 = vld [vmem:[%s166 + $0x878] sm:$0xff]
      %v446 = vld [vmem:[%s166 + $0x880] sm:$0xff]
      %v447 = vld [vmem:[%s166 + $0x888] sm:$0xff]
      %v448 = vld [vmem:[%s166 + $0x890] sm:$0xff]
      %v449 = vld [vmem:[%s166 + $0x898] sm:$0xff]
      %v450 = vld [vmem:[%s166 + $0x8a0] sm:$0xff]
      %v451 = vld [vmem:[%s166 + $0x8a8] sm:$0xff]
      %v452 = vld [vmem:[%s166 + $0x8b0] sm:$0xff]
      %v453 = vld [vmem:[%s166 + $0x8b8] sm:$0xff]
      %v454 = vld [vmem:[%s166 + $0x8c0] sm:$0xff]
      %v455 = vld [vmem:[%s166 + $0x8c8] sm:$0xff]
      %v456 = vld [vmem:[%s166 + $0x8d0] sm:$0xff]
      %v457 = vld [vmem:[%s166 + $0x8d8] sm:$0xff]
      %v458 = vld [vmem:[%s166 + $0x8e0] sm:$0xff]
      %v459 = vld [vmem:[%s166 + $0x8e8] sm:$0xff]
      %v460 = vld [vmem:[%s166 + $0x8f0] sm:$0xff]
      %v461 = vld [vmem:[%s166 + $0x8f8] sm:$0xff]
      %v462 = vld [vmem:[%s166 + $0x900] sm:$0xff]
      %v463 = vld [vmem:[%s166 + $0x908] sm:$0xff]
      %v464 = vld [vmem:[%s166 + $0x910] sm:$0xff]
      %v465 = vld [vmem:[%s166 + $0x918] sm:$0xff]
      %v466 = vld [vmem:[%s166 + $0x920] sm:$0xff]
      %v467 = vld [vmem:[%s166 + $0x928] sm:$0xff]
      %v468 = vld [vmem:[%s166 + $0x930] sm:$0xff]
      %v469 = vld [vmem:[%s166 + $0x938] sm:$0xff]
      %v470 = vld [vmem:[%s166 + $0x940] sm:$0xff]
      %v471 = vld [vmem:[%s166 + $0x948] sm:$0xff]
      %v472 = vld [vmem:[%s166 + $0x950] sm:$0xff]
      %v473 = vld [vmem:[%s166 + $0x958] sm:$0xff]
      %v474 = vld [vmem:[%s166 + $0x960] sm:$0xff]
      %v475 = vld [vmem:[%s166 + $0x968] sm:$0xff]
      %v476 = vld [vmem:[%s166 + $0x970] sm:$0xff]
      %v477 = vld [vmem:[%s166 + $0x978] sm:$0xff]
      %v478 = vld [vmem:[%s166 + $0x980] sm:$0xff]
      %v479 = vld [vmem:[%s166 + $0x988] sm:$0xff]
      %v480 = vld [vmem:[%s166 + $0x990] sm:$0xff]
      %v481 = vld [vmem:[%s166 + $0x998] sm:$0xff]
      %v482 = vld [vmem:[%s166 + $0x9a0] sm:$0xff]
      %v483 = vld [vmem:[%s166 + $0x9a8] sm:$0xff]
      %v484 = vld [vmem:[%s166 + $0x9b0] sm:$0xff]
      %v485 = vld [vmem:[%s166 + $0x9b8] sm:$0xff]
      %v486 = vld [vmem:[%s166 + $0x9c0] sm:$0xff]
      %v487 = vld [vmem:[%s166 + $0x9c8] sm:$0xff]
      %v488 = vld [vmem:[%s166 + $0x9d0] sm:$0xff]
      %v489 = vld [vmem:[%s166 + $0x9d8] sm:$0xff]
      %v490 = vld [vmem:[%s166 + $0x9e0] sm:$0xff]
      %v491 = vld [vmem:[%s166 + $0x9e8] sm:$0xff]
      %v492 = vld [vmem:[%s166 + $0x9f0] sm:$0xff]
      %v493 = vld [vmem:[%s166 + $0x9f8] sm:$0xff]
      %v494 = vld [vmem:[%s166 + $0xa00] sm:$0xff]
      %v495 = vld [vmem:[%s166 + $0xa08] sm:$0xff]
      %v496 = vld [vmem:[%s166 + $0xa10] sm:$0xff]
      %v497 = vld [vmem:[%s166 + $0xa18] sm:$0xff]
      %v498 = vld [vmem:[%s166 + $0xa20] sm:$0xff]
      %v499 = vld [vmem:[%s166 + $0xa28] sm:$0xff]
      %v500 = vld [vmem:[%s166 + $0xa30] sm:$0xff]
      %v501 = vld [vmem:[%s166 + $0xa38] sm:$0xff]
      %v502 = vld [vmem:[%s166 + $0xa40] sm:$0xff]
      %v503 = vld [vmem:[%s166 + $0xa48] sm:$0xff]
      %v504 = vld [vmem:[%s166 + $0xa50] sm:$0xff]
      %v505 = vld [vmem:[%s166 + $0xa58] sm:$0xff]
      %v506 = vld [vmem:[%s166 + $0xa60] sm:$0xff]
      %v507 = vld [vmem:[%s166 + $0xa68] sm:$0xff]
      %v508 = vld [vmem:[%s166 + $0xa70] sm:$0xff]
      %v509 = vld [vmem:[%s166 + $0xa78] sm:$0xff]
      %v510 = vld [vmem:[%s166 + $0xa80] sm:$0xff]
      %v511 = vld [vmem:[%s166 + $0xa88] sm:$0xff]
      %v512 = vld [vmem:[%s166 + $0xa90] sm:$0xff]
      %v513 = vld [vmem:[%s166 + $0xa98] sm:$0xff]
      %v514 = vld [vmem:[%s166 + $0xaa0] sm:$0xff]
      %v515 = vld [vmem:[%s166 + $0xaa8] sm:$0xff]
      %v516 = vld [vmem:[%s166 + $0xab0] sm:$0xff]
      %v517 = vld [vmem:[%s166 + $0xab8] sm:$0xff]
      %v518 = vld [vmem:[%s166 + $0xac0] sm:$0xff]
      %v519 = vld [vmem:[%s166 + $0xac8] sm:$0xff]
      %v520 = vld [vmem:[%s166 + $0xad0] sm:$0xff]
      %v521 = vld [vmem:[%s166 + $0xad8] sm:$0xff]
      %v522 = vld [vmem:[%s166 + $0xae0] sm:$0xff]
      %v523 = vld [vmem:[%s166 + $0xae8] sm:$0xff]
      %v524 = vld [vmem:[%s166 + $0xaf0] sm:$0xff]
      %v525 = vld [vmem:[%s166 + $0xaf8] sm:$0xff]
      %v526 = vld [vmem:[%s166 + $0xb00] sm:$0xff]
      %v527 = vld [vmem:[%s166 + $0xb08] sm:$0xff]
      %v528 = vld [vmem:[%s166 + $0xb10] sm:$0xff]
      %v529 = vld [vmem:[%s166 + $0xb18] sm:$0xff]
      %v530 = vld [vmem:[%s166 + $0xb20] sm:$0xff]
      %v531 = vld [vmem:[%s166 + $0xb28] sm:$0xff]
      %v532 = vld [vmem:[%s166 + $0xb30] sm:$0xff]
      %v533 = vld [vmem:[%s166 + $0xb38] sm:$0xff]
      %v534 = vld [vmem:[%s166 + $0xb40] sm:$0xff]
      %v535 = vld [vmem:[%s166 + $0xb48] sm:$0xff]
      %v536 = vld [vmem:[%s166 + $0xb50] sm:$0xff]
      %v537 = vld [vmem:[%s166 + $0xb58] sm:$0xff]
      %v538 = vld [vmem:[%s166 + $0xb60] sm:$0xff]
      %v539 = vld [vmem:[%s166 + $0xb68] sm:$0xff]
      %v540 = vld [vmem:[%s166 + $0xb70] sm:$0xff]
      %v541 = vld [vmem:[%s166 + $0xb78] sm:$0xff]
      %v542 = vld [vmem:[%s166 + $0xb80] sm:$0xff]
      %v543 = vld [vmem:[%s166 + $0xb88] sm:$0xff]
      %v544 = vld [vmem:[%s166 + $0xb90] sm:$0xff]
      %v545 = vld [vmem:[%s166 + $0xb98] sm:$0xff]
      %v546 = vld [vmem:[%s166 + $0xba0] sm:$0xff]
      %v547 = vld [vmem:[%s166 + $0xba8] sm:$0xff]
      %v548 = vld [vmem:[%s166 + $0xbb0] sm:$0xff]
      %v549 = vld [vmem:[%s166 + $0xbb8] sm:$0xff]
      %v550 = vld [vmem:[%s166 + $0xbc0] sm:$0xff]
      %v551 = vld [vmem:[%s166 + $0xbc8] sm:$0xff]
      %v552 = vld [vmem:[%s166 + $0xbd0] sm:$0xff]
      %v553 = vld [vmem:[%s166 + $0xbd8] sm:$0xff]
      %v554 = vld [vmem:[%s166 + $0xbe0] sm:$0xff]
      %v555 = vld [vmem:[%s166 + $0xbe8] sm:$0xff]
      %v556 = vld [vmem:[%s166 + $0xbf0] sm:$0xff]
      %v557 = vld [vmem:[%s166 + $0xbf8] sm:$0xff]
      %v558 = vld [vmem:[%s166 + $0xc00] sm:$0xff]
      %v559 = vld [vmem:[%s166 + $0xc08] sm:$0xff]
      %v560 = vld [vmem:[%s166 + $0xc10] sm:$0xff]
      %v561 = vld [vmem:[%s166 + $0xc18] sm:$0xff]
      %v562 = vld [vmem:[%s166 + $0xc20] sm:$0xff]
      %v563 = vld [vmem:[%s166 + $0xc28] sm:$0xff]
      %v564 = vld [vmem:[%s166 + $0xc30] sm:$0xff]
      %v565 = vld [vmem:[%s166 + $0xc38] sm:$0xff]
      %v566 = vld [vmem:[%s166 + $0xc40] sm:$0xff]
      %v567 = vld [vmem:[%s166 + $0xc48] sm:$0xff]
      %v568 = vld [vmem:[%s166 + $0xc50] sm:$0xff]
      %v569 = vld [vmem:[%s166 + $0xc58] sm:$0xff]
      %v570 = vld [vmem:[%s166 + $0xc60] sm:$0xff]
      %v571 = vld [vmem:[%s166 + $0xc68] sm:$0xff]
      %v572 = vld [vmem:[%s166 + $0xc70] sm:$0xff]
      %v573 = vld [vmem:[%s166 + $0xc78] sm:$0xff]
      %v574 = vld [vmem:[%s166 + $0xc80] sm:$0xff]
      %v575 = vld [vmem:[%s166 + $0xc88] sm:$0xff]
      %v576 = vld [vmem:[%s166 + $0xc90] sm:$0xff]
      %v577 = vld [vmem:[%s166 + $0xc98] sm:$0xff]
      %v578 = vld [vmem:[%s166 + $0xca0] sm:$0xff]
      %v579 = vld [vmem:[%s166 + $0xca8] sm:$0xff]
      %v580 = vld [vmem:[%s166 + $0xcb0] sm:$0xff]
      %v581 = vld [vmem:[%s166 + $0xcb8] sm:$0xff]
      %v582 = vld [vmem:[%s166 + $0xcc0] sm:$0xff]
      %v583 = vld [vmem:[%s166 + $0xcc8] sm:$0xff]
      %v584 = vld [vmem:[%s166 + $0xcd0] sm:$0xff]
      %v585 = vld [vmem:[%s166 + $0xcd8] sm:$0xff]
      %v586 = vld [vmem:[%s166 + $0xce0] sm:$0xff]
      %v587 = vld [vmem:[%s166 + $0xce8] sm:$0xff]
      %v588 = vld [vmem:[%s166 + $0xcf0] sm:$0xff]
      %v589 = vld [vmem:[%s166 + $0xcf8] sm:$0xff]
      %v590 = vld [vmem:[%s166 + $0xd00] sm:$0xff]
      %v591 = vld [vmem:[%s166 + $0xd08] sm:$0xff]
      %v592 = vld [vmem:[%s166 + $0xd10] sm:$0xff]
      %v593 = vld [vmem:[%s166 + $0xd18] sm:$0xff]
      %v594 = vld [vmem:[%s166 + $0xd20] sm:$0xff]
      %v595 = vld [vmem:[%s166 + $0xd28] sm:$0xff]
      %v596 = vld [vmem:[%s166 + $0xd30] sm:$0xff]
      %v597 = vld [vmem:[%s166 + $0xd38] sm:$0xff]
      %v598 = vld [vmem:[%s166 + $0xd40] sm:$0xff]
      %v599 = vld [vmem:[%s166 + $0xd48] sm:$0xff]
      %v600 = vld [vmem:[%s166 + $0xd50] sm:$0xff]
      %v601 = vld [vmem:[%s166 + $0xd58] sm:$0xff]
      %v602 = vld [vmem:[%s166 + $0xd60] sm:$0xff]
      %v603 = vld [vmem:[%s166 + $0xd68] sm:$0xff]
      %v604 = vld [vmem:[%s166 + $0xd70] sm:$0xff]
      %v605 = vld [vmem:[%s166 + $0xd78] sm:$0xff]
      %v606 = vld [vmem:[%s166 + $0xd80] sm:$0xff]
      %v607 = vld [vmem:[%s166 + $0xd88] sm:$0xff]
      %v608 = vld [vmem:[%s166 + $0xd90] sm:$0xff]
      %v609 = vld [vmem:[%s166 + $0xd98] sm:$0xff]
      %v610 = vld [vmem:[%s166 + $0xda0] sm:$0xff]
      %v611 = vld [vmem:[%s166 + $0xda8] sm:$0xff]
      %v612 = vld [vmem:[%s166 + $0xdb0] sm:$0xff]
      %v613 = vld [vmem:[%s166 + $0xdb8] sm:$0xff]
      %v614 = vld [vmem:[%s166 + $0xdc0] sm:$0xff]
      %v615 = vld [vmem:[%s166 + $0xdc8] sm:$0xff]
      %v616 = vld [vmem:[%s166 + $0xdd0] sm:$0xff]
      %v617 = vld [vmem:[%s166 + $0xdd8] sm:$0xff]
      %v618 = vld [vmem:[%s166 + $0xde0] sm:$0xff]
      %v619 = vld [vmem:[%s166 + $0xde8] sm:$0xff]
      %v620 = vld [vmem:[%s166 + $0xdf0] sm:$0xff]
      %v621 = vld [vmem:[%s166 + $0xdf8] sm:$0xff]
      %v622 = vld [vmem:[%s1] sm:$0x1]
      %v624 = vlaneseq
      %v625 = vshrl.u32 %v624, 7
      %v626 = vsub.s32 0, %v625
      %v627 = vrot.slane %v622, %v626
      %v629 = vmul.f32 %v174, %v627
      %v630 = vmul.f32 %v175, %v627
      %v631 = vmul.f32 %v176, %v627
      %v632 = vmul.f32 %v177, %v627
      %v633 = vmul.f32 %v178, %v627
      %v634 = vmul.f32 %v179, %v627
      %v635 = vmul.f32 %v180, %v627
      %v636 = vmul.f32 %v181, %v627
      %v637 = vmul.f32 %v182, %v627
      %v638 = vmul.f32 %v183, %v627
      %v639 = vmul.f32 %v184, %v627
      %v640 = vmul.f32 %v185, %v627
      %v641 = vmul.f32 %v186, %v627
      %v642 = vmul.f32 %v187, %v627
      %v643 = vmul.f32 %v188, %v627
      %v644 = vmul.f32 %v189, %v627
      %v645 = vmul.f32 %v190, %v627
      %v646 = vmul.f32 %v191, %v627
      %v647 = vmul.f32 %v192, %v627
      %v648 = vmul.f32 %v193, %v627
      %v649 = vmul.f32 %v194, %v627
      %v650 = vmul.f32 %v195, %v627
      %v651 = vmul.f32 %v196, %v627
      %v652 = vmul.f32 %v197, %v627
      %v653 = vmul.f32 %v198, %v627
      %v654 = vmul.f32 %v199, %v627
      %v655 = vmul.f32 %v200, %v627
      %v656 = vmul.f32 %v201, %v627
      %v657 = vmul.f32 %v202, %v627
      %v658 = vmul.f32 %v203, %v627
      %v659 = vmul.f32 %v204, %v627
      %v660 = vmul.f32 %v205, %v627
      %v661 = vmul.f32 %v206, %v627
      %v662 = vmul.f32 %v207, %v627
      %v663 = vmul.f32 %v208, %v627
      %v664 = vmul.f32 %v209, %v627
      %v665 = vmul.f32 %v210, %v627
      %v666 = vmul.f32 %v211, %v627
      %v667 = vmul.f32 %v212, %v627
      %v668 = vmul.f32 %v213, %v627
      %v669 = vmul.f32 %v214, %v627
      %v670 = vmul.f32 %v215, %v627
      %v671 = vmul.f32 %v216, %v627
      %v672 = vmul.f32 %v217, %v627
      %v673 = vmul.f32 %v218, %v627
      %v674 = vmul.f32 %v219, %v627
      %v675 = vmul.f32 %v220, %v627
      %v676 = vmul.f32 %v221, %v627
      %v677 = vmul.f32 %v222, %v627
      %v678 = vmul.f32 %v223, %v627
      %v679 = vmul.f32 %v224, %v627
      %v680 = vmul.f32 %v225, %v627
      %v681 = vmul.f32 %v226, %v627
      %v682 = vmul.f32 %v227, %v627
      %v683 = vmul.f32 %v228, %v627
      %v684 = vmul.f32 %v229, %v627
      %v685 = vmul.f32 %v230, %v627
      %v686 = vmul.f32 %v231, %v627
      %v687 = vmul.f32 %v232, %v627
      %v688 = vmul.f32 %v233, %v627
      %v689 = vmul.f32 %v234, %v627
      %v690 = vmul.f32 %v235, %v627
      %v691 = vmul.f32 %v236, %v627
      %v692 = vmul.f32 %v237, %v627
      %v693 = vmul.f32 %v238, %v627
      %v694 = vmul.f32 %v239, %v627
      %v695 = vmul.f32 %v240, %v627
      %v696 = vmul.f32 %v241, %v627
      %v697 = vmul.f32 %v242, %v627
      %v698 = vmul.f32 %v243, %v627
      %v699 = vmul.f32 %v244, %v627
      %v700 = vmul.f32 %v245, %v627
      %v701 = vmul.f32 %v246, %v627
      %v702 = vmul.f32 %v247, %v627
      %v703 = vmul.f32 %v248, %v627
      %v704 = vmul.f32 %v249, %v627
      %v705 = vmul.f32 %v250, %v627
      %v706 = vmul.f32 %v251, %v627
      %v707 = vmul.f32 %v252, %v627
      %v708 = vmul.f32 %v253, %v627
      %v709 = vmul.f32 %v254, %v627
      %v710 = vmul.f32 %v255, %v627
      %v711 = vmul.f32 %v256, %v627
      %v712 = vmul.f32 %v257, %v627
      %v713 = vmul.f32 %v258, %v627
      %v714 = vmul.f32 %v259, %v627
      %v715 = vmul.f32 %v260, %v627
      %v716 = vmul.f32 %v261, %v627
      %v717 = vmul.f32 %v262, %v627
      %v718 = vmul.f32 %v263, %v627
      %v719 = vmul.f32 %v264, %v627
      %v720 = vmul.f32 %v265, %v627
      %v721 = vmul.f32 %v266, %v627
      %v722 = vmul.f32 %v267, %v627
      %v723 = vmul.f32 %v268, %v627
      %v724 = vmul.f32 %v269, %v627
      %v725 = vmul.f32 %v270, %v627
      %v726 = vmul.f32 %v271, %v627
      %v727 = vmul.f32 %v272, %v627
      %v728 = vmul.f32 %v273, %v627
      %v729 = vmul.f32 %v274, %v627
      %v730 = vmul.f32 %v275, %v627
      %v731 = vmul.f32 %v276, %v627
      %v732 = vmul.f32 %v277, %v627
      %v733 = vmul.f32 %v278, %v627
      %v734 = vmul.f32 %v279, %v627
      %v735 = vmul.f32 %v280, %v627
      %v736 = vmul.f32 %v281, %v627
      %v737 = vmul.f32 %v282, %v627
      %v738 = vmul.f32 %v283, %v627
      %v739 = vmul.f32 %v284, %v627
      %v740 = vmul.f32 %v285, %v627
      %v741 = vmul.f32 %v286, %v627
      %v742 = vmul.f32 %v287, %v627
      %v743 = vmul.f32 %v288, %v627
      %v744 = vmul.f32 %v289, %v627
      %v745 = vmul.f32 %v290, %v627
      %v746 = vmul.f32 %v291, %v627
      %v747 = vmul.f32 %v292, %v627
      %v748 = vmul.f32 %v293, %v627
      %v749 = vmul.f32 %v294, %v627
      %v750 = vmul.f32 %v295, %v627
      %v751 = vmul.f32 %v296, %v627
      %v752 = vmul.f32 %v297, %v627
      %v753 = vmul.f32 %v298, %v627
      %v754 = vmul.f32 %v299, %v627
      %v755 = vmul.f32 %v300, %v627
      %v756 = vmul.f32 %v301, %v627
      %v757 = vmul.f32 %v302, %v627
      %v758 = vmul.f32 %v303, %v627
      %v759 = vmul.f32 %v304, %v627
      %v760 = vmul.f32 %v305, %v627
      %v761 = vmul.f32 %v306, %v627
      %v762 = vmul.f32 %v307, %v627
      %v763 = vmul.f32 %v308, %v627
      %v764 = vmul.f32 %v309, %v627
      %v765 = vmul.f32 %v310, %v627
      %v766 = vmul.f32 %v311, %v627
      %v767 = vmul.f32 %v312, %v627
      %v768 = vmul.f32 %v313, %v627
      %v769 = vmul.f32 %v314, %v627
      %v770 = vmul.f32 %v315, %v627
      %v771 = vmul.f32 %v316, %v627
      %v772 = vmul.f32 %v317, %v627
      %v773 = vmul.f32 %v318, %v627
      %v774 = vmul.f32 %v319, %v627
      %v775 = vmul.f32 %v320, %v627
      %v776 = vmul.f32 %v321, %v627
      %v777 = vmul.f32 %v322, %v627
      %v778 = vmul.f32 %v323, %v627
      %v779 = vmul.f32 %v324, %v627
      %v780 = vmul.f32 %v325, %v627
      %v781 = vmul.f32 %v326, %v627
      %v782 = vmul.f32 %v327, %v627
      %v783 = vmul.f32 %v328, %v627
      %v784 = vmul.f32 %v329, %v627
      %v785 = vmul.f32 %v330, %v627
      %v786 = vmul.f32 %v331, %v627
      %v787 = vmul.f32 %v332, %v627
      %v788 = vmul.f32 %v333, %v627
      %v789 = vmul.f32 %v334, %v627
      %v790 = vmul.f32 %v335, %v627
      %v791 = vmul.f32 %v336, %v627
      %v792 = vmul.f32 %v337, %v627
      %v793 = vmul.f32 %v338, %v627
      %v794 = vmul.f32 %v339, %v627
      %v795 = vmul.f32 %v340, %v627
      %v796 = vmul.f32 %v341, %v627
      %v797 = vmul.f32 %v342, %v627
      %v798 = vmul.f32 %v343, %v627
      %v799 = vmul.f32 %v344, %v627
      %v800 = vmul.f32 %v345, %v627
      %v801 = vmul.f32 %v346, %v627
      %v802 = vmul.f32 %v347, %v627
      %v803 = vmul.f32 %v348, %v627
      %v804 = vmul.f32 %v349, %v627
      %v805 = vmul.f32 %v350, %v627
      %v806 = vmul.f32 %v351, %v627
      %v807 = vmul.f32 %v352, %v627
      %v808 = vmul.f32 %v353, %v627
      %v809 = vmul.f32 %v354, %v627
      %v810 = vmul.f32 %v355, %v627
      %v811 = vmul.f32 %v356, %v627
      %v812 = vmul.f32 %v357, %v627
      %v813 = vmul.f32 %v358, %v627
      %v814 = vmul.f32 %v359, %v627
      %v815 = vmul.f32 %v360, %v627
      %v816 = vmul.f32 %v361, %v627
      %v817 = vmul.f32 %v362, %v627
      %v818 = vmul.f32 %v363, %v627
      %v819 = vmul.f32 %v364, %v627
      %v820 = vmul.f32 %v365, %v627
      %v821 = vmul.f32 %v366, %v627
      %v822 = vmul.f32 %v367, %v627
      %v823 = vmul.f32 %v368, %v627
      %v824 = vmul.f32 %v369, %v627
      %v825 = vmul.f32 %v370, %v627
      %v826 = vmul.f32 %v371, %v627
      %v827 = vmul.f32 %v372, %v627
      %v828 = vmul.f32 %v373, %v627
      %v829 = vmul.f32 %v374, %v627
      %v830 = vmul.f32 %v375, %v627
      %v831 = vmul.f32 %v376, %v627
      %v832 = vmul.f32 %v377, %v627
      %v833 = vmul.f32 %v378, %v627
      %v834 = vmul.f32 %v379, %v627
      %v835 = vmul.f32 %v380, %v627
      %v836 = vmul.f32 %v381, %v627
      %v837 = vmul.f32 %v382, %v627
      %v838 = vmul.f32 %v383, %v627
      %v839 = vmul.f32 %v384, %v627
      %v840 = vmul.f32 %v385, %v627
      %v841 = vmul.f32 %v386, %v627
      %v842 = vmul.f32 %v387, %v627
      %v843 = vmul.f32 %v388, %v627
      %v844 = vmul.f32 %v389, %v627
      %v845 = vmul.f32 %v390, %v627
      %v846 = vmul.f32 %v391, %v627
      %v847 = vmul.f32 %v392, %v627
      %v848 = vmul.f32 %v393, %v627
      %v849 = vmul.f32 %v394, %v627
      %v850 = vmul.f32 %v395, %v627
      %v851 = vmul.f32 %v396, %v627
      %v852 = vmul.f32 %v397, %v627
      %v853 = vmul.f32 %v398, %v627
      %v854 = vmul.f32 %v399, %v627
      %v855 = vmul.f32 %v400, %v627
      %v856 = vmul.f32 %v401, %v627
      %v857 = vmul.f32 %v402, %v627
      %v858 = vmul.f32 %v403, %v627
      %v859 = vmul.f32 %v404, %v627
      %v860 = vmul.f32 %v405, %v627
      %v861 = vmul.f32 %v406, %v627
      %v862 = vmul.f32 %v407, %v627
      %v863 = vmul.f32 %v408, %v627
      %v864 = vmul.f32 %v409, %v627
      %v865 = vmul.f32 %v410, %v627
      %v866 = vmul.f32 %v411, %v627
      %v867 = vmul.f32 %v412, %v627
      %v868 = vmul.f32 %v413, %v627
      %v869 = vmul.f32 %v414, %v627
      %v870 = vmul.f32 %v415, %v627
      %v871 = vmul.f32 %v416, %v627
      %v872 = vmul.f32 %v417, %v627
      %v873 = vmul.f32 %v418, %v627
      %v874 = vmul.f32 %v419, %v627
      %v875 = vmul.f32 %v420, %v627
      %v876 = vmul.f32 %v421, %v627
      %v877 = vmul.f32 %v422, %v627
      %v878 = vmul.f32 %v423, %v627
      %v879 = vmul.f32 %v424, %v627
      %v880 = vmul.f32 %v425, %v627
      %v881 = vmul.f32 %v426, %v627
      %v882 = vmul.f32 %v427, %v627
      %v883 = vmul.f32 %v428, %v627
      %v884 = vmul.f32 %v429, %v627
      %v885 = vmul.f32 %v430, %v627
      %v886 = vmul.f32 %v431, %v627
      %v887 = vmul.f32 %v432, %v627
      %v888 = vmul.f32 %v433, %v627
      %v889 = vmul.f32 %v434, %v627
      %v890 = vmul.f32 %v435, %v627
      %v891 = vmul.f32 %v436, %v627
      %v892 = vmul.f32 %v437, %v627
      %v893 = vmul.f32 %v438, %v627
      %v894 = vmul.f32 %v439, %v627
      %v895 = vmul.f32 %v440, %v627
      %v896 = vmul.f32 %v441, %v627
      %v897 = vmul.f32 %v442, %v627
      %v898 = vmul.f32 %v443, %v627
      %v899 = vmul.f32 %v444, %v627
      %v900 = vmul.f32 %v445, %v627
      %v901 = vmul.f32 %v446, %v627
      %v902 = vmul.f32 %v447, %v627
      %v903 = vmul.f32 %v448, %v627
      %v904 = vmul.f32 %v449, %v627
      %v905 = vmul.f32 %v450, %v627
      %v906 = vmul.f32 %v451, %v627
      %v907 = vmul.f32 %v452, %v627
      %v908 = vmul.f32 %v453, %v627
      %v909 = vmul.f32 %v454, %v627
      %v910 = vmul.f32 %v455, %v627
      %v911 = vmul.f32 %v456, %v627
      %v912 = vmul.f32 %v457, %v627
      %v913 = vmul.f32 %v458, %v627
      %v914 = vmul.f32 %v459, %v627
      %v915 = vmul.f32 %v460, %v627
      %v916 = vmul.f32 %v461, %v627
      %v917 = vmul.f32 %v462, %v627
      %v918 = vmul.f32 %v463, %v627
      %v919 = vmul.f32 %v464, %v627
      %v920 = vmul.f32 %v465, %v627
      %v921 = vmul.f32 %v466, %v627
      %v922 = vmul.f32 %v467, %v627
      %v923 = vmul.f32 %v468, %v627
      %v924 = vmul.f32 %v469, %v627
      %v925 = vmul.f32 %v470, %v627
      %v926 = vmul.f32 %v471, %v627
      %v927 = vmul.f32 %v472, %v627
      %v928 = vmul.f32 %v473, %v627
      %v929 = vmul.f32 %v474, %v627
      %v930 = vmul.f32 %v475, %v627
      %v931 = vmul.f32 %v476, %v627
      %v932 = vmul.f32 %v477, %v627
      %v933 = vmul.f32 %v478, %v627
      %v934 = vmul.f32 %v479, %v627
      %v935 = vmul.f32 %v480, %v627
      %v936 = vmul.f32 %v481, %v627
      %v937 = vmul.f32 %v482, %v627
      %v938 = vmul.f32 %v483, %v627
      %v939 = vmul.f32 %v484, %v627
      %v940 = vmul.f32 %v485, %v627
      %v941 = vmul.f32 %v486, %v627
      %v942 = vmul.f32 %v487, %v627
      %v943 = vmul.f32 %v488, %v627
      %v944 = vmul.f32 %v489, %v627
      %v945 = vmul.f32 %v490, %v627
      %v946 = vmul.f32 %v491, %v627
      %v947 = vmul.f32 %v492, %v627
      %v948 = vmul.f32 %v493, %v627
      %v949 = vmul.f32 %v494, %v627
      %v950 = vmul.f32 %v495, %v627
      %v951 = vmul.f32 %v496, %v627
      %v952 = vmul.f32 %v497, %v627
      %v953 = vmul.f32 %v498, %v627
      %v954 = vmul.f32 %v499, %v627
      %v955 = vmul.f32 %v500, %v627
      %v956 = vmul.f32 %v501, %v627
      %v957 = vmul.f32 %v502, %v627
      %v958 = vmul.f32 %v503, %v627
      %v959 = vmul.f32 %v504, %v627
      %v960 = vmul.f32 %v505, %v627
      %v961 = vmul.f32 %v506, %v627
      %v962 = vmul.f32 %v507, %v627
      %v963 = vmul.f32 %v508, %v627
      %v964 = vmul.f32 %v509, %v627
      %v965 = vmul.f32 %v510, %v627
      %v966 = vmul.f32 %v511, %v627
      %v967 = vmul.f32 %v512, %v627
      %v968 = vmul.f32 %v513, %v627
      %v969 = vmul.f32 %v514, %v627
      %v970 = vmul.f32 %v515, %v627
      %v971 = vmul.f32 %v516, %v627
      %v972 = vmul.f32 %v517, %v627
      %v973 = vmul.f32 %v518, %v627
      %v974 = vmul.f32 %v519, %v627
      %v975 = vmul.f32 %v520, %v627
      %v976 = vmul.f32 %v521, %v627
      %v977 = vmul.f32 %v522, %v627
      %v978 = vmul.f32 %v523, %v627
      %v979 = vmul.f32 %v524, %v627
      %v980 = vmul.f32 %v525, %v627
      %v981 = vmul.f32 %v526, %v627
      %v982 = vmul.f32 %v527, %v627
      %v983 = vmul.f32 %v528, %v627
      %v984 = vmul.f32 %v529, %v627
      %v985 = vmul.f32 %v530, %v627
      %v986 = vmul.f32 %v531, %v627
      %v987 = vmul.f32 %v532, %v627
      %v988 = vmul.f32 %v533, %v627
      %v989 = vmul.f32 %v534, %v627
      %v990 = vmul.f32 %v535, %v627
      %v991 = vmul.f32 %v536, %v627
      %v992 = vmul.f32 %v537, %v627
      %v993 = vmul.f32 %v538, %v627
      %v994 = vmul.f32 %v539, %v627
      %v995 = vmul.f32 %v540, %v627
      %v996 = vmul.f32 %v541, %v627
      %v997 = vmul.f32 %v542, %v627
      %v998 = vmul.f32 %v543, %v627
      %v999 = vmul.f32 %v544, %v627
      %v1000 = vmul.f32 %v545, %v627
      %v1001 = vmul.f32 %v546, %v627
      %v1002 = vmul.f32 %v547, %v627
      %v1003 = vmul.f32 %v548, %v627
      %v1004 = vmul.f32 %v549, %v627
      %v1005 = vmul.f32 %v550, %v627
      %v1006 = vmul.f32 %v551, %v627
      %v1007 = vmul.f32 %v552, %v627
      %v1008 = vmul.f32 %v553, %v627
      %v1009 = vmul.f32 %v554, %v627
      %v1010 = vmul.f32 %v555, %v627
      %v1011 = vmul.f32 %v556, %v627
      %v1012 = vmul.f32 %v557, %v627
      %v1013 = vmul.f32 %v558, %v627
      %v1014 = vmul.f32 %v559, %v627
      %v1015 = vmul.f32 %v560, %v627
      %v1016 = vmul.f32 %v561, %v627
      %v1017 = vmul.f32 %v562, %v627
      %v1018 = vmul.f32 %v563, %v627
      %v1019 = vmul.f32 %v564, %v627
      %v1020 = vmul.f32 %v565, %v627
      %v1021 = vmul.f32 %v566, %v627
      %v1022 = vmul.f32 %v567, %v627
      %v1023 = vmul.f32 %v568, %v627
      %v1024 = vmul.f32 %v569, %v627
      %v1025 = vmul.f32 %v570, %v627
      %v1026 = vmul.f32 %v571, %v627
      %v1027 = vmul.f32 %v572, %v627
      %v1028 = vmul.f32 %v573, %v627
      %v1029 = vmul.f32 %v574, %v627
      %v1030 = vmul.f32 %v575, %v627
      %v1031 = vmul.f32 %v576, %v627
      %v1032 = vmul.f32 %v577, %v627
      %v1033 = vmul.f32 %v578, %v627
      %v1034 = vmul.f32 %v579, %v627
      %v1035 = vmul.f32 %v580, %v627
      %v1036 = vmul.f32 %v581, %v627
      %v1037 = vmul.f32 %v582, %v627
      %v1038 = vmul.f32 %v583, %v627
      %v1039 = vmul.f32 %v584, %v627
      %v1040 = vmul.f32 %v585, %v627
      %v1041 = vmul.f32 %v586, %v627
      %v1042 = vmul.f32 %v587, %v627
      %v1043 = vmul.f32 %v588, %v627
      %v1044 = vmul.f32 %v589, %v627
      %v1045 = vmul.f32 %v590, %v627
      %v1046 = vmul.f32 %v591, %v627
      %v1047 = vmul.f32 %v592, %v627
      %v1048 = vmul.f32 %v593, %v627
      %v1049 = vmul.f32 %v594, %v627
      %v1050 = vmul.f32 %v595, %v627
      %v1051 = vmul.f32 %v596, %v627
      %v1052 = vmul.f32 %v597, %v627
      %v1053 = vmul.f32 %v598, %v627
      %v1054 = vmul.f32 %v599, %v627
      %v1055 = vmul.f32 %v600, %v627
      %v1056 = vmul.f32 %v601, %v627
      %v1057 = vmul.f32 %v602, %v627
      %v1058 = vmul.f32 %v603, %v627
      %v1059 = vmul.f32 %v604, %v627
      %v1060 = vmul.f32 %v605, %v627
      %v1061 = vmul.f32 %v606, %v627
      %v1062 = vmul.f32 %v607, %v627
      %v1063 = vmul.f32 %v608, %v627
      %v1064 = vmul.f32 %v609, %v627
      %v1065 = vmul.f32 %v610, %v627
      %v1066 = vmul.f32 %v611, %v627
      %v1067 = vmul.f32 %v612, %v627
      %v1068 = vmul.f32 %v613, %v627
      %v1069 = vmul.f32 %v614, %v627
      %v1070 = vmul.f32 %v615, %v627
      %v1071 = vmul.f32 %v616, %v627
      %v1072 = vmul.f32 %v617, %v627
      %v1073 = vmul.f32 %v618, %v627
      %v1074 = vmul.f32 %v619, %v627
      %v1075 = vmul.f32 %v620, %v627
      %v1076 = vmul.f32 %v621, %v627
      %v1077 = vld [vmem:[%s2] sm:$0x1]
      %v1079 = vlaneseq
      %v1080 = vshrl.u32 %v1079, 7
      %v1081 = vsub.s32 0, %v1080
      %v1082 = vrot.slane %v1077, %v1081
      %v1084 = vadd.f32 %v629, %v1082
      %v1085 = vadd.f32 %v630, %v1082
      %v1086 = vadd.f32 %v631, %v1082
      %v1087 = vadd.f32 %v632, %v1082
      %v1088 = vadd.f32 %v633, %v1082
      %v1089 = vadd.f32 %v634, %v1082
      %v1090 = vadd.f32 %v635, %v1082
      %v1091 = vadd.f32 %v636, %v1082
      %v1092 = vadd.f32 %v637, %v1082
      %v1093 = vadd.f32 %v638, %v1082
      %v1094 = vadd.f32 %v639, %v1082
      %v1095 = vadd.f32 %v640, %v1082
      %v1096 = vadd.f32 %v641, %v1082
      %v1097 = vadd.f32 %v642, %v1082
      %v1098 = vadd.f32 %v643, %v1082
      %v1099 = vadd.f32 %v644, %v1082
      %v1100 = vadd.f32 %v645, %v1082
      %v1101 = vadd.f32 %v646, %v1082
      %v1102 = vadd.f32 %v647, %v1082
      %v1103 = vadd.f32 %v648, %v1082
      %v1104 = vadd.f32 %v649, %v1082
      %v1105 = vadd.f32 %v650, %v1082
      %v1106 = vadd.f32 %v651, %v1082
      %v1107 = vadd.f32 %v652, %v1082
      %v1108 = vadd.f32 %v653, %v1082
      %v1109 = vadd.f32 %v654, %v1082
      %v1110 = vadd.f32 %v655, %v1082
      %v1111 = vadd.f32 %v656, %v1082
      %v1112 = vadd.f32 %v657, %v1082
      %v1113 = vadd.f32 %v658, %v1082
      %v1114 = vadd.f32 %v659, %v1082
      %v1115 = vadd.f32 %v660, %v1082
      %v1116 = vadd.f32 %v661, %v1082
      %v1117 = vadd.f32 %v662, %v1082
      %v1118 = vadd.f32 %v663, %v1082
      %v1119 = vadd.f32 %v664, %v1082
      %v1120 = vadd.f32 %v665, %v1082
      %v1121 = vadd.f32 %v666, %v1082
      %v1122 = vadd.f32 %v667, %v1082
      %v1123 = vadd.f32 %v668, %v1082
      %v1124 = vadd.f32 %v669, %v1082
      %v1125 = vadd.f32 %v670, %v1082
      %v1126 = vadd.f32 %v671, %v1082
      %v1127 = vadd.f32 %v672, %v1082
      %v1128 = vadd.f32 %v673, %v1082
      %v1129 = vadd.f32 %v674, %v1082
      %v1130 = vadd.f32 %v675, %v1082
      %v1131 = vadd.f32 %v676, %v1082
      %v1132 = vadd.f32 %v677, %v1082
      %v1133 = vadd.f32 %v678, %v1082
      %v1134 = vadd.f32 %v679, %v1082
      %v1135 = vadd.f32 %v680, %v1082
      %v1136 = vadd.f32 %v681, %v1082
      %v1137 = vadd.f32 %v682, %v1082
      %v1138 = vadd.f32 %v683, %v1082
      %v1139 = vadd.f32 %v684, %v1082
      %v1140 = vadd.f32 %v685, %v1082
      %v1141 = vadd.f32 %v686, %v1082
      %v1142 = vadd.f32 %v687, %v1082
      %v1143 = vadd.f32 %v688, %v1082
      %v1144 = vadd.f32 %v689, %v1082
      %v1145 = vadd.f32 %v690, %v1082
      %v1146 = vadd.f32 %v691, %v1082
      %v1147 = vadd.f32 %v692, %v1082
      %v1148 = vadd.f32 %v693, %v1082
      %v1149 = vadd.f32 %v694, %v1082
      %v1150 = vadd.f32 %v695, %v1082
      %v1151 = vadd.f32 %v696, %v1082
      %v1152 = vadd.f32 %v697, %v1082
      %v1153 = vadd.f32 %v698, %v1082
      %v1154 = vadd.f32 %v699, %v1082
      %v1155 = vadd.f32 %v700, %v1082
      %v1156 = vadd.f32 %v701, %v1082
      %v1157 = vadd.f32 %v702, %v1082
      %v1158 = vadd.f32 %v703, %v1082
      %v1159 = vadd.f32 %v704, %v1082
      %v1160 = vadd.f32 %v705, %v1082
      %v1161 = vadd.f32 %v706, %v1082
      %v1162 = vadd.f32 %v707, %v1082
      %v1163 = vadd.f32 %v708, %v1082
      %v1164 = vadd.f32 %v709, %v1082
      %v1165 = vadd.f32 %v710, %v1082
      %v1166 = vadd.f32 %v711, %v1082
      %v1167 = vadd.f32 %v712, %v1082
      %v1168 = vadd.f32 %v713, %v1082
      %v1169 = vadd.f32 %v714, %v1082
      %v1170 = vadd.f32 %v715, %v1082
      %v1171 = vadd.f32 %v716, %v1082
      %v1172 = vadd.f32 %v717, %v1082
      %v1173 = vadd.f32 %v718, %v1082
      %v1174 = vadd.f32 %v719, %v1082
      %v1175 = vadd.f32 %v720, %v1082
      %v1176 = vadd.f32 %v721, %v1082
      %v1177 = vadd.f32 %v722, %v1082
      %v1178 = vadd.f32 %v723, %v1082
      %v1179 = vadd.f32 %v724, %v1082
      %v1180 = vadd.f32 %v725, %v1082
      %v1181 = vadd.f32 %v726, %v1082
      %v1182 = vadd.f32 %v727, %v1082
      %v1183 = vadd.f32 %v728, %v1082
      %v1184 = vadd.f32 %v729, %v1082
      %v1185 = vadd.f32 %v730, %v1082
      %v1186 = vadd.f32 %v731, %v1082
      %v1187 = vadd.f32 %v732, %v1082
      %v1188 = vadd.f32 %v733, %v1082
      %v1189 = vadd.f32 %v734, %v1082
      %v1190 = vadd.f32 %v735, %v1082
      %v1191 = vadd.f32 %v736, %v1082
      %v1192 = vadd.f32 %v737, %v1082
      %v1193 = vadd.f32 %v738, %v1082
      %v1194 = vadd.f32 %v739, %v1082
      %v1195 = vadd.f32 %v740, %v1082
      %v1196 = vadd.f32 %v741, %v1082
      %v1197 = vadd.f32 %v742, %v1082
      %v1198 = vadd.f32 %v743, %v1082
      %v1199 = vadd.f32 %v744, %v1082
      %v1200 = vadd.f32 %v745, %v1082
      %v1201 = vadd.f32 %v746, %v1082
      %v1202 = vadd.f32 %v747, %v1082
      %v1203 = vadd.f32 %v748, %v1082
      %v1204 = vadd.f32 %v749, %v1082
      %v1205 = vadd.f32 %v750, %v1082
      %v1206 = vadd.f32 %v751, %v1082
      %v1207 = vadd.f32 %v752, %v1082
      %v1208 = vadd.f32 %v753, %v1082
      %v1209 = vadd.f32 %v754, %v1082
      %v1210 = vadd.f32 %v755, %v1082
      %v1211 = vadd.f32 %v756, %v1082
      %v1212 = vadd.f32 %v757, %v1082
      %v1213 = vadd.f32 %v758, %v1082
      %v1214 = vadd.f32 %v759, %v1082
      %v1215 = vadd.f32 %v760, %v1082
      %v1216 = vadd.f32 %v761, %v1082
      %v1217 = vadd.f32 %v762, %v1082
      %v1218 = vadd.f32 %v763, %v1082
      %v1219 = vadd.f32 %v764, %v1082
      %v1220 = vadd.f32 %v765, %v1082
      %v1221 = vadd.f32 %v766, %v1082
      %v1222 = vadd.f32 %v767, %v1082
      %v1223 = vadd.f32 %v768, %v1082
      %v1224 = vadd.f32 %v769, %v1082
      %v1225 = vadd.f32 %v770, %v1082
      %v1226 = vadd.f32 %v771, %v1082
      %v1227 = vadd.f32 %v772, %v1082
      %v1228 = vadd.f32 %v773, %v1082
      %v1229 = vadd.f32 %v774, %v1082
      %v1230 = vadd.f32 %v775, %v1082
      %v1231 = vadd.f32 %v776, %v1082
      %v1232 = vadd.f32 %v777, %v1082
      %v1233 = vadd.f32 %v778, %v1082
      %v1234 = vadd.f32 %v779, %v1082
      %v1235 = vadd.f32 %v780, %v1082
      %v1236 = vadd.f32 %v781, %v1082
      %v1237 = vadd.f32 %v782, %v1082
      %v1238 = vadd.f32 %v783, %v1082
      %v1239 = vadd.f32 %v784, %v1082
      %v1240 = vadd.f32 %v785, %v1082
      %v1241 = vadd.f32 %v786, %v1082
      %v1242 = vadd.f32 %v787, %v1082
      %v1243 = vadd.f32 %v788, %v1082
      %v1244 = vadd.f32 %v789, %v1082
      %v1245 = vadd.f32 %v790, %v1082
      %v1246 = vadd.f32 %v791, %v1082
      %v1247 = vadd.f32 %v792, %v1082
      %v1248 = vadd.f32 %v793, %v1082
      %v1249 = vadd.f32 %v794, %v1082
      %v1250 = vadd.f32 %v795, %v1082
      %v1251 = vadd.f32 %v796, %v1082
      %v1252 = vadd.f32 %v797, %v1082
      %v1253 = vadd.f32 %v798, %v1082
      %v1254 = vadd.f32 %v799, %v1082
      %v1255 = vadd.f32 %v800, %v1082
      %v1256 = vadd.f32 %v801, %v1082
      %v1257 = vadd.f32 %v802, %v1082
      %v1258 = vadd.f32 %v803, %v1082
      %v1259 = vadd.f32 %v804, %v1082
      %v1260 = vadd.f32 %v805, %v1082
      %v1261 = vadd.f32 %v806, %v1082
      %v1262 = vadd.f32 %v807, %v1082
      %v1263 = vadd.f32 %v808, %v1082
      %v1264 = vadd.f32 %v809, %v1082
      %v1265 = vadd.f32 %v810, %v1082
      %v1266 = vadd.f32 %v811, %v1082
      %v1267 = vadd.f32 %v812, %v1082
      %v1268 = vadd.f32 %v813, %v1082
      %v1269 = vadd.f32 %v814, %v1082
      %v1270 = vadd.f32 %v815, %v1082
      %v1271 = vadd.f32 %v816, %v1082
      %v1272 = vadd.f32 %v817, %v1082
      %v1273 = vadd.f32 %v818, %v1082
      %v1274 = vadd.f32 %v819, %v1082
      %v1275 = vadd.f32 %v820, %v1082
      %v1276 = vadd.f32 %v821, %v1082
      %v1277 = vadd.f32 %v822, %v1082
      %v1278 = vadd.f32 %v823, %v1082
      %v1279 = vadd.f32 %v824, %v1082
      %v1280 = vadd.f32 %v825, %v1082
      %v1281 = vadd.f32 %v826, %v1082
      %v1282 = vadd.f32 %v827, %v1082
      %v1283 = vadd.f32 %v828, %v1082
      %v1284 = vadd.f32 %v829, %v1082
      %v1285 = vadd.f32 %v830, %v1082
      %v1286 = vadd.f32 %v831, %v1082
      %v1287 = vadd.f32 %v832, %v1082
      %v1288 = vadd.f32 %v833, %v1082
      %v1289 = vadd.f32 %v834, %v1082
      %v1290 = vadd.f32 %v835, %v1082
      %v1291 = vadd.f32 %v836, %v1082
      %v1292 = vadd.f32 %v837, %v1082
      %v1293 = vadd.f32 %v838, %v1082
      %v1294 = vadd.f32 %v839, %v1082
      %v1295 = vadd.f32 %v840, %v1082
      %v1296 = vadd.f32 %v841, %v1082
      %v1297 = vadd.f32 %v842, %v1082
      %v1298 = vadd.f32 %v843, %v1082
      %v1299 = vadd.f32 %v844, %v1082
      %v1300 = vadd.f32 %v845, %v1082
      %v1301 = vadd.f32 %v846, %v1082
      %v1302 = vadd.f32 %v847, %v1082
      %v1303 = vadd.f32 %v848, %v1082
      %v1304 = vadd.f32 %v849, %v1082
      %v1305 = vadd.f32 %v850, %v1082
      %v1306 = vadd.f32 %v851, %v1082
      %v1307 = vadd.f32 %v852, %v1082
      %v1308 = vadd.f32 %v853, %v1082
      %v1309 = vadd.f32 %v854, %v1082
      %v1310 = vadd.f32 %v855, %v1082
      %v1311 = vadd.f32 %v856, %v1082
      %v1312 = vadd.f32 %v857, %v1082
      %v1313 = vadd.f32 %v858, %v1082
      %v1314 = vadd.f32 %v859, %v1082
      %v1315 = vadd.f32 %v860, %v1082
      %v1316 = vadd.f32 %v861, %v1082
      %v1317 = vadd.f32 %v862, %v1082
      %v1318 = vadd.f32 %v863, %v1082
      %v1319 = vadd.f32 %v864, %v1082
      %v1320 = vadd.f32 %v865, %v1082
      %v1321 = vadd.f32 %v866, %v1082
      %v1322 = vadd.f32 %v867, %v1082
      %v1323 = vadd.f32 %v868, %v1082
      %v1324 = vadd.f32 %v869, %v1082
      %v1325 = vadd.f32 %v870, %v1082
      %v1326 = vadd.f32 %v871, %v1082
      %v1327 = vadd.f32 %v872, %v1082
      %v1328 = vadd.f32 %v873, %v1082
      %v1329 = vadd.f32 %v874, %v1082
      %v1330 = vadd.f32 %v875, %v1082
      %v1331 = vadd.f32 %v876, %v1082
      %v1332 = vadd.f32 %v877, %v1082
      %v1333 = vadd.f32 %v878, %v1082
      %v1334 = vadd.f32 %v879, %v1082
      %v1335 = vadd.f32 %v880, %v1082
      %v1336 = vadd.f32 %v881, %v1082
      %v1337 = vadd.f32 %v882, %v1082
      %v1338 = vadd.f32 %v883, %v1082
      %v1339 = vadd.f32 %v884, %v1082
      %v1340 = vadd.f32 %v885, %v1082
      %v1341 = vadd.f32 %v886, %v1082
      %v1342 = vadd.f32 %v887, %v1082
      %v1343 = vadd.f32 %v888, %v1082
      %v1344 = vadd.f32 %v889, %v1082
      %v1345 = vadd.f32 %v890, %v1082
      %v1346 = vadd.f32 %v891, %v1082
      %v1347 = vadd.f32 %v892, %v1082
      %v1348 = vadd.f32 %v893, %v1082
      %v1349 = vadd.f32 %v894, %v1082
      %v1350 = vadd.f32 %v895, %v1082
      %v1351 = vadd.f32 %v896, %v1082
      %v1352 = vadd.f32 %v897, %v1082
      %v1353 = vadd.f32 %v898, %v1082
      %v1354 = vadd.f32 %v899, %v1082
      %v1355 = vadd.f32 %v900, %v1082
      %v1356 = vadd.f32 %v901, %v1082
      %v1357 = vadd.f32 %v902, %v1082
      %v1358 = vadd.f32 %v903, %v1082
      %v1359 = vadd.f32 %v904, %v1082
      %v1360 = vadd.f32 %v905, %v1082
      %v1361 = vadd.f32 %v906, %v1082
      %v1362 = vadd.f32 %v907, %v1082
      %v1363 = vadd.f32 %v908, %v1082
      %v1364 = vadd.f32 %v909, %v1082
      %v1365 = vadd.f32 %v910, %v1082
      %v1366 = vadd.f32 %v911, %v1082
      %v1367 = vadd.f32 %v912, %v1082
      %v1368 = vadd.f32 %v913, %v1082
      %v1369 = vadd.f32 %v914, %v1082
      %v1370 = vadd.f32 %v915, %v1082
      %v1371 = vadd.f32 %v916, %v1082
      %v1372 = vadd.f32 %v917, %v1082
      %v1373 = vadd.f32 %v918, %v1082
      %v1374 = vadd.f32 %v919, %v1082
      %v1375 = vadd.f32 %v920, %v1082
      %v1376 = vadd.f32 %v921, %v1082
      %v1377 = vadd.f32 %v922, %v1082
      %v1378 = vadd.f32 %v923, %v1082
      %v1379 = vadd.f32 %v924, %v1082
      %v1380 = vadd.f32 %v925, %v1082
      %v1381 = vadd.f32 %v926, %v1082
      %v1382 = vadd.f32 %v927, %v1082
      %v1383 = vadd.f32 %v928, %v1082
      %v1384 = vadd.f32 %v929, %v1082
      %v1385 = vadd.f32 %v930, %v1082
      %v1386 = vadd.f32 %v931, %v1082
      %v1387 = vadd.f32 %v932, %v1082
      %v1388 = vadd.f32 %v933, %v1082
      %v1389 = vadd.f32 %v934, %v1082
      %v1390 = vadd.f32 %v935, %v1082
      %v1391 = vadd.f32 %v936, %v1082
      %v1392 = vadd.f32 %v937, %v1082
      %v1393 = vadd.f32 %v938, %v1082
      %v1394 = vadd.f32 %v939, %v1082
      %v1395 = vadd.f32 %v940, %v1082
      %v1396 = vadd.f32 %v941, %v1082
      %v1397 = vadd.f32 %v942, %v1082
      %v1398 = vadd.f32 %v943, %v1082
      %v1399 = vadd.f32 %v944, %v1082
      %v1400 = vadd.f32 %v945, %v1082
      %v1401 = vadd.f32 %v946, %v1082
      %v1402 = vadd.f32 %v947, %v1082
      %v1403 = vadd.f32 %v948, %v1082
      %v1404 = vadd.f32 %v949, %v1082
      %v1405 = vadd.f32 %v950, %v1082
      %v1406 = vadd.f32 %v951, %v1082
      %v1407 = vadd.f32 %v952, %v1082
      %v1408 = vadd.f32 %v953, %v1082
      %v1409 = vadd.f32 %v954, %v1082
      %v1410 = vadd.f32 %v955, %v1082
      %v1411 = vadd.f32 %v956, %v1082
      %v1412 = vadd.f32 %v957, %v1082
      %v1413 = vadd.f32 %v958, %v1082
      %v1414 = vadd.f32 %v959, %v1082
      %v1415 = vadd.f32 %v960, %v1082
      %v1416 = vadd.f32 %v961, %v1082
      %v1417 = vadd.f32 %v962, %v1082
      %v1418 = vadd.f32 %v963, %v1082
      %v1419 = vadd.f32 %v964, %v1082
      %v1420 = vadd.f32 %v965, %v1082
      %v1421 = vadd.f32 %v966, %v1082
      %v1422 = vadd.f32 %v967, %v1082
      %v1423 = vadd.f32 %v968, %v1082
      %v1424 = vadd.f32 %v969, %v1082
      %v1425 = vadd.f32 %v970, %v1082
      %v1426 = vadd.f32 %v971, %v1082
      %v1427 = vadd.f32 %v972, %v1082
      %v1428 = vadd.f32 %v973, %v1082
      %v1429 = vadd.f32 %v974, %v1082
      %v1430 = vadd.f32 %v975, %v1082
      %v1431 = vadd.f32 %v976, %v1082
      %v1432 = vadd.f32 %v977, %v1082
      %v1433 = vadd.f32 %v978, %v1082
      %v1434 = vadd.f32 %v979, %v1082
      %v1435 = vadd.f32 %v980, %v1082
      %v1436 = vadd.f32 %v981, %v1082
      %v1437 = vadd.f32 %v982, %v1082
      %v1438 = vadd.f32 %v983, %v1082
      %v1439 = vadd.f32 %v984, %v1082
      %v1440 = vadd.f32 %v985, %v1082
      %v1441 = vadd.f32 %v986, %v1082
      %v1442 = vadd.f32 %v987, %v1082
      %v1443 = vadd.f32 %v988, %v1082
      %v1444 = vadd.f32 %v989, %v1082
      %v1445 = vadd.f32 %v990, %v1082
      %v1446 = vadd.f32 %v991, %v1082
      %v1447 = vadd.f32 %v992, %v1082
      %v1448 = vadd.f32 %v993, %v1082
      %v1449 = vadd.f32 %v994, %v1082
      %v1450 = vadd.f32 %v995, %v1082
      %v1451 = vadd.f32 %v996, %v1082
      %v1452 = vadd.f32 %v997, %v1082
      %v1453 = vadd.f32 %v998, %v1082
      %v1454 = vadd.f32 %v999, %v1082
      %v1455 = vadd.f32 %v1000, %v1082
      %v1456 = vadd.f32 %v1001, %v1082
      %v1457 = vadd.f32 %v1002, %v1082
      %v1458 = vadd.f32 %v1003, %v1082
      %v1459 = vadd.f32 %v1004, %v1082
      %v1460 = vadd.f32 %v1005, %v1082
      %v1461 = vadd.f32 %v1006, %v1082
      %v1462 = vadd.f32 %v1007, %v1082
      %v1463 = vadd.f32 %v1008, %v1082
      %v1464 = vadd.f32 %v1009, %v1082
      %v1465 = vadd.f32 %v1010, %v1082
      %v1466 = vadd.f32 %v1011, %v1082
      %v1467 = vadd.f32 %v1012, %v1082
      %v1468 = vadd.f32 %v1013, %v1082
      %v1469 = vadd.f32 %v1014, %v1082
      %v1470 = vadd.f32 %v1015, %v1082
      %v1471 = vadd.f32 %v1016, %v1082
      %v1472 = vadd.f32 %v1017, %v1082
      %v1473 = vadd.f32 %v1018, %v1082
      %v1474 = vadd.f32 %v1019, %v1082
      %v1475 = vadd.f32 %v1020, %v1082
      %v1476 = vadd.f32 %v1021, %v1082
      %v1477 = vadd.f32 %v1022, %v1082
      %v1478 = vadd.f32 %v1023, %v1082
      %v1479 = vadd.f32 %v1024, %v1082
      %v1480 = vadd.f32 %v1025, %v1082
      %v1481 = vadd.f32 %v1026, %v1082
      %v1482 = vadd.f32 %v1027, %v1082
      %v1483 = vadd.f32 %v1028, %v1082
      %v1484 = vadd.f32 %v1029, %v1082
      %v1485 = vadd.f32 %v1030, %v1082
      %v1486 = vadd.f32 %v1031, %v1082
      %v1487 = vadd.f32 %v1032, %v1082
      %v1488 = vadd.f32 %v1033, %v1082
      %v1489 = vadd.f32 %v1034, %v1082
      %v1490 = vadd.f32 %v1035, %v1082
      %v1491 = vadd.f32 %v1036, %v1082
      %v1492 = vadd.f32 %v1037, %v1082
      %v1493 = vadd.f32 %v1038, %v1082
      %v1494 = vadd.f32 %v1039, %v1082
      %v1495 = vadd.f32 %v1040, %v1082
      %v1496 = vadd.f32 %v1041, %v1082
      %v1497 = vadd.f32 %v1042, %v1082
      %v1498 = vadd.f32 %v1043, %v1082
      %v1499 = vadd.f32 %v1044, %v1082
      %v1500 = vadd.f32 %v1045, %v1082
      %v1501 = vadd.f32 %v1046, %v1082
      %v1502 = vadd.f32 %v1047, %v1082
      %v1503 = vadd.f32 %v1048, %v1082
      %v1504 = vadd.f32 %v1049, %v1082
      %v1505 = vadd.f32 %v1050, %v1082
      %v1506 = vadd.f32 %v1051, %v1082
      %v1507 = vadd.f32 %v1052, %v1082
      %v1508 = vadd.f32 %v1053, %v1082
      %v1509 = vadd.f32 %v1054, %v1082
      %v1510 = vadd.f32 %v1055, %v1082
      %v1511 = vadd.f32 %v1056, %v1082
      %v1512 = vadd.f32 %v1057, %v1082
      %v1513 = vadd.f32 %v1058, %v1082
      %v1514 = vadd.f32 %v1059, %v1082
      %v1515 = vadd.f32 %v1060, %v1082
      %v1516 = vadd.f32 %v1061, %v1082
      %v1517 = vadd.f32 %v1062, %v1082
      %v1518 = vadd.f32 %v1063, %v1082
      %v1519 = vadd.f32 %v1064, %v1082
      %v1520 = vadd.f32 %v1065, %v1082
      %v1521 = vadd.f32 %v1066, %v1082
      %v1522 = vadd.f32 %v1067, %v1082
      %v1523 = vadd.f32 %v1068, %v1082
      %v1524 = vadd.f32 %v1069, %v1082
      %v1525 = vadd.f32 %v1070, %v1082
      %v1526 = vadd.f32 %v1071, %v1082
      %v1527 = vadd.f32 %v1072, %v1082
      %v1528 = vadd.f32 %v1073, %v1082
      %v1529 = vadd.f32 %v1074, %v1082
      %v1530 = vadd.f32 %v1075, %v1082
      %v1531 = vadd.f32 %v1076, %v1082
      %v1532 = vmax.f32 %v1084, 0.0
      %v1533 = vmax.f32 %v1085, 0.0
      %v1534 = vmax.f32 %v1086, 0.0
      %v1535 = vmax.f32 %v1087, 0.0
      %v1536 = vmax.f32 %v1088, 0.0
      %v1537 = vmax.f32 %v1089, 0.0
      %v1538 = vmax.f32 %v1090, 0.0
      %v1539 = vmax.f32 %v1091, 0.0
      %v1540 = vmax.f32 %v1092, 0.0
      %v1541 = vmax.f32 %v1093, 0.0
      %v1542 = vmax.f32 %v1094, 0.0
      %v1543 = vmax.f32 %v1095, 0.0
      %v1544 = vmax.f32 %v1096, 0.0
      %v1545 = vmax.f32 %v1097, 0.0
      %v1546 = vmax.f32 %v1098, 0.0
      %v1547 = vmax.f32 %v1099, 0.0
      %v1548 = vmax.f32 %v1100, 0.0
      %v1549 = vmax.f32 %v1101, 0.0
      %v1550 = vmax.f32 %v1102, 0.0
      %v1551 = vmax.f32 %v1103, 0.0
      %v1552 = vmax.f32 %v1104, 0.0
      %v1553 = vmax.f32 %v1105, 0.0
      %v1554 = vmax.f32 %v1106, 0.0
      %v1555 = vmax.f32 %v1107, 0.0
      %v1556 = vmax.f32 %v1108, 0.0
      %v1557 = vmax.f32 %v1109, 0.0
      %v1558 = vmax.f32 %v1110, 0.0
      %v1559 = vmax.f32 %v1111, 0.0
      %v1560 = vmax.f32 %v1112, 0.0
      %v1561 = vmax.f32 %v1113, 0.0
      %v1562 = vmax.f32 %v1114, 0.0
      %v1563 = vmax.f32 %v1115, 0.0
      %v1564 = vmax.f32 %v1116, 0.0
      %v1565 = vmax.f32 %v1117, 0.0
      %v1566 = vmax.f32 %v1118, 0.0
      %v1567 = vmax.f32 %v1119, 0.0
      %v1568 = vmax.f32 %v1120, 0.0
      %v1569 = vmax.f32 %v1121, 0.0
      %v1570 = vmax.f32 %v1122, 0.0
      %v1571 = vmax.f32 %v1123, 0.0
      %v1572 = vmax.f32 %v1124, 0.0
      %v1573 = vmax.f32 %v1125, 0.0
      %v1574 = vmax.f32 %v1126, 0.0
      %v1575 = vmax.f32 %v1127, 0.0
      %v1576 = vmax.f32 %v1128, 0.0
      %v1577 = vmax.f32 %v1129, 0.0
      %v1578 = vmax.f32 %v1130, 0.0
      %v1579 = vmax.f32 %v1131, 0.0
      %v1580 = vmax.f32 %v1132, 0.0
      %v1581 = vmax.f32 %v1133, 0.0
      %v1582 = vmax.f32 %v1134, 0.0
      %v1583 = vmax.f32 %v1135, 0.0
      %v1584 = vmax.f32 %v1136, 0.0
      %v1585 = vmax.f32 %v1137, 0.0
      %v1586 = vmax.f32 %v1138, 0.0
      %v1587 = vmax.f32 %v1139, 0.0
      %v1588 = vmax.f32 %v1140, 0.0
      %v1589 = vmax.f32 %v1141, 0.0
      %v1590 = vmax.f32 %v1142, 0.0
      %v1591 = vmax.f32 %v1143, 0.0
      %v1592 = vmax.f32 %v1144, 0.0
      %v1593 = vmax.f32 %v1145, 0.0
      %v1594 = vmax.f32 %v1146, 0.0
      %v1595 = vmax.f32 %v1147, 0.0
      %v1596 = vmax.f32 %v1148, 0.0
      %v1597 = vmax.f32 %v1149, 0.0
      %v1598 = vmax.f32 %v1150, 0.0
      %v1599 = vmax.f32 %v1151, 0.0
      %v1600 = vmax.f32 %v1152, 0.0
      %v1601 = vmax.f32 %v1153, 0.0
      %v1602 = vmax.f32 %v1154, 0.0
      %v1603 = vmax.f32 %v1155, 0.0
      %v1604 = vmax.f32 %v1156, 0.0
      %v1605 = vmax.f32 %v1157, 0.0
      %v1606 = vmax.f32 %v1158, 0.0
      %v1607 = vmax.f32 %v1159, 0.0
      %v1608 = vmax.f32 %v1160, 0.0
      %v1609 = vmax.f32 %v1161, 0.0
      %v1610 = vmax.f32 %v1162, 0.0
      %v1611 = vmax.f32 %v1163, 0.0
      %v1612 = vmax.f32 %v1164, 0.0
      %v1613 = vmax.f32 %v1165, 0.0
      %v1614 = vmax.f32 %v1166, 0.0
      %v1615 = vmax.f32 %v1167, 0.0
      %v1616 = vmax.f32 %v1168, 0.0
      %v1617 = vmax.f32 %v1169, 0.0
      %v1618 = vmax.f32 %v1170, 0.0
      %v1619 = vmax.f32 %v1171, 0.0
      %v1620 = vmax.f32 %v1172, 0.0
      %v1621 = vmax.f32 %v1173, 0.0
      %v1622 = vmax.f32 %v1174, 0.0
      %v1623 = vmax.f32 %v1175, 0.0
      %v1624 = vmax.f32 %v1176, 0.0
      %v1625 = vmax.f32 %v1177, 0.0
      %v1626 = vmax.f32 %v1178, 0.0
      %v1627 = vmax.f32 %v1179, 0.0
      %v1628 = vmax.f32 %v1180, 0.0
      %v1629 = vmax.f32 %v1181, 0.0
      %v1630 = vmax.f32 %v1182, 0.0
      %v1631 = vmax.f32 %v1183, 0.0
      %v1632 = vmax.f32 %v1184, 0.0
      %v1633 = vmax.f32 %v1185, 0.0
      %v1634 = vmax.f32 %v1186, 0.0
      %v1635 = vmax.f32 %v1187, 0.0
      %v1636 = vmax.f32 %v1188, 0.0
      %v1637 = vmax.f32 %v1189, 0.0
      %v1638 = vmax.f32 %v1190, 0.0
      %v1639 = vmax.f32 %v1191, 0.0
      %v1640 = vmax.f32 %v1192, 0.0
      %v1641 = vmax.f32 %v1193, 0.0
      %v1642 = vmax.f32 %v1194, 0.0
      %v1643 = vmax.f32 %v1195, 0.0
      %v1644 = vmax.f32 %v1196, 0.0
      %v1645 = vmax.f32 %v1197, 0.0
      %v1646 = vmax.f32 %v1198, 0.0
      %v1647 = vmax.f32 %v1199, 0.0
      %v1648 = vmax.f32 %v1200, 0.0
      %v1649 = vmax.f32 %v1201, 0.0
      %v1650 = vmax.f32 %v1202, 0.0
      %v1651 = vmax.f32 %v1203, 0.0
      %v1652 = vmax.f32 %v1204, 0.0
      %v1653 = vmax.f32 %v1205, 0.0
      %v1654 = vmax.f32 %v1206, 0.0
      %v1655 = vmax.f32 %v1207, 0.0
      %v1656 = vmax.f32 %v1208, 0.0
      %v1657 = vmax.f32 %v1209, 0.0
      %v1658 = vmax.f32 %v1210, 0.0
      %v1659 = vmax.f32 %v1211, 0.0
      %v1660 = vmax.f32 %v1212, 0.0
      %v1661 = vmax.f32 %v1213, 0.0
      %v1662 = vmax.f32 %v1214, 0.0
      %v1663 = vmax.f32 %v1215, 0.0
      %v1664 = vmax.f32 %v1216, 0.0
      %v1665 = vmax.f32 %v1217, 0.0
      %v1666 = vmax.f32 %v1218, 0.0
      %v1667 = vmax.f32 %v1219, 0.0
      %v1668 = vmax.f32 %v1220, 0.0
      %v1669 = vmax.f32 %v1221, 0.0
      %v1670 = vmax.f32 %v1222, 0.0
      %v1671 = vmax.f32 %v1223, 0.0
      %v1672 = vmax.f32 %v1224, 0.0
      %v1673 = vmax.f32 %v1225, 0.0
      %v1674 = vmax.f32 %v1226, 0.0
      %v1675 = vmax.f32 %v1227, 0.0
      %v1676 = vmax.f32 %v1228, 0.0
      %v1677 = vmax.f32 %v1229, 0.0
      %v1678 = vmax.f32 %v1230, 0.0
      %v1679 = vmax.f32 %v1231, 0.0
      %v1680 = vmax.f32 %v1232, 0.0
      %v1681 = vmax.f32 %v1233, 0.0
      %v1682 = vmax.f32 %v1234, 0.0
      %v1683 = vmax.f32 %v1235, 0.0
      %v1684 = vmax.f32 %v1236, 0.0
      %v1685 = vmax.f32 %v1237, 0.0
      %v1686 = vmax.f32 %v1238, 0.0
      %v1687 = vmax.f32 %v1239, 0.0
      %v1688 = vmax.f32 %v1240, 0.0
      %v1689 = vmax.f32 %v1241, 0.0
      %v1690 = vmax.f32 %v1242, 0.0
      %v1691 = vmax.f32 %v1243, 0.0
      %v1692 = vmax.f32 %v1244, 0.0
      %v1693 = vmax.f32 %v1245, 0.0
      %v1694 = vmax.f32 %v1246, 0.0
      %v1695 = vmax.f32 %v1247, 0.0
      %v1696 = vmax.f32 %v1248, 0.0
      %v1697 = vmax.f32 %v1249, 0.0
      %v1698 = vmax.f32 %v1250, 0.0
      %v1699 = vmax.f32 %v1251, 0.0
      %v1700 = vmax.f32 %v1252, 0.0
      %v1701 = vmax.f32 %v1253, 0.0
      %v1702 = vmax.f32 %v1254, 0.0
      %v1703 = vmax.f32 %v1255, 0.0
      %v1704 = vmax.f32 %v1256, 0.0
      %v1705 = vmax.f32 %v1257, 0.0
      %v1706 = vmax.f32 %v1258, 0.0
      %v1707 = vmax.f32 %v1259, 0.0
      %v1708 = vmax.f32 %v1260, 0.0
      %v1709 = vmax.f32 %v1261, 0.0
      %v1710 = vmax.f32 %v1262, 0.0
      %v1711 = vmax.f32 %v1263, 0.0
      %v1712 = vmax.f32 %v1264, 0.0
      %v1713 = vmax.f32 %v1265, 0.0
      %v1714 = vmax.f32 %v1266, 0.0
      %v1715 = vmax.f32 %v1267, 0.0
      %v1716 = vmax.f32 %v1268, 0.0
      %v1717 = vmax.f32 %v1269, 0.0
      %v1718 = vmax.f32 %v1270, 0.0
      %v1719 = vmax.f32 %v1271, 0.0
      %v1720 = vmax.f32 %v1272, 0.0
      %v1721 = vmax.f32 %v1273, 0.0
      %v1722 = vmax.f32 %v1274, 0.0
      %v1723 = vmax.f32 %v1275, 0.0
      %v1724 = vmax.f32 %v1276, 0.0
      %v1725 = vmax.f32 %v1277, 0.0
      %v1726 = vmax.f32 %v1278, 0.0
      %v1727 = vmax.f32 %v1279, 0.0
      %v1728 = vmax.f32 %v1280, 0.0
      %v1729 = vmax.f32 %v1281, 0.0
      %v1730 = vmax.f32 %v1282, 0.0
      %v1731 = vmax.f32 %v1283, 0.0
      %v1732 = vmax.f32 %v1284, 0.0
      %v1733 = vmax.f32 %v1285, 0.0
      %v1734 = vmax.f32 %v1286, 0.0
      %v1735 = vmax.f32 %v1287, 0.0
      %v1736 = vmax.f32 %v1288, 0.0
      %v1737 = vmax.f32 %v1289, 0.0
      %v1738 = vmax.f32 %v1290, 0.0
      %v1739 = vmax.f32 %v1291, 0.0
      %v1740 = vmax.f32 %v1292, 0.0
      %v1741 = vmax.f32 %v1293, 0.0
      %v1742 = vmax.f32 %v1294, 0.0
      %v1743 = vmax.f32 %v1295, 0.0
      %v1744 = vmax.f32 %v1296, 0.0
      %v1745 = vmax.f32 %v1297, 0.0
      %v1746 = vmax.f32 %v1298, 0.0
      %v1747 = vmax.f32 %v1299, 0.0
      %v1748 = vmax.f32 %v1300, 0.0
      %v1749 = vmax.f32 %v1301, 0.0
      %v1750 = vmax.f32 %v1302, 0.0
      %v1751 = vmax.f32 %v1303, 0.0
      %v1752 = vmax.f32 %v1304, 0.0
      %v1753 = vmax.f32 %v1305, 0.0
      %v1754 = vmax.f32 %v1306, 0.0
      %v1755 = vmax.f32 %v1307, 0.0
      %v1756 = vmax.f32 %v1308, 0.0
      %v1757 = vmax.f32 %v1309, 0.0
      %v1758 = vmax.f32 %v1310, 0.0
      %v1759 = vmax.f32 %v1311, 0.0
      %v1760 = vmax.f32 %v1312, 0.0
      %v1761 = vmax.f32 %v1313, 0.0
      %v1762 = vmax.f32 %v1314, 0.0
      %v1763 = vmax.f32 %v1315, 0.0
      %v1764 = vmax.f32 %v1316, 0.0
      %v1765 = vmax.f32 %v1317, 0.0
      %v1766 = vmax.f32 %v1318, 0.0
      %v1767 = vmax.f32 %v1319, 0.0
      %v1768 = vmax.f32 %v1320, 0.0
      %v1769 = vmax.f32 %v1321, 0.0
      %v1770 = vmax.f32 %v1322, 0.0
      %v1771 = vmax.f32 %v1323, 0.0
      %v1772 = vmax.f32 %v1324, 0.0
      %v1773 = vmax.f32 %v1325, 0.0
      %v1774 = vmax.f32 %v1326, 0.0
      %v1775 = vmax.f32 %v1327, 0.0
      %v1776 = vmax.f32 %v1328, 0.0
      %v1777 = vmax.f32 %v1329, 0.0
      %v1778 = vmax.f32 %v1330, 0.0
      %v1779 = vmax.f32 %v1331, 0.0
      %v1780 = vmax.f32 %v1332, 0.0
      %v1781 = vmax.f32 %v1333, 0.0
      %v1782 = vmax.f32 %v1334, 0.0
      %v1783 = vmax.f32 %v1335, 0.0
      %v1784 = vmax.f32 %v1336, 0.0
      %v1785 = vmax.f32 %v1337, 0.0
      %v1786 = vmax.f32 %v1338, 0.0
      %v1787 = vmax.f32 %v1339, 0.0
      %v1788 = vmax.f32 %v1340, 0.0
      %v1789 = vmax.f32 %v1341, 0.0
      %v1790 = vmax.f32 %v1342, 0.0
      %v1791 = vmax.f32 %v1343, 0.0
      %v1792 = vmax.f32 %v1344, 0.0
      %v1793 = vmax.f32 %v1345, 0.0
      %v1794 = vmax.f32 %v1346, 0.0
      %v1795 = vmax.f32 %v1347, 0.0
      %v1796 = vmax.f32 %v1348, 0.0
      %v1797 = vmax.f32 %v1349, 0.0
      %v1798 = vmax.f32 %v1350, 0.0
      %v1799 = vmax.f32 %v1351, 0.0
      %v1800 = vmax.f32 %v1352, 0.0
      %v1801 = vmax.f32 %v1353, 0.0
      %v1802 = vmax.f32 %v1354, 0.0
      %v1803 = vmax.f32 %v1355, 0.0
      %v1804 = vmax.f32 %v1356, 0.0
      %v1805 = vmax.f32 %v1357, 0.0
      %v1806 = vmax.f32 %v1358, 0.0
      %v1807 = vmax.f32 %v1359, 0.0
      %v1808 = vmax.f32 %v1360, 0.0
      %v1809 = vmax.f32 %v1361, 0.0
      %v1810 = vmax.f32 %v1362, 0.0
      %v1811 = vmax.f32 %v1363, 0.0
      %v1812 = vmax.f32 %v1364, 0.0
      %v1813 = vmax.f32 %v1365, 0.0
      %v1814 = vmax.f32 %v1366, 0.0
      %v1815 = vmax.f32 %v1367, 0.0
      %v1816 = vmax.f32 %v1368, 0.0
      %v1817 = vmax.f32 %v1369, 0.0
      %v1818 = vmax.f32 %v1370, 0.0
      %v1819 = vmax.f32 %v1371, 0.0
      %v1820 = vmax.f32 %v1372, 0.0
      %v1821 = vmax.f32 %v1373, 0.0
      %v1822 = vmax.f32 %v1374, 0.0
      %v1823 = vmax.f32 %v1375, 0.0
      %v1824 = vmax.f32 %v1376, 0.0
      %v1825 = vmax.f32 %v1377, 0.0
      %v1826 = vmax.f32 %v1378, 0.0
      %v1827 = vmax.f32 %v1379, 0.0
      %v1828 = vmax.f32 %v1380, 0.0
      %v1829 = vmax.f32 %v1381, 0.0
      %v1830 = vmax.f32 %v1382, 0.0
      %v1831 = vmax.f32 %v1383, 0.0
      %v1832 = vmax.f32 %v1384, 0.0
      %v1833 = vmax.f32 %v1385, 0.0
      %v1834 = vmax.f32 %v1386, 0.0
      %v1835 = vmax.f32 %v1387, 0.0
      %v1836 = vmax.f32 %v1388, 0.0
      %v1837 = vmax.f32 %v1389, 0.0
      %v1838 = vmax.f32 %v1390, 0.0
      %v1839 = vmax.f32 %v1391, 0.0
      %v1840 = vmax.f32 %v1392, 0.0
      %v1841 = vmax.f32 %v1393, 0.0
      %v1842 = vmax.f32 %v1394, 0.0
      %v1843 = vmax.f32 %v1395, 0.0
      %v1844 = vmax.f32 %v1396, 0.0
      %v1845 = vmax.f32 %v1397, 0.0
      %v1846 = vmax.f32 %v1398, 0.0
      %v1847 = vmax.f32 %v1399, 0.0
      %v1848 = vmax.f32 %v1400, 0.0
      %v1849 = vmax.f32 %v1401, 0.0
      %v1850 = vmax.f32 %v1402, 0.0
      %v1851 = vmax.f32 %v1403, 0.0
      %v1852 = vmax.f32 %v1404, 0.0
      %v1853 = vmax.f32 %v1405, 0.0
      %v1854 = vmax.f32 %v1406, 0.0
      %v1855 = vmax.f32 %v1407, 0.0
      %v1856 = vmax.f32 %v1408, 0.0
      %v1857 = vmax.f32 %v1409, 0.0
      %v1858 = vmax.f32 %v1410, 0.0
      %v1859 = vmax.f32 %v1411, 0.0
      %v1860 = vmax.f32 %v1412, 0.0
      %v1861 = vmax.f32 %v1413, 0.0
      %v1862 = vmax.f32 %v1414, 0.0
      %v1863 = vmax.f32 %v1415, 0.0
      %v1864 = vmax.f32 %v1416, 0.0
      %v1865 = vmax.f32 %v1417, 0.0
      %v1866 = vmax.f32 %v1418, 0.0
      %v1867 = vmax.f32 %v1419, 0.0
      %v1868 = vmax.f32 %v1420, 0.0
      %v1869 = vmax.f32 %v1421, 0.0
      %v1870 = vmax.f32 %v1422, 0.0
      %v1871 = vmax.f32 %v1423, 0.0
      %v1872 = vmax.f32 %v1424, 0.0
      %v1873 = vmax.f32 %v1425, 0.0
      %v1874 = vmax.f32 %v1426, 0.0
      %v1875 = vmax.f32 %v1427, 0.0
      %v1876 = vmax.f32 %v1428, 0.0
      %v1877 = vmax.f32 %v1429, 0.0
      %v1878 = vmax.f32 %v1430, 0.0
      %v1879 = vmax.f32 %v1431, 0.0
      %v1880 = vmax.f32 %v1432, 0.0
      %v1881 = vmax.f32 %v1433, 0.0
      %v1882 = vmax.f32 %v1434, 0.0
      %v1883 = vmax.f32 %v1435, 0.0
      %v1884 = vmax.f32 %v1436, 0.0
      %v1885 = vmax.f32 %v1437, 0.0
      %v1886 = vmax.f32 %v1438, 0.0
      %v1887 = vmax.f32 %v1439, 0.0
      %v1888 = vmax.f32 %v1440, 0.0
      %v1889 = vmax.f32 %v1441, 0.0
      %v1890 = vmax.f32 %v1442, 0.0
      %v1891 = vmax.f32 %v1443, 0.0
      %v1892 = vmax.f32 %v1444, 0.0
      %v1893 = vmax.f32 %v1445, 0.0
      %v1894 = vmax.f32 %v1446, 0.0
      %v1895 = vmax.f32 %v1447, 0.0
      %v1896 = vmax.f32 %v1448, 0.0
      %v1897 = vmax.f32 %v1449, 0.0
      %v1898 = vmax.f32 %v1450, 0.0
      %v1899 = vmax.f32 %v1451, 0.0
      %v1900 = vmax.f32 %v1452, 0.0
      %v1901 = vmax.f32 %v1453, 0.0
      %v1902 = vmax.f32 %v1454, 0.0
      %v1903 = vmax.f32 %v1455, 0.0
      %v1904 = vmax.f32 %v1456, 0.0
      %v1905 = vmax.f32 %v1457, 0.0
      %v1906 = vmax.f32 %v1458, 0.0
      %v1907 = vmax.f32 %v1459, 0.0
      %v1908 = vmax.f32 %v1460, 0.0
      %v1909 = vmax.f32 %v1461, 0.0
      %v1910 = vmax.f32 %v1462, 0.0
      %v1911 = vmax.f32 %v1463, 0.0
      %v1912 = vmax.f32 %v1464, 0.0
      %v1913 = vmax.f32 %v1465, 0.0
      %v1914 = vmax.f32 %v1466, 0.0
      %v1915 = vmax.f32 %v1467, 0.0
      %v1916 = vmax.f32 %v1468, 0.0
      %v1917 = vmax.f32 %v1469, 0.0
      %v1918 = vmax.f32 %v1470, 0.0
      %v1919 = vmax.f32 %v1471, 0.0
      %v1920 = vmax.f32 %v1472, 0.0
      %v1921 = vmax.f32 %v1473, 0.0
      %v1922 = vmax.f32 %v1474, 0.0
      %v1923 = vmax.f32 %v1475, 0.0
      %v1924 = vmax.f32 %v1476, 0.0
      %v1925 = vmax.f32 %v1477, 0.0
      %v1926 = vmax.f32 %v1478, 0.0
      %v1927 = vmax.f32 %v1479, 0.0
      %v1928 = vmax.f32 %v1480, 0.0
      %v1929 = vmax.f32 %v1481, 0.0
      %v1930 = vmax.f32 %v1482, 0.0
      %v1931 = vmax.f32 %v1483, 0.0
      %v1932 = vmax.f32 %v1484, 0.0
      %v1933 = vmax.f32 %v1485, 0.0
      %v1934 = vmax.f32 %v1486, 0.0
      %v1935 = vmax.f32 %v1487, 0.0
      %v1936 = vmax.f32 %v1488, 0.0
      %v1937 = vmax.f32 %v1489, 0.0
      %v1938 = vmax.f32 %v1490, 0.0
      %v1939 = vmax.f32 %v1491, 0.0
      %v1940 = vmax.f32 %v1492, 0.0
      %v1941 = vmax.f32 %v1493, 0.0
      %v1942 = vmax.f32 %v1494, 0.0
      %v1943 = vmax.f32 %v1495, 0.0
      %v1944 = vmax.f32 %v1496, 0.0
      %v1945 = vmax.f32 %v1497, 0.0
      %v1946 = vmax.f32 %v1498, 0.0
      %v1947 = vmax.f32 %v1499, 0.0
      %v1948 = vmax.f32 %v1500, 0.0
      %v1949 = vmax.f32 %v1501, 0.0
      %v1950 = vmax.f32 %v1502, 0.0
      %v1951 = vmax.f32 %v1503, 0.0
      %v1952 = vmax.f32 %v1504, 0.0
      %v1953 = vmax.f32 %v1505, 0.0
      %v1954 = vmax.f32 %v1506, 0.0
      %v1955 = vmax.f32 %v1507, 0.0
      %v1956 = vmax.f32 %v1508, 0.0
      %v1957 = vmax.f32 %v1509, 0.0
      %v1958 = vmax.f32 %v1510, 0.0
      %v1959 = vmax.f32 %v1511, 0.0
      %v1960 = vmax.f32 %v1512, 0.0
      %v1961 = vmax.f32 %v1513, 0.0
      %v1962 = vmax.f32 %v1514, 0.0
      %v1963 = vmax.f32 %v1515, 0.0
      %v1964 = vmax.f32 %v1516, 0.0
      %v1965 = vmax.f32 %v1517, 0.0
      %v1966 = vmax.f32 %v1518, 0.0
      %v1967 = vmax.f32 %v1519, 0.0
      %v1968 = vmax.f32 %v1520, 0.0
      %v1969 = vmax.f32 %v1521, 0.0
      %v1970 = vmax.f32 %v1522, 0.0
      %v1971 = vmax.f32 %v1523, 0.0
      %v1972 = vmax.f32 %v1524, 0.0
      %v1973 = vmax.f32 %v1525, 0.0
      %v1974 = vmax.f32 %v1526, 0.0
      %v1975 = vmax.f32 %v1527, 0.0
      %v1976 = vmax.f32 %v1528, 0.0
      %v1977 = vmax.f32 %v1529, 0.0
      %v1978 = vmax.f32 %v1530, 0.0
      %v1979 = vmax.f32 %v1531, 0.0
      %vm1980 = vcmask 31744
      %1981 = vst.msk [vmem:[%s172] sm:$0xff] %vm1980, %v1532
      %1982 = vst.msk [vmem:[%s172 + $0x8] sm:$0xff] %vm1980, %v1533
      %1983 = vst.msk [vmem:[%s172 + $0x10] sm:$0xff] %vm1980, %v1534
      %1984 = vst.msk [vmem:[%s172 + $0x18] sm:$0xff] %vm1980, %v1535
      %1985 = vst.msk [vmem:[%s172 + $0x20] sm:$0xff] %vm1980, %v1536
      %1986 = vst.msk [vmem:[%s172 + $0x28] sm:$0xff] %vm1980, %v1537
      %1987 = vst.msk [vmem:[%s172 + $0x30] sm:$0xff] %vm1980, %v1538
      %1988 = vst.msk [vmem:[%s172 + $0x38] sm:$0xff] %vm1980, %v1539
      %1989 = vst.msk [vmem:[%s172 + $0x40] sm:$0xff] %vm1980, %v1540
      %1990 = vst.msk [vmem:[%s172 + $0x48] sm:$0xff] %vm1980, %v1541
      %1991 = vst.msk [vmem:[%s172 + $0x50] sm:$0xff] %vm1980, %v1542
      %1992 = vst.msk [vmem:[%s172 + $0x58] sm:$0xff] %vm1980, %v1543
      %1993 = vst.msk [vmem:[%s172 + $0x60] sm:$0xff] %vm1980, %v1544
      %1994 = vst.msk [vmem:[%s172 + $0x68] sm:$0xff] %vm1980, %v1545
      %1995 = vst.msk [vmem:[%s172 + $0x70] sm:$0xff] %vm1980, %v1546
      %1996 = vst.msk [vmem:[%s172 + $0x78] sm:$0xff] %vm1980, %v1547
      %1997 = vst.msk [vmem:[%s172 + $0x80] sm:$0xff] %vm1980, %v1548
      %1998 = vst.msk [vmem:[%s172 + $0x88] sm:$0xff] %vm1980, %v1549
      %1999 = vst.msk [vmem:[%s172 + $0x90] sm:$0xff] %vm1980, %v1550
      %2000 = vst.msk [vmem:[%s172 + $0x98] sm:$0xff] %vm1980, %v1551
      %2001 = vst.msk [vmem:[%s172 + $0xa0] sm:$0xff] %vm1980, %v1552
      %2002 = vst.msk [vmem:[%s172 + $0xa8] sm:$0xff] %vm1980, %v1553
      %2003 = vst.msk [vmem:[%s172 + $0xb0] sm:$0xff] %vm1980, %v1554
      %2004 = vst.msk [vmem:[%s172 + $0xb8] sm:$0xff] %vm1980, %v1555
      %2005 = vst.msk [vmem:[%s172 + $0xc0] sm:$0xff] %vm1980, %v1556
      %2006 = vst.msk [vmem:[%s172 + $0xc8] sm:$0xff] %vm1980, %v1557
      %2007 = vst.msk [vmem:[%s172 + $0xd0] sm:$0xff] %vm1980, %v1558
      %2008 = vst.msk [vmem:[%s172 + $0xd8] sm:$0xff] %vm1980, %v1559
      %2009 = vst.msk [vmem:[%s172 + $0xe0] sm:$0xff] %vm1980, %v1560
      %2010 = vst.msk [vmem:[%s172 + $0xe8] sm:$0xff] %vm1980, %v1561
      %2011 = vst.msk [vmem:[%s172 + $0xf0] sm:$0xff] %vm1980, %v1562
      %2012 = vst.msk [vmem:[%s172 + $0xf8] sm:$0xff] %vm1980, %v1563
      %2013 = vst.msk [vmem:[%s172 + $0x100] sm:$0xff] %vm1980, %v1564
      %2014 = vst.msk [vmem:[%s172 + $0x108] sm:$0xff] %vm1980, %v1565
      %2015 = vst.msk [vmem:[%s172 + $0x110] sm:$0xff] %vm1980, %v1566
      %2016 = vst.msk [vmem:[%s172 + $0x118] sm:$0xff] %vm1980, %v1567
      %2017 = vst.msk [vmem:[%s172 + $0x120] sm:$0xff] %vm1980, %v1568
      %2018 = vst.msk [vmem:[%s172 + $0x128] sm:$0xff] %vm1980, %v1569
      %2019 = vst.msk [vmem:[%s172 + $0x130] sm:$0xff] %vm1980, %v1570
      %2020 = vst.msk [vmem:[%s172 + $0x138] sm:$0xff] %vm1980, %v1571
      %2021 = vst.msk [vmem:[%s172 + $0x140] sm:$0xff] %vm1980, %v1572
      %2022 = vst.msk [vmem:[%s172 + $0x148] sm:$0xff] %vm1980, %v1573
      %2023 = vst.msk [vmem:[%s172 + $0x150] sm:$0xff] %vm1980, %v1574
      %2024 = vst.msk [vmem:[%s172 + $0x158] sm:$0xff] %vm1980, %v1575
      %2025 = vst.msk [vmem:[%s172 + $0x160] sm:$0xff] %vm1980, %v1576
      %2026 = vst.msk [vmem:[%s172 + $0x168] sm:$0xff] %vm1980, %v1577
      %2027 = vst.msk [vmem:[%s172 + $0x170] sm:$0xff] %vm1980, %v1578
      %2028 = vst.msk [vmem:[%s172 + $0x178] sm:$0xff] %vm1980, %v1579
      %2029 = vst.msk [vmem:[%s172 + $0x180] sm:$0xff] %vm1980, %v1580
      %2030 = vst.msk [vmem:[%s172 + $0x188] sm:$0xff] %vm1980, %v1581
      %2031 = vst.msk [vmem:[%s172 + $0x190] sm:$0xff] %vm1980, %v1582
      %2032 = vst.msk [vmem:[%s172 + $0x198] sm:$0xff] %vm1980, %v1583
      %2033 = vst.msk [vmem:[%s172 + $0x1a0] sm:$0xff] %vm1980, %v1584
      %2034 = vst.msk [vmem:[%s172 + $0x1a8] sm:$0xff] %vm1980, %v1585
      %2035 = vst.msk [vmem:[%s172 + $0x1b0] sm:$0xff] %vm1980, %v1586
      %2036 = vst.msk [vmem:[%s172 + $0x1b8] sm:$0xff] %vm1980, %v1587
      %2037 = vst.msk [vmem:[%s172 + $0x1c0] sm:$0xff] %vm1980, %v1588
      %2038 = vst.msk [vmem:[%s172 + $0x1c8] sm:$0xff] %vm1980, %v1589
      %2039 = vst.msk [vmem:[%s172 + $0x1d0] sm:$0xff] %vm1980, %v1590
      %2040 = vst.msk [vmem:[%s172 + $0x1d8] sm:$0xff] %vm1980, %v1591
      %2041 = vst.msk [vmem:[%s172 + $0x1e0] sm:$0xff] %vm1980, %v1592
      %2042 = vst.msk [vmem:[%s172 + $0x1e8] sm:$0xff] %vm1980, %v1593
      %2043 = vst.msk [vmem:[%s172 + $0x1f0] sm:$0xff] %vm1980, %v1594
      %2044 = vst.msk [vmem:[%s172 + $0x1f8] sm:$0xff] %vm1980, %v1595
      %2045 = vst.msk [vmem:[%s172 + $0x200] sm:$0xff] %vm1980, %v1596
      %2046 = vst.msk [vmem:[%s172 + $0x208] sm:$0xff] %vm1980, %v1597
      %2047 = vst.msk [vmem:[%s172 + $0x210] sm:$0xff] %vm1980, %v1598
      %2048 = vst.msk [vmem:[%s172 + $0x218] sm:$0xff] %vm1980, %v1599
      %2049 = vst.msk [vmem:[%s172 + $0x220] sm:$0xff] %vm1980, %v1600
      %2050 = vst.msk [vmem:[%s172 + $0x228] sm:$0xff] %vm1980, %v1601
      %2051 = vst.msk [vmem:[%s172 + $0x230] sm:$0xff] %vm1980, %v1602
      %2052 = vst.msk [vmem:[%s172 + $0x238] sm:$0xff] %vm1980, %v1603
      %2053 = vst.msk [vmem:[%s172 + $0x240] sm:$0xff] %vm1980, %v1604
      %2054 = vst.msk [vmem:[%s172 + $0x248] sm:$0xff] %vm1980, %v1605
      %2055 = vst.msk [vmem:[%s172 + $0x250] sm:$0xff] %vm1980, %v1606
      %2056 = vst.msk [vmem:[%s172 + $0x258] sm:$0xff] %vm1980, %v1607
      %2057 = vst.msk [vmem:[%s172 + $0x260] sm:$0xff] %vm1980, %v1608
      %2058 = vst.msk [vmem:[%s172 + $0x268] sm:$0xff] %vm1980, %v1609
      %2059 = vst.msk [vmem:[%s172 + $0x270] sm:$0xff] %vm1980, %v1610
      %2060 = vst.msk [vmem:[%s172 + $0x278] sm:$0xff] %vm1980, %v1611
      %2061 = vst.msk [vmem:[%s172 + $0x280] sm:$0xff] %vm1980, %v1612
      %2062 = vst.msk [vmem:[%s172 + $0x288] sm:$0xff] %vm1980, %v1613
      %2063 = vst.msk [vmem:[%s172 + $0x290] sm:$0xff] %vm1980, %v1614
      %2064 = vst.msk [vmem:[%s172 + $0x298] sm:$0xff] %vm1980, %v1615
      %2065 = vst.msk [vmem:[%s172 + $0x2a0] sm:$0xff] %vm1980, %v1616
      %2066 = vst.msk [vmem:[%s172 + $0x2a8] sm:$0xff] %vm1980, %v1617
      %2067 = vst.msk [vmem:[%s172 + $0x2b0] sm:$0xff] %vm1980, %v1618
      %2068 = vst.msk [vmem:[%s172 + $0x2b8] sm:$0xff] %vm1980, %v1619
      %2069 = vst.msk [vmem:[%s172 + $0x2c0] sm:$0xff] %vm1980, %v1620
      %2070 = vst.msk [vmem:[%s172 + $0x2c8] sm:$0xff] %vm1980, %v1621
      %2071 = vst.msk [vmem:[%s172 + $0x2d0] sm:$0xff] %vm1980, %v1622
      %2072 = vst.msk [vmem:[%s172 + $0x2d8] sm:$0xff] %vm1980, %v1623
      %2073 = vst.msk [vmem:[%s172 + $0x2e0] sm:$0xff] %vm1980, %v1624
      %2074 = vst.msk [vmem:[%s172 + $0x2e8] sm:$0xff] %vm1980, %v1625
      %2075 = vst.msk [vmem:[%s172 + $0x2f0] sm:$0xff] %vm1980, %v1626
      %2076 = vst.msk [vmem:[%s172 + $0x2f8] sm:$0xff] %vm1980, %v1627
      %2077 = vst.msk [vmem:[%s172 + $0x300] sm:$0xff] %vm1980, %v1628
      %2078 = vst.msk [vmem:[%s172 + $0x308] sm:$0xff] %vm1980, %v1629
      %2079 = vst.msk [vmem:[%s172 + $0x310] sm:$0xff] %vm1980, %v1630
      %2080 = vst.msk [vmem:[%s172 + $0x318] sm:$0xff] %vm1980, %v1631
      %2081 = vst.msk [vmem:[%s172 + $0x320] sm:$0xff] %vm1980, %v1632
      %2082 = vst.msk [vmem:[%s172 + $0x328] sm:$0xff] %vm1980, %v1633
      %2083 = vst.msk [vmem:[%s172 + $0x330] sm:$0xff] %vm1980, %v1634
      %2084 = vst.msk [vmem:[%s172 + $0x338] sm:$0xff] %vm1980, %v1635
      %2085 = vst.msk [vmem:[%s172 + $0x340] sm:$0xff] %vm1980, %v1636
      %2086 = vst.msk [vmem:[%s172 + $0x348] sm:$0xff] %vm1980, %v1637
      %2087 = vst.msk [vmem:[%s172 + $0x350] sm:$0xff] %vm1980, %v1638
      %2088 = vst.msk [vmem:[%s172 + $0x358] sm:$0xff] %vm1980, %v1639
      %2089 = vst.msk [vmem:[%s172 + $0x360] sm:$0xff] %vm1980, %v1640
      %2090 = vst.msk [vmem:[%s172 + $0x368] sm:$0xff] %vm1980, %v1641
      %2091 = vst.msk [vmem:[%s172 + $0x370] sm:$0xff] %vm1980, %v1642
      %2092 = vst.msk [vmem:[%s172 + $0x378] sm:$0xff] %vm1980, %v1643
      %2093 = vst.msk [vmem:[%s172 + $0x380] sm:$0xff] %vm1980, %v1644
      %2094 = vst.msk [vmem:[%s172 + $0x388] sm:$0xff] %vm1980, %v1645
      %2095 = vst.msk [vmem:[%s172 + $0x390] sm:$0xff] %vm1980, %v1646
      %2096 = vst.msk [vmem:[%s172 + $0x398] sm:$0xff] %vm1980, %v1647
      %2097 = vst.msk [vmem:[%s172 + $0x3a0] sm:$0xff] %vm1980, %v1648
      %2098 = vst.msk [vmem:[%s172 + $0x3a8] sm:$0xff] %vm1980, %v1649
      %2099 = vst.msk [vmem:[%s172 + $0x3b0] sm:$0xff] %vm1980, %v1650
      %2100 = vst.msk [vmem:[%s172 + $0x3b8] sm:$0xff] %vm1980, %v1651
      %2101 = vst.msk [vmem:[%s172 + $0x3c0] sm:$0xff] %vm1980, %v1652
      %2102 = vst.msk [vmem:[%s172 + $0x3c8] sm:$0xff] %vm1980, %v1653
      %2103 = vst.msk [vmem:[%s172 + $0x3d0] sm:$0xff] %vm1980, %v1654
      %2104 = vst.msk [vmem:[%s172 + $0x3d8] sm:$0xff] %vm1980, %v1655
      %2105 = vst.msk [vmem:[%s172 + $0x3e0] sm:$0xff] %vm1980, %v1656
      %2106 = vst.msk [vmem:[%s172 + $0x3e8] sm:$0xff] %vm1980, %v1657
      %2107 = vst.msk [vmem:[%s172 + $0x3f0] sm:$0xff] %vm1980, %v1658
      %2108 = vst.msk [vmem:[%s172 + $0x3f8] sm:$0xff] %vm1980, %v1659
      %2109 = vst.msk [vmem:[%s172 + $0x400] sm:$0xff] %vm1980, %v1660
      %2110 = vst.msk [vmem:[%s172 + $0x408] sm:$0xff] %vm1980, %v1661
      %2111 = vst.msk [vmem:[%s172 + $0x410] sm:$0xff] %vm1980, %v1662
      %2112 = vst.msk [vmem:[%s172 + $0x418] sm:$0xff] %vm1980, %v1663
      %2113 = vst.msk [vmem:[%s172 + $0x420] sm:$0xff] %vm1980, %v1664
      %2114 = vst.msk [vmem:[%s172 + $0x428] sm:$0xff] %vm1980, %v1665
      %2115 = vst.msk [vmem:[%s172 + $0x430] sm:$0xff] %vm1980, %v1666
      %2116 = vst.msk [vmem:[%s172 + $0x438] sm:$0xff] %vm1980, %v1667
      %2117 = vst.msk [vmem:[%s172 + $0x440] sm:$0xff] %vm1980, %v1668
      %2118 = vst.msk [vmem:[%s172 + $0x448] sm:$0xff] %vm1980, %v1669
      %2119 = vst.msk [vmem:[%s172 + $0x450] sm:$0xff] %vm1980, %v1670
      %2120 = vst.msk [vmem:[%s172 + $0x458] sm:$0xff] %vm1980, %v1671
      %2121 = vst.msk [vmem:[%s172 + $0x460] sm:$0xff] %vm1980, %v1672
      %2122 = vst.msk [vmem:[%s172 + $0x468] sm:$0xff] %vm1980, %v1673
      %2123 = vst.msk [vmem:[%s172 + $0x470] sm:$0xff] %vm1980, %v1674
      %2124 = vst.msk [vmem:[%s172 + $0x478] sm:$0xff] %vm1980, %v1675
      %2125 = vst.msk [vmem:[%s172 + $0x480] sm:$0xff] %vm1980, %v1676
      %2126 = vst.msk [vmem:[%s172 + $0x488] sm:$0xff] %vm1980, %v1677
      %2127 = vst.msk [vmem:[%s172 + $0x490] sm:$0xff] %vm1980, %v1678
      %2128 = vst.msk [vmem:[%s172 + $0x498] sm:$0xff] %vm1980, %v1679
      %2129 = vst.msk [vmem:[%s172 + $0x4a0] sm:$0xff] %vm1980, %v1680
      %2130 = vst.msk [vmem:[%s172 + $0x4a8] sm:$0xff] %vm1980, %v1681
      %2131 = vst.msk [vmem:[%s172 + $0x4b0] sm:$0xff] %vm1980, %v1682
      %2132 = vst.msk [vmem:[%s172 + $0x4b8] sm:$0xff] %vm1980, %v1683
      %2133 = vst.msk [vmem:[%s172 + $0x4c0] sm:$0xff] %vm1980, %v1684
      %2134 = vst.msk [vmem:[%s172 + $0x4c8] sm:$0xff] %vm1980, %v1685
      %2135 = vst.msk [vmem:[%s172 + $0x4d0] sm:$0xff] %vm1980, %v1686
      %2136 = vst.msk [vmem:[%s172 + $0x4d8] sm:$0xff] %vm1980, %v1687
      %2137 = vst.msk [vmem:[%s172 + $0x4e0] sm:$0xff] %vm1980, %v1688
      %2138 = vst.msk [vmem:[%s172 + $0x4e8] sm:$0xff] %vm1980, %v1689
      %2139 = vst.msk [vmem:[%s172 + $0x4f0] sm:$0xff] %vm1980, %v1690
      %2140 = vst.msk [vmem:[%s172 + $0x4f8] sm:$0xff] %vm1980, %v1691
      %2141 = vst.msk [vmem:[%s172 + $0x500] sm:$0xff] %vm1980, %v1692
      %2142 = vst.msk [vmem:[%s172 + $0x508] sm:$0xff] %vm1980, %v1693
      %2143 = vst.msk [vmem:[%s172 + $0x510] sm:$0xff] %vm1980, %v1694
      %2144 = vst.msk [vmem:[%s172 + $0x518] sm:$0xff] %vm1980, %v1695
      %2145 = vst.msk [vmem:[%s172 + $0x520] sm:$0xff] %vm1980, %v1696
      %2146 = vst.msk [vmem:[%s172 + $0x528] sm:$0xff] %vm1980, %v1697
      %2147 = vst.msk [vmem:[%s172 + $0x530] sm:$0xff] %vm1980, %v1698
      %2148 = vst.msk [vmem:[%s172 + $0x538] sm:$0xff] %vm1980, %v1699
      %2149 = vst.msk [vmem:[%s172 + $0x540] sm:$0xff] %vm1980, %v1700
      %2150 = vst.msk [vmem:[%s172 + $0x548] sm:$0xff] %vm1980, %v1701
      %2151 = vst.msk [vmem:[%s172 + $0x550] sm:$0xff] %vm1980, %v1702
      %2152 = vst.msk [vmem:[%s172 + $0x558] sm:$0xff] %vm1980, %v1703
      %2153 = vst.msk [vmem:[%s172 + $0x560] sm:$0xff] %vm1980, %v1704
      %2154 = vst.msk [vmem:[%s172 + $0x568] sm:$0xff] %vm1980, %v1705
      %2155 = vst.msk [vmem:[%s172 + $0x570] sm:$0xff] %vm1980, %v1706
      %2156 = vst.msk [vmem:[%s172 + $0x578] sm:$0xff] %vm1980, %v1707
      %2157 = vst.msk [vmem:[%s172 + $0x580] sm:$0xff] %vm1980, %v1708
      %2158 = vst.msk [vmem:[%s172 + $0x588] sm:$0xff] %vm1980, %v1709
      %2159 = vst.msk [vmem:[%s172 + $0x590] sm:$0xff] %vm1980, %v1710
      %2160 = vst.msk [vmem:[%s172 + $0x598] sm:$0xff] %vm1980, %v1711
      %2161 = vst.msk [vmem:[%s172 + $0x5a0] sm:$0xff] %vm1980, %v1712
      %2162 = vst.msk [vmem:[%s172 + $0x5a8] sm:$0xff] %vm1980, %v1713
      %2163 = vst.msk [vmem:[%s172 + $0x5b0] sm:$0xff] %vm1980, %v1714
      %2164 = vst.msk [vmem:[%s172 + $0x5b8] sm:$0xff] %vm1980, %v1715
      %2165 = vst.msk [vmem:[%s172 + $0x5c0] sm:$0xff] %vm1980, %v1716
      %2166 = vst.msk [vmem:[%s172 + $0x5c8] sm:$0xff] %vm1980, %v1717
      %2167 = vst.msk [vmem:[%s172 + $0x5d0] sm:$0xff] %vm1980, %v1718
      %2168 = vst.msk [vmem:[%s172 + $0x5d8] sm:$0xff] %vm1980, %v1719
      %2169 = vst.msk [vmem:[%s172 + $0x5e0] sm:$0xff] %vm1980, %v1720
      %2170 = vst.msk [vmem:[%s172 + $0x5e8] sm:$0xff] %vm1980, %v1721
      %2171 = vst.msk [vmem:[%s172 + $0x5f0] sm:$0xff] %vm1980, %v1722
      %2172 = vst.msk [vmem:[%s172 + $0x5f8] sm:$0xff] %vm1980, %v1723
      %2173 = vst.msk [vmem:[%s172 + $0x600] sm:$0xff] %vm1980, %v1724
      %2174 = vst.msk [vmem:[%s172 + $0x608] sm:$0xff] %vm1980, %v1725
      %2175 = vst.msk [vmem:[%s172 + $0x610] sm:$0xff] %vm1980, %v1726
      %2176 = vst.msk [vmem:[%s172 + $0x618] sm:$0xff] %vm1980, %v1727
      %2177 = vst.msk [vmem:[%s172 + $0x620] sm:$0xff] %vm1980, %v1728
      %2178 = vst.msk [vmem:[%s172 + $0x628] sm:$0xff] %vm1980, %v1729
      %2179 = vst.msk [vmem:[%s172 + $0x630] sm:$0xff] %vm1980, %v1730
      %2180 = vst.msk [vmem:[%s172 + $0x638] sm:$0xff] %vm1980, %v1731
      %2181 = vst.msk [vmem:[%s172 + $0x640] sm:$0xff] %vm1980, %v1732
      %2182 = vst.msk [vmem:[%s172 + $0x648] sm:$0xff] %vm1980, %v1733
      %2183 = vst.msk [vmem:[%s172 + $0x650] sm:$0xff] %vm1980, %v1734
      %2184 = vst.msk [vmem:[%s172 + $0x658] sm:$0xff] %vm1980, %v1735
      %2185 = vst.msk [vmem:[%s172 + $0x660] sm:$0xff] %vm1980, %v1736
      %2186 = vst.msk [vmem:[%s172 + $0x668] sm:$0xff] %vm1980, %v1737
      %2187 = vst.msk [vmem:[%s172 + $0x670] sm:$0xff] %vm1980, %v1738
      %2188 = vst.msk [vmem:[%s172 + $0x678] sm:$0xff] %vm1980, %v1739
      %2189 = vst.msk [vmem:[%s172 + $0x680] sm:$0xff] %vm1980, %v1740
      %2190 = vst.msk [vmem:[%s172 + $0x688] sm:$0xff] %vm1980, %v1741
      %2191 = vst.msk [vmem:[%s172 + $0x690] sm:$0xff] %vm1980, %v1742
      %2192 = vst.msk [vmem:[%s172 + $0x698] sm:$0xff] %vm1980, %v1743
      %2193 = vst.msk [vmem:[%s172 + $0x6a0] sm:$0xff] %vm1980, %v1744
      %2194 = vst.msk [vmem:[%s172 + $0x6a8] sm:$0xff] %vm1980, %v1745
      %2195 = vst.msk [vmem:[%s172 + $0x6b0] sm:$0xff] %vm1980, %v1746
      %2196 = vst.msk [vmem:[%s172 + $0x6b8] sm:$0xff] %vm1980, %v1747
      %2197 = vst.msk [vmem:[%s172 + $0x6c0] sm:$0xff] %vm1980, %v1748
      %2198 = vst.msk [vmem:[%s172 + $0x6c8] sm:$0xff] %vm1980, %v1749
      %2199 = vst.msk [vmem:[%s172 + $0x6d0] sm:$0xff] %vm1980, %v1750
      %2200 = vst.msk [vmem:[%s172 + $0x6d8] sm:$0xff] %vm1980, %v1751
      %2201 = vst.msk [vmem:[%s172 + $0x6e0] sm:$0xff] %vm1980, %v1752
      %2202 = vst.msk [vmem:[%s172 + $0x6e8] sm:$0xff] %vm1980, %v1753
      %2203 = vst.msk [vmem:[%s172 + $0x6f0] sm:$0xff] %vm1980, %v1754
      %2204 = vst.msk [vmem:[%s172 + $0x6f8] sm:$0xff] %vm1980, %v1755
      %2205 = vst.msk [vmem:[%s172 + $0x700] sm:$0xff] %vm1980, %v1756
      %2206 = vst.msk [vmem:[%s172 + $0x708] sm:$0xff] %vm1980, %v1757
      %2207 = vst.msk [vmem:[%s172 + $0x710] sm:$0xff] %vm1980, %v1758
      %2208 = vst.msk [vmem:[%s172 + $0x718] sm:$0xff] %vm1980, %v1759
      %2209 = vst.msk [vmem:[%s172 + $0x720] sm:$0xff] %vm1980, %v1760
      %2210 = vst.msk [vmem:[%s172 + $0x728] sm:$0xff] %vm1980, %v1761
      %2211 = vst.msk [vmem:[%s172 + $0x730] sm:$0xff] %vm1980, %v1762
      %2212 = vst.msk [vmem:[%s172 + $0x738] sm:$0xff] %vm1980, %v1763
      %2213 = vst.msk [vmem:[%s172 + $0x740] sm:$0xff] %vm1980, %v1764
      %2214 = vst.msk [vmem:[%s172 + $0x748] sm:$0xff] %vm1980, %v1765
      %2215 = vst.msk [vmem:[%s172 + $0x750] sm:$0xff] %vm1980, %v1766
      %2216 = vst.msk [vmem:[%s172 + $0x758] sm:$0xff] %vm1980, %v1767
      %2217 = vst.msk [vmem:[%s172 + $0x760] sm:$0xff] %vm1980, %v1768
      %2218 = vst.msk [vmem:[%s172 + $0x768] sm:$0xff] %vm1980, %v1769
      %2219 = vst.msk [vmem:[%s172 + $0x770] sm:$0xff] %vm1980, %v1770
      %2220 = vst.msk [vmem:[%s172 + $0x778] sm:$0xff] %vm1980, %v1771
      %2221 = vst.msk [vmem:[%s172 + $0x780] sm:$0xff] %vm1980, %v1772
      %2222 = vst.msk [vmem:[%s172 + $0x788] sm:$0xff] %vm1980, %v1773
      %2223 = vst.msk [vmem:[%s172 + $0x790] sm:$0xff] %vm1980, %v1774
      %2224 = vst.msk [vmem:[%s172 + $0x798] sm:$0xff] %vm1980, %v1775
      %2225 = vst.msk [vmem:[%s172 + $0x7a0] sm:$0xff] %vm1980, %v1776
      %2226 = vst.msk [vmem:[%s172 + $0x7a8] sm:$0xff] %vm1980, %v1777
      %2227 = vst.msk [vmem:[%s172 + $0x7b0] sm:$0xff] %vm1980, %v1778
      %2228 = vst.msk [vmem:[%s172 + $0x7b8] sm:$0xff] %vm1980, %v1779
      %2229 = vst.msk [vmem:[%s172 + $0x7c0] sm:$0xff] %vm1980, %v1780
      %2230 = vst.msk [vmem:[%s172 + $0x7c8] sm:$0xff] %vm1980, %v1781
      %2231 = vst.msk [vmem:[%s172 + $0x7d0] sm:$0xff] %vm1980, %v1782
      %2232 = vst.msk [vmem:[%s172 + $0x7d8] sm:$0xff] %vm1980, %v1783
      %2233 = vst.msk [vmem:[%s172 + $0x7e0] sm:$0xff] %vm1980, %v1784
      %2234 = vst.msk [vmem:[%s172 + $0x7e8] sm:$0xff] %vm1980, %v1785
      %2235 = vst.msk [vmem:[%s172 + $0x7f0] sm:$0xff] %vm1980, %v1786
      %2236 = vst.msk [vmem:[%s172 + $0x7f8] sm:$0xff] %vm1980, %v1787
      %2237 = vst.msk [vmem:[%s172 + $0x800] sm:$0xff] %vm1980, %v1788
      %2238 = vst.msk [vmem:[%s172 + $0x808] sm:$0xff] %vm1980, %v1789
      %2239 = vst.msk [vmem:[%s172 + $0x810] sm:$0xff] %vm1980, %v1790
      %2240 = vst.msk [vmem:[%s172 + $0x818] sm:$0xff] %vm1980, %v1791
      %2241 = vst.msk [vmem:[%s172 + $0x820] sm:$0xff] %vm1980, %v1792
      %2242 = vst.msk [vmem:[%s172 + $0x828] sm:$0xff] %vm1980, %v1793
      %2243 = vst.msk [vmem:[%s172 + $0x830] sm:$0xff] %vm1980, %v1794
      %2244 = vst.msk [vmem:[%s172 + $0x838] sm:$0xff] %vm1980, %v1795
      %2245 = vst.msk [vmem:[%s172 + $0x840] sm:$0xff] %vm1980, %v1796
      %2246 = vst.msk [vmem:[%s172 + $0x848] sm:$0xff] %vm1980, %v1797
      %2247 = vst.msk [vmem:[%s172 + $0x850] sm:$0xff] %vm1980, %v1798
      %2248 = vst.msk [vmem:[%s172 + $0x858] sm:$0xff] %vm1980, %v1799
      %2249 = vst.msk [vmem:[%s172 + $0x860] sm:$0xff] %vm1980, %v1800
      %2250 = vst.msk [vmem:[%s172 + $0x868] sm:$0xff] %vm1980, %v1801
      %2251 = vst.msk [vmem:[%s172 + $0x870] sm:$0xff] %vm1980, %v1802
      %2252 = vst.msk [vmem:[%s172 + $0x878] sm:$0xff] %vm1980, %v1803
      %2253 = vst.msk [vmem:[%s172 + $0x880] sm:$0xff] %vm1980, %v1804
      %2254 = vst.msk [vmem:[%s172 + $0x888] sm:$0xff] %vm1980, %v1805
      %2255 = vst.msk [vmem:[%s172 + $0x890] sm:$0xff] %vm1980, %v1806
      %2256 = vst.msk [vmem:[%s172 + $0x898] sm:$0xff] %vm1980, %v1807
      %2257 = vst.msk [vmem:[%s172 + $0x8a0] sm:$0xff] %vm1980, %v1808
      %2258 = vst.msk [vmem:[%s172 + $0x8a8] sm:$0xff] %vm1980, %v1809
      %2259 = vst.msk [vmem:[%s172 + $0x8b0] sm:$0xff] %vm1980, %v1810
      %2260 = vst.msk [vmem:[%s172 + $0x8b8] sm:$0xff] %vm1980, %v1811
      %2261 = vst.msk [vmem:[%s172 + $0x8c0] sm:$0xff] %vm1980, %v1812
      %2262 = vst.msk [vmem:[%s172 + $0x8c8] sm:$0xff] %vm1980, %v1813
      %2263 = vst.msk [vmem:[%s172 + $0x8d0] sm:$0xff] %vm1980, %v1814
      %2264 = vst.msk [vmem:[%s172 + $0x8d8] sm:$0xff] %vm1980, %v1815
      %2265 = vst.msk [vmem:[%s172 + $0x8e0] sm:$0xff] %vm1980, %v1816
      %2266 = vst.msk [vmem:[%s172 + $0x8e8] sm:$0xff] %vm1980, %v1817
      %2267 = vst.msk [vmem:[%s172 + $0x8f0] sm:$0xff] %vm1980, %v1818
      %2268 = vst.msk [vmem:[%s172 + $0x8f8] sm:$0xff] %vm1980, %v1819
      %2269 = vst.msk [vmem:[%s172 + $0x900] sm:$0xff] %vm1980, %v1820
      %2270 = vst.msk [vmem:[%s172 + $0x908] sm:$0xff] %vm1980, %v1821
      %2271 = vst.msk [vmem:[%s172 + $0x910] sm:$0xff] %vm1980, %v1822
      %2272 = vst.msk [vmem:[%s172 + $0x918] sm:$0xff] %vm1980, %v1823
      %2273 = vst.msk [vmem:[%s172 + $0x920] sm:$0xff] %vm1980, %v1824
      %2274 = vst.msk [vmem:[%s172 + $0x928] sm:$0xff] %vm1980, %v1825
      %2275 = vst.msk [vmem:[%s172 + $0x930] sm:$0xff] %vm1980, %v1826
      %2276 = vst.msk [vmem:[%s172 + $0x938] sm:$0xff] %vm1980, %v1827
      %2277 = vst.msk [vmem:[%s172 + $0x940] sm:$0xff] %vm1980, %v1828
      %2278 = vst.msk [vmem:[%s172 + $0x948] sm:$0xff] %vm1980, %v1829
      %2279 = vst.msk [vmem:[%s172 + $0x950] sm:$0xff] %vm1980, %v1830
      %2280 = vst.msk [vmem:[%s172 + $0x958] sm:$0xff] %vm1980, %v1831
      %2281 = vst.msk [vmem:[%s172 + $0x960] sm:$0xff] %vm1980, %v1832
      %2282 = vst.msk [vmem:[%s172 + $0x968] sm:$0xff] %vm1980, %v1833
      %2283 = vst.msk [vmem:[%s172 + $0x970] sm:$0xff] %vm1980, %v1834
      %2284 = vst.msk [vmem:[%s172 + $0x978] sm:$0xff] %vm1980, %v1835
      %2285 = vst.msk [vmem:[%s172 + $0x980] sm:$0xff] %vm1980, %v1836
      %2286 = vst.msk [vmem:[%s172 + $0x988] sm:$0xff] %vm1980, %v1837
      %2287 = vst.msk [vmem:[%s172 + $0x990] sm:$0xff] %vm1980, %v1838
      %2288 = vst.msk [vmem:[%s172 + $0x998] sm:$0xff] %vm1980, %v1839
      %2289 = vst.msk [vmem:[%s172 + $0x9a0] sm:$0xff] %vm1980, %v1840
      %2290 = vst.msk [vmem:[%s172 + $0x9a8] sm:$0xff] %vm1980, %v1841
      %2291 = vst.msk [vmem:[%s172 + $0x9b0] sm:$0xff] %vm1980, %v1842
      %2292 = vst.msk [vmem:[%s172 + $0x9b8] sm:$0xff] %vm1980, %v1843
      %2293 = vst.msk [vmem:[%s172 + $0x9c0] sm:$0xff] %vm1980, %v1844
      %2294 = vst.msk [vmem:[%s172 + $0x9c8] sm:$0xff] %vm1980, %v1845
      %2295 = vst.msk [vmem:[%s172 + $0x9d0] sm:$0xff] %vm1980, %v1846
      %2296 = vst.msk [vmem:[%s172 + $0x9d8] sm:$0xff] %vm1980, %v1847
      %2297 = vst.msk [vmem:[%s172 + $0x9e0] sm:$0xff] %vm1980, %v1848
      %2298 = vst.msk [vmem:[%s172 + $0x9e8] sm:$0xff] %vm1980, %v1849
      %2299 = vst.msk [vmem:[%s172 + $0x9f0] sm:$0xff] %vm1980, %v1850
      %2300 = vst.msk [vmem:[%s172 + $0x9f8] sm:$0xff] %vm1980, %v1851
      %2301 = vst.msk [vmem:[%s172 + $0xa00] sm:$0xff] %vm1980, %v1852
      %2302 = vst.msk [vmem:[%s172 + $0xa08] sm:$0xff] %vm1980, %v1853
      %2303 = vst.msk [vmem:[%s172 + $0xa10] sm:$0xff] %vm1980, %v1854
      %2304 = vst.msk [vmem:[%s172 + $0xa18] sm:$0xff] %vm1980, %v1855
      %2305 = vst.msk [vmem:[%s172 + $0xa20] sm:$0xff] %vm1980, %v1856
      %2306 = vst.msk [vmem:[%s172 + $0xa28] sm:$0xff] %vm1980, %v1857
      %2307 = vst.msk [vmem:[%s172 + $0xa30] sm:$0xff] %vm1980, %v1858
      %2308 = vst.msk [vmem:[%s172 + $0xa38] sm:$0xff] %vm1980, %v1859
      %2309 = vst.msk [vmem:[%s172 + $0xa40] sm:$0xff] %vm1980, %v1860
      %2310 = vst.msk [vmem:[%s172 + $0xa48] sm:$0xff] %vm1980, %v1861
      %2311 = vst.msk [vmem:[%s172 + $0xa50] sm:$0xff] %vm1980, %v1862
      %2312 = vst.msk [vmem:[%s172 + $0xa58] sm:$0xff] %vm1980, %v1863
      %2313 = vst.msk [vmem:[%s172 + $0xa60] sm:$0xff] %vm1980, %v1864
      %2314 = vst.msk [vmem:[%s172 + $0xa68] sm:$0xff] %vm1980, %v1865
      %2315 = vst.msk [vmem:[%s172 + $0xa70] sm:$0xff] %vm1980, %v1866
      %2316 = vst.msk [vmem:[%s172 + $0xa78] sm:$0xff] %vm1980, %v1867
      %2317 = vst.msk [vmem:[%s172 + $0xa80] sm:$0xff] %vm1980, %v1868
      %2318 = vst.msk [vmem:[%s172 + $0xa88] sm:$0xff] %vm1980, %v1869
      %2319 = vst.msk [vmem:[%s172 + $0xa90] sm:$0xff] %vm1980, %v1870
      %2320 = vst.msk [vmem:[%s172 + $0xa98] sm:$0xff] %vm1980, %v1871
      %2321 = vst.msk [vmem:[%s172 + $0xaa0] sm:$0xff] %vm1980, %v1872
      %2322 = vst.msk [vmem:[%s172 + $0xaa8] sm:$0xff] %vm1980, %v1873
      %2323 = vst.msk [vmem:[%s172 + $0xab0] sm:$0xff] %vm1980, %v1874
      %2324 = vst.msk [vmem:[%s172 + $0xab8] sm:$0xff] %vm1980, %v1875
      %2325 = vst.msk [vmem:[%s172 + $0xac0] sm:$0xff] %vm1980, %v1876
      %2326 = vst.msk [vmem:[%s172 + $0xac8] sm:$0xff] %vm1980, %v1877
      %2327 = vst.msk [vmem:[%s172 + $0xad0] sm:$0xff] %vm1980, %v1878
      %2328 = vst.msk [vmem:[%s172 + $0xad8] sm:$0xff] %vm1980, %v1879
      %2329 = vst.msk [vmem:[%s172 + $0xae0] sm:$0xff] %vm1980, %v1880
      %2330 = vst.msk [vmem:[%s172 + $0xae8] sm:$0xff] %vm1980, %v1881
      %2331 = vst.msk [vmem:[%s172 + $0xaf0] sm:$0xff] %vm1980, %v1882
      %2332 = vst.msk [vmem:[%s172 + $0xaf8] sm:$0xff] %vm1980, %v1883
      %2333 = vst.msk [vmem:[%s172 + $0xb00] sm:$0xff] %vm1980, %v1884
      %2334 = vst.msk [vmem:[%s172 + $0xb08] sm:$0xff] %vm1980, %v1885
      %2335 = vst.msk [vmem:[%s172 + $0xb10] sm:$0xff] %vm1980, %v1886
      %2336 = vst.msk [vmem:[%s172 + $0xb18] sm:$0xff] %vm1980, %v1887
      %2337 = vst.msk [vmem:[%s172 + $0xb20] sm:$0xff] %vm1980, %v1888
      %2338 = vst.msk [vmem:[%s172 + $0xb28] sm:$0xff] %vm1980, %v1889
      %2339 = vst.msk [vmem:[%s172 + $0xb30] sm:$0xff] %vm1980, %v1890
      %2340 = vst.msk [vmem:[%s172 + $0xb38] sm:$0xff] %vm1980, %v1891
      %2341 = vst.msk [vmem:[%s172 + $0xb40] sm:$0xff] %vm1980, %v1892
      %2342 = vst.msk [vmem:[%s172 + $0xb48] sm:$0xff] %vm1980, %v1893
      %2343 = vst.msk [vmem:[%s172 + $0xb50] sm:$0xff] %vm1980, %v1894
      %2344 = vst.msk [vmem:[%s172 + $0xb58] sm:$0xff] %vm1980, %v1895
      %2345 = vst.msk [vmem:[%s172 + $0xb60] sm:$0xff] %vm1980, %v1896
      %2346 = vst.msk [vmem:[%s172 + $0xb68] sm:$0xff] %vm1980, %v1897
      %2347 = vst.msk [vmem:[%s172 + $0xb70] sm:$0xff] %vm1980, %v1898
      %2348 = vst.msk [vmem:[%s172 + $0xb78] sm:$0xff] %vm1980, %v1899
      %2349 = vst.msk [vmem:[%s172 + $0xb80] sm:$0xff] %vm1980, %v1900
      %2350 = vst.msk [vmem:[%s172 + $0xb88] sm:$0xff] %vm1980, %v1901
      %2351 = vst.msk [vmem:[%s172 + $0xb90] sm:$0xff] %vm1980, %v1902
      %2352 = vst.msk [vmem:[%s172 + $0xb98] sm:$0xff] %vm1980, %v1903
      %2353 = vst.msk [vmem:[%s172 + $0xba0] sm:$0xff] %vm1980, %v1904
      %2354 = vst.msk [vmem:[%s172 + $0xba8] sm:$0xff] %vm1980, %v1905
      %2355 = vst.msk [vmem:[%s172 + $0xbb0] sm:$0xff] %vm1980, %v1906
      %2356 = vst.msk [vmem:[%s172 + $0xbb8] sm:$0xff] %vm1980, %v1907
      %2357 = vst.msk [vmem:[%s172 + $0xbc0] sm:$0xff] %vm1980, %v1908
      %2358 = vst.msk [vmem:[%s172 + $0xbc8] sm:$0xff] %vm1980, %v1909
      %2359 = vst.msk [vmem:[%s172 + $0xbd0] sm:$0xff] %vm1980, %v1910
      %2360 = vst.msk [vmem:[%s172 + $0xbd8] sm:$0xff] %vm1980, %v1911
      %2361 = vst.msk [vmem:[%s172 + $0xbe0] sm:$0xff] %vm1980, %v1912
      %2362 = vst.msk [vmem:[%s172 + $0xbe8] sm:$0xff] %vm1980, %v1913
      %2363 = vst.msk [vmem:[%s172 + $0xbf0] sm:$0xff] %vm1980, %v1914
      %2364 = vst.msk [vmem:[%s172 + $0xbf8] sm:$0xff] %vm1980, %v1915
      %2365 = vst.msk [vmem:[%s172 + $0xc00] sm:$0xff] %vm1980, %v1916
      %2366 = vst.msk [vmem:[%s172 + $0xc08] sm:$0xff] %vm1980, %v1917
      %2367 = vst.msk [vmem:[%s172 + $0xc10] sm:$0xff] %vm1980, %v1918
      %2368 = vst.msk [vmem:[%s172 + $0xc18] sm:$0xff] %vm1980, %v1919
      %2369 = vst.msk [vmem:[%s172 + $0xc20] sm:$0xff] %vm1980, %v1920
      %2370 = vst.msk [vmem:[%s172 + $0xc28] sm:$0xff] %vm1980, %v1921
      %2371 = vst.msk [vmem:[%s172 + $0xc30] sm:$0xff] %vm1980, %v1922
      %2372 = vst.msk [vmem:[%s172 + $0xc38] sm:$0xff] %vm1980, %v1923
      %2373 = vst.msk [vmem:[%s172 + $0xc40] sm:$0xff] %vm1980, %v1924
      %2374 = vst.msk [vmem:[%s172 + $0xc48] sm:$0xff] %vm1980, %v1925
      %2375 = vst.msk [vmem:[%s172 + $0xc50] sm:$0xff] %vm1980, %v1926
      %2376 = vst.msk [vmem:[%s172 + $0xc58] sm:$0xff] %vm1980, %v1927
      %2377 = vst.msk [vmem:[%s172 + $0xc60] sm:$0xff] %vm1980, %v1928
      %2378 = vst.msk [vmem:[%s172 + $0xc68] sm:$0xff] %vm1980, %v1929
      %2379 = vst.msk [vmem:[%s172 + $0xc70] sm:$0xff] %vm1980, %v1930
      %2380 = vst.msk [vmem:[%s172 + $0xc78] sm:$0xff] %vm1980, %v1931
      %2381 = vst.msk [vmem:[%s172 + $0xc80] sm:$0xff] %vm1980, %v1932
      %2382 = vst.msk [vmem:[%s172 + $0xc88] sm:$0xff] %vm1980, %v1933
      %2383 = vst.msk [vmem:[%s172 + $0xc90] sm:$0xff] %vm1980, %v1934
      %2384 = vst.msk [vmem:[%s172 + $0xc98] sm:$0xff] %vm1980, %v1935
      %2385 = vst.msk [vmem:[%s172 + $0xca0] sm:$0xff] %vm1980, %v1936
      %2386 = vst.msk [vmem:[%s172 + $0xca8] sm:$0xff] %vm1980, %v1937
      %2387 = vst.msk [vmem:[%s172 + $0xcb0] sm:$0xff] %vm1980, %v1938
      %2388 = vst.msk [vmem:[%s172 + $0xcb8] sm:$0xff] %vm1980, %v1939
      %2389 = vst.msk [vmem:[%s172 + $0xcc0] sm:$0xff] %vm1980, %v1940
      %2390 = vst.msk [vmem:[%s172 + $0xcc8] sm:$0xff] %vm1980, %v1941
      %2391 = vst.msk [vmem:[%s172 + $0xcd0] sm:$0xff] %vm1980, %v1942
      %2392 = vst.msk [vmem:[%s172 + $0xcd8] sm:$0xff] %vm1980, %v1943
      %2393 = vst.msk [vmem:[%s172 + $0xce0] sm:$0xff] %vm1980, %v1944
      %2394 = vst.msk [vmem:[%s172 + $0xce8] sm:$0xff] %vm1980, %v1945
      %2395 = vst.msk [vmem:[%s172 + $0xcf0] sm:$0xff] %vm1980, %v1946
      %2396 = vst.msk [vmem:[%s172 + $0xcf8] sm:$0xff] %vm1980, %v1947
      %2397 = vst.msk [vmem:[%s172 + $0xd00] sm:$0xff] %vm1980, %v1948
      %2398 = vst.msk [vmem:[%s172 + $0xd08] sm:$0xff] %vm1980, %v1949
      %2399 = vst.msk [vmem:[%s172 + $0xd10] sm:$0xff] %vm1980, %v1950
      %2400 = vst.msk [vmem:[%s172 + $0xd18] sm:$0xff] %vm1980, %v1951
      %2401 = vst.msk [vmem:[%s172 + $0xd20] sm:$0xff] %vm1980, %v1952
      %2402 = vst.msk [vmem:[%s172 + $0xd28] sm:$0xff] %vm1980, %v1953
      %2403 = vst.msk [vmem:[%s172 + $0xd30] sm:$0xff] %vm1980, %v1954
      %2404 = vst.msk [vmem:[%s172 + $0xd38] sm:$0xff] %vm1980, %v1955
      %2405 = vst.msk [vmem:[%s172 + $0xd40] sm:$0xff] %vm1980, %v1956
      %2406 = vst.msk [vmem:[%s172 + $0xd48] sm:$0xff] %vm1980, %v1957
      %2407 = vst.msk [vmem:[%s172 + $0xd50] sm:$0xff] %vm1980, %v1958
      %2408 = vst.msk [vmem:[%s172 + $0xd58] sm:$0xff] %vm1980, %v1959
      %2409 = vst.msk [vmem:[%s172 + $0xd60] sm:$0xff] %vm1980, %v1960
      %2410 = vst.msk [vmem:[%s172 + $0xd68] sm:$0xff] %vm1980, %v1961
      %2411 = vst.msk [vmem:[%s172 + $0xd70] sm:$0xff] %vm1980, %v1962
      %2412 = vst.msk [vmem:[%s172 + $0xd78] sm:$0xff] %vm1980, %v1963
      %2413 = vst.msk [vmem:[%s172 + $0xd80] sm:$0xff] %vm1980, %v1964
      %2414 = vst.msk [vmem:[%s172 + $0xd88] sm:$0xff] %vm1980, %v1965
      %2415 = vst.msk [vmem:[%s172 + $0xd90] sm:$0xff] %vm1980, %v1966
      %2416 = vst.msk [vmem:[%s172 + $0xd98] sm:$0xff] %vm1980, %v1967
      %2417 = vst.msk [vmem:[%s172 + $0xda0] sm:$0xff] %vm1980, %v1968
      %2418 = vst.msk [vmem:[%s172 + $0xda8] sm:$0xff] %vm1980, %v1969
      %2419 = vst.msk [vmem:[%s172 + $0xdb0] sm:$0xff] %vm1980, %v1970
      %2420 = vst.msk [vmem:[%s172 + $0xdb8] sm:$0xff] %vm1980, %v1971
      %2421 = vst.msk [vmem:[%s172 + $0xdc0] sm:$0xff] %vm1980, %v1972
      %2422 = vst.msk [vmem:[%s172 + $0xdc8] sm:$0xff] %vm1980, %v1973
      %2423 = vst.msk [vmem:[%s172 + $0xdd0] sm:$0xff] %vm1980, %v1974
      %2424 = vst.msk [vmem:[%s172 + $0xdd8] sm:$0xff] %vm1980, %v1975
      %2425 = vst.msk [vmem:[%s172 + $0xde0] sm:$0xff] %vm1980, %v1976
      %2426 = vst.msk [vmem:[%s172 + $0xde8] sm:$0xff] %vm1980, %v1977
      %2427 = vst.msk [vmem:[%s172 + $0xdf0] sm:$0xff] %vm1980, %v1978
      %2428 = vst.msk [vmem:[%s172 + $0xdf8] sm:$0xff] %vm1980, %v1979
      %s2429 = smul.u32 448, %s14
      %p2430 = scmp.lt.s32.totalorder %s2429, 1791
      %s2431 = scalar_select %p2430, %s2429, 1791
      %s2432 = smul.addr %s2431, 8
      %s2433 = scalar_lea.vmem %s3, %s2432
      // Predicated region
      $region33: #{conv_layer_forward.3} parent=31 // pred_check
        %p2434 = pneg %p100
      $region34: #{conv_layer_forward.3} parent=31 // pred_check_branch
        %2436 = sbr.rel (%p2434) target = $region36
      $region35: #{conv_layer_forward.3} parent=31 // pred_region
        %s2437 = smul.u32 448, %s14
      $region36: #{conv_layer_forward.3} parent=31 // pred_fallthru
        _
    $region32: #{conv_layer_forward.3} parent=5 // pred_fallthru
      _
    %p2438 = scmp.le.s32.totalorder 2, %s9
    // Predicated region
    $region37: #{conv_layer_forward.3} parent=5 // pred_check
      %p2439 = pneg %p2438
    $region38: #{conv_layer_forward.3} parent=5 // pred_check_branch
      %2441 = sbr.rel (%p2439) target = $region40
    $region39: #{conv_layer_forward.3} parent=5 // pred_region
      %s2442 = ssub.s32 %s9, 2
      // Predicated region
      $region41: #{conv_layer_forward.3} parent=39 // pred_check
        %p2443 = pneg %p106
      $region42: #{conv_layer_forward.3} parent=39 // pred_check_branch
        %2445 = sbr.rel (%p2443) target = $region44
      $region43: #{conv_layer_forward.3} parent=39 // pred_region
        %s2446 = smul.u32 448, %s15
        %p2447 = scmp.lt.s32.totalorder %s2446, 1791
        %s2448 = scalar_select %p2447, %s2446, 1791
        %s2449 = smul.addr %s2448, 8
        %s2450 = scalar_lea.vmem %s3, %s2449
      $region44: #{conv_layer_forward.3} parent=39 // pred_fallthru
        _
    $region40: #{conv_layer_forward.3} parent=5 // pred_fallthru
      _
  $region6: #{conv_layer_forward.3} parent=0 // loop_footer
    %s13 = sadd.s32 1, %s9
  $region7: #{conv_layer_forward.3} parent=0 // loop_footer_branch
    %8 = sbr.rel target = $region3
  $region8: #{conv_layer_forward.3} parent=0 // loop_exit
    _

// kernel: conv_layer_forward.2
$region0: #{conv_layer_forward.2}
  #allocation0 [shape = 'u32[]', space=smem, size = 0x4, offset = 0x4, fixed_abs, tag = 'smem constant byte address 0x4 - core index']
  #allocation1 [shape = 'u32[144,128]{1,0:T(1,128)}', space=vmem, size = 0x12000, scoped, tag = 'internal scratch']
  #allocation2 [shape = 'bf16[5376,18]{1,0:T(16,128)(2,1)}', space=vmem, size = 0x150000, scoped, tag = 'scratch operand']
  %s0 = inlined_call_operand.vmem [shape: bf16[16128,18], index: 0, kind: input, shape index: {}, may-alias: {0,1}]
  %s1 = inlined_call_operand.vmem [shape: bf16[16128,18], index: 1, kind: input, shape index: {}, may-alias: {0,1}]
  %s2 = inlined_call_operand.vmem [shape: f32[14336,1], index: 2, kind: input, shape index: {}]
  %s3 = inlined_call_operand.vmem [shape: bf16[9,18,128], index: 3, kind: input, shape index: {}]
  %s4 = inlined_call_operand.vmem [shape: f32[14336,4], index: 4, kind: output, shape index: {0}]
  %s5 = inlined_call_operand.vmem [shape: f32[1,256], index: 5, kind: output, shape index: {1}]
  %s6 = inlined_call_operand.vmem [shape: f32[1,256], index: 6, kind: output, shape index: {2}]
  %7 = xla_tuple %s4, %s5, %s6
  %s8 = sld [smem:[#allocation0]]
  $region76: #{conv_layer_forward.2} parent=0
    _
  %s10 = ssub.s32 1, %s8
  %s11 = scalar_select 0, %s10, %s8
  loop: start=0, step=1, limit=6
  $region2: #{conv_layer_forward.2} parent=0 // loop_pre_header
    _
  $region3: #{conv_layer_forward.2} parent=0 // loop_header
    %s13 = sphi 0, %s17
    %p14 = scmp.ge.s32.totalorder %s13, 6
    %s20 = sphi 0, %s32
    %s21 = sphi 0, %s28
    %s22 = sphi 0, %s20
    %s23 = sphi 0, %s21
    %s24 = sphi 0, %s22
    %s25 = sphi 0, %s23
    %s39 = sphi 0, %s41
    %s42 = sphi 0, %s39
    %s43 = sphi 0, %s42
    %s59 = sphi 0, %s43
    %s73 = sphi 0, %s75
    %s76 = sphi 0, %s73
    %s77 = sphi 0, %s76
    %s93 = sphi 0, %s77
    %s103 = sphi 0, %s105
    %s106 = sphi 0, %s103
    %s107 = sphi 0, %s106
    %s123 = sphi 0, %s107
    %s127 = sphi 0, %s127
    %s129 = sphi 0, %s127
    %s130 = sphi 0, %s129
    %s144 = sphi 0, %s130
    %s154 = sphi 0, %s156
    %s157 = sphi 0, %s154
    %s158 = sphi 0, %s157
    %s174 = sphi 0, %s158
    %s180 = sphi 0, %s182
    %s183 = sphi 0, %s180
    %s184 = sphi 0, %s183
    %s200 = sphi 0, %s184
    %s206 = sphi 0, %s208
    %s209 = sphi 0, %s206
    %s210 = sphi 0, %s209
    %s226 = sphi 0, %s210
  $region4: #{conv_layer_forward.2} parent=0 // loop_header_branch
    %16 = sbr.rel (%p14) target = $region8
  $region5: #{conv_layer_forward.2} parent=0 // loop_body
    %s18 = ssub.s32 %s13, 1
    %s19 = ssub.s32 %s13, 2
    %s26 = sadd.s32 1, %s21
    %p27 = scmp.ge.s32.totalorder %s26, 2
    %s28 = scalar_select %p27, 0, %s26
    %s29 = sadd.s32 1, %s20
    %s30 = scalar_select %p27, %s29, %s20
    %p31 = scmp.ge.s32.totalorder %s30, 2
    %s32 = scalar_select %p31, 0, %s30
    %s33 = smul.u32 %s20, 2
    %s34 = sadd.s32 %s33, %s21
    %s35 = smul.u32 %s32, 2
    %s36 = sadd.s32 %s35, %s28
    %s37 = ssub.s32 %s34, %s36
    %p38 = scmp.eq.s32.totalorder %s37, 0
    %s40 = sadd.s32 %s39, 1
    %s41 = scalar_select %p38, %s39, %s40
    %p44 = pneg %p38
    %p45 = scmp.eq.s32.totalorder %s13, 3
    %p46 = por %p44, %p45
    %p47 = scmp.ne.s32.totalorder %s39, %s42
    %p48 = scmp.eq.s32.totalorder %s13, 0
    %p49 = por %p47, %p48
    %p50 = scmp.ne.s32.totalorder %s39, %s42
    %p51 = scmp.eq.s32.totalorder %s18, 3
    %p52 = por %p50, %p51
    %p53 = scmp.ne.s32.totalorder %s42, %s43
    %p54 = scmp.eq.s32.totalorder %s18, 0
    %p55 = por %p53, %p54
    %p56 = scmp.ne.s32.totalorder %s42, %s43
    %p57 = scmp.eq.s32.totalorder %s19, 3
    %p58 = por %p56, %p57
    %p60 = scmp.ne.s32.totalorder %s43, %s59
    %p61 = scmp.eq.s32.totalorder %s19, 0
    %p62 = por %p60, %p61
    %s63 = smul.u32 %s20, 2
    %s64 = sadd.s32 %s63, %s21
    %s65 = sadd.s32 %s64, 1
    %s66 = smul.u32 %s65, 2
    %s67 = smul.u32 %s32, 2
    %s68 = sadd.s32 %s67, %s28
    %s69 = sadd.s32 %s68, 1
    %s70 = smul.u32 %s69, 2
    %s71 = ssub.s32 %s66, %s70
    %p72 = scmp.eq.s32.totalorder %s71, 0
    %s74 = sadd.s32 %s73, 1
    %s75 = scalar_select %p72, %s73, %s74
    %p78 = pneg %p72
    %p79 = scmp.eq.s32.totalorder %s13, 3
    %p80 = por %p78, %p79
    %p81 = scmp.ne.s32.totalorder %s73, %s76
    %p82 = scmp.eq.s32.totalorder %s13, 0
    %p83 = por %p81, %p82
    %p84 = scmp.ne.s32.totalorder %s73, %s76
    %p85 = scmp.eq.s32.totalorder %s18, 3
    %p86 = por %p84, %p85
    %p87 = scmp.ne.s32.totalorder %s76, %s77
    %p88 = scmp.eq.s32.totalorder %s18, 0
    %p89 = por %p87, %p88
    %p90 = scmp.ne.s32.totalorder %s76, %s77
    %p91 = scmp.eq.s32.totalorder %s19, 3
    %p92 = por %p90, %p91
    %p94 = scmp.ne.s32.totalorder %s77, %s93
    %p95 = scmp.eq.s32.totalorder %s19, 0
    %p96 = por %p94, %p95
    %s97 = smul.u32 %s20, 2
    %s98 = sadd.s32 %s97, %s21
    %s99 = smul.u32 %s32, 2
    %s100 = sadd.s32 %s99, %s28
    %s101 = ssub.s32 %s98, %s100
    %p102 = scmp.eq.s32.totalorder %s101, 0
    %s104 = sadd.s32 %s103, 1
    %s105 = scalar_select %p102, %s103, %s104
    %p108 = pneg %p102
    %p109 = scmp.eq.s32.totalorder %s13, 3
    %p110 = por %p108, %p109
    %p111 = scmp.ne.s32.totalorder %s103, %s106
    %p112 = scmp.eq.s32.totalorder %s13, 0
    %p113 = por %p111, %p112
    %p114 = scmp.ne.s32.totalorder %s103, %s106
    %p115 = scmp.eq.s32.totalorder %s18, 3
    %p116 = por %p114, %p115
    %p117 = scmp.ne.s32.totalorder %s106, %s107
    %p118 = scmp.eq.s32.totalorder %s18, 0
    %p119 = por %p117, %p118
    %p120 = scmp.ne.s32.totalorder %s106, %s107
    %p121 = scmp.eq.s32.totalorder %s19, 3
    %p122 = por %p120, %p121
    %p124 = scmp.ne.s32.totalorder %s107, %s123
    %p125 = scmp.eq.s32.totalorder %s19, 0
    %p126 = por %p124, %p125
    %s128 = sadd.s32 %s127, 1
    %p131 = scmp.eq.s32.totalorder %s13, 3
    %p132 = scmp.ne.s32.totalorder %s127, %s129
    %p133 = scmp.eq.s32.totalorder %s13, 0
    %p134 = por %p132, %p133
    %p135 = scmp.ne.s32.totalorder %s127, %s129
    %p136 = scmp.eq.s32.totalorder %s18, 3
    %p137 = por %p135, %p136
    %p138 = scmp.ne.s32.totalorder %s129, %s130
    %p139 = scmp.eq.s32.totalorder %s18, 0
    %p140 = por %p138, %p139
    %p141 = scmp.ne.s32.totalorder %s129, %s130
    %p142 = scmp.eq.s32.totalorder %s19, 3
    %p143 = por %p141, %p142
    %p145 = scmp.ne.s32.totalorder %s130, %s144
    %p146 = scmp.eq.s32.totalorder %s19, 0
    %p147 = por %p145, %p146
    %s148 = smul.u32 %s20, 2
    %s149 = sadd.s32 %s148, %s21
    %s150 = smul.u32 %s32, 2
    %s151 = sadd.s32 %s150, %s28
    %s152 = ssub.s32 %s149, %s151
    %p153 = scmp.eq.s32.totalorder %s152, 0
    %s155 = sadd.s32 %s154, 1
    %s156 = scalar_select %p153, %s154, %s155
    %p159 = pneg %p153
    %p160 = scmp.eq.s32.totalorder %s13, 3
    %p161 = por %p159, %p160
    %p162 = scmp.ne.s32.totalorder %s154, %s157
    %p163 = scmp.eq.s32.totalorder %s13, 0
    %p164 = por %p162, %p163
    %p165 = scmp.ne.s32.totalorder %s154, %s157
    %p166 = scmp.eq.s32.totalorder %s18, 3
    %p167 = por %p165, %p166
    %p168 = scmp.ne.s32.totalorder %s157, %s158
    %p169 = scmp.eq.s32.totalorder %s18, 0
    %p170 = por %p168, %p169
    %p171 = scmp.ne.s32.totalorder %s157, %s158
    %p172 = scmp.eq.s32.totalorder %s19, 3
    %p173 = por %p171, %p172
    %p175 = scmp.ne.s32.totalorder %s158, %s174
    %p176 = scmp.eq.s32.totalorder %s19, 0
    %p177 = por %p175, %p176
    %s178 = ssub.s32 %s20, %s32
    %p179 = scmp.eq.s32.totalorder %s178, 0
    %s181 = sadd.s32 %s180, 1
    %s182 = scalar_select %p179, %s180, %s181
    %p185 = pneg %p179
    %p186 = scmp.eq.s32.totalorder %s13, 3
    %p187 = por %p185, %p186
    %p188 = scmp.ne.s32.totalorder %s180, %s183
    %p189 = scmp.eq.s32.totalorder %s13, 0
    %p190 = por %p188, %p189
    %p191 = scmp.ne.s32.totalorder %s180, %s183
    %p192 = scmp.eq.s32.totalorder %s18, 3
    %p193 = por %p191, %p192
    %p194 = scmp.ne.s32.totalorder %s183, %s184
    %p195 = scmp.eq.s32.totalorder %s18, 0
    %p196 = por %p194, %p195
    %p197 = scmp.ne.s32.totalorder %s183, %s184
    %p198 = scmp.eq.s32.totalorder %s19, 3
    %p199 = por %p197, %p198
    %p201 = scmp.ne.s32.totalorder %s184, %s200
    %p202 = scmp.eq.s32.totalorder %s19, 0
    %p203 = por %p201, %p202
    %s204 = ssub.s32 %s20, %s32
    %p205 = scmp.eq.s32.totalorder %s204, 0
    %s207 = sadd.s32 %s206, 1
    %s208 = scalar_select %p205, %s206, %s207
    %p211 = pneg %p205
    %p212 = scmp.eq.s32.totalorder %s13, 3
    %p213 = por %p211, %p212
    %p214 = scmp.ne.s32.totalorder %s206, %s209
    %p215 = scmp.eq.s32.totalorder %s13, 0
    %p216 = por %p214, %p215
    %p217 = scmp.ne.s32.totalorder %s206, %s209
    %p218 = scmp.eq.s32.totalorder %s18, 3
    %p219 = por %p217, %p218
    %p220 = scmp.ne.s32.totalorder %s209, %s210
    %p221 = scmp.eq.s32.totalorder %s18, 0
    %p222 = por %p220, %p221
    %p223 = scmp.ne.s32.totalorder %s209, %s210
    %p224 = scmp.eq.s32.totalorder %s19, 3
    %p225 = por %p223, %p224
    %p227 = scmp.ne.s32.totalorder %s210, %s226
    %p228 = scmp.eq.s32.totalorder %s19, 0
    %p229 = por %p227, %p228
    %p230 = scmp.le.s32.totalorder 1, %s13
    %p231 = scmp.lt.s32.totalorder %s13, 5
    %p232 = pnand %p230, %p231
    %p233 = pneg %p232
    // Predicated region
    $region9: #{conv_layer_forward.2} parent=5 // pred_check
      _
    $region10: #{conv_layer_forward.2} parent=5 // pred_check_branch
      %235 = sbr.rel (%p232) target = $region12
    $region11: #{conv_layer_forward.2} parent=5 // pred_region
      %s236 = ssub.s32 %s13, 1
      // Predicated region
      $region13: #{conv_layer_forward.2} parent=11 // pred_check
        %p237 = pneg %p140
      $region14: #{conv_layer_forward.2} parent=11 // pred_check_branch
        %239 = sbr.rel (%p237) target = $region16
      $region15: #{conv_layer_forward.2} parent=11 // pred_region
        _
      $region16: #{conv_layer_forward.2} parent=11 // pred_fallthru
        _
    $region12: #{conv_layer_forward.2} parent=5 // pred_fallthru
      _
    %p240 = scmp.lt.s32.totalorder %s13, 4
    // Predicated region
    $region17: #{conv_layer_forward.2} parent=5 // pred_check
      %p241 = pneg %p240
    $region18: #{conv_layer_forward.2} parent=5 // pred_check_branch
      %243 = sbr.rel (%p241) target = $region20
    $region19: #{conv_layer_forward.2} parent=5 // pred_region
      // Predicated region
      $region21: #{conv_layer_forward.2} parent=19 // pred_check
        %p244 = pneg %p49
      $region22: #{conv_layer_forward.2} parent=19 // pred_check_branch
        %246 = sbr.rel (%p244) target = $region24
      $region23: #{conv_layer_forward.2} parent=19 // pred_region
        %s247 = smul.u32 %s20, 2
        %s248 = sadd.s32 %s247, %s21
        %s249 = smul.u32 448, %s248
        %s250 = ssub.s32 2016, %s249
        %p251 = scmp.lt.s32.totalorder %s250, 448
        %s252 = scalar_select %p251, %s250, 448
        %s253 = smul.u32 64, %s252
        %p254 = scmp.lt.s32.totalorder %s249, 2015
        %s255 = scalar_select %p254, %s249, 2015
        %s256 = smul.addr %s255, 4
        %s257 = scalar_lea.vmem %s0, %s256
        %s258 = smul.u32 %s20, 2
        %s259 = sadd.s32 %s258, %s21
        %s260 = smul.u32 448, %s259
        %s261 = ssub.s32 2016, %s260
        %p262 = scmp.lt.s32.totalorder %s261, 448
        %s263 = scalar_select %p262, %s261, 448
        %s264 = smul.u32 64, %s263
      $region24: #{conv_layer_forward.2} parent=19 // pred_fallthru
        _
      // Predicated region
      $region25: #{conv_layer_forward.2} parent=19 // pred_check
        %p265 = pneg %p83
      $region26: #{conv_layer_forward.2} parent=19 // pred_check_branch
        %267 = sbr.rel (%p265) target = $region28
      $region27: #{conv_layer_forward.2} parent=19 // pred_region
        %s268 = smul.u32 %s20, 2
        %s269 = sadd.s32 %s268, %s21
        %s270 = sadd.s32 %s269, 1
        %s271 = smul.u32 %s270, 2
        %s272 = smul.u32 224, %s271
        %p273 = scmp.lt.s32.totalorder %s272, 2015
        %s274 = scalar_select %p273, %s272, 2015
        %s275 = smul.addr %s274, 4
        %s276 = scalar_lea.vmem %s1, %s275
        %s277 = smul.u32 %s20, 2
        %s278 = sadd.s32 %s277, %s21
        %s279 = sadd.s32 %s278, 1
        %s280 = smul.u32 %s279, 2
        %s281 = smul.u32 224, %s280
      $region28: #{conv_layer_forward.2} parent=19 // pred_fallthru
        _
      // Predicated region
      $region29: #{conv_layer_forward.2} parent=19 // pred_check
        %p282 = pneg %p113
      $region30: #{conv_layer_forward.2} parent=19 // pred_check_branch
        %284 = sbr.rel (%p282) target = $region32
      $region31: #{conv_layer_forward.2} parent=19 // pred_region
        %s285 = smul.u32 %s20, 2
        %s286 = sadd.s32 %s285, %s21
        %s287 = smul.u32 448, %s286
        %p288 = scmp.lt.s32.totalorder %s287, 1791
        %s289 = scalar_select %p288, %s287, 1791
        %s290 = smul.addr %s289, 8
        %s291 = scalar_lea.vmem %s2, %s290
        %s292 = smul.u32 %s20, 2
        %s293 = sadd.s32 %s292, %s21
        %s294 = smul.u32 448, %s293
      $region32: #{conv_layer_forward.2} parent=19 // pred_fallthru
        _
    $region20: #{conv_layer_forward.2} parent=5 // pred_fallthru
      _
    %p295 = scmp.le.s32.totalorder 1, %s13
    %p296 = scmp.lt.s32.totalorder %s13, 5
    %p297 = pnand %p295, %p296
    %p298 = pneg %p297
    // Predicated region
    $region33: #{conv_layer_forward.2} parent=5 // pred_check
      _
    $region34: #{conv_layer_forward.2} parent=5 // pred_check_branch
      %300 = sbr.rel (%p297) target = $region36
    $region35: #{conv_layer_forward.2} parent=5 // pred_region
      %s301 = ssub.s32 %s13, 1
      %s302 = smul.u32 %s22, 2
      %s303 = sadd.s32 %s302, %s23
      %s304 = smul.u32 448, %s303
      %s305 = ssub.s32 2016, %s304
      %p306 = scmp.lt.s32.totalorder %s305, 448
      %s307 = scalar_select %p306, %s305, 448
      %s308 = smul.u32 64, %s307
      %p309 = scmp.lt.s32.totalorder %s304, 2015
      %s310 = scalar_select %p309, %s304, 2015
      %s311 = smul.addr %s310, 4
      %s312 = scalar_lea.vmem %s0, %s311
      %p313 = pneg %p55
      %p314 = pneg %p52
      %s315 = smul.u32 %s22, 2
      %s316 = sadd.s32 %s315, %s23
      %s317 = sadd.s32 %s316, 1
      %s318 = smul.u32 %s317, 2
      %s319 = smul.u32 224, %s318
      %p320 = scmp.lt.s32.totalorder %s319, 2015
      %s321 = scalar_select %p320, %s319, 2015
      %s322 = smul.addr %s321, 4
      %s323 = scalar_lea.vmem %s1, %s322
      %p324 = pneg %p89
      %p325 = pneg %p86
      %s326 = smul.u32 %s22, 2
      %s327 = sadd.s32 %s326, %s23
      %s328 = smul.u32 448, %s327
      %p329 = scmp.lt.s32.totalorder %s328, 1791
      %s330 = scalar_select %p329, %s328, 1791
      %s331 = smul.addr %s330, 8
      %s332 = scalar_lea.vmem %s2, %s331
      %p333 = pneg %p119
      %p334 = pneg %p116
      %p335 = pneg %p140
      %p336 = pneg %p137
      %p337 = pneg %p170
      %p338 = pneg %p167
      %s339 = smul.u32 %s22, 2
      %s340 = sadd.s32 %s339, %s23
      %s341 = smul.u32 448, %s340
      %p342 = scmp.lt.s32.totalorder %s341, 1791
      %s343 = scalar_select %p342, %s341, 1791
      %s344 = smul.addr %s343, 8
      %s345 = scalar_lea.vmem %s4, %s344
      %p346 = pneg %p196
      %p347 = pneg %p193
      %p348 = scmp.lt.s32.totalorder %s22, 1
      %s349 = scalar_select %p348, %s22, 1
      %s350 = scalar_lea.vmem %s5, %s349
      %p351 = pneg %p222
      %p352 = pneg %p219
      %p353 = scmp.lt.s32.totalorder %s22, 1
      %s354 = scalar_select %p353, %s22, 1
      %s355 = scalar_lea.vmem %s6, %s354
      %s356 = smul.u32 %s22, 2
      %s357 = sadd.s32 %s356, %s23
      %s358 = smul.u32 448, %s357
      %s359 = ssub.s32 2016, %s358
      %p360 = scmp.lt.s32.totalorder %s359, 448
      %s361 = scalar_select %p360, %s359, 448
      %s362 = smul.u32 64, %s361
      %p363 = scmp.lt.s32.totalorder %s358, 2015
      %s364 = scalar_select %p363, %s358, 2015
      %s365 = smul.addr %s364, 4
      %s366 = scalar_lea.vmem %s0, %s365
      %s367 = smul.u32 %s22, 2
      %s368 = sadd.s32 %s367, %s23
      %s369 = smul.u32 448, %s368
      %s370 = ssub.s32 2016, %s369
      %p371 = scmp.lt.s32.totalorder %s370, 448
      %s372 = scalar_select %p371, %s370, 448
      %s373 = smul.u32 64, %s372
      %s374 = smul.u32 %s22, 2
      %s375 = sadd.s32 %s374, %s23
      %s376 = sadd.s32 %s375, 1
      %s377 = smul.u32 %s376, 2
      %s378 = smul.u32 224, %s377
      %p379 = scmp.lt.s32.totalorder %s378, 2015
      %s380 = scalar_select %p379, %s378, 2015
      %s381 = smul.addr %s380, 4
      %s382 = scalar_lea.vmem %s1, %s381
      %s383 = smul.u32 %s22, 2
      %s384 = sadd.s32 %s383, %s23
      %s385 = sadd.s32 %s384, 1
      %s386 = smul.u32 %s385, 2
      %s387 = smul.u32 224, %s386
      %s388 = smul.u32 %s22, 2
      %s389 = sadd.s32 %s388, %s23
      %s390 = smul.u32 448, %s389
      %p391 = scmp.lt.s32.totalorder %s390, 1791
      %s392 = scalar_select %p391, %s390, 1791
      %s393 = smul.addr %s392, 8
      %s394 = scalar_lea.vmem %s2, %s393
      %s395 = smul.u32 %s22, 2
      %s396 = sadd.s32 %s395, %s23
      %s397 = smul.u32 448, %s396
      %s398 = smul.u32 %s22, 2
      %s399 = sadd.s32 %s398, %s23
      %s400 = smul.u32 448, %s399
      %p401 = scmp.lt.s32.totalorder %s400, 1791
      %s402 = scalar_select %p401, %s400, 1791
      %s403 = smul.addr %s402, 8
      %s404 = scalar_lea.vmem %s4, %s403
      %s405 = smul.u32 %s22, 2
      %s406 = sadd.s32 %s405, %s23
      %s407 = smul.u32 448, %s406
      %p408 = scmp.lt.s32.totalorder %s22, 1
      %s409 = scalar_select %p408, %s22, 1
      %s410 = scalar_lea.vmem %s5, %s409
      %p411 = scmp.lt.s32.totalorder %s22, 1
      %s412 = scalar_select %p411, %s22, 1
      %s413 = scalar_lea.vmem %s6, %s412
      %p415 = scmp.eq.s32.totalorder %s23, 0
      // Predicated region
      $region37: #{conv_layer_forward.2} parent=35 // pred_check
        %p416 = pneg %p415
      $region38: #{conv_layer_forward.2} parent=35 // pred_check_branch
        %418 = sbr.rel (%p416) target = $region40
      $region39: #{conv_layer_forward.2} parent=35 // pred_region
        %419 = vst [vmem:[%s410] sm:$0x1] 0.0
        %420 = vst [vmem:[%s413] sm:$0x1] 0.0
      $region40: #{conv_layer_forward.2} parent=35 // pred_fallthru
        _
      %v421 = vld [vmem:[%s366] sm:$0xf]
      %v422 = vld [vmem:[%s366 + $0x4] sm:$0xf]
      %v423 = vld [vmem:[%s366 + $0x8] sm:$0xf]
      %v424 = vld [vmem:[%s366 + $0xc] sm:$0xf]
      %v425 = vld [vmem:[%s366 + $0x10] sm:$0xf]
      %v426 = vld [vmem:[%s366 + $0x14] sm:$0xf]
      %v427 = vld [vmem:[%s366 + $0x18] sm:$0xf]
      %v428 = vld [vmem:[%s366 + $0x1c] sm:$0xf]
      %v429 = vld [vmem:[%s366 + $0x20] sm:$0xf]
      %v430 = vld [vmem:[%s366 + $0x24] sm:$0xf]
      %v431 = vld [vmem:[%s366 + $0x28] sm:$0xf]
      %v432 = vld [vmem:[%s366 + $0x2c] sm:$0xf]
      %v433 = vld [vmem:[%s366 + $0x30] sm:$0xf]
      %v434 = vld [vmem:[%s366 + $0x34] sm:$0xf]
      %v435 = vld [vmem:[%s366 + $0x38] sm:$0xf]
      %v436 = vld [vmem:[%s366 + $0x3c] sm:$0xf]
      %v437 = vld [vmem:[%s366 + $0x40] sm:$0xf]
      %v438 = vld [vmem:[%s366 + $0x44] sm:$0xf]
      %v439 = vld [vmem:[%s366 + $0x48] sm:$0xf]
      %v440 = vld [vmem:[%s366 + $0x4c] sm:$0xf]
      %v441 = vld [vmem:[%s366 + $0x50] sm:$0xf]
      %v442 = vld [vmem:[%s366 + $0x54] sm:$0xf]
      %v443 = vld [vmem:[%s366 + $0x58] sm:$0xf]
      %v444 = vld [vmem:[%s366 + $0x5c] sm:$0xf]
      %v445 = vld [vmem:[%s366 + $0x60] sm:$0xf]
      %v446 = vld [vmem:[%s366 + $0x64] sm:$0xf]
      %v447 = vld [vmem:[%s366 + $0x68] sm:$0xf]
      %v448 = vld [vmem:[%s366 + $0x6c] sm:$0xf]
      %v449 = vld [vmem:[%s366 + $0x70] sm:$0xf]
      %v450 = vld [vmem:[%s366 + $0x74] sm:$0xf]
      %v451 = vld [vmem:[%s366 + $0x78] sm:$0xf]
      %v452 = vld [vmem:[%s366 + $0x7c] sm:$0xf]
      %v453 = vld [vmem:[%s366 + $0x80] sm:$0xf]
      %v454 = vld [vmem:[%s366 + $0x84] sm:$0xf]
      %v455 = vld [vmem:[%s366 + $0x88] sm:$0xf]
      %v456 = vld [vmem:[%s366 + $0x8c] sm:$0xf]
      %v457 = vld [vmem:[%s366 + $0x90] sm:$0xf]
      %v458 = vld [vmem:[%s366 + $0x94] sm:$0xf]
      %v459 = vld [vmem:[%s366 + $0x98] sm:$0xf]
      %v460 = vld [vmem:[%s366 + $0x9c] sm:$0xf]
      %v461 = vld [vmem:[%s366 + $0xa0] sm:$0xf]
      %v462 = vld [vmem:[%s366 + $0xa4] sm:$0xf]
      %v463 = vld [vmem:[%s366 + $0xa8] sm:$0xf]
      %v464 = vld [vmem:[%s366 + $0xac] sm:$0xf]
      %v465 = vld [vmem:[%s366 + $0xb0] sm:$0xf]
      %v466 = vld [vmem:[%s366 + $0xb4] sm:$0xf]
      %v467 = vld [vmem:[%s366 + $0xb8] sm:$0xf]
      %v468 = vld [vmem:[%s366 + $0xbc] sm:$0xf]
      %v469 = vld [vmem:[%s366 + $0xc0] sm:$0xf]
      %v470 = vld [vmem:[%s366 + $0xc4] sm:$0xf]
      %v471 = vld [vmem:[%s366 + $0xc8] sm:$0xf]
      %v472 = vld [vmem:[%s366 + $0xcc] sm:$0xf]
      %v473 = vld [vmem:[%s366 + $0xd0] sm:$0xf]
      %v474 = vld [vmem:[%s366 + $0xd4] sm:$0xf]
      %v475 = vld [vmem:[%s366 + $0xd8] sm:$0xf]
      %v476 = vld [vmem:[%s366 + $0xdc] sm:$0xf]
      %v477 = vld [vmem:[%s366 + $0xe0] sm:$0xf]
      %v478 = vld [vmem:[%s366 + $0xe4] sm:$0xf]
      %v479 = vld [vmem:[%s366 + $0xe8] sm:$0xf]
      %v480 = vld [vmem:[%s366 + $0xec] sm:$0xf]
      %v481 = vld [vmem:[%s366 + $0xf0] sm:$0xf]
      %v482 = vld [vmem:[%s366 + $0xf4] sm:$0xf]
      %v483 = vld [vmem:[%s366 + $0xf8] sm:$0xf]
      %v484 = vld [vmem:[%s366 + $0xfc] sm:$0xf]
      %v485 = vld [vmem:[%s366 + $0x100] sm:$0xf]
      %v486 = vld [vmem:[%s366 + $0x104] sm:$0xf]
      %v487 = vld [vmem:[%s366 + $0x108] sm:$0xf]
      %v488 = vld [vmem:[%s366 + $0x10c] sm:$0xf]
      %v489 = vld [vmem:[%s366 + $0x110] sm:$0xf]
      %v490 = vld [vmem:[%s366 + $0x114] sm:$0xf]
      %v491 = vld [vmem:[%s366 + $0x118] sm:$0xf]
      %v492 = vld [vmem:[%s366 + $0x11c] sm:$0xf]
      %v493 = vld [vmem:[%s366 + $0x120] sm:$0xf]
      %v494 = vld [vmem:[%s366 + $0x124] sm:$0xf]
      %v495 = vld [vmem:[%s366 + $0x128] sm:$0xf]
      %v496 = vld [vmem:[%s366 + $0x12c] sm:$0xf]
      %v497 = vld [vmem:[%s366 + $0x130] sm:$0xf]
      %v498 = vld [vmem:[%s366 + $0x134] sm:$0xf]
      %v499 = vld [vmem:[%s366 + $0x138] sm:$0xf]
      %v500 = vld [vmem:[%s366 + $0x13c] sm:$0xf]
      %v501 = vld [vmem:[%s366 + $0x140] sm:$0xf]
      %v502 = vld [vmem:[%s366 + $0x144] sm:$0xf]
      %v503 = vld [vmem:[%s366 + $0x148] sm:$0xf]
      %v504 = vld [vmem:[%s366 + $0x14c] sm:$0xf]
      %v505 = vld [vmem:[%s366 + $0x150] sm:$0xf]
      %v506 = vld [vmem:[%s366 + $0x154] sm:$0xf]
      %v507 = vld [vmem:[%s366 + $0x158] sm:$0xf]
      %v508 = vld [vmem:[%s366 + $0x15c] sm:$0xf]
      %v509 = vld [vmem:[%s366 + $0x160] sm:$0xf]
      %v510 = vld [vmem:[%s366 + $0x164] sm:$0xf]
      %v511 = vld [vmem:[%s366 + $0x168] sm:$0xf]
      %v512 = vld [vmem:[%s366 + $0x16c] sm:$0xf]
      %v513 = vld [vmem:[%s366 + $0x170] sm:$0xf]
      %v514 = vld [vmem:[%s366 + $0x174] sm:$0xf]
      %v515 = vld [vmem:[%s366 + $0x178] sm:$0xf]
      %v516 = vld [vmem:[%s366 + $0x17c] sm:$0xf]
      %v517 = vld [vmem:[%s366 + $0x180] sm:$0xf]
      %v518 = vld [vmem:[%s366 + $0x184] sm:$0xf]
      %v519 = vld [vmem:[%s366 + $0x188] sm:$0xf]
      %v520 = vld [vmem:[%s366 + $0x18c] sm:$0xf]
      %v521 = vld [vmem:[%s366 + $0x190] sm:$0xf]
      %v522 = vld [vmem:[%s366 + $0x194] sm:$0xf]
      %v523 = vld [vmem:[%s366 + $0x198] sm:$0xf]
      %v524 = vld [vmem:[%s366 + $0x19c] sm:$0xf]
      %v525 = vld [vmem:[%s366 + $0x1a0] sm:$0xf]
      %v526 = vld [vmem:[%s366 + $0x1a4] sm:$0xf]
      %v527 = vld [vmem:[%s366 + $0x1a8] sm:$0xf]
      %v528 = vld [vmem:[%s366 + $0x1ac] sm:$0xf]
      %v529 = vld [vmem:[%s366 + $0x1b0] sm:$0xf]
      %v530 = vld [vmem:[%s366 + $0x1b4] sm:$0xf]
      %v531 = vld [vmem:[%s366 + $0x1b8] sm:$0xf]
      %v532 = vld [vmem:[%s366 + $0x1bc] sm:$0xf]
      %v533 = vld [vmem:[%s366 + $0x1c0] sm:$0xf]
      %v534 = vld [vmem:[%s366 + $0x1c4] sm:$0xf]
      %v535 = vld [vmem:[%s366 + $0x1c8] sm:$0xf]
      %v536 = vld [vmem:[%s366 + $0x1cc] sm:$0xf]
      %v537 = vld [vmem:[%s366 + $0x1d0] sm:$0xf]
      %v538 = vld [vmem:[%s366 + $0x1d4] sm:$0xf]
      %v539 = vld [vmem:[%s366 + $0x1d8] sm:$0xf]
      %v540 = vld [vmem:[%s366 + $0x1dc] sm:$0xf]
      %v541 = vld [vmem:[%s366 + $0x1e0] sm:$0xf]
      %v542 = vld [vmem:[%s366 + $0x1e4] sm:$0xf]
      %v543 = vld [vmem:[%s366 + $0x1e8] sm:$0xf]
      %v544 = vld [vmem:[%s366 + $0x1ec] sm:$0xf]
      %v545 = vld [vmem:[%s366 + $0x1f0] sm:$0xf]
      %v546 = vld [vmem:[%s366 + $0x1f4] sm:$0xf]
      %v547 = vld [vmem:[%s366 + $0x1f8] sm:$0xf]
      %v548 = vld [vmem:[%s366 + $0x1fc] sm:$0xf]
      %v549 = vld [vmem:[%s366 + $0x200] sm:$0xf]
      %v550 = vld [vmem:[%s366 + $0x204] sm:$0xf]
      %v551 = vld [vmem:[%s366 + $0x208] sm:$0xf]
      %v552 = vld [vmem:[%s366 + $0x20c] sm:$0xf]
      %v553 = vld [vmem:[%s366 + $0x210] sm:$0xf]
      %v554 = vld [vmem:[%s366 + $0x214] sm:$0xf]
      %v555 = vld [vmem:[%s366 + $0x218] sm:$0xf]
      %v556 = vld [vmem:[%s366 + $0x21c] sm:$0xf]
      %v557 = vld [vmem:[%s366 + $0x220] sm:$0xf]
      %v558 = vld [vmem:[%s366 + $0x224] sm:$0xf]
      %v559 = vld [vmem:[%s366 + $0x228] sm:$0xf]
      %v560 = vld [vmem:[%s366 + $0x22c] sm:$0xf]
      %v561 = vld [vmem:[%s366 + $0x230] sm:$0xf]
      %v562 = vld [vmem:[%s366 + $0x234] sm:$0xf]
      %v563 = vld [vmem:[%s366 + $0x238] sm:$0xf]
      %v564 = vld [vmem:[%s366 + $0x23c] sm:$0xf]
      %v565 = vld [vmem:[%s366 + $0x240] sm:$0xf]
      %v566 = vld [vmem:[%s366 + $0x244] sm:$0xf]
      %v567 = vld [vmem:[%s366 + $0x248] sm:$0xf]
      %v568 = vld [vmem:[%s366 + $0x24c] sm:$0xf]
      %v569 = vld [vmem:[%s366 + $0x250] sm:$0xf]
      %v570 = vld [vmem:[%s366 + $0x254] sm:$0xf]
      %v571 = vld [vmem:[%s366 + $0x258] sm:$0xf]
      %v572 = vld [vmem:[%s366 + $0x25c] sm:$0xf]
      %v573 = vld [vmem:[%s366 + $0x260] sm:$0xf]
      %v574 = vld [vmem:[%s366 + $0x264] sm:$0xf]
      %v575 = vld [vmem:[%s366 + $0x268] sm:$0xf]
      %v576 = vld [vmem:[%s366 + $0x26c] sm:$0xf]
      %v577 = vld [vmem:[%s366 + $0x270] sm:$0xf]
      %v578 = vld [vmem:[%s366 + $0x274] sm:$0xf]
      %v579 = vld [vmem:[%s366 + $0x278] sm:$0xf]
      %v580 = vld [vmem:[%s366 + $0x27c] sm:$0xf]
      %v581 = vld [vmem:[%s366 + $0x280] sm:$0xf]
      %v582 = vld [vmem:[%s366 + $0x284] sm:$0xf]
      %v583 = vld [vmem:[%s366 + $0x288] sm:$0xf]
      %v584 = vld [vmem:[%s366 + $0x28c] sm:$0xf]
      %v585 = vld [vmem:[%s366 + $0x290] sm:$0xf]
      %v586 = vld [vmem:[%s366 + $0x294] sm:$0xf]
      %v587 = vld [vmem:[%s366 + $0x298] sm:$0xf]
      %v588 = vld [vmem:[%s366 + $0x29c] sm:$0xf]
      %v589 = vld [vmem:[%s366 + $0x2a0] sm:$0xf]
      %v590 = vld [vmem:[%s366 + $0x2a4] sm:$0xf]
      %v591 = vld [vmem:[%s366 + $0x2a8] sm:$0xf]
      %v592 = vld [vmem:[%s366 + $0x2ac] sm:$0xf]
      %v593 = vld [vmem:[%s366 + $0x2b0] sm:$0xf]
      %v594 = vld [vmem:[%s366 + $0x2b4] sm:$0xf]
      %v595 = vld [vmem:[%s366 + $0x2b8] sm:$0xf]
      %v596 = vld [vmem:[%s366 + $0x2bc] sm:$0xf]
      %v597 = vld [vmem:[%s366 + $0x2c0] sm:$0xf]
      %v598 = vld [vmem:[%s366 + $0x2c4] sm:$0xf]
      %v599 = vld [vmem:[%s366 + $0x2c8] sm:$0xf]
      %v600 = vld [vmem:[%s366 + $0x2cc] sm:$0xf]
      %v601 = vld [vmem:[%s366 + $0x2d0] sm:$0xf]
      %v602 = vld [vmem:[%s366 + $0x2d4] sm:$0xf]
      %v603 = vld [vmem:[%s366 + $0x2d8] sm:$0xf]
      %v604 = vld [vmem:[%s366 + $0x2dc] sm:$0xf]
      %v605 = vld [vmem:[%s366 + $0x2e0] sm:$0xf]
      %v606 = vld [vmem:[%s366 + $0x2e4] sm:$0xf]
      %v607 = vld [vmem:[%s366 + $0x2e8] sm:$0xf]
      %v608 = vld [vmem:[%s366 + $0x2ec] sm:$0xf]
      %v609 = vld [vmem:[%s366 + $0x2f0] sm:$0xf]
      %v610 = vld [vmem:[%s366 + $0x2f4] sm:$0xf]
      %v611 = vld [vmem:[%s366 + $0x2f8] sm:$0xf]
      %v612 = vld [vmem:[%s366 + $0x2fc] sm:$0xf]
      %v613 = vld [vmem:[%s366 + $0x300] sm:$0xf]
      %v614 = vld [vmem:[%s366 + $0x304] sm:$0xf]
      %v615 = vld [vmem:[%s366 + $0x308] sm:$0xf]
      %v616 = vld [vmem:[%s366 + $0x30c] sm:$0xf]
      %v617 = vld [vmem:[%s366 + $0x310] sm:$0xf]
      %v618 = vld [vmem:[%s366 + $0x314] sm:$0xf]
      %v619 = vld [vmem:[%s366 + $0x318] sm:$0xf]
      %v620 = vld [vmem:[%s366 + $0x31c] sm:$0xf]
      %v621 = vld [vmem:[%s366 + $0x320] sm:$0xf]
      %v622 = vld [vmem:[%s366 + $0x324] sm:$0xf]
      %v623 = vld [vmem:[%s366 + $0x328] sm:$0xf]
      %v624 = vld [vmem:[%s366 + $0x32c] sm:$0xf]
      %v625 = vld [vmem:[%s366 + $0x330] sm:$0xf]
      %v626 = vld [vmem:[%s366 + $0x334] sm:$0xf]
      %v627 = vld [vmem:[%s366 + $0x338] sm:$0xf]
      %v628 = vld [vmem:[%s366 + $0x33c] sm:$0xf]
      %v629 = vld [vmem:[%s366 + $0x340] sm:$0xf]
      %v630 = vld [vmem:[%s366 + $0x344] sm:$0xf]
      %v631 = vld [vmem:[%s366 + $0x348] sm:$0xf]
      %v632 = vld [vmem:[%s366 + $0x34c] sm:$0xf]
      %v633 = vld [vmem:[%s366 + $0x350] sm:$0xf]
      %v634 = vld [vmem:[%s366 + $0x354] sm:$0xf]
      %v635 = vld [vmem:[%s366 + $0x358] sm:$0xf]
      %v636 = vld [vmem:[%s366 + $0x35c] sm:$0xf]
      %v637 = vld [vmem:[%s366 + $0x360] sm:$0xf]
      %v638 = vld [vmem:[%s366 + $0x364] sm:$0xf]
      %v639 = vld [vmem:[%s366 + $0x368] sm:$0xf]
      %v640 = vld [vmem:[%s366 + $0x36c] sm:$0xf]
      %v641 = vld [vmem:[%s366 + $0x370] sm:$0xf]
      %v642 = vld [vmem:[%s366 + $0x374] sm:$0xf]
      %v643 = vld [vmem:[%s366 + $0x378] sm:$0xf]
      %v644 = vld [vmem:[%s366 + $0x37c] sm:$0xf]
      %v645 = vld [vmem:[%s366 + $0x380] sm:$0xf]
      %v646 = vld [vmem:[%s366 + $0x384] sm:$0xf]
      %v647 = vld [vmem:[%s366 + $0x388] sm:$0xf]
      %v648 = vld [vmem:[%s366 + $0x38c] sm:$0xf]
      %v649 = vld [vmem:[%s366 + $0x390] sm:$0xf]
      %v650 = vld [vmem:[%s366 + $0x394] sm:$0xf]
      %v651 = vld [vmem:[%s366 + $0x398] sm:$0xf]
      %v652 = vld [vmem:[%s366 + $0x39c] sm:$0xf]
      %v653 = vld [vmem:[%s366 + $0x3a0] sm:$0xf]
      %v654 = vld [vmem:[%s366 + $0x3a4] sm:$0xf]
      %v655 = vld [vmem:[%s366 + $0x3a8] sm:$0xf]
      %v656 = vld [vmem:[%s366 + $0x3ac] sm:$0xf]
      %v657 = vld [vmem:[%s366 + $0x3b0] sm:$0xf]
      %v658 = vld [vmem:[%s366 + $0x3b4] sm:$0xf]
      %v659 = vld [vmem:[%s366 + $0x3b8] sm:$0xf]
      %v660 = vld [vmem:[%s366 + $0x3bc] sm:$0xf]
      %v661 = vld [vmem:[%s366 + $0x3c0] sm:$0xf]
      %v662 = vld [vmem:[%s366 + $0x3c4] sm:$0xf]
      %v663 = vld [vmem:[%s366 + $0x3c8] sm:$0xf]
      %v664 = vld [vmem:[%s366 + $0x3cc] sm:$0xf]
      %v665 = vld [vmem:[%s366 + $0x3d0] sm:$0xf]
      %v666 = vld [vmem:[%s366 + $0x3d4] sm:$0xf]
      %v667 = vld [vmem:[%s366 + $0x3d8] sm:$0xf]
      %v668 = vld [vmem:[%s366 + $0x3dc] sm:$0xf]
      %v669 = vld [vmem:[%s366 + $0x3e0] sm:$0xf]
      %v670 = vld [vmem:[%s366 + $0x3e4] sm:$0xf]
      %v671 = vld [vmem:[%s366 + $0x3e8] sm:$0xf]
      %v672 = vld [vmem:[%s366 + $0x3ec] sm:$0xf]
      %v673 = vld [vmem:[%s366 + $0x3f0] sm:$0xf]
      %v674 = vld [vmem:[%s366 + $0x3f4] sm:$0xf]
      %v675 = vld [vmem:[%s366 + $0x3f8] sm:$0xf]
      %v676 = vld [vmem:[%s366 + $0x3fc] sm:$0xf]
      %v677 = vld [vmem:[%s366 + $0x400] sm:$0xf]
      %v678 = vld [vmem:[%s366 + $0x404] sm:$0xf]
      %v679 = vld [vmem:[%s366 + $0x408] sm:$0xf]
      %v680 = vld [vmem:[%s366 + $0x40c] sm:$0xf]
      %v681 = vld [vmem:[%s366 + $0x410] sm:$0xf]
      %v682 = vld [vmem:[%s366 + $0x414] sm:$0xf]
      %v683 = vld [vmem:[%s366 + $0x418] sm:$0xf]
      %v684 = vld [vmem:[%s366 + $0x41c] sm:$0xf]
      %v685 = vld [vmem:[%s366 + $0x420] sm:$0xf]
      %v686 = vld [vmem:[%s366 + $0x424] sm:$0xf]
      %v687 = vld [vmem:[%s366 + $0x428] sm:$0xf]
      %v688 = vld [vmem:[%s366 + $0x42c] sm:$0xf]
      %v689 = vld [vmem:[%s366 + $0x430] sm:$0xf]
      %v690 = vld [vmem:[%s366 + $0x434] sm:$0xf]
      %v691 = vld [vmem:[%s366 + $0x438] sm:$0xf]
      %v692 = vld [vmem:[%s366 + $0x43c] sm:$0xf]
      %v693 = vld [vmem:[%s366 + $0x440] sm:$0xf]
      %v694 = vld [vmem:[%s366 + $0x444] sm:$0xf]
      %v695 = vld [vmem:[%s366 + $0x448] sm:$0xf]
      %v696 = vld [vmem:[%s366 + $0x44c] sm:$0xf]
      %v697 = vld [vmem:[%s366 + $0x450] sm:$0xf]
      %v698 = vld [vmem:[%s366 + $0x454] sm:$0xf]
      %v699 = vld [vmem:[%s366 + $0x458] sm:$0xf]
      %v700 = vld [vmem:[%s366 + $0x45c] sm:$0xf]
      %v701 = vld [vmem:[%s366 + $0x460] sm:$0xf]
      %v702 = vld [vmem:[%s366 + $0x464] sm:$0xf]
      %v703 = vld [vmem:[%s366 + $0x468] sm:$0xf]
      %v704 = vld [vmem:[%s366 + $0x46c] sm:$0xf]
      %v705 = vld [vmem:[%s366 + $0x470] sm:$0xf]
      %v706 = vld [vmem:[%s366 + $0x474] sm:$0xf]
      %v707 = vld [vmem:[%s366 + $0x478] sm:$0xf]
      %v708 = vld [vmem:[%s366 + $0x47c] sm:$0xf]
      %v709 = vld [vmem:[%s366 + $0x480] sm:$0xf]
      %v710 = vld [vmem:[%s366 + $0x484] sm:$0xf]
      %v711 = vld [vmem:[%s366 + $0x488] sm:$0xf]
      %v712 = vld [vmem:[%s366 + $0x48c] sm:$0xf]
      %v713 = vld [vmem:[%s366 + $0x490] sm:$0xf]
      %v714 = vld [vmem:[%s366 + $0x494] sm:$0xf]
      %v715 = vld [vmem:[%s366 + $0x498] sm:$0xf]
      %v716 = vld [vmem:[%s366 + $0x49c] sm:$0xf]
      %v717 = vld [vmem:[%s366 + $0x4a0] sm:$0xf]
      %v718 = vld [vmem:[%s366 + $0x4a4] sm:$0xf]
      %v719 = vld [vmem:[%s366 + $0x4a8] sm:$0xf]
      %v720 = vld [vmem:[%s366 + $0x4ac] sm:$0xf]
      %v721 = vld [vmem:[%s366 + $0x4b0] sm:$0xf]
      %v722 = vld [vmem:[%s366 + $0x4b4] sm:$0xf]
      %v723 = vld [vmem:[%s366 + $0x4b8] sm:$0xf]
      %v724 = vld [vmem:[%s366 + $0x4bc] sm:$0xf]
      %v725 = vld [vmem:[%s366 + $0x4c0] sm:$0xf]
      %v726 = vld [vmem:[%s366 + $0x4c4] sm:$0xf]
      %v727 = vld [vmem:[%s366 + $0x4c8] sm:$0xf]
      %v728 = vld [vmem:[%s366 + $0x4cc] sm:$0xf]
      %v729 = vld [vmem:[%s366 + $0x4d0] sm:$0xf]
      %v730 = vld [vmem:[%s366 + $0x4d4] sm:$0xf]
      %v731 = vld [vmem:[%s366 + $0x4d8] sm:$0xf]
      %v732 = vld [vmem:[%s366 + $0x4dc] sm:$0xf]
      %v733 = vld [vmem:[%s366 + $0x4e0] sm:$0xf]
      %v734 = vld [vmem:[%s366 + $0x4e4] sm:$0xf]
      %v735 = vld [vmem:[%s366 + $0x4e8] sm:$0xf]
      %v736 = vld [vmem:[%s366 + $0x4ec] sm:$0xf]
      %v737 = vld [vmem:[%s366 + $0x4f0] sm:$0xf]
      %v738 = vld [vmem:[%s366 + $0x4f4] sm:$0xf]
      %v739 = vld [vmem:[%s366 + $0x4f8] sm:$0xf]
      %v740 = vld [vmem:[%s366 + $0x4fc] sm:$0xf]
      %v741 = vld [vmem:[%s366 + $0x500] sm:$0xf]
      %v742 = vld [vmem:[%s366 + $0x504] sm:$0xf]
      %v743 = vld [vmem:[%s366 + $0x508] sm:$0xf]
      %v744 = vld [vmem:[%s366 + $0x50c] sm:$0xf]
      %v745 = vld [vmem:[%s366 + $0x510] sm:$0xf]
      %v746 = vld [vmem:[%s366 + $0x514] sm:$0xf]
      %v747 = vld [vmem:[%s366 + $0x518] sm:$0xf]
      %v748 = vld [vmem:[%s366 + $0x51c] sm:$0xf]
      %v749 = vld [vmem:[%s366 + $0x520] sm:$0xf]
      %v750 = vld [vmem:[%s366 + $0x524] sm:$0xf]
      %v751 = vld [vmem:[%s366 + $0x528] sm:$0xf]
      %v752 = vld [vmem:[%s366 + $0x52c] sm:$0xf]
      %v753 = vld [vmem:[%s366 + $0x530] sm:$0xf]
      %v754 = vld [vmem:[%s366 + $0x534] sm:$0xf]
      %v755 = vld [vmem:[%s366 + $0x538] sm:$0xf]
      %v756 = vld [vmem:[%s366 + $0x53c] sm:$0xf]
      %v757 = vld [vmem:[%s366 + $0x540] sm:$0xf]
      %v758 = vld [vmem:[%s366 + $0x544] sm:$0xf]
      %v759 = vld [vmem:[%s366 + $0x548] sm:$0xf]
      %v760 = vld [vmem:[%s366 + $0x54c] sm:$0xf]
      %v761 = vld [vmem:[%s366 + $0x550] sm:$0xf]
      %v762 = vld [vmem:[%s366 + $0x554] sm:$0xf]
      %v763 = vld [vmem:[%s366 + $0x558] sm:$0xf]
      %v764 = vld [vmem:[%s366 + $0x55c] sm:$0xf]
      %v765 = vld [vmem:[%s366 + $0x560] sm:$0xf]
      %v766 = vld [vmem:[%s366 + $0x564] sm:$0xf]
      %v767 = vld [vmem:[%s366 + $0x568] sm:$0xf]
      %v768 = vld [vmem:[%s366 + $0x56c] sm:$0xf]
      %v769 = vld [vmem:[%s366 + $0x570] sm:$0xf]
      %v770 = vld [vmem:[%s366 + $0x574] sm:$0xf]
      %v771 = vld [vmem:[%s366 + $0x578] sm:$0xf]
      %v772 = vld [vmem:[%s366 + $0x57c] sm:$0xf]
      %v773 = vld [vmem:[%s366 + $0x580] sm:$0xf]
      %v774 = vld [vmem:[%s366 + $0x584] sm:$0xf]
      %v775 = vld [vmem:[%s366 + $0x588] sm:$0xf]
      %v776 = vld [vmem:[%s366 + $0x58c] sm:$0xf]
      %v777 = vld [vmem:[%s366 + $0x590] sm:$0xf]
      %v778 = vld [vmem:[%s366 + $0x594] sm:$0xf]
      %v779 = vld [vmem:[%s366 + $0x598] sm:$0xf]
      %v780 = vld [vmem:[%s366 + $0x59c] sm:$0xf]
      %v781 = vld [vmem:[%s366 + $0x5a0] sm:$0xf]
      %v782 = vld [vmem:[%s366 + $0x5a4] sm:$0xf]
      %v783 = vld [vmem:[%s366 + $0x5a8] sm:$0xf]
      %v784 = vld [vmem:[%s366 + $0x5ac] sm:$0xf]
      %v785 = vld [vmem:[%s366 + $0x5b0] sm:$0xf]
      %v786 = vld [vmem:[%s366 + $0x5b4] sm:$0xf]
      %v787 = vld [vmem:[%s366 + $0x5b8] sm:$0xf]
      %v788 = vld [vmem:[%s366 + $0x5bc] sm:$0xf]
      %v789 = vld [vmem:[%s366 + $0x5c0] sm:$0xf]
      %v790 = vld [vmem:[%s366 + $0x5c4] sm:$0xf]
      %v791 = vld [vmem:[%s366 + $0x5c8] sm:$0xf]
      %v792 = vld [vmem:[%s366 + $0x5cc] sm:$0xf]
      %v793 = vld [vmem:[%s366 + $0x5d0] sm:$0xf]
      %v794 = vld [vmem:[%s366 + $0x5d4] sm:$0xf]
      %v795 = vld [vmem:[%s366 + $0x5d8] sm:$0xf]
      %v796 = vld [vmem:[%s366 + $0x5dc] sm:$0xf]
      %v797 = vld [vmem:[%s366 + $0x5e0] sm:$0xf]
      %v798 = vld [vmem:[%s366 + $0x5e4] sm:$0xf]
      %v799 = vld [vmem:[%s366 + $0x5e8] sm:$0xf]
      %v800 = vld [vmem:[%s366 + $0x5ec] sm:$0xf]
      %v801 = vld [vmem:[%s366 + $0x5f0] sm:$0xf]
      %v802 = vld [vmem:[%s366 + $0x5f4] sm:$0xf]
      %v803 = vld [vmem:[%s366 + $0x5f8] sm:$0xf]
      %v804 = vld [vmem:[%s366 + $0x5fc] sm:$0xf]
      %v805 = vld [vmem:[%s366 + $0x600] sm:$0xf]
      %v806 = vld [vmem:[%s366 + $0x604] sm:$0xf]
      %v807 = vld [vmem:[%s366 + $0x608] sm:$0xf]
      %v808 = vld [vmem:[%s366 + $0x60c] sm:$0xf]
      %v809 = vld [vmem:[%s366 + $0x610] sm:$0xf]
      %v810 = vld [vmem:[%s366 + $0x614] sm:$0xf]
      %v811 = vld [vmem:[%s366 + $0x618] sm:$0xf]
      %v812 = vld [vmem:[%s366 + $0x61c] sm:$0xf]
      %v813 = vld [vmem:[%s366 + $0x620] sm:$0xf]
      %v814 = vld [vmem:[%s366 + $0x624] sm:$0xf]
      %v815 = vld [vmem:[%s366 + $0x628] sm:$0xf]
      %v816 = vld [vmem:[%s366 + $0x62c] sm:$0xf]
      %v817 = vld [vmem:[%s366 + $0x630] sm:$0xf]
      %v818 = vld [vmem:[%s366 + $0x634] sm:$0xf]
      %v819 = vld [vmem:[%s366 + $0x638] sm:$0xf]
      %v820 = vld [vmem:[%s366 + $0x63c] sm:$0xf]
      %v821 = vld [vmem:[%s366 + $0x640] sm:$0xf]
      %v822 = vld [vmem:[%s366 + $0x644] sm:$0xf]
      %v823 = vld [vmem:[%s366 + $0x648] sm:$0xf]
      %v824 = vld [vmem:[%s366 + $0x64c] sm:$0xf]
      %v825 = vld [vmem:[%s366 + $0x650] sm:$0xf]
      %v826 = vld [vmem:[%s366 + $0x654] sm:$0xf]
      %v827 = vld [vmem:[%s366 + $0x658] sm:$0xf]
      %v828 = vld [vmem:[%s366 + $0x65c] sm:$0xf]
      %v829 = vld [vmem:[%s366 + $0x660] sm:$0xf]
      %v830 = vld [vmem:[%s366 + $0x664] sm:$0xf]
      %v831 = vld [vmem:[%s366 + $0x668] sm:$0xf]
      %v832 = vld [vmem:[%s366 + $0x66c] sm:$0xf]
      %v833 = vld [vmem:[%s366 + $0x670] sm:$0xf]
      %v834 = vld [vmem:[%s366 + $0x674] sm:$0xf]
      %v835 = vld [vmem:[%s366 + $0x678] sm:$0xf]
      %v836 = vld [vmem:[%s366 + $0x67c] sm:$0xf]
      %v837 = vld [vmem:[%s366 + $0x680] sm:$0xf]
      %v838 = vld [vmem:[%s366 + $0x684] sm:$0xf]
      %v839 = vld [vmem:[%s366 + $0x688] sm:$0xf]
      %v840 = vld [vmem:[%s366 + $0x68c] sm:$0xf]
      %v841 = vld [vmem:[%s366 + $0x690] sm:$0xf]
      %v842 = vld [vmem:[%s366 + $0x694] sm:$0xf]
      %v843 = vld [vmem:[%s366 + $0x698] sm:$0xf]
      %v844 = vld [vmem:[%s366 + $0x69c] sm:$0xf]
      %v845 = vld [vmem:[%s366 + $0x6a0] sm:$0xf]
      %v846 = vld [vmem:[%s366 + $0x6a4] sm:$0xf]
      %v847 = vld [vmem:[%s366 + $0x6a8] sm:$0xf]
      %v848 = vld [vmem:[%s366 + $0x6ac] sm:$0xf]
      %v849 = vld [vmem:[%s366 + $0x6b0] sm:$0xf]
      %v850 = vld [vmem:[%s366 + $0x6b4] sm:$0xf]
      %v851 = vld [vmem:[%s366 + $0x6b8] sm:$0xf]
      %v852 = vld [vmem:[%s366 + $0x6bc] sm:$0xf]
      %v853 = vld [vmem:[%s366 + $0x6c0] sm:$0xf]
      %v854 = vld [vmem:[%s366 + $0x6c4] sm:$0xf]
      %v855 = vld [vmem:[%s366 + $0x6c8] sm:$0xf]
      %v856 = vld [vmem:[%s366 + $0x6cc] sm:$0xf]
      %v857 = vld [vmem:[%s366 + $0x6d0] sm:$0xf]
      %v858 = vld [vmem:[%s366 + $0x6d4] sm:$0xf]
      %v859 = vld [vmem:[%s366 + $0x6d8] sm:$0xf]
      %v860 = vld [vmem:[%s366 + $0x6dc] sm:$0xf]
      %v861 = vld [vmem:[%s366 + $0x6e0] sm:$0xf]
      %v862 = vld [vmem:[%s366 + $0x6e4] sm:$0xf]
      %v863 = vld [vmem:[%s366 + $0x6e8] sm:$0xf]
      %v864 = vld [vmem:[%s366 + $0x6ec] sm:$0xf]
      %v865 = vld [vmem:[%s366 + $0x6f0] sm:$0xf]
      %v866 = vld [vmem:[%s366 + $0x6f4] sm:$0xf]
      %v867 = vld [vmem:[%s366 + $0x6f8] sm:$0xf]
      %v868 = vld [vmem:[%s366 + $0x6fc] sm:$0xf]
      %v1317 = vunpack.c.l.b16 %v421
      %v1318 = vunpack.c.l.b16 %v422
      %v1319 = vunpack.c.l.b16 %v423
      %v1320 = vunpack.c.l.b16 %v424
      %v1321 = vunpack.c.l.b16 %v425
      %v1322 = vunpack.c.l.b16 %v426
      %v1323 = vunpack.c.l.b16 %v427
      %v1324 = vunpack.c.l.b16 %v428
      %v1325 = vunpack.c.l.b16 %v429
      %v1326 = vunpack.c.l.b16 %v430
      %v1327 = vunpack.c.l.b16 %v431
      %v1328 = vunpack.c.l.b16 %v432
      %v1329 = vunpack.c.l.b16 %v433
      %v1330 = vunpack.c.l.b16 %v434
      %v1331 = vunpack.c.l.b16 %v435
      %v1332 = vunpack.c.l.b16 %v436
      %v1333 = vunpack.c.l.b16 %v437
      %v1334 = vunpack.c.l.b16 %v438
      %v1335 = vunpack.c.l.b16 %v439
      %v1336 = vunpack.c.l.b16 %v440
      %v1337 = vunpack.c.l.b16 %v441
      %v1338 = vunpack.c.l.b16 %v442
      %v1339 = vunpack.c.l.b16 %v443
      %v1340 = vunpack.c.l.b16 %v444
      %v1341 = vunpack.c.l.b16 %v445
      %v1342 = vunpack.c.l.b16 %v446
      %v1343 = vunpack.c.l.b16 %v447
      %v1344 = vunpack.c.l.b16 %v448
      %v1345 = vunpack.c.l.b16 %v449
      %v1346 = vunpack.c.l.b16 %v450
      %v1347 = vunpack.c.l.b16 %v451
      %v1348 = vunpack.c.l.b16 %v452
      %v1349 = vunpack.c.l.b16 %v453
      %v1350 = vunpack.c.l.b16 %v454
      %v1351 = vunpack.c.l.b16 %v455
      %v1352 = vunpack.c.l.b16 %v456
      %v1353 = vunpack.c.l.b16 %v457
      %v1354 = vunpack.c.l.b16 %v458
      %v1355 = vunpack.c.l.b16 %v459
      %v1356 = vunpack.c.l.b16 %v460
      %v1357 = vunpack.c.l.b16 %v461
      %v1358 = vunpack.c.l.b16 %v462
      %v1359 = vunpack.c.l.b16 %v463
      %v1360 = vunpack.c.l.b16 %v464
      %v1361 = vunpack.c.l.b16 %v465
      %v1362 = vunpack.c.l.b16 %v466
      %v1363 = vunpack.c.l.b16 %v467
      %v1364 = vunpack.c.l.b16 %v468
      %v1365 = vunpack.c.l.b16 %v469
      %v1366 = vunpack.c.l.b16 %v470
      %v1367 = vunpack.c.l.b16 %v471
      %v1368 = vunpack.c.l.b16 %v472
      %v1369 = vunpack.c.l.b16 %v473
      %v1370 = vunpack.c.l.b16 %v474
      %v1371 = vunpack.c.l.b16 %v475
      %v1372 = vunpack.c.l.b16 %v476
      %v1373 = vunpack.c.l.b16 %v477
      %v1374 = vunpack.c.l.b16 %v478
      %v1375 = vunpack.c.l.b16 %v479
      %v1376 = vunpack.c.l.b16 %v480
      %v1377 = vunpack.c.l.b16 %v481
      %v1378 = vunpack.c.l.b16 %v482
      %v1379 = vunpack.c.l.b16 %v483
      %v1380 = vunpack.c.l.b16 %v484
      %v1381 = vunpack.c.l.b16 %v485
      %v1382 = vunpack.c.l.b16 %v486
      %v1383 = vunpack.c.l.b16 %v487
      %v1384 = vunpack.c.l.b16 %v488
      %v1385 = vunpack.c.l.b16 %v489
      %v1386 = vunpack.c.l.b16 %v490
      %v1387 = vunpack.c.l.b16 %v491
      %v1388 = vunpack.c.l.b16 %v492
      %v1389 = vunpack.c.l.b16 %v493
      %v1390 = vunpack.c.l.b16 %v494
      %v1391 = vunpack.c.l.b16 %v495
      %v1392 = vunpack.c.l.b16 %v496
      %v1393 = vunpack.c.l.b16 %v497
      %v1394 = vunpack.c.l.b16 %v498
      %v1395 = vunpack.c.l.b16 %v499
      %v1396 = vunpack.c.l.b16 %v500
      %v1397 = vunpack.c.l.b16 %v501
      %v1398 = vunpack.c.l.b16 %v502
      %v1399 = vunpack.c.l.b16 %v503
      %v1400 = vunpack.c.l.b16 %v504
      %v1401 = vunpack.c.l.b16 %v505
      %v1402 = vunpack.c.l.b16 %v506
      %v1403 = vunpack.c.l.b16 %v507
      %v1404 = vunpack.c.l.b16 %v508
      %v1405 = vunpack.c.l.b16 %v509
      %v1406 = vunpack.c.l.b16 %v510
      %v1407 = vunpack.c.l.b16 %v511
      %v1408 = vunpack.c.l.b16 %v512
      %v1409 = vunpack.c.l.b16 %v513
      %v1410 = vunpack.c.l.b16 %v514
      %v1411 = vunpack.c.l.b16 %v515
      %v1412 = vunpack.c.l.b16 %v516
      %v1413 = vunpack.c.l.b16 %v517
      %v1414 = vunpack.c.l.b16 %v518
      %v1415 = vunpack.c.l.b16 %v519
      %v1416 = vunpack.c.l.b16 %v520
      %v1417 = vunpack.c.l.b16 %v521
      %v1418 = vunpack.c.l.b16 %v522
      %v1419 = vunpack.c.l.b16 %v523
      %v1420 = vunpack.c.l.b16 %v524
      %v1421 = vunpack.c.l.b16 %v525
      %v1422 = vunpack.c.l.b16 %v526
      %v1423 = vunpack.c.l.b16 %v527
      %v1424 = vunpack.c.l.b16 %v528
      %v1425 = vunpack.c.l.b16 %v529
      %v1426 = vunpack.c.l.b16 %v530
      %v1427 = vunpack.c.l.b16 %v531
      %v1428 = vunpack.c.l.b16 %v532
      %v1429 = vunpack.c.l.b16 %v533
      %v1430 = vunpack.c.l.b16 %v534
      %v1431 = vunpack.c.l.b16 %v535
      %v1432 = vunpack.c.l.b16 %v536
      %v1433 = vunpack.c.l.b16 %v537
      %v1434 = vunpack.c.l.b16 %v538
      %v1435 = vunpack.c.l.b16 %v539
      %v1436 = vunpack.c.l.b16 %v540
      %v1437 = vunpack.c.l.b16 %v541
      %v1438 = vunpack.c.l.b16 %v542
      %v1439 = vunpack.c.l.b16 %v543
      %v1440 = vunpack.c.l.b16 %v544
      %v1441 = vunpack.c.l.b16 %v545
      %v1442 = vunpack.c.l.b16 %v546
      %v1443 = vunpack.c.l.b16 %v547
      %v1444 = vunpack.c.l.b16 %v548
      %v1445 = vunpack.c.l.b16 %v549
      %v1446 = vunpack.c.l.b16 %v550
      %v1447 = vunpack.c.l.b16 %v551
      %v1448 = vunpack.c.l.b16 %v552
      %v1449 = vunpack.c.l.b16 %v553
      %v1450 = vunpack.c.l.b16 %v554
      %v1451 = vunpack.c.l.b16 %v555
      %v1452 = vunpack.c.l.b16 %v556
      %v1453 = vunpack.c.l.b16 %v557
      %v1454 = vunpack.c.l.b16 %v558
      %v1455 = vunpack.c.l.b16 %v559
      %v1456 = vunpack.c.l.b16 %v560
      %v1457 = vunpack.c.l.b16 %v561
      %v1458 = vunpack.c.l.b16 %v562
      %v1459 = vunpack.c.l.b16 %v563
      %v1460 = vunpack.c.l.b16 %v564
      %v1461 = vunpack.c.l.b16 %v565
      %v1462 = vunpack.c.l.b16 %v566
      %v1463 = vunpack.c.l.b16 %v567
      %v1464 = vunpack.c.l.b16 %v568
      %v1465 = vunpack.c.l.b16 %v569
      %v1466 = vunpack.c.l.b16 %v570
      %v1467 = vunpack.c.l.b16 %v571
      %v1468 = vunpack.c.l.b16 %v572
      %v1469 = vunpack.c.l.b16 %v573
      %v1470 = vunpack.c.l.b16 %v574
      %v1471 = vunpack.c.l.b16 %v575
      %v1472 = vunpack.c.l.b16 %v576
      %v1473 = vunpack.c.l.b16 %v577
      %v1474 = vunpack.c.l.b16 %v578
      %v1475 = vunpack.c.l.b16 %v579
      %v1476 = vunpack.c.l.b16 %v580
      %v1477 = vunpack.c.l.b16 %v581
      %v1478 = vunpack.c.l.b16 %v582
      %v1479 = vunpack.c.l.b16 %v583
      %v1480 = vunpack.c.l.b16 %v584
      %v1481 = vunpack.c.l.b16 %v585
      %v1482 = vunpack.c.l.b16 %v586
      %v1483 = vunpack.c.l.b16 %v587
      %v1484 = vunpack.c.l.b16 %v588
      %v1485 = vunpack.c.l.b16 %v589
      %v1486 = vunpack.c.l.b16 %v590
      %v1487 = vunpack.c.l.b16 %v591
      %v1488 = vunpack.c.l.b16 %v592
      %v1489 = vunpack.c.l.b16 %v593
      %v1490 = vunpack.c.l.b16 %v594
      %v1491 = vunpack.c.l.b16 %v595
      %v1492 = vunpack.c.l.b16 %v596
      %v1493 = vunpack.c.l.b16 %v597
      %v1494 = vunpack.c.l.b16 %v598
      %v1495 = vunpack.c.l.b16 %v599
      %v1496 = vunpack.c.l.b16 %v600
      %v1497 = vunpack.c.l.b16 %v601
      %v1498 = vunpack.c.l.b16 %v602
      %v1499 = vunpack.c.l.b16 %v603
      %v1500 = vunpack.c.l.b16 %v604
      %v1501 = vunpack.c.l.b16 %v605
      %v1502 = vunpack.c.l.b16 %v606
      %v1503 = vunpack.c.l.b16 %v607
      %v1504 = vunpack.c.l.b16 %v608
      %v1505 = vunpack.c.l.b16 %v609
      %v1506 = vunpack.c.l.b16 %v610
      %v1507 = vunpack.c.l.b16 %v611
      %v1508 = vunpack.c.l.b16 %v612
      %v1509 = vunpack.c.l.b16 %v613
      %v1510 = vunpack.c.l.b16 %v614
      %v1511 = vunpack.c.l.b16 %v615
      %v1512 = vunpack.c.l.b16 %v616
      %v1513 = vunpack.c.l.b16 %v617
      %v1514 = vunpack.c.l.b16 %v618
      %v1515 = vunpack.c.l.b16 %v619
      %v1516 = vunpack.c.l.b16 %v620
      %v1517 = vunpack.c.l.b16 %v621
      %v1518 = vunpack.c.l.b16 %v622
      %v1519 = vunpack.c.l.b16 %v623
      %v1520 = vunpack.c.l.b16 %v624
      %v1521 = vunpack.c.l.b16 %v625
      %v1522 = vunpack.c.l.b16 %v626
      %v1523 = vunpack.c.l.b16 %v627
      %v1524 = vunpack.c.l.b16 %v628
      %v1525 = vunpack.c.l.b16 %v629
      %v1526 = vunpack.c.l.b16 %v630
      %v1527 = vunpack.c.l.b16 %v631
      %v1528 = vunpack.c.l.b16 %v632
      %v1529 = vunpack.c.l.b16 %v633
      %v1530 = vunpack.c.l.b16 %v634
      %v1531 = vunpack.c.l.b16 %v635
      %v1532 = vunpack.c.l.b16 %v636
      %v1533 = vunpack.c.l.b16 %v637
      %v1534 = vunpack.c.l.b16 %v638
      %v1535 = vunpack.c.l.b16 %v639
      %v1536 = vunpack.c.l.b16 %v640
      %v1537 = vunpack.c.l.b16 %v641
      %v1538 = vunpack.c.l.b16 %v642
      %v1539 = vunpack.c.l.b16 %v643
      %v1540 = vunpack.c.l.b16 %v644
      %v1541 = vunpack.c.l.b16 %v645
      %v1542 = vunpack.c.l.b16 %v646
      %v1543 = vunpack.c.l.b16 %v647
      %v1544 = vunpack.c.l.b16 %v648
      %v1545 = vunpack.c.l.b16 %v649
      %v1546 = vunpack.c.l.b16 %v650
      %v1547 = vunpack.c.l.b16 %v651
      %v1548 = vunpack.c.l.b16 %v652
      %v1549 = vunpack.c.l.b16 %v653
      %v1550 = vunpack.c.l.b16 %v654
      %v1551 = vunpack.c.l.b16 %v655
      %v1552 = vunpack.c.l.b16 %v656
      %v1553 = vunpack.c.l.b16 %v657
      %v1554 = vunpack.c.l.b16 %v658
      %v1555 = vunpack.c.l.b16 %v659
      %v1556 = vunpack.c.l.b16 %v660
      %v1557 = vunpack.c.l.b16 %v661
      %v1558 = vunpack.c.l.b16 %v662
      %v1559 = vunpack.c.l.b16 %v663
      %v1560 = vunpack.c.l.b16 %v664
      %v1561 = vunpack.c.l.b16 %v665
      %v1562 = vunpack.c.l.b16 %v666
      %v1563 = vunpack.c.l.b16 %v667
      %v1564 = vunpack.c.l.b16 %v668
      %v1565 = vunpack.c.l.b16 %v669
      %v1566 = vunpack.c.l.b16 %v670
      %v1567 = vunpack.c.l.b16 %v671
      %v1568 = vunpack.c.l.b16 %v672
      %v1569 = vunpack.c.l.b16 %v673
      %v1570 = vunpack.c.l.b16 %v674
      %v1571 = vunpack.c.l.b16 %v675
      %v1572 = vunpack.c.l.b16 %v676
      %v1573 = vunpack.c.l.b16 %v677
      %v1574 = vunpack.c.l.b16 %v678
      %v1575 = vunpack.c.l.b16 %v679
      %v1576 = vunpack.c.l.b16 %v680
      %v1577 = vunpack.c.l.b16 %v681
      %v1578 = vunpack.c.l.b16 %v682
      %v1579 = vunpack.c.l.b16 %v683
      %v1580 = vunpack.c.l.b16 %v684
      %v1581 = vunpack.c.l.b16 %v685
      %v1582 = vunpack.c.l.b16 %v686
      %v1583 = vunpack.c.l.b16 %v687
      %v1584 = vunpack.c.l.b16 %v688
      %v1585 = vunpack.c.l.b16 %v689
      %v1586 = vunpack.c.l.b16 %v690
      %v1587 = vunpack.c.l.b16 %v691
      %v1588 = vunpack.c.l.b16 %v692
      %v1589 = vunpack.c.l.b16 %v693
      %v1590 = vunpack.c.l.b16 %v694
      %v1591 = vunpack.c.l.b16 %v695
      %v1592 = vunpack.c.l.b16 %v696
      %v1593 = vunpack.c.l.b16 %v697
      %v1594 = vunpack.c.l.b16 %v698
      %v1595 = vunpack.c.l.b16 %v699
      %v1596 = vunpack.c.l.b16 %v700
      %v1597 = vunpack.c.l.b16 %v701
      %v1598 = vunpack.c.l.b16 %v702
      %v1599 = vunpack.c.l.b16 %v703
      %v1600 = vunpack.c.l.b16 %v704
      %v1601 = vunpack.c.l.b16 %v705
      %v1602 = vunpack.c.l.b16 %v706
      %v1603 = vunpack.c.l.b16 %v707
      %v1604 = vunpack.c.l.b16 %v708
      %v1605 = vunpack.c.l.b16 %v709
      %v1606 = vunpack.c.l.b16 %v710
      %v1607 = vunpack.c.l.b16 %v711
      %v1608 = vunpack.c.l.b16 %v712
      %v1609 = vunpack.c.l.b16 %v713
      %v1610 = vunpack.c.l.b16 %v714
      %v1611 = vunpack.c.l.b16 %v715
      %v1612 = vunpack.c.l.b16 %v716
      %v1613 = vunpack.c.l.b16 %v717
      %v1614 = vunpack.c.l.b16 %v718
      %v1615 = vunpack.c.l.b16 %v719
      %v1616 = vunpack.c.l.b16 %v720
      %v1617 = vunpack.c.l.b16 %v721
      %v1618 = vunpack.c.l.b16 %v722
      %v1619 = vunpack.c.l.b16 %v723
      %v1620 = vunpack.c.l.b16 %v724
      %v1621 = vunpack.c.l.b16 %v725
      %v1622 = vunpack.c.l.b16 %v726
      %v1623 = vunpack.c.l.b16 %v727
      %v1624 = vunpack.c.l.b16 %v728
      %v1625 = vunpack.c.l.b16 %v729
      %v1626 = vunpack.c.l.b16 %v730
      %v1627 = vunpack.c.l.b16 %v731
      %v1628 = vunpack.c.l.b16 %v732
      %v1629 = vunpack.c.l.b16 %v733
      %v1630 = vunpack.c.l.b16 %v734
      %v1631 = vunpack.c.l.b16 %v735
      %v1632 = vunpack.c.l.b16 %v736
      %v1633 = vunpack.c.l.b16 %v737
      %v1634 = vunpack.c.l.b16 %v738
      %v1635 = vunpack.c.l.b16 %v739
      %v1636 = vunpack.c.l.b16 %v740
      %v1637 = vunpack.c.l.b16 %v741
      %v1638 = vunpack.c.l.b16 %v742
      %v1639 = vunpack.c.l.b16 %v743
      %v1640 = vunpack.c.l.b16 %v744
      %v1641 = vunpack.c.l.b16 %v745
      %v1642 = vunpack.c.l.b16 %v746
      %v1643 = vunpack.c.l.b16 %v747
      %v1644 = vunpack.c.l.b16 %v748
      %v1645 = vunpack.c.l.b16 %v749
      %v1646 = vunpack.c.l.b16 %v750
      %v1647 = vunpack.c.l.b16 %v751
      %v1648 = vunpack.c.l.b16 %v752
      %v1649 = vunpack.c.l.b16 %v753
      %v1650 = vunpack.c.l.b16 %v754
      %v1651 = vunpack.c.l.b16 %v755
      %v1652 = vunpack.c.l.b16 %v756
      %v1653 = vunpack.c.l.b16 %v757
      %v1654 = vunpack.c.l.b16 %v758
      %v1655 = vunpack.c.l.b16 %v759
      %v1656 = vunpack.c.l.b16 %v760
      %v1657 = vunpack.c.l.b16 %v761
      %v1658 = vunpack.c.l.b16 %v762
      %v1659 = vunpack.c.l.b16 %v763
      %v1660 = vunpack.c.l.b16 %v764
      %v1661 = vunpack.c.l.b16 %v765
      %v1662 = vunpack.c.l.b16 %v766
      %v1663 = vunpack.c.l.b16 %v767
      %v1664 = vunpack.c.l.b16 %v768
      %v1665 = vunpack.c.l.b16 %v769
      %v1666 = vunpack.c.l.b16 %v770
      %v1667 = vunpack.c.l.b16 %v771
      %v1668 = vunpack.c.l.b16 %v772
      %v1669 = vunpack.c.l.b16 %v773
      %v1670 = vunpack.c.l.b16 %v774
      %v1671 = vunpack.c.l.b16 %v775
      %v1672 = vunpack.c.l.b16 %v776
      %v1673 = vunpack.c.l.b16 %v777
      %v1674 = vunpack.c.l.b16 %v778
      %v1675 = vunpack.c.l.b16 %v779
      %v1676 = vunpack.c.l.b16 %v780
      %v1677 = vunpack.c.l.b16 %v781
      %v1678 = vunpack.c.l.b16 %v782
      %v1679 = vunpack.c.l.b16 %v783
      %v1680 = vunpack.c.l.b16 %v784
      %v1681 = vunpack.c.l.b16 %v785
      %v1682 = vunpack.c.l.b16 %v786
      %v1683 = vunpack.c.l.b16 %v787
      %v1684 = vunpack.c.l.b16 %v788
      %v1685 = vunpack.c.l.b16 %v789
      %v1686 = vunpack.c.l.b16 %v790
      %v1687 = vunpack.c.l.b16 %v791
      %v1688 = vunpack.c.l.b16 %v792
      %v1689 = vunpack.c.l.b16 %v793
      %v1690 = vunpack.c.l.b16 %v794
      %v1691 = vunpack.c.l.b16 %v795
      %v1692 = vunpack.c.l.b16 %v796
      %v1693 = vunpack.c.l.b16 %v797
      %v1694 = vunpack.c.l.b16 %v798
      %v1695 = vunpack.c.l.b16 %v799
      %v1696 = vunpack.c.l.b16 %v800
      %v1697 = vunpack.c.l.b16 %v801
      %v1698 = vunpack.c.l.b16 %v802
      %v1699 = vunpack.c.l.b16 %v803
      %v1700 = vunpack.c.l.b16 %v804
      %v1701 = vunpack.c.l.b16 %v805
      %v1702 = vunpack.c.l.b16 %v806
      %v1703 = vunpack.c.l.b16 %v807
      %v1704 = vunpack.c.l.b16 %v808
      %v1705 = vunpack.c.l.b16 %v809
      %v1706 = vunpack.c.l.b16 %v810
      %v1707 = vunpack.c.l.b16 %v811
      %v1708 = vunpack.c.l.b16 %v812
      %v1709 = vunpack.c.l.b16 %v813
      %v1710 = vunpack.c.l.b16 %v814
      %v1711 = vunpack.c.l.b16 %v815
      %v1712 = vunpack.c.l.b16 %v816
      %v1713 = vunpack.c.l.b16 %v817
      %v1714 = vunpack.c.l.b16 %v818
      %v1715 = vunpack.c.l.b16 %v819
      %v1716 = vunpack.c.l.b16 %v820
      %v1717 = vunpack.c.l.b16 %v821
      %v1718 = vunpack.c.l.b16 %v822
      %v1719 = vunpack.c.l.b16 %v823
      %v1720 = vunpack.c.l.b16 %v824
      %v1721 = vunpack.c.l.b16 %v825
      %v1722 = vunpack.c.l.b16 %v826
      %v1723 = vunpack.c.l.b16 %v827
      %v1724 = vunpack.c.l.b16 %v828
      %v1725 = vunpack.c.l.b16 %v829
      %v1726 = vunpack.c.l.b16 %v830
      %v1727 = vunpack.c.l.b16 %v831
      %v1728 = vunpack.c.l.b16 %v832
      %v1729 = vunpack.c.l.b16 %v833
      %v1730 = vunpack.c.l.b16 %v834
      %v1731 = vunpack.c.l.b16 %v835
      %v1732 = vunpack.c.l.b16 %v836
      %v1733 = vunpack.c.l.b16 %v837
      %v1734 = vunpack.c.l.b16 %v838
      %v1735 = vunpack.c.l.b16 %v839
      %v1736 = vunpack.c.l.b16 %v840
      %v1737 = vunpack.c.l.b16 %v841
      %v1738 = vunpack.c.l.b16 %v842
      %v1739 = vunpack.c.l.b16 %v843
      %v1740 = vunpack.c.l.b16 %v844
      %v1741 = vunpack.c.l.b16 %v845
      %v1742 = vunpack.c.l.b16 %v846
      %v1743 = vunpack.c.l.b16 %v847
      %v1744 = vunpack.c.l.b16 %v848
      %v1745 = vunpack.c.l.b16 %v849
      %v1746 = vunpack.c.l.b16 %v850
      %v1747 = vunpack.c.l.b16 %v851
      %v1748 = vunpack.c.l.b16 %v852
      %v1749 = vunpack.c.l.b16 %v853
      %v1750 = vunpack.c.l.b16 %v854
      %v1751 = vunpack.c.l.b16 %v855
      %v1752 = vunpack.c.l.b16 %v856
      %v1753 = vunpack.c.l.b16 %v857
      %v1754 = vunpack.c.l.b16 %v858
      %v1755 = vunpack.c.l.b16 %v859
      %v1756 = vunpack.c.l.b16 %v860
      %v1757 = vunpack.c.l.b16 %v861
      %v1758 = vunpack.c.l.b16 %v862
      %v1759 = vunpack.c.l.b16 %v863
      %v1760 = vunpack.c.l.b16 %v864
      %v1761 = vunpack.c.l.b16 %v865
      %v1762 = vunpack.c.l.b16 %v866
      %v1763 = vunpack.c.l.b16 %v867
      %v1764 = vunpack.c.l.b16 %v868
      %v1765 = vpack.c.b16 %v1318, %v1317
      %v1766 = vpack.c.b16 %v1320, %v1319
      %v1767 = vpack.c.b16 %v1322, %v1321
      %v1768 = vpack.c.b16 %v1324, %v1323
      %v1769 = vpack.c.b16 %v1326, %v1325
      %v1770 = vpack.c.b16 %v1328, %v1327
      %v1771 = vpack.c.b16 %v1330, %v1329
      %v1772 = vpack.c.b16 %v1332, %v1331
      %v1773 = vpack.c.b16 %v1334, %v1333
      %v1774 = vpack.c.b16 %v1336, %v1335
      %v1775 = vpack.c.b16 %v1338, %v1337
      %v1776 = vpack.c.b16 %v1340, %v1339
      %v1777 = vpack.c.b16 %v1342, %v1341
      %v1778 = vpack.c.b16 %v1344, %v1343
      %v1779 = vpack.c.b16 %v1346, %v1345
      %v1780 = vpack.c.b16 %v1348, %v1347
      %v1781 = vpack.c.b16 %v1350, %v1349
      %v1782 = vpack.c.b16 %v1352, %v1351
      %v1783 = vpack.c.b16 %v1354, %v1353
      %v1784 = vpack.c.b16 %v1356, %v1355
      %v1785 = vpack.c.b16 %v1358, %v1357
      %v1786 = vpack.c.b16 %v1360, %v1359
      %v1787 = vpack.c.b16 %v1362, %v1361
      %v1788 = vpack.c.b16 %v1364, %v1363
      %v1789 = vpack.c.b16 %v1366, %v1365
      %v1790 = vpack.c.b16 %v1368, %v1367
      %v1791 = vpack.c.b16 %v1370, %v1369
      %v1792 = vpack.c.b16 %v1372, %v1371
      %v1793 = vpack.c.b16 %v1374, %v1373
      %v1794 = vpack.c.b16 %v1376, %v1375
      %v1795 = vpack.c.b16 %v1378, %v1377
      %v1796 = vpack.c.b16 %v1380, %v1379
      %v1797 = vpack.c.b16 %v1382, %v1381
      %v1798 = vpack.c.b16 %v1384, %v1383
      %v1799 = vpack.c.b16 %v1386, %v1385
      %v1800 = vpack.c.b16 %v1388, %v1387
      %v1801 = vpack.c.b16 %v1390, %v1389
      %v1802 = vpack.c.b16 %v1392, %v1391
      %v1803 = vpack.c.b16 %v1394, %v1393
      %v1804 = vpack.c.b16 %v1396, %v1395
      %v1805 = vpack.c.b16 %v1398, %v1397
      %v1806 = vpack.c.b16 %v1400, %v1399
      %v1807 = vpack.c.b16 %v1402, %v1401
      %v1808 = vpack.c.b16 %v1404, %v1403
      %v1809 = vpack.c.b16 %v1406, %v1405
      %v1810 = vpack.c.b16 %v1408, %v1407
      %v1811 = vpack.c.b16 %v1410, %v1409
      %v1812 = vpack.c.b16 %v1412, %v1411
      %v1813 = vpack.c.b16 %v1414, %v1413
      %v1814 = vpack.c.b16 %v1416, %v1415
      %v1815 = vpack.c.b16 %v1418, %v1417
      %v1816 = vpack.c.b16 %v1420, %v1419
      %v1817 = vpack.c.b16 %v1422, %v1421
      %v1818 = vpack.c.b16 %v1424, %v1423
      %v1819 = vpack.c.b16 %v1426, %v1425
      %v1820 = vpack.c.b16 %v1428, %v1427
      %v1821 = vpack.c.b16 %v1430, %v1429
      %v1822 = vpack.c.b16 %v1432, %v1431
      %v1823 = vpack.c.b16 %v1434, %v1433
      %v1824 = vpack.c.b16 %v1436, %v1435
      %v1825 = vpack.c.b16 %v1438, %v1437
      %v1826 = vpack.c.b16 %v1440, %v1439
      %v1827 = vpack.c.b16 %v1442, %v1441
      %v1828 = vpack.c.b16 %v1444, %v1443
      %v1829 = vpack.c.b16 %v1446, %v1445
      %v1830 = vpack.c.b16 %v1448, %v1447
      %v1831 = vpack.c.b16 %v1450, %v1449
      %v1832 = vpack.c.b16 %v1452, %v1451
      %v1833 = vpack.c.b16 %v1454, %v1453
      %v1834 = vpack.c.b16 %v1456, %v1455
      %v1835 = vpack.c.b16 %v1458, %v1457
      %v1836 = vpack.c.b16 %v1460, %v1459
      %v1837 = vpack.c.b16 %v1462, %v1461
      %v1838 = vpack.c.b16 %v1464, %v1463
      %v1839 = vpack.c.b16 %v1466, %v1465
      %v1840 = vpack.c.b16 %v1468, %v1467
      %v1841 = vpack.c.b16 %v1470, %v1469
      %v1842 = vpack.c.b16 %v1472, %v1471
      %v1843 = vpack.c.b16 %v1474, %v1473
      %v1844 = vpack.c.b16 %v1476, %v1475
      %v1845 = vpack.c.b16 %v1478, %v1477
      %v1846 = vpack.c.b16 %v1480, %v1479
      %v1847 = vpack.c.b16 %v1482, %v1481
      %v1848 = vpack.c.b16 %v1484, %v1483
      %v1849 = vpack.c.b16 %v1486, %v1485
      %v1850 = vpack.c.b16 %v1488, %v1487
      %v1851 = vpack.c.b16 %v1490, %v1489
      %v1852 = vpack.c.b16 %v1492, %v1491
      %v1853 = vpack.c.b16 %v1494, %v1493
      %v1854 = vpack.c.b16 %v1496, %v1495
      %v1855 = vpack.c.b16 %v1498, %v1497
      %v1856 = vpack.c.b16 %v1500, %v1499
      %v1857 = vpack.c.b16 %v1502, %v1501
      %v1858 = vpack.c.b16 %v1504, %v1503
      %v1859 = vpack.c.b16 %v1506, %v1505
      %v1860 = vpack.c.b16 %v1508, %v1507
      %v1861 = vpack.c.b16 %v1510, %v1509
      %v1862 = vpack.c.b16 %v1512, %v1511
      %v1863 = vpack.c.b16 %v1514, %v1513
      %v1864 = vpack.c.b16 %v1516, %v1515
      %v1865 = vpack.c.b16 %v1518, %v1517
      %v1866 = vpack.c.b16 %v1520, %v1519
      %v1867 = vpack.c.b16 %v1522, %v1521
      %v1868 = vpack.c.b16 %v1524, %v1523
      %v1869 = vpack.c.b16 %v1526, %v1525
      %v1870 = vpack.c.b16 %v1528, %v1527
      %v1871 = vpack.c.b16 %v1530, %v1529
      %v1872 = vpack.c.b16 %v1532, %v1531
      %v1873 = vpack.c.b16 %v1534, %v1533
      %v1874 = vpack.c.b16 %v1536, %v1535
      %v1875 = vpack.c.b16 %v1538, %v1537
      %v1876 = vpack.c.b16 %v1540, %v1539
      %v1877 = vpack.c.b16 %v1542, %v1541
      %v1878 = vpack.c.b16 %v1544, %v1543
      %v1879 = vpack.c.b16 %v1546, %v1545
      %v1880 = vpack.c.b16 %v1548, %v1547
      %v1881 = vpack.c.b16 %v1550, %v1549
      %v1882 = vpack.c.b16 %v1552, %v1551
      %v1883 = vpack.c.b16 %v1554, %v1553
      %v1884 = vpack.c.b16 %v1556, %v1555
      %v1885 = vpack.c.b16 %v1558, %v1557
      %v1886 = vpack.c.b16 %v1560, %v1559
      %v1887 = vpack.c.b16 %v1562, %v1561
      %v1888 = vpack.c.b16 %v1564, %v1563
      %v1889 = vpack.c.b16 %v1566, %v1565
      %v1890 = vpack.c.b16 %v1568, %v1567
      %v1891 = vpack.c.b16 %v1570, %v1569
      %v1892 = vpack.c.b16 %v1572, %v1571
      %v1893 = vpack.c.b16 %v1574, %v1573
      %v1894 = vpack.c.b16 %v1576, %v1575
      %v1895 = vpack.c.b16 %v1578, %v1577
      %v1896 = vpack.c.b16 %v1580, %v1579
      %v1897 = vpack.c.b16 %v1582, %v1581
      %v1898 = vpack.c.b16 %v1584, %v1583
      %v1899 = vpack.c.b16 %v1586, %v1585
      %v1900 = vpack.c.b16 %v1588, %v1587
      %v1901 = vpack.c.b16 %v1590, %v1589
      %v1902 = vpack.c.b16 %v1592, %v1591
      %v1903 = vpack.c.b16 %v1594, %v1593
      %v1904 = vpack.c.b16 %v1596, %v1595
      %v1905 = vpack.c.b16 %v1598, %v1597
      %v1906 = vpack.c.b16 %v1600, %v1599
      %v1907 = vpack.c.b16 %v1602, %v1601
      %v1908 = vpack.c.b16 %v1604, %v1603
      %v1909 = vpack.c.b16 %v1606, %v1605
      %v1910 = vpack.c.b16 %v1608, %v1607
      %v1911 = vpack.c.b16 %v1610, %v1609
      %v1912 = vpack.c.b16 %v1612, %v1611
      %v1913 = vpack.c.b16 %v1614, %v1613
      %v1914 = vpack.c.b16 %v1616, %v1615
      %v1915 = vpack.c.b16 %v1618, %v1617
      %v1916 = vpack.c.b16 %v1620, %v1619
      %v1917 = vpack.c.b16 %v1622, %v1621
      %v1918 = vpack.c.b16 %v1624, %v1623
      %v1919 = vpack.c.b16 %v1626, %v1625
      %v1920 = vpack.c.b16 %v1628, %v1627
      %v1921 = vpack.c.b16 %v1630, %v1629
      %v1922 = vpack.c.b16 %v1632, %v1631
      %v1923 = vpack.c.b16 %v1634, %v1633
      %v1924 = vpack.c.b16 %v1636, %v1635
      %v1925 = vpack.c.b16 %v1638, %v1637
      %v1926 = vpack.c.b16 %v1640, %v1639
      %v1927 = vpack.c.b16 %v1642, %v1641
      %v1928 = vpack.c.b16 %v1644, %v1643
      %v1929 = vpack.c.b16 %v1646, %v1645
      %v1930 = vpack.c.b16 %v1648, %v1647
      %v1931 = vpack.c.b16 %v1650, %v1649
      %v1932 = vpack.c.b16 %v1652, %v1651
      %v1933 = vpack.c.b16 %v1654, %v1653
      %v1934 = vpack.c.b16 %v1656, %v1655
      %v1935 = vpack.c.b16 %v1658, %v1657
      %v1936 = vpack.c.b16 %v1660, %v1659
      %v1937 = vpack.c.b16 %v1662, %v1661
      %v1938 = vpack.c.b16 %v1664, %v1663
      %v1939 = vpack.c.b16 %v1666, %v1665
      %v1940 = vpack.c.b16 %v1668, %v1667
      %v1941 = vpack.c.b16 %v1670, %v1669
      %v1942 = vpack.c.b16 %v1672, %v1671
      %v1943 = vpack.c.b16 %v1674, %v1673
      %v1944 = vpack.c.b16 %v1676, %v1675
      %v1945 = vpack.c.b16 %v1678, %v1677
      %v1946 = vpack.c.b16 %v1680, %v1679
      %v1947 = vpack.c.b16 %v1682, %v1681
      %v1948 = vpack.c.b16 %v1684, %v1683
      %v1949 = vpack.c.b16 %v1686, %v1685
      %v1950 = vpack.c.b16 %v1688, %v1687
      %v1951 = vpack.c.b16 %v1690, %v1689
      %v1952 = vpack.c.b16 %v1692, %v1691
      %v1953 = vpack.c.b16 %v1694, %v1693
      %v1954 = vpack.c.b16 %v1696, %v1695
      %v1955 = vpack.c.b16 %v1698, %v1697
      %v1956 = vpack.c.b16 %v1700, %v1699
      %v1957 = vpack.c.b16 %v1702, %v1701
      %v1958 = vpack.c.b16 %v1704, %v1703
      %v1959 = vpack.c.b16 %v1706, %v1705
      %v1960 = vpack.c.b16 %v1708, %v1707
      %v1961 = vpack.c.b16 %v1710, %v1709
      %v1962 = vpack.c.b16 %v1712, %v1711
      %v1963 = vpack.c.b16 %v1714, %v1713
      %v1964 = vpack.c.b16 %v1716, %v1715
      %v1965 = vpack.c.b16 %v1718, %v1717
      %v1966 = vpack.c.b16 %v1720, %v1719
      %v1967 = vpack.c.b16 %v1722, %v1721
      %v1968 = vpack.c.b16 %v1724, %v1723
      %v1969 = vpack.c.b16 %v1726, %v1725
      %v1970 = vpack.c.b16 %v1728, %v1727
      %v1971 = vpack.c.b16 %v1730, %v1729
      %v1972 = vpack.c.b16 %v1732, %v1731
      %v1973 = vpack.c.b16 %v1734, %v1733
      %v1974 = vpack.c.b16 %v1736, %v1735
      %v1975 = vpack.c.b16 %v1738, %v1737
      %v1976 = vpack.c.b16 %v1740, %v1739
      %v1977 = vpack.c.b16 %v1742, %v1741
      %v1978 = vpack.c.b16 %v1744, %v1743
      %v1979 = vpack.c.b16 %v1746, %v1745
      %v1980 = vpack.c.b16 %v1748, %v1747
      %v1981 = vpack.c.b16 %v1750, %v1749
      %v1982 = vpack.c.b16 %v1752, %v1751
      %v1983 = vpack.c.b16 %v1754, %v1753
      %v1984 = vpack.c.b16 %v1756, %v1755
      %v1985 = vpack.c.b16 %v1758, %v1757
      %v1986 = vpack.c.b16 %v1760, %v1759
      %v1987 = vpack.c.b16 %v1762, %v1761
      %v1988 = vpack.c.b16 %v1764, %v1763
      %vm2213 = vcmask 146432
      %2214 = vst.msk [vmem:[#allocation2] sm:$0xff] %vm2213, %v1765
      %2215 = vst.msk [vmem:[#allocation2 + $0x8] sm:$0xff] %vm2213, %v1766
      %2216 = vst.msk [vmem:[#allocation2 + $0x10] sm:$0xff] %vm2213, %v1767
      %2217 = vst.msk [vmem:[#allocation2 + $0x18] sm:$0xff] %vm2213, %v1768
      %2218 = vst.msk [vmem:[#allocation2 + $0x20] sm:$0xff] %vm2213, %v1769
      %2219 = vst.msk [vmem:[#allocation2 + $0x28] sm:$0xff] %vm2213, %v1770
      %2220 = vst.msk [vmem:[#allocation2 + $0x30] sm:$0xff] %vm2213, %v1771
      %2221 = vst.msk [vmem:[#allocation2 + $0x38] sm:$0xff] %vm2213, %v1772
      %2222 = vst.msk [vmem:[#allocation2 + $0x40] sm:$0xff] %vm2213, %v1773
      %2223 = vst.msk [vmem:[#allocation2 + $0x48] sm:$0xff] %vm2213, %v1774
      %2224 = vst.msk [vmem:[#allocation2 + $0x50] sm:$0xff] %vm2213, %v1775
      %2225 = vst.msk [vmem:[#allocation2 + $0x58] sm:$0xff] %vm2213, %v1776
      %2226 = vst.msk [vmem:[#allocation2 + $0x60] sm:$0xff] %vm2213, %v1777
      %2227 = vst.msk [vmem:[#allocation2 + $0x68] sm:$0xff] %vm2213, %v1778
      %2228 = vst.msk [vmem:[#allocation2 + $0x70] sm:$0xff] %vm2213, %v1779
      %2229 = vst.msk [vmem:[#allocation2 + $0x78] sm:$0xff] %vm2213, %v1780
      %2230 = vst.msk [vmem:[#allocation2 + $0x80] sm:$0xff] %vm2213, %v1781
      %2231 = vst.msk [vmem:[#allocation2 + $0x88] sm:$0xff] %vm2213, %v1782
      %2232 = vst.msk [vmem:[#allocation2 + $0x90] sm:$0xff] %vm2213, %v1783
      %2233 = vst.msk [vmem:[#allocation2 + $0x98] sm:$0xff] %vm2213, %v1784
      %2234 = vst.msk [vmem:[#allocation2 + $0xa0] sm:$0xff] %vm2213, %v1785
      %2235 = vst.msk [vmem:[#allocation2 + $0xa8] sm:$0xff] %vm2213, %v1786
      %2236 = vst.msk [vmem:[#allocation2 + $0xb0] sm:$0xff] %vm2213, %v1787
      %2237 = vst.msk [vmem:[#allocation2 + $0xb8] sm:$0xff] %vm2213, %v1788
      %2238 = vst.msk [vmem:[#allocation2 + $0xc0] sm:$0xff] %vm2213, %v1789
      %2239 = vst.msk [vmem:[#allocation2 + $0xc8] sm:$0xff] %vm2213, %v1790
      %2240 = vst.msk [vmem:[#allocation2 + $0xd0] sm:$0xff] %vm2213, %v1791
      %2241 = vst.msk [vmem:[#allocation2 + $0xd8] sm:$0xff] %vm2213, %v1792
      %2242 = vst.msk [vmem:[#allocation2 + $0xe0] sm:$0xff] %vm2213, %v1793
      %2243 = vst.msk [vmem:[#allocation2 + $0xe8] sm:$0xff] %vm2213, %v1794
      %2244 = vst.msk [vmem:[#allocation2 + $0xf0] sm:$0xff] %vm2213, %v1795
      %2245 = vst.msk [vmem:[#allocation2 + $0xf8] sm:$0xff] %vm2213, %v1796
      %2246 = vst.msk [vmem:[#allocation2 + $0x100] sm:$0xff] %vm2213, %v1797
      %2247 = vst.msk [vmem:[#allocation2 + $0x108] sm:$0xff] %vm2213, %v1798
      %2248 = vst.msk [vmem:[#allocation2 + $0x110] sm:$0xff] %vm2213, %v1799
      %2249 = vst.msk [vmem:[#allocation2 + $0x118] sm:$0xff] %vm2213, %v1800
      %2250 = vst.msk [vmem:[#allocation2 + $0x120] sm:$0xff] %vm2213, %v1801
      %2251 = vst.msk [vmem:[#allocation2 + $0x128] sm:$0xff] %vm2213, %v1802
      %2252 = vst.msk [vmem:[#allocation2 + $0x130] sm:$0xff] %vm2213, %v1803
      %2253 = vst.msk [vmem:[#allocation2 + $0x138] sm:$0xff] %vm2213, %v1804
      %2254 = vst.msk [vmem:[#allocation2 + $0x140] sm:$0xff] %vm2213, %v1805
      %2255 = vst.msk [vmem:[#allocation2 + $0x148] sm:$0xff] %vm2213, %v1806
      %2256 = vst.msk [vmem:[#allocation2 + $0x150] sm:$0xff] %vm2213, %v1807
      %2257 = vst.msk [vmem:[#allocation2 + $0x158] sm:$0xff] %vm2213, %v1808
      %2258 = vst.msk [vmem:[#allocation2 + $0x160] sm:$0xff] %vm2213, %v1809
      %2259 = vst.msk [vmem:[#allocation2 + $0x168] sm:$0xff] %vm2213, %v1810
      %2260 = vst.msk [vmem:[#allocation2 + $0x170] sm:$0xff] %vm2213, %v1811
      %2261 = vst.msk [vmem:[#allocation2 + $0x178] sm:$0xff] %vm2213, %v1812
      %2262 = vst.msk [vmem:[#allocation2 + $0x180] sm:$0xff] %vm2213, %v1813
      %2263 = vst.msk [vmem:[#allocation2 + $0x188] sm:$0xff] %vm2213, %v1814
      %2264 = vst.msk [vmem:[#allocation2 + $0x190] sm:$0xff] %vm2213, %v1815
      %2265 = vst.msk [vmem:[#allocation2 + $0x198] sm:$0xff] %vm2213, %v1816
      %2266 = vst.msk [vmem:[#allocation2 + $0x1a0] sm:$0xff] %vm2213, %v1817
      %2267 = vst.msk [vmem:[#allocation2 + $0x1a8] sm:$0xff] %vm2213, %v1818
      %2268 = vst.msk [vmem:[#allocation2 + $0x1b0] sm:$0xff] %vm2213, %v1819
      %2269 = vst.msk [vmem:[#allocation2 + $0x1b8] sm:$0xff] %vm2213, %v1820
      %2270 = vst.msk [vmem:[#allocation2 + $0x1c0] sm:$0xff] %vm2213, %v1821
      %2271 = vst.msk [vmem:[#allocation2 + $0x1c8] sm:$0xff] %vm2213, %v1822
      %2272 = vst.msk [vmem:[#allocation2 + $0x1d0] sm:$0xff] %vm2213, %v1823
      %2273 = vst.msk [vmem:[#allocation2 + $0x1d8] sm:$0xff] %vm2213, %v1824
      %2274 = vst.msk [vmem:[#allocation2 + $0x1e0] sm:$0xff] %vm2213, %v1825
      %2275 = vst.msk [vmem:[#allocation2 + $0x1e8] sm:$0xff] %vm2213, %v1826
      %2276 = vst.msk [vmem:[#allocation2 + $0x1f0] sm:$0xff] %vm2213, %v1827
      %2277 = vst.msk [vmem:[#allocation2 + $0x1f8] sm:$0xff] %vm2213, %v1828
      %2278 = vst.msk [vmem:[#allocation2 + $0x200] sm:$0xff] %vm2213, %v1829
      %2279 = vst.msk [vmem:[#allocation2 + $0x208] sm:$0xff] %vm2213, %v1830
      %2280 = vst.msk [vmem:[#allocation2 + $0x210] sm:$0xff] %vm2213, %v1831
      %2281 = vst.msk [vmem:[#allocation2 + $0x218] sm:$0xff] %vm2213, %v1832
      %2282 = vst.msk [vmem:[#allocation2 + $0x220] sm:$0xff] %vm2213, %v1833
      %2283 = vst.msk [vmem:[#allocation2 + $0x228] sm:$0xff] %vm2213, %v1834
      %2284 = vst.msk [vmem:[#allocation2 + $0x230] sm:$0xff] %vm2213, %v1835
      %2285 = vst.msk [vmem:[#allocation2 + $0x238] sm:$0xff] %vm2213, %v1836
      %2286 = vst.msk [vmem:[#allocation2 + $0x240] sm:$0xff] %vm2213, %v1837
      %2287 = vst.msk [vmem:[#allocation2 + $0x248] sm:$0xff] %vm2213, %v1838
      %2288 = vst.msk [vmem:[#allocation2 + $0x250] sm:$0xff] %vm2213, %v1839
      %2289 = vst.msk [vmem:[#allocation2 + $0x258] sm:$0xff] %vm2213, %v1840
      %2290 = vst.msk [vmem:[#allocation2 + $0x260] sm:$0xff] %vm2213, %v1841
      %2291 = vst.msk [vmem:[#allocation2 + $0x268] sm:$0xff] %vm2213, %v1842
      %2292 = vst.msk [vmem:[#allocation2 + $0x270] sm:$0xff] %vm2213, %v1843
      %2293 = vst.msk [vmem:[#allocation2 + $0x278] sm:$0xff] %vm2213, %v1844
      %2294 = vst.msk [vmem:[#allocation2 + $0x280] sm:$0xff] %vm2213, %v1845
      %2295 = vst.msk [vmem:[#allocation2 + $0x288] sm:$0xff] %vm2213, %v1846
      %2296 = vst.msk [vmem:[#allocation2 + $0x290] sm:$0xff] %vm2213, %v1847
      %2297 = vst.msk [vmem:[#allocation2 + $0x298] sm:$0xff] %vm2213, %v1848
      %2298 = vst.msk [vmem:[#allocation2 + $0x2a0] sm:$0xff] %vm2213, %v1849
      %2299 = vst.msk [vmem:[#allocation2 + $0x2a8] sm:$0xff] %vm2213, %v1850
      %2300 = vst.msk [vmem:[#allocation2 + $0x2b0] sm:$0xff] %vm2213, %v1851
      %2301 = vst.msk [vmem:[#allocation2 + $0x2b8] sm:$0xff] %vm2213, %v1852
      %2302 = vst.msk [vmem:[#allocation2 + $0x2c0] sm:$0xff] %vm2213, %v1853
      %2303 = vst.msk [vmem:[#allocation2 + $0x2c8] sm:$0xff] %vm2213, %v1854
      %2304 = vst.msk [vmem:[#allocation2 + $0x2d0] sm:$0xff] %vm2213, %v1855
      %2305 = vst.msk [vmem:[#allocation2 + $0x2d8] sm:$0xff] %vm2213, %v1856
      %2306 = vst.msk [vmem:[#allocation2 + $0x2e0] sm:$0xff] %vm2213, %v1857
      %2307 = vst.msk [vmem:[#allocation2 + $0x2e8] sm:$0xff] %vm2213, %v1858
      %2308 = vst.msk [vmem:[#allocation2 + $0x2f0] sm:$0xff] %vm2213, %v1859
      %2309 = vst.msk [vmem:[#allocation2 + $0x2f8] sm:$0xff] %vm2213, %v1860
      %2310 = vst.msk [vmem:[#allocation2 + $0x300] sm:$0xff] %vm2213, %v1861
      %2311 = vst.msk [vmem:[#allocation2 + $0x308] sm:$0xff] %vm2213, %v1862
      %2312 = vst.msk [vmem:[#allocation2 + $0x310] sm:$0xff] %vm2213, %v1863
      %2313 = vst.msk [vmem:[#allocation2 + $0x318] sm:$0xff] %vm2213, %v1864
      %2314 = vst.msk [vmem:[#allocation2 + $0x320] sm:$0xff] %vm2213, %v1865
      %2315 = vst.msk [vmem:[#allocation2 + $0x328] sm:$0xff] %vm2213, %v1866
      %2316 = vst.msk [vmem:[#allocation2 + $0x330] sm:$0xff] %vm2213, %v1867
      %2317 = vst.msk [vmem:[#allocation2 + $0x338] sm:$0xff] %vm2213, %v1868
      %2318 = vst.msk [vmem:[#allocation2 + $0x340] sm:$0xff] %vm2213, %v1869
      %2319 = vst.msk [vmem:[#allocation2 + $0x348] sm:$0xff] %vm2213, %v1870
      %2320 = vst.msk [vmem:[#allocation2 + $0x350] sm:$0xff] %vm2213, %v1871
      %2321 = vst.msk [vmem:[#allocation2 + $0x358] sm:$0xff] %vm2213, %v1872
      %2322 = vst.msk [vmem:[#allocation2 + $0x360] sm:$0xff] %vm2213, %v1873
      %2323 = vst.msk [vmem:[#allocation2 + $0x368] sm:$0xff] %vm2213, %v1874
      %2324 = vst.msk [vmem:[#allocation2 + $0x370] sm:$0xff] %vm2213, %v1875
      %2325 = vst.msk [vmem:[#allocation2 + $0x378] sm:$0xff] %vm2213, %v1876
      %2326 = vst.msk [vmem:[#allocation2 + $0x380] sm:$0xff] %vm2213, %v1877
      %2327 = vst.msk [vmem:[#allocation2 + $0x388] sm:$0xff] %vm2213, %v1878
      %2328 = vst.msk [vmem:[#allocation2 + $0x390] sm:$0xff] %vm2213, %v1879
      %2329 = vst.msk [vmem:[#allocation2 + $0x398] sm:$0xff] %vm2213, %v1880
      %2330 = vst.msk [vmem:[#allocation2 + $0x3a0] sm:$0xff] %vm2213, %v1881
      %2331 = vst.msk [vmem:[#allocation2 + $0x3a8] sm:$0xff] %vm2213, %v1882
      %2332 = vst.msk [vmem:[#allocation2 + $0x3b0] sm:$0xff] %vm2213, %v1883
      %2333 = vst.msk [vmem:[#allocation2 + $0x3b8] sm:$0xff] %vm2213, %v1884
      %2334 = vst.msk [vmem:[#allocation2 + $0x3c0] sm:$0xff] %vm2213, %v1885
      %2335 = vst.msk [vmem:[#allocation2 + $0x3c8] sm:$0xff] %vm2213, %v1886
      %2336 = vst.msk [vmem:[#allocation2 + $0x3d0] sm:$0xff] %vm2213, %v1887
      %2337 = vst.msk [vmem:[#allocation2 + $0x3d8] sm:$0xff] %vm2213, %v1888
      %2338 = vst.msk [vmem:[#allocation2 + $0x3e0] sm:$0xff] %vm2213, %v1889
      %2339 = vst.msk [vmem:[#allocation2 + $0x3e8] sm:$0xff] %vm2213, %v1890
      %2340 = vst.msk [vmem:[#allocation2 + $0x3f0] sm:$0xff] %vm2213, %v1891
      %2341 = vst.msk [vmem:[#allocation2 + $0x3f8] sm:$0xff] %vm2213, %v1892
      %2342 = vst.msk [vmem:[#allocation2 + $0x400] sm:$0xff] %vm2213, %v1893
      %2343 = vst.msk [vmem:[#allocation2 + $0x408] sm:$0xff] %vm2213, %v1894
      %2344 = vst.msk [vmem:[#allocation2 + $0x410] sm:$0xff] %vm2213, %v1895
      %2345 = vst.msk [vmem:[#allocation2 + $0x418] sm:$0xff] %vm2213, %v1896
      %2346 = vst.msk [vmem:[#allocation2 + $0x420] sm:$0xff] %vm2213, %v1897
      %2347 = vst.msk [vmem:[#allocation2 + $0x428] sm:$0xff] %vm2213, %v1898
      %2348 = vst.msk [vmem:[#allocation2 + $0x430] sm:$0xff] %vm2213, %v1899
      %2349 = vst.msk [vmem:[#allocation2 + $0x438] sm:$0xff] %vm2213, %v1900
      %2350 = vst.msk [vmem:[#allocation2 + $0x440] sm:$0xff] %vm2213, %v1901
      %2351 = vst.msk [vmem:[#allocation2 + $0x448] sm:$0xff] %vm2213, %v1902
      %2352 = vst.msk [vmem:[#allocation2 + $0x450] sm:$0xff] %vm2213, %v1903
      %2353 = vst.msk [vmem:[#allocation2 + $0x458] sm:$0xff] %vm2213, %v1904
      %2354 = vst.msk [vmem:[#allocation2 + $0x460] sm:$0xff] %vm2213, %v1905
      %2355 = vst.msk [vmem:[#allocation2 + $0x468] sm:$0xff] %vm2213, %v1906
      %2356 = vst.msk [vmem:[#allocation2 + $0x470] sm:$0xff] %vm2213, %v1907
      %2357 = vst.msk [vmem:[#allocation2 + $0x478] sm:$0xff] %vm2213, %v1908
      %2358 = vst.msk [vmem:[#allocation2 + $0x480] sm:$0xff] %vm2213, %v1909
      %2359 = vst.msk [vmem:[#allocation2 + $0x488] sm:$0xff] %vm2213, %v1910
      %2360 = vst.msk [vmem:[#allocation2 + $0x490] sm:$0xff] %vm2213, %v1911
      %2361 = vst.msk [vmem:[#allocation2 + $0x498] sm:$0xff] %vm2213, %v1912
      %2362 = vst.msk [vmem:[#allocation2 + $0x4a0] sm:$0xff] %vm2213, %v1913
      %2363 = vst.msk [vmem:[#allocation2 + $0x4a8] sm:$0xff] %vm2213, %v1914
      %2364 = vst.msk [vmem:[#allocation2 + $0x4b0] sm:$0xff] %vm2213, %v1915
      %2365 = vst.msk [vmem:[#allocation2 + $0x4b8] sm:$0xff] %vm2213, %v1916
      %2366 = vst.msk [vmem:[#allocation2 + $0x4c0] sm:$0xff] %vm2213, %v1917
      %2367 = vst.msk [vmem:[#allocation2 + $0x4c8] sm:$0xff] %vm2213, %v1918
      %2368 = vst.msk [vmem:[#allocation2 + $0x4d0] sm:$0xff] %vm2213, %v1919
      %2369 = vst.msk [vmem:[#allocation2 + $0x4d8] sm:$0xff] %vm2213, %v1920
      %2370 = vst.msk [vmem:[#allocation2 + $0x4e0] sm:$0xff] %vm2213, %v1921
      %2371 = vst.msk [vmem:[#allocation2 + $0x4e8] sm:$0xff] %vm2213, %v1922
      %2372 = vst.msk [vmem:[#allocation2 + $0x4f0] sm:$0xff] %vm2213, %v1923
      %2373 = vst.msk [vmem:[#allocation2 + $0x4f8] sm:$0xff] %vm2213, %v1924
      %2374 = vst.msk [vmem:[#allocation2 + $0x500] sm:$0xff] %vm2213, %v1925
      %2375 = vst.msk [vmem:[#allocation2 + $0x508] sm:$0xff] %vm2213, %v1926
      %2376 = vst.msk [vmem:[#allocation2 + $0x510] sm:$0xff] %vm2213, %v1927
      %2377 = vst.msk [vmem:[#allocation2 + $0x518] sm:$0xff] %vm2213, %v1928
      %2378 = vst.msk [vmem:[#allocation2 + $0x520] sm:$0xff] %vm2213, %v1929
      %2379 = vst.msk [vmem:[#allocation2 + $0x528] sm:$0xff] %vm2213, %v1930
      %2380 = vst.msk [vmem:[#allocation2 + $0x530] sm:$0xff] %vm2213, %v1931
      %2381 = vst.msk [vmem:[#allocation2 + $0x538] sm:$0xff] %vm2213, %v1932
      %2382 = vst.msk [vmem:[#allocation2 + $0x540] sm:$0xff] %vm2213, %v1933
      %2383 = vst.msk [vmem:[#allocation2 + $0x548] sm:$0xff] %vm2213, %v1934
      %2384 = vst.msk [vmem:[#allocation2 + $0x550] sm:$0xff] %vm2213, %v1935
      %2385 = vst.msk [vmem:[#allocation2 + $0x558] sm:$0xff] %vm2213, %v1936
      %2386 = vst.msk [vmem:[#allocation2 + $0x560] sm:$0xff] %vm2213, %v1937
      %2387 = vst.msk [vmem:[#allocation2 + $0x568] sm:$0xff] %vm2213, %v1938
      %2388 = vst.msk [vmem:[#allocation2 + $0x570] sm:$0xff] %vm2213, %v1939
      %2389 = vst.msk [vmem:[#allocation2 + $0x578] sm:$0xff] %vm2213, %v1940
      %2390 = vst.msk [vmem:[#allocation2 + $0x580] sm:$0xff] %vm2213, %v1941
      %2391 = vst.msk [vmem:[#allocation2 + $0x588] sm:$0xff] %vm2213, %v1942
      %2392 = vst.msk [vmem:[#allocation2 + $0x590] sm:$0xff] %vm2213, %v1943
      %2393 = vst.msk [vmem:[#allocation2 + $0x598] sm:$0xff] %vm2213, %v1944
      %2394 = vst.msk [vmem:[#allocation2 + $0x5a0] sm:$0xff] %vm2213, %v1945
      %2395 = vst.msk [vmem:[#allocation2 + $0x5a8] sm:$0xff] %vm2213, %v1946
      %2396 = vst.msk [vmem:[#allocation2 + $0x5b0] sm:$0xff] %vm2213, %v1947
      %2397 = vst.msk [vmem:[#allocation2 + $0x5b8] sm:$0xff] %vm2213, %v1948
      %2398 = vst.msk [vmem:[#allocation2 + $0x5c0] sm:$0xff] %vm2213, %v1949
      %2399 = vst.msk [vmem:[#allocation2 + $0x5c8] sm:$0xff] %vm2213, %v1950
      %2400 = vst.msk [vmem:[#allocation2 + $0x5d0] sm:$0xff] %vm2213, %v1951
      %2401 = vst.msk [vmem:[#allocation2 + $0x5d8] sm:$0xff] %vm2213, %v1952
      %2402 = vst.msk [vmem:[#allocation2 + $0x5e0] sm:$0xff] %vm2213, %v1953
      %2403 = vst.msk [vmem:[#allocation2 + $0x5e8] sm:$0xff] %vm2213, %v1954
      %2404 = vst.msk [vmem:[#allocation2 + $0x5f0] sm:$0xff] %vm2213, %v1955
      %2405 = vst.msk [vmem:[#allocation2 + $0x5f8] sm:$0xff] %vm2213, %v1956
      %2406 = vst.msk [vmem:[#allocation2 + $0x600] sm:$0xff] %vm2213, %v1957
      %2407 = vst.msk [vmem:[#allocation2 + $0x608] sm:$0xff] %vm2213, %v1958
      %2408 = vst.msk [vmem:[#allocation2 + $0x610] sm:$0xff] %vm2213, %v1959
      %2409 = vst.msk [vmem:[#allocation2 + $0x618] sm:$0xff] %vm2213, %v1960
      %2410 = vst.msk [vmem:[#allocation2 + $0x620] sm:$0xff] %vm2213, %v1961
      %2411 = vst.msk [vmem:[#allocation2 + $0x628] sm:$0xff] %vm2213, %v1962
      %2412 = vst.msk [vmem:[#allocation2 + $0x630] sm:$0xff] %vm2213, %v1963
      %2413 = vst.msk [vmem:[#allocation2 + $0x638] sm:$0xff] %vm2213, %v1964
      %2414 = vst.msk [vmem:[#allocation2 + $0x640] sm:$0xff] %vm2213, %v1965
      %2415 = vst.msk [vmem:[#allocation2 + $0x648] sm:$0xff] %vm2213, %v1966
      %2416 = vst.msk [vmem:[#allocation2 + $0x650] sm:$0xff] %vm2213, %v1967
      %2417 = vst.msk [vmem:[#allocation2 + $0x658] sm:$0xff] %vm2213, %v1968
      %2418 = vst.msk [vmem:[#allocation2 + $0x660] sm:$0xff] %vm2213, %v1969
      %2419 = vst.msk [vmem:[#allocation2 + $0x668] sm:$0xff] %vm2213, %v1970
      %2420 = vst.msk [vmem:[#allocation2 + $0x670] sm:$0xff] %vm2213, %v1971
      %2421 = vst.msk [vmem:[#allocation2 + $0x678] sm:$0xff] %vm2213, %v1972
      %2422 = vst.msk [vmem:[#allocation2 + $0x680] sm:$0xff] %vm2213, %v1973
      %2423 = vst.msk [vmem:[#allocation2 + $0x688] sm:$0xff] %vm2213, %v1974
      %2424 = vst.msk [vmem:[#allocation2 + $0x690] sm:$0xff] %vm2213, %v1975
      %2425 = vst.msk [vmem:[#allocation2 + $0x698] sm:$0xff] %vm2213, %v1976
      %2426 = vst.msk [vmem:[#allocation2 + $0x6a0] sm:$0xff] %vm2213, %v1977
      %2427 = vst.msk [vmem:[#allocation2 + $0x6a8] sm:$0xff] %vm2213, %v1978
      %2428 = vst.msk [vmem:[#allocation2 + $0x6b0] sm:$0xff] %vm2213, %v1979
      %2429 = vst.msk [vmem:[#allocation2 + $0x6b8] sm:$0xff] %vm2213, %v1980
      %2430 = vst.msk [vmem:[#allocation2 + $0x6c0] sm:$0xff] %vm2213, %v1981
      %2431 = vst.msk [vmem:[#allocation2 + $0x6c8] sm:$0xff] %vm2213, %v1982
      %2432 = vst.msk [vmem:[#allocation2 + $0x6d0] sm:$0xff] %vm2213, %v1983
      %2433 = vst.msk [vmem:[#allocation2 + $0x6d8] sm:$0xff] %vm2213, %v1984
      %2434 = vst.msk [vmem:[#allocation2 + $0x6e0] sm:$0xff] %vm2213, %v1985
      %2435 = vst.msk [vmem:[#allocation2 + $0x6e8] sm:$0xff] %vm2213, %v1986
      %2436 = vst.msk [vmem:[#allocation2 + $0x6f0] sm:$0xff] %vm2213, %v1987
      %2437 = vst.msk [vmem:[#allocation2 + $0x6f8] sm:$0xff] %vm2213, %v1988
      %v2438 = vld [vmem:[%s382] sm:$0xf]
      %v2439 = vld [vmem:[%s382 + $0x4] sm:$0xf]
      %v2440 = vld [vmem:[%s382 + $0x8] sm:$0xf]
      %v2441 = vld [vmem:[%s382 + $0xc] sm:$0xf]
      %v2442 = vld [vmem:[%s382 + $0x10] sm:$0xf]
      %v2443 = vld [vmem:[%s382 + $0x14] sm:$0xf]
      %v2444 = vld [vmem:[%s382 + $0x18] sm:$0xf]
      %v2445 = vld [vmem:[%s382 + $0x1c] sm:$0xf]
      %v2446 = vld [vmem:[%s382 + $0x20] sm:$0xf]
      %v2447 = vld [vmem:[%s382 + $0x24] sm:$0xf]
      %v2448 = vld [vmem:[%s382 + $0x28] sm:$0xf]
      %v2449 = vld [vmem:[%s382 + $0x2c] sm:$0xf]
      %v2450 = vld [vmem:[%s382 + $0x30] sm:$0xf]
      %v2451 = vld [vmem:[%s382 + $0x34] sm:$0xf]
      %v2452 = vld [vmem:[%s382 + $0x38] sm:$0xf]
      %v2453 = vld [vmem:[%s382 + $0x3c] sm:$0xf]
      %v2454 = vld [vmem:[%s382 + $0x40] sm:$0xf]
      %v2455 = vld [vmem:[%s382 + $0x44] sm:$0xf]
      %v2456 = vld [vmem:[%s382 + $0x48] sm:$0xf]
      %v2457 = vld [vmem:[%s382 + $0x4c] sm:$0xf]
      %v2458 = vld [vmem:[%s382 + $0x50] sm:$0xf]
      %v2459 = vld [vmem:[%s382 + $0x54] sm:$0xf]
      %v2460 = vld [vmem:[%s382 + $0x58] sm:$0xf]
      %v2461 = vld [vmem:[%s382 + $0x5c] sm:$0xf]
      %v2462 = vld [vmem:[%s382 + $0x60] sm:$0xf]
      %v2463 = vld [vmem:[%s382 + $0x64] sm:$0xf]
      %v2464 = vld [vmem:[%s382 + $0x68] sm:$0xf]
      %v2465 = vld [vmem:[%s382 + $0x6c] sm:$0xf]
      %v2466 = vld [vmem:[%s382 + $0x70] sm:$0xf]
      %v2467 = vld [vmem:[%s382 + $0x74] sm:$0xf]
      %v2468 = vld [vmem:[%s382 + $0x78] sm:$0xf]
      %v2469 = vld [vmem:[%s382 + $0x7c] sm:$0xf]
      %v2470 = vld [vmem:[%s382 + $0x80] sm:$0xf]
      %v2471 = vld [vmem:[%s382 + $0x84] sm:$0xf]
      %v2472 = vld [vmem:[%s382 + $0x88] sm:$0xf]
      %v2473 = vld [vmem:[%s382 + $0x8c] sm:$0xf]
      %v2474 = vld [vmem:[%s382 + $0x90] sm:$0xf]
      %v2475 = vld [vmem:[%s382 + $0x94] sm:$0xf]
      %v2476 = vld [vmem:[%s382 + $0x98] sm:$0xf]
      %v2477 = vld [vmem:[%s382 + $0x9c] sm:$0xf]
      %v2478 = vld [vmem:[%s382 + $0xa0] sm:$0xf]
      %v2479 = vld [vmem:[%s382 + $0xa4] sm:$0xf]
      %v2480 = vld [vmem:[%s382 + $0xa8] sm:$0xf]
      %v2481 = vld [vmem:[%s382 + $0xac] sm:$0xf]
      %v2482 = vld [vmem:[%s382 + $0xb0] sm:$0xf]
      %v2483 = vld [vmem:[%s382 + $0xb4] sm:$0xf]
      %v2484 = vld [vmem:[%s382 + $0xb8] sm:$0xf]
      %v2485 = vld [vmem:[%s382 + $0xbc] sm:$0xf]
      %v2486 = vld [vmem:[%s382 + $0xc0] sm:$0xf]
      %v2487 = vld [vmem:[%s382 + $0xc4] sm:$0xf]
      %v2488 = vld [vmem:[%s382 + $0xc8] sm:$0xf]
      %v2489 = vld [vmem:[%s382 + $0xcc] sm:$0xf]
      %v2490 = vld [vmem:[%s382 + $0xd0] sm:$0xf]
      %v2491 = vld [vmem:[%s382 + $0xd4] sm:$0xf]
      %v2492 = vld [vmem:[%s382 + $0xd8] sm:$0xf]
      %v2493 = vld [vmem:[%s382 + $0xdc] sm:$0xf]
      %v2494 = vld [vmem:[%s382 + $0xe0] sm:$0xf]
      %v2495 = vld [vmem:[%s382 + $0xe4] sm:$0xf]
      %v2496 = vld [vmem:[%s382 + $0xe8] sm:$0xf]
      %v2497 = vld [vmem:[%s382 + $0xec] sm:$0xf]
      %v2498 = vld [vmem:[%s382 + $0xf0] sm:$0xf]
      %v2499 = vld [vmem:[%s382 + $0xf4] sm:$0xf]
      %v2500 = vld [vmem:[%s382 + $0xf8] sm:$0xf]
      %v2501 = vld [vmem:[%s382 + $0xfc] sm:$0xf]
      %v2502 = vld [vmem:[%s382 + $0x100] sm:$0xf]
      %v2503 = vld [vmem:[%s382 + $0x104] sm:$0xf]
      %v2504 = vld [vmem:[%s382 + $0x108] sm:$0xf]
      %v2505 = vld [vmem:[%s382 + $0x10c] sm:$0xf]
      %v2506 = vld [vmem:[%s382 + $0x110] sm:$0xf]
      %v2507 = vld [vmem:[%s382 + $0x114] sm:$0xf]
      %v2508 = vld [vmem:[%s382 + $0x118] sm:$0xf]
      %v2509 = vld [vmem:[%s382 + $0x11c] sm:$0xf]
      %v2510 = vld [vmem:[%s382 + $0x120] sm:$0xf]
      %v2511 = vld [vmem:[%s382 + $0x124] sm:$0xf]
      %v2512 = vld [vmem:[%s382 + $0x128] sm:$0xf]
      %v2513 = vld [vmem:[%s382 + $0x12c] sm:$0xf]
      %v2514 = vld [vmem:[%s382 + $0x130] sm:$0xf]
      %v2515 = vld [vmem:[%s382 + $0x134] sm:$0xf]
      %v2516 = vld [vmem:[%s382 + $0x138] sm:$0xf]
      %v2517 = vld [vmem:[%s382 + $0x13c] sm:$0xf]
      %v2518 = vld [vmem:[%s382 + $0x140] sm:$0xf]
      %v2519 = vld [vmem:[%s382 + $0x144] sm:$0xf]
      %v2520 = vld [vmem:[%s382 + $0x148] sm:$0xf]
      %v2521 = vld [vmem:[%s382 + $0x14c] sm:$0xf]
      %v2522 = vld [vmem:[%s382 + $0x150] sm:$0xf]
      %v2523 = vld [vmem:[%s382 + $0x154] sm:$0xf]
      %v2524 = vld [vmem:[%s382 + $0x158] sm:$0xf]
      %v2525 = vld [vmem:[%s382 + $0x15c] sm:$0xf]
      %v2526 = vld [vmem:[%s382 + $0x160] sm:$0xf]
      %v2527 = vld [vmem:[%s382 + $0x164] sm:$0xf]
      %v2528 = vld [vmem:[%s382 + $0x168] sm:$0xf]
      %v2529 = vld [vmem:[%s382 + $0x16c] sm:$0xf]
      %v2530 = vld [vmem:[%s382 + $0x170] sm:$0xf]
      %v2531 = vld [vmem:[%s382 + $0x174] sm:$0xf]
      %v2532 = vld [vmem:[%s382 + $0x178] sm:$0xf]
      %v2533 = vld [vmem:[%s382 + $0x17c] sm:$0xf]
      %v2534 = vld [vmem:[%s382 + $0x180] sm:$0xf]
      %v2535 = vld [vmem:[%s382 + $0x184] sm:$0xf]
      %v2536 = vld [vmem:[%s382 + $0x188] sm:$0xf]
      %v2537 = vld [vmem:[%s382 + $0x18c] sm:$0xf]
      %v2538 = vld [vmem:[%s382 + $0x190] sm:$0xf]
      %v2539 = vld [vmem:[%s382 + $0x194] sm:$0xf]
      %v2540 = vld [vmem:[%s382 + $0x198] sm:$0xf]
      %v2541 = vld [vmem:[%s382 + $0x19c] sm:$0xf]
      %v2542 = vld [vmem:[%s382 + $0x1a0] sm:$0xf]
      %v2543 = vld [vmem:[%s382 + $0x1a4] sm:$0xf]
      %v2544 = vld [vmem:[%s382 + $0x1a8] sm:$0xf]
      %v2545 = vld [vmem:[%s382 + $0x1ac] sm:$0xf]
      %v2546 = vld [vmem:[%s382 + $0x1b0] sm:$0xf]
      %v2547 = vld [vmem:[%s382 + $0x1b4] sm:$0xf]
      %v2548 = vld [vmem:[%s382 + $0x1b8] sm:$0xf]
      %v2549 = vld [vmem:[%s382 + $0x1bc] sm:$0xf]
      %v2550 = vld [vmem:[%s382 + $0x1c0] sm:$0xf]
      %v2551 = vld [vmem:[%s382 + $0x1c4] sm:$0xf]
      %v2552 = vld [vmem:[%s382 + $0x1c8] sm:$0xf]
      %v2553 = vld [vmem:[%s382 + $0x1cc] sm:$0xf]
      %v2554 = vld [vmem:[%s382 + $0x1d0] sm:$0xf]
      %v2555 = vld [vmem:[%s382 + $0x1d4] sm:$0xf]
      %v2556 = vld [vmem:[%s382 + $0x1d8] sm:$0xf]
      %v2557 = vld [vmem:[%s382 + $0x1dc] sm:$0xf]
      %v2558 = vld [vmem:[%s382 + $0x1e0] sm:$0xf]
      %v2559 = vld [vmem:[%s382 + $0x1e4] sm:$0xf]
      %v2560 = vld [vmem:[%s382 + $0x1e8] sm:$0xf]
      %v2561 = vld [vmem:[%s382 + $0x1ec] sm:$0xf]
      %v2562 = vld [vmem:[%s382 + $0x1f0] sm:$0xf]
      %v2563 = vld [vmem:[%s382 + $0x1f4] sm:$0xf]
      %v2564 = vld [vmem:[%s382 + $0x1f8] sm:$0xf]
      %v2565 = vld [vmem:[%s382 + $0x1fc] sm:$0xf]
      %v2566 = vld [vmem:[%s382 + $0x200] sm:$0xf]
      %v2567 = vld [vmem:[%s382 + $0x204] sm:$0xf]
      %v2568 = vld [vmem:[%s382 + $0x208] sm:$0xf]
      %v2569 = vld [vmem:[%s382 + $0x20c] sm:$0xf]
      %v2570 = vld [vmem:[%s382 + $0x210] sm:$0xf]
      %v2571 = vld [vmem:[%s382 + $0x214] sm:$0xf]
      %v2572 = vld [vmem:[%s382 + $0x218] sm:$0xf]
      %v2573 = vld [vmem:[%s382 + $0x21c] sm:$0xf]
      %v2574 = vld [vmem:[%s382 + $0x220] sm:$0xf]
      %v2575 = vld [vmem:[%s382 + $0x224] sm:$0xf]
      %v2576 = vld [vmem:[%s382 + $0x228] sm:$0xf]
      %v2577 = vld [vmem:[%s382 + $0x22c] sm:$0xf]
      %v2578 = vld [vmem:[%s382 + $0x230] sm:$0xf]
      %v2579 = vld [vmem:[%s382 + $0x234] sm:$0xf]
      %v2580 = vld [vmem:[%s382 + $0x238] sm:$0xf]
      %v2581 = vld [vmem:[%s382 + $0x23c] sm:$0xf]
      %v2582 = vld [vmem:[%s382 + $0x240] sm:$0xf]
      %v2583 = vld [vmem:[%s382 + $0x244] sm:$0xf]
      %v2584 = vld [vmem:[%s382 + $0x248] sm:$0xf]
      %v2585 = vld [vmem:[%s382 + $0x24c] sm:$0xf]
      %v2586 = vld [vmem:[%s382 + $0x250] sm:$0xf]
      %v2587 = vld [vmem:[%s382 + $0x254] sm:$0xf]
      %v2588 = vld [vmem:[%s382 + $0x258] sm:$0xf]
      %v2589 = vld [vmem:[%s382 + $0x25c] sm:$0xf]
      %v2590 = vld [vmem:[%s382 + $0x260] sm:$0xf]
      %v2591 = vld [vmem:[%s382 + $0x264] sm:$0xf]
      %v2592 = vld [vmem:[%s382 + $0x268] sm:$0xf]
      %v2593 = vld [vmem:[%s382 + $0x26c] sm:$0xf]
      %v2594 = vld [vmem:[%s382 + $0x270] sm:$0xf]
      %v2595 = vld [vmem:[%s382 + $0x274] sm:$0xf]
      %v2596 = vld [vmem:[%s382 + $0x278] sm:$0xf]
      %v2597 = vld [vmem:[%s382 + $0x27c] sm:$0xf]
      %v2598 = vld [vmem:[%s382 + $0x280] sm:$0xf]
      %v2599 = vld [vmem:[%s382 + $0x284] sm:$0xf]
      %v2600 = vld [vmem:[%s382 + $0x288] sm:$0xf]
      %v2601 = vld [vmem:[%s382 + $0x28c] sm:$0xf]
      %v2602 = vld [vmem:[%s382 + $0x290] sm:$0xf]
      %v2603 = vld [vmem:[%s382 + $0x294] sm:$0xf]
      %v2604 = vld [vmem:[%s382 + $0x298] sm:$0xf]
      %v2605 = vld [vmem:[%s382 + $0x29c] sm:$0xf]
      %v2606 = vld [vmem:[%s382 + $0x2a0] sm:$0xf]
      %v2607 = vld [vmem:[%s382 + $0x2a4] sm:$0xf]
      %v2608 = vld [vmem:[%s382 + $0x2a8] sm:$0xf]
      %v2609 = vld [vmem:[%s382 + $0x2ac] sm:$0xf]
      %v2610 = vld [vmem:[%s382 + $0x2b0] sm:$0xf]
      %v2611 = vld [vmem:[%s382 + $0x2b4] sm:$0xf]
      %v2612 = vld [vmem:[%s382 + $0x2b8] sm:$0xf]
      %v2613 = vld [vmem:[%s382 + $0x2bc] sm:$0xf]
      %v2614 = vld [vmem:[%s382 + $0x2c0] sm:$0xf]
      %v2615 = vld [vmem:[%s382 + $0x2c4] sm:$0xf]
      %v2616 = vld [vmem:[%s382 + $0x2c8] sm:$0xf]
      %v2617 = vld [vmem:[%s382 + $0x2cc] sm:$0xf]
      %v2618 = vld [vmem:[%s382 + $0x2d0] sm:$0xf]
      %v2619 = vld [vmem:[%s382 + $0x2d4] sm:$0xf]
      %v2620 = vld [vmem:[%s382 + $0x2d8] sm:$0xf]
      %v2621 = vld [vmem:[%s382 + $0x2dc] sm:$0xf]
      %v2622 = vld [vmem:[%s382 + $0x2e0] sm:$0xf]
      %v2623 = vld [vmem:[%s382 + $0x2e4] sm:$0xf]
      %v2624 = vld [vmem:[%s382 + $0x2e8] sm:$0xf]
      %v2625 = vld [vmem:[%s382 + $0x2ec] sm:$0xf]
      %v2626 = vld [vmem:[%s382 + $0x2f0] sm:$0xf]
      %v2627 = vld [vmem:[%s382 + $0x2f4] sm:$0xf]
      %v2628 = vld [vmem:[%s382 + $0x2f8] sm:$0xf]
      %v2629 = vld [vmem:[%s382 + $0x2fc] sm:$0xf]
      %v2630 = vld [vmem:[%s382 + $0x300] sm:$0xf]
      %v2631 = vld [vmem:[%s382 + $0x304] sm:$0xf]
      %v2632 = vld [vmem:[%s382 + $0x308] sm:$0xf]
      %v2633 = vld [vmem:[%s382 + $0x30c] sm:$0xf]
      %v2634 = vld [vmem:[%s382 + $0x310] sm:$0xf]
      %v2635 = vld [vmem:[%s382 + $0x314] sm:$0xf]
      %v2636 = vld [vmem:[%s382 + $0x318] sm:$0xf]
      %v2637 = vld [vmem:[%s382 + $0x31c] sm:$0xf]
      %v2638 = vld [vmem:[%s382 + $0x320] sm:$0xf]
      %v2639 = vld [vmem:[%s382 + $0x324] sm:$0xf]
      %v2640 = vld [vmem:[%s382 + $0x328] sm:$0xf]
      %v2641 = vld [vmem:[%s382 + $0x32c] sm:$0xf]
      %v2642 = vld [vmem:[%s382 + $0x330] sm:$0xf]
      %v2643 = vld [vmem:[%s382 + $0x334] sm:$0xf]
      %v2644 = vld [vmem:[%s382 + $0x338] sm:$0xf]
      %v2645 = vld [vmem:[%s382 + $0x33c] sm:$0xf]
      %v2646 = vld [vmem:[%s382 + $0x340] sm:$0xf]
      %v2647 = vld [vmem:[%s382 + $0x344] sm:$0xf]
      %v2648 = vld [vmem:[%s382 + $0x348] sm:$0xf]
      %v2649 = vld [vmem:[%s382 + $0x34c] sm:$0xf]
      %v2650 = vld [vmem:[%s382 + $0x350] sm:$0xf]
      %v2651 = vld [vmem:[%s382 + $0x354] sm:$0xf]
      %v2652 = vld [vmem:[%s382 + $0x358] sm:$0xf]
      %v2653 = vld [vmem:[%s382 + $0x35c] sm:$0xf]
      %v2654 = vld [vmem:[%s382 + $0x360] sm:$0xf]
      %v2655 = vld [vmem:[%s382 + $0x364] sm:$0xf]
      %v2656 = vld [vmem:[%s382 + $0x368] sm:$0xf]
      %v2657 = vld [vmem:[%s382 + $0x36c] sm:$0xf]
      %v2658 = vld [vmem:[%s382 + $0x370] sm:$0xf]
      %v2659 = vld [vmem:[%s382 + $0x374] sm:$0xf]
      %v2660 = vld [vmem:[%s382 + $0x378] sm:$0xf]
      %v2661 = vld [vmem:[%s382 + $0x37c] sm:$0xf]
      %v2886 = vunpack.c.l.b16 %v2438
      %v2887 = vunpack.c.l.b16 %v2439
      %v2888 = vunpack.c.l.b16 %v2440
      %v2889 = vunpack.c.l.b16 %v2441
      %v2890 = vunpack.c.l.b16 %v2442
      %v2891 = vunpack.c.l.b16 %v2443
      %v2892 = vunpack.c.l.b16 %v2444
      %v2893 = vunpack.c.l.b16 %v2445
      %v2894 = vunpack.c.l.b16 %v2446
      %v2895 = vunpack.c.l.b16 %v2447
      %v2896 = vunpack.c.l.b16 %v2448
      %v2897 = vunpack.c.l.b16 %v2449
      %v2898 = vunpack.c.l.b16 %v2450
      %v2899 = vunpack.c.l.b16 %v2451
      %v2900 = vunpack.c.l.b16 %v2452
      %v2901 = vunpack.c.l.b16 %v2453
      %v2902 = vunpack.c.l.b16 %v2454
      %v2903 = vunpack.c.l.b16 %v2455
      %v2904 = vunpack.c.l.b16 %v2456
      %v2905 = vunpack.c.l.b16 %v2457
      %v2906 = vunpack.c.l.b16 %v2458
      %v2907 = vunpack.c.l.b16 %v2459
      %v2908 = vunpack.c.l.b16 %v2460
      %v2909 = vunpack.c.l.b16 %v2461
      %v2910 = vunpack.c.l.b16 %v2462
      %v2911 = vunpack.c.l.b16 %v2463
      %v2912 = vunpack.c.l.b16 %v2464
      %v2913 = vunpack.c.l.b16 %v2465
      %v2914 = vunpack.c.l.b16 %v2466
      %v2915 = vunpack.c.l.b16 %v2467
      %v2916 = vunpack.c.l.b16 %v2468
      %v2917 = vunpack.c.l.b16 %v2469
      %v2918 = vunpack.c.l.b16 %v2470
      %v2919 = vunpack.c.l.b16 %v2471
      %v2920 = vunpack.c.l.b16 %v2472
      %v2921 = vunpack.c.l.b16 %v2473
      %v2922 = vunpack.c.l.b16 %v2474
      %v2923 = vunpack.c.l.b16 %v2475
      %v2924 = vunpack.c.l.b16 %v2476
      %v2925 = vunpack.c.l.b16 %v2477
      %v2926 = vunpack.c.l.b16 %v2478
      %v2927 = vunpack.c.l.b16 %v2479
      %v2928 = vunpack.c.l.b16 %v2480
      %v2929 = vunpack.c.l.b16 %v2481
      %v2930 = vunpack.c.l.b16 %v2482
      %v2931 = vunpack.c.l.b16 %v2483
      %v2932 = vunpack.c.l.b16 %v2484
      %v2933 = vunpack.c.l.b16 %v2485
      %v2934 = vunpack.c.l.b16 %v2486
      %v2935 = vunpack.c.l.b16 %v2487
      %v2936 = vunpack.c.l.b16 %v2488
      %v2937 = vunpack.c.l.b16 %v2489
      %v2938 = vunpack.c.l.b16 %v2490
      %v2939 = vunpack.c.l.b16 %v2491
      %v2940 = vunpack.c.l.b16 %v2492
      %v2941 = vunpack.c.l.b16 %v2493
      %v2942 = vunpack.c.l.b16 %v2494
      %v2943 = vunpack.c.l.b16 %v2495
      %v2944 = vunpack.c.l.b16 %v2496
      %v2945 = vunpack.c.l.b16 %v2497
      %v2946 = vunpack.c.l.b16 %v2498
      %v2947 = vunpack.c.l.b16 %v2499
      %v2948 = vunpack.c.l.b16 %v2500
      %v2949 = vunpack.c.l.b16 %v2501
      %v2950 = vunpack.c.l.b16 %v2502
      %v2951 = vunpack.c.l.b16 %v2503
      %v2952 = vunpack.c.l.b16 %v2504
      %v2953 = vunpack.c.l.b16 %v2505
      %v2954 = vunpack.c.l.b16 %v2506
      %v2955 = vunpack.c.l.b16 %v2507
      %v2956 = vunpack.c.l.b16 %v2508
      %v2957 = vunpack.c.l.b16 %v2509
      %v2958 = vunpack.c.l.b16 %v2510
      %v2959 = vunpack.c.l.b16 %v2511
      %v2960 = vunpack.c.l.b16 %v2512
      %v2961 = vunpack.c.l.b16 %v2513
      %v2962 = vunpack.c.l.b16 %v2514
      %v2963 = vunpack.c.l.b16 %v2515
      %v2964 = vunpack.c.l.b16 %v2516
      %v2965 = vunpack.c.l.b16 %v2517
      %v2966 = vunpack.c.l.b16 %v2518
      %v2967 = vunpack.c.l.b16 %v2519
      %v2968 = vunpack.c.l.b16 %v2520
      %v2969 = vunpack.c.l.b16 %v2521
      %v2970 = vunpack.c.l.b16 %v2522
      %v2971 = vunpack.c.l.b16 %v2523
      %v2972 = vunpack.c.l.b16 %v2524
      %v2973 = vunpack.c.l.b16 %v2525
      %v2974 = vunpack.c.l.b16 %v2526
      %v2975 = vunpack.c.l.b16 %v2527
      %v2976 = vunpack.c.l.b16 %v2528
      %v2977 = vunpack.c.l.b16 %v2529
      %v2978 = vunpack.c.l.b16 %v2530
      %v2979 = vunpack.c.l.b16 %v2531
      %v2980 = vunpack.c.l.b16 %v2532
      %v2981 = vunpack.c.l.b16 %v2533
      %v2982 = vunpack.c.l.b16 %v2534
      %v2983 = vunpack.c.l.b16 %v2535
      %v2984 = vunpack.c.l.b16 %v2536
      %v2985 = vunpack.c.l.b16 %v2537
      %v2986 = vunpack.c.l.b16 %v2538
      %v2987 = vunpack.c.l.b16 %v2539
      %v2988 = vunpack.c.l.b16 %v2540
      %v2989 = vunpack.c.l.b16 %v2541
      %v2990 = vunpack.c.l.b16 %v2542
      %v2991 = vunpack.c.l.b16 %v2543
      %v2992 = vunpack.c.l.b16 %v2544
      %v2993 = vunpack.c.l.b16 %v2545
      %v2994 = vunpack.c.l.b16 %v2546
      %v2995 = vunpack.c.l.b16 %v2547
      %v2996 = vunpack.c.l.b16 %v2548
      %v2997 = vunpack.c.l.b16 %v2549
      %v2998 = vunpack.c.l.b16 %v2550
      %v2999 = vunpack.c.l.b16 %v2551
      %v3000 = vunpack.c.l.b16 %v2552
      %v3001 = vunpack.c.l.b16 %v2553
      %v3002 = vunpack.c.l.b16 %v2554
      %v3003 = vunpack.c.l.b16 %v2555
      %v3004 = vunpack.c.l.b16 %v2556
      %v3005 = vunpack.c.l.b16 %v2557
      %v3006 = vunpack.c.l.b16 %v2558
      %v3007 = vunpack.c.l.b16 %v2559
      %v3008 = vunpack.c.l.b16 %v2560
      %v3009 = vunpack.c.l.b16 %v2561
      %v3010 = vunpack.c.l.b16 %v2562
      %v3011 = vunpack.c.l.b16 %v2563
      %v3012 = vunpack.c.l.b16 %v2564
      %v3013 = vunpack.c.l.b16 %v2565
      %v3014 = vunpack.c.l.b16 %v2566
      %v3015 = vunpack.c.l.b16 %v2567
      %v3016 = vunpack.c.l.b16 %v2568
      %v3017 = vunpack.c.l.b16 %v2569
      %v3018 = vunpack.c.l.b16 %v2570
      %v3019 = vunpack.c.l.b16 %v2571
      %v3020 = vunpack.c.l.b16 %v2572
      %v3021 = vunpack.c.l.b16 %v2573
      %v3022 = vunpack.c.l.b16 %v2574
      %v3023 = vunpack.c.l.b16 %v2575
      %v3024 = vunpack.c.l.b16 %v2576
      %v3025 = vunpack.c.l.b16 %v2577
      %v3026 = vunpack.c.l.b16 %v2578
      %v3027 = vunpack.c.l.b16 %v2579
      %v3028 = vunpack.c.l.b16 %v2580
      %v3029 = vunpack.c.l.b16 %v2581
      %v3030 = vunpack.c.l.b16 %v2582
      %v3031 = vunpack.c.l.b16 %v2583
      %v3032 = vunpack.c.l.b16 %v2584
      %v3033 = vunpack.c.l.b16 %v2585
      %v3034 = vunpack.c.l.b16 %v2586
      %v3035 = vunpack.c.l.b16 %v2587
      %v3036 = vunpack.c.l.b16 %v2588
      %v3037 = vunpack.c.l.b16 %v2589
      %v3038 = vunpack.c.l.b16 %v2590
      %v3039 = vunpack.c.l.b16 %v2591
      %v3040 = vunpack.c.l.b16 %v2592
      %v3041 = vunpack.c.l.b16 %v2593
      %v3042 = vunpack.c.l.b16 %v2594
      %v3043 = vunpack.c.l.b16 %v2595
      %v3044 = vunpack.c.l.b16 %v2596
      %v3045 = vunpack.c.l.b16 %v2597
      %v3046 = vunpack.c.l.b16 %v2598
      %v3047 = vunpack.c.l.b16 %v2599
      %v3048 = vunpack.c.l.b16 %v2600
      %v3049 = vunpack.c.l.b16 %v2601
      %v3050 = vunpack.c.l.b16 %v2602
      %v3051 = vunpack.c.l.b16 %v2603
      %v3052 = vunpack.c.l.b16 %v2604
      %v3053 = vunpack.c.l.b16 %v2605
      %v3054 = vunpack.c.l.b16 %v2606
      %v3055 = vunpack.c.l.b16 %v2607
      %v3056 = vunpack.c.l.b16 %v2608
      %v3057 = vunpack.c.l.b16 %v2609
      %v3058 = vunpack.c.l.b16 %v2610
      %v3059 = vunpack.c.l.b16 %v2611
      %v3060 = vunpack.c.l.b16 %v2612
      %v3061 = vunpack.c.l.b16 %v2613
      %v3062 = vunpack.c.l.b16 %v2614
      %v3063 = vunpack.c.l.b16 %v2615
      %v3064 = vunpack.c.l.b16 %v2616
      %v3065 = vunpack.c.l.b16 %v2617
      %v3066 = vunpack.c.l.b16 %v2618
      %v3067 = vunpack.c.l.b16 %v2619
      %v3068 = vunpack.c.l.b16 %v2620
      %v3069 = vunpack.c.l.b16 %v2621
      %v3070 = vunpack.c.l.b16 %v2622
      %v3071 = vunpack.c.l.b16 %v2623
      %v3072 = vunpack.c.l.b16 %v2624
      %v3073 = vunpack.c.l.b16 %v2625
      %v3074 = vunpack.c.l.b16 %v2626
      %v3075 = vunpack.c.l.b16 %v2627
      %v3076 = vunpack.c.l.b16 %v2628
      %v3077 = vunpack.c.l.b16 %v2629
      %v3078 = vunpack.c.l.b16 %v2630
      %v3079 = vunpack.c.l.b16 %v2631
      %v3080 = vunpack.c.l.b16 %v2632
      %v3081 = vunpack.c.l.b16 %v2633
      %v3082 = vunpack.c.l.b16 %v2634
      %v3083 = vunpack.c.l.b16 %v2635
      %v3084 = vunpack.c.l.b16 %v2636
      %v3085 = vunpack.c.l.b16 %v2637
      %v3086 = vunpack.c.l.b16 %v2638
      %v3087 = vunpack.c.l.b16 %v2639
      %v3088 = vunpack.c.l.b16 %v2640
      %v3089 = vunpack.c.l.b16 %v2641
      %v3090 = vunpack.c.l.b16 %v2642
      %v3091 = vunpack.c.l.b16 %v2643
      %v3092 = vunpack.c.l.b16 %v2644
      %v3093 = vunpack.c.l.b16 %v2645
      %v3094 = vunpack.c.l.b16 %v2646
      %v3095 = vunpack.c.l.b16 %v2647
      %v3096 = vunpack.c.l.b16 %v2648
      %v3097 = vunpack.c.l.b16 %v2649
      %v3098 = vunpack.c.l.b16 %v2650
      %v3099 = vunpack.c.l.b16 %v2651
      %v3100 = vunpack.c.l.b16 %v2652
      %v3101 = vunpack.c.l.b16 %v2653
      %v3102 = vunpack.c.l.b16 %v2654
      %v3103 = vunpack.c.l.b16 %v2655
      %v3104 = vunpack.c.l.b16 %v2656
      %v3105 = vunpack.c.l.b16 %v2657
      %v3106 = vunpack.c.l.b16 %v2658
      %v3107 = vunpack.c.l.b16 %v2659
      %v3108 = vunpack.c.l.b16 %v2660
      %v3109 = vunpack.c.l.b16 %v2661
      %v3110 = vpack.c.b16 %v2887, %v2886
      %v3111 = vpack.c.b16 %v2889, %v2888
      %v3112 = vpack.c.b16 %v2891, %v2890
      %v3113 = vpack.c.b16 %v2893, %v2892
      %v3114 = vpack.c.b16 %v2895, %v2894
      %v3115 = vpack.c.b16 %v2897, %v2896
      %v3116 = vpack.c.b16 %v2899, %v2898
      %v3117 = vpack.c.b16 %v2901, %v2900
      %v3118 = vpack.c.b16 %v2903, %v2902
      %v3119 = vpack.c.b16 %v2905, %v2904
      %v3120 = vpack.c.b16 %v2907, %v2906
      %v3121 = vpack.c.b16 %v2909, %v2908
      %v3122 = vpack.c.b16 %v2911, %v2910
      %v3123 = vpack.c.b16 %v2913, %v2912
      %v3124 = vpack.c.b16 %v2915, %v2914
      %v3125 = vpack.c.b16 %v2917, %v2916
      %v3126 = vpack.c.b16 %v2919, %v2918
      %v3127 = vpack.c.b16 %v2921, %v2920
      %v3128 = vpack.c.b16 %v2923, %v2922
      %v3129 = vpack.c.b16 %v2925, %v2924
      %v3130 = vpack.c.b16 %v2927, %v2926
      %v3131 = vpack.c.b16 %v2929, %v2928
      %v3132 = vpack.c.b16 %v2931, %v2930
      %v3133 = vpack.c.b16 %v2933, %v2932
      %v3134 = vpack.c.b16 %v2935, %v2934
      %v3135 = vpack.c.b16 %v2937, %v2936
      %v3136 = vpack.c.b16 %v2939, %v2938
      %v3137 = vpack.c.b16 %v2941, %v2940
      %v3138 = vpack.c.b16 %v2943, %v2942
      %v3139 = vpack.c.b16 %v2945, %v2944
      %v3140 = vpack.c.b16 %v2947, %v2946
      %v3141 = vpack.c.b16 %v2949, %v2948
      %v3142 = vpack.c.b16 %v2951, %v2950
      %v3143 = vpack.c.b16 %v2953, %v2952
      %v3144 = vpack.c.b16 %v2955, %v2954
      %v3145 = vpack.c.b16 %v2957, %v2956
      %v3146 = vpack.c.b16 %v2959, %v2958
      %v3147 = vpack.c.b16 %v2961, %v2960
      %v3148 = vpack.c.b16 %v2963, %v2962
      %v3149 = vpack.c.b16 %v2965, %v2964
      %v3150 = vpack.c.b16 %v2967, %v2966
      %v3151 = vpack.c.b16 %v2969, %v2968
      %v3152 = vpack.c.b16 %v2971, %v2970
      %v3153 = vpack.c.b16 %v2973, %v2972
      %v3154 = vpack.c.b16 %v2975, %v2974
      %v3155 = vpack.c.b16 %v2977, %v2976
      %v3156 = vpack.c.b16 %v2979, %v2978
      %v3157 = vpack.c.b16 %v2981, %v2980
      %v3158 = vpack.c.b16 %v2983, %v2982
      %v3159 = vpack.c.b16 %v2985, %v2984
      %v3160 = vpack.c.b16 %v2987, %v2986
      %v3161 = vpack.c.b16 %v2989, %v2988
      %v3162 = vpack.c.b16 %v2991, %v2990
      %v3163 = vpack.c.b16 %v2993, %v2992
      %v3164 = vpack.c.b16 %v2995, %v2994
      %v3165 = vpack.c.b16 %v2997, %v2996
      %v3166 = vpack.c.b16 %v2999, %v2998
      %v3167 = vpack.c.b16 %v3001, %v3000
      %v3168 = vpack.c.b16 %v3003, %v3002
      %v3169 = vpack.c.b16 %v3005, %v3004
      %v3170 = vpack.c.b16 %v3007, %v3006
      %v3171 = vpack.c.b16 %v3009, %v3008
      %v3172 = vpack.c.b16 %v3011, %v3010
      %v3173 = vpack.c.b16 %v3013, %v3012
      %v3174 = vpack.c.b16 %v3015, %v3014
      %v3175 = vpack.c.b16 %v3017, %v3016
      %v3176 = vpack.c.b16 %v3019, %v3018
      %v3177 = vpack.c.b16 %v3021, %v3020
      %v3178 = vpack.c.b16 %v3023, %v3022
      %v3179 = vpack.c.b16 %v3025, %v3024
      %v3180 = vpack.c.b16 %v3027, %v3026
      %v3181 = vpack.c.b16 %v3029, %v3028
      %v3182 = vpack.c.b16 %v3031, %v3030
      %v3183 = vpack.c.b16 %v3033, %v3032
      %v3184 = vpack.c.b16 %v3035, %v3034
      %v3185 = vpack.c.b16 %v3037, %v3036
      %v3186 = vpack.c.b16 %v3039, %v3038
      %v3187 = vpack.c.b16 %v3041, %v3040
      %v3188 = vpack.c.b16 %v3043, %v3042
      %v3189 = vpack.c.b16 %v3045, %v3044
      %v3190 = vpack.c.b16 %v3047, %v3046
      %v3191 = vpack.c.b16 %v3049, %v3048
      %v3192 = vpack.c.b16 %v3051, %v3050
      %v3193 = vpack.c.b16 %v3053, %v3052
      %v3194 = vpack.c.b16 %v3055, %v3054
      %v3195 = vpack.c.b16 %v3057, %v3056
      %v3196 = vpack.c.b16 %v3059, %v3058
      %v3197 = vpack.c.b16 %v3061, %v3060
      %v3198 = vpack.c.b16 %v3063, %v3062
      %v3199 = vpack.c.b16 %v3065, %v3064
      %v3200 = vpack.c.b16 %v3067, %v3066
      %v3201 = vpack.c.b16 %v3069, %v3068
      %v3202 = vpack.c.b16 %v3071, %v3070
      %v3203 = vpack.c.b16 %v3073, %v3072
      %v3204 = vpack.c.b16 %v3075, %v3074
      %v3205 = vpack.c.b16 %v3077, %v3076
      %v3206 = vpack.c.b16 %v3079, %v3078
      %v3207 = vpack.c.b16 %v3081, %v3080
      %v3208 = vpack.c.b16 %v3083, %v3082
      %v3209 = vpack.c.b16 %v3085, %v3084
      %v3210 = vpack.c.b16 %v3087, %v3086
      %v3211 = vpack.c.b16 %v3089, %v3088
      %v3212 = vpack.c.b16 %v3091, %v3090
      %v3213 = vpack.c.b16 %v3093, %v3092
      %v3214 = vpack.c.b16 %v3095, %v3094
      %v3215 = vpack.c.b16 %v3097, %v3096
      %v3216 = vpack.c.b16 %v3099, %v3098
      %v3217 = vpack.c.b16 %v3101, %v3100
      %v3218 = vpack.c.b16 %v3103, %v3102
      %v3219 = vpack.c.b16 %v3105, %v3104
      %v3220 = vpack.c.b16 %v3107, %v3106
      %v3221 = vpack.c.b16 %v3109, %v3108
      %3334 = vst.msk [vmem:[#allocation2 + $0x700] sm:$0xff] %vm2213, %v3110
      %3335 = vst.msk [vmem:[#allocation2 + $0x708] sm:$0xff] %vm2213, %v3111
      %3336 = vst.msk [vmem:[#allocation2 + $0x710] sm:$0xff] %vm2213, %v3112
      %3337 = vst.msk [vmem:[#allocation2 + $0x718] sm:$0xff] %vm2213, %v3113
      %3338 = vst.msk [vmem:[#allocation2 + $0x720] sm:$0xff] %vm2213, %v3114
      %3339 = vst.msk [vmem:[#allocation2 + $0x728] sm:$0xff] %vm2213, %v3115
      %3340 = vst.msk [vmem:[#allocation2 + $0x730] sm:$0xff] %vm2213, %v3116
      %3341 = vst.msk [vmem:[#allocation2 + $0x738] sm:$0xff] %vm2213, %v3117
      %3342 = vst.msk [vmem:[#allocation2 + $0x740] sm:$0xff] %vm2213, %v3118
      %3343 = vst.msk [vmem:[#allocation2 + $0x748] sm:$0xff] %vm2213, %v3119
      %3344 = vst.msk [vmem:[#allocation2 + $0x750] sm:$0xff] %vm2213, %v3120
      %3345 = vst.msk [vmem:[#allocation2 + $0x758] sm:$0xff] %vm2213, %v3121
      %3346 = vst.msk [vmem:[#allocation2 + $0x760] sm:$0xff] %vm2213, %v3122
      %3347 = vst.msk [vmem:[#allocation2 + $0x768] sm:$0xff] %vm2213, %v3123
      %3348 = vst.msk [vmem:[#allocation2 + $0x770] sm:$0xff] %vm2213, %v3124
      %3349 = vst.msk [vmem:[#allocation2 + $0x778] sm:$0xff] %vm2213, %v3125
      %3350 = vst.msk [vmem:[#allocation2 + $0x780] sm:$0xff] %vm2213, %v3126
      %3351 = vst.msk [vmem:[#allocation2 + $0x788] sm:$0xff] %vm2213, %v3127
      %3352 = vst.msk [vmem:[#allocation2 + $0x790] sm:$0xff] %vm2213, %v3128
      %3353 = vst.msk [vmem:[#allocation2 + $0x798] sm:$0xff] %vm2213, %v3129
      %3354 = vst.msk [vmem:[#allocation2 + $0x7a0] sm:$0xff] %vm2213, %v3130
      %3355 = vst.msk [vmem:[#allocation2 + $0x7a8] sm:$0xff] %vm2213, %v3131
      %3356 = vst.msk [vmem:[#allocation2 + $0x7b0] sm:$0xff] %vm2213, %v3132
      %3357 = vst.msk [vmem:[#allocation2 + $0x7b8] sm:$0xff] %vm2213, %v3133
      %3358 = vst.msk [vmem:[#allocation2 + $0x7c0] sm:$0xff] %vm2213, %v3134
      %3359 = vst.msk [vmem:[#allocation2 + $0x7c8] sm:$0xff] %vm2213, %v3135
      %3360 = vst.msk [vmem:[#allocation2 + $0x7d0] sm:$0xff] %vm2213, %v3136
      %3361 = vst.msk [vmem:[#allocation2 + $0x7d8] sm:$0xff] %vm2213, %v3137
      %3362 = vst.msk [vmem:[#allocation2 + $0x7e0] sm:$0xff] %vm2213, %v3138
      %3363 = vst.msk [vmem:[#allocation2 + $0x7e8] sm:$0xff] %vm2213, %v3139
      %3364 = vst.msk [vmem:[#allocation2 + $0x7f0] sm:$0xff] %vm2213, %v3140
      %3365 = vst.msk [vmem:[#allocation2 + $0x7f8] sm:$0xff] %vm2213, %v3141
      %3366 = vst.msk [vmem:[#allocation2 + $0x800] sm:$0xff] %vm2213, %v3142
      %3367 = vst.msk [vmem:[#allocation2 + $0x808] sm:$0xff] %vm2213, %v3143
      %3368 = vst.msk [vmem:[#allocation2 + $0x810] sm:$0xff] %vm2213, %v3144
      %3369 = vst.msk [vmem:[#allocation2 + $0x818] sm:$0xff] %vm2213, %v3145
      %3370 = vst.msk [vmem:[#allocation2 + $0x820] sm:$0xff] %vm2213, %v3146
      %3371 = vst.msk [vmem:[#allocation2 + $0x828] sm:$0xff] %vm2213, %v3147
      %3372 = vst.msk [vmem:[#allocation2 + $0x830] sm:$0xff] %vm2213, %v3148
      %3373 = vst.msk [vmem:[#allocation2 + $0x838] sm:$0xff] %vm2213, %v3149
      %3374 = vst.msk [vmem:[#allocation2 + $0x840] sm:$0xff] %vm2213, %v3150
      %3375 = vst.msk [vmem:[#allocation2 + $0x848] sm:$0xff] %vm2213, %v3151
      %3376 = vst.msk [vmem:[#allocation2 + $0x850] sm:$0xff] %vm2213, %v3152
      %3377 = vst.msk [vmem:[#allocation2 + $0x858] sm:$0xff] %vm2213, %v3153
      %3378 = vst.msk [vmem:[#allocation2 + $0x860] sm:$0xff] %vm2213, %v3154
      %3379 = vst.msk [vmem:[#allocation2 + $0x868] sm:$0xff] %vm2213, %v3155
      %3380 = vst.msk [vmem:[#allocation2 + $0x870] sm:$0xff] %vm2213, %v3156
      %3381 = vst.msk [vmem:[#allocation2 + $0x878] sm:$0xff] %vm2213, %v3157
      %3382 = vst.msk [vmem:[#allocation2 + $0x880] sm:$0xff] %vm2213, %v3158
      %3383 = vst.msk [vmem:[#allocation2 + $0x888] sm:$0xff] %vm2213, %v3159
      %3384 = vst.msk [vmem:[#allocation2 + $0x890] sm:$0xff] %vm2213, %v3160
      %3385 = vst.msk [vmem:[#allocation2 + $0x898] sm:$0xff] %vm2213, %v3161
      %3386 = vst.msk [vmem:[#allocation2 + $0x8a0] sm:$0xff] %vm2213, %v3162
      %3387 = vst.msk [vmem:[#allocation2 + $0x8a8] sm:$0xff] %vm2213, %v3163
      %3388 = vst.msk [vmem:[#allocation2 + $0x8b0] sm:$0xff] %vm2213, %v3164
      %3389 = vst.msk [vmem:[#allocation2 + $0x8b8] sm:$0xff] %vm2213, %v3165
      %3390 = vst.msk [vmem:[#allocation2 + $0x8c0] sm:$0xff] %vm2213, %v3166
      %3391 = vst.msk [vmem:[#allocation2 + $0x8c8] sm:$0xff] %vm2213, %v3167
      %3392 = vst.msk [vmem:[#allocation2 + $0x8d0] sm:$0xff] %vm2213, %v3168
      %3393 = vst.msk [vmem:[#allocation2 + $0x8d8] sm:$0xff] %vm2213, %v3169
      %3394 = vst.msk [vmem:[#allocation2 + $0x8e0] sm:$0xff] %vm2213, %v3170
      %3395 = vst.msk [vmem:[#allocation2 + $0x8e8] sm:$0xff] %vm2213, %v3171
      %3396 = vst.msk [vmem:[#allocation2 + $0x8f0] sm:$0xff] %vm2213, %v3172
      %3397 = vst.msk [vmem:[#allocation2 + $0x8f8] sm:$0xff] %vm2213, %v3173
      %3398 = vst.msk [vmem:[#allocation2 + $0x900] sm:$0xff] %vm2213, %v3174
      %3399 = vst.msk [vmem:[#allocation2 + $0x908] sm:$0xff] %vm2213, %v3175
      %3400 = vst.msk [vmem:[#allocation2 + $0x910] sm:$0xff] %vm2213, %v3176
      %3401 = vst.msk [vmem:[#allocation2 + $0x918] sm:$0xff] %vm2213, %v3177
      %3402 = vst.msk [vmem:[#allocation2 + $0x920] sm:$0xff] %vm2213, %v3178
      %3403 = vst.msk [vmem:[#allocation2 + $0x928] sm:$0xff] %vm2213, %v3179
      %3404 = vst.msk [vmem:[#allocation2 + $0x930] sm:$0xff] %vm2213, %v3180
      %3405 = vst.msk [vmem:[#allocation2 + $0x938] sm:$0xff] %vm2213, %v3181
      %3406 = vst.msk [vmem:[#allocation2 + $0x940] sm:$0xff] %vm2213, %v3182
      %3407 = vst.msk [vmem:[#allocation2 + $0x948] sm:$0xff] %vm2213, %v3183
      %3408 = vst.msk [vmem:[#allocation2 + $0x950] sm:$0xff] %vm2213, %v3184
      %3409 = vst.msk [vmem:[#allocation2 + $0x958] sm:$0xff] %vm2213, %v3185
      %3410 = vst.msk [vmem:[#allocation2 + $0x960] sm:$0xff] %vm2213, %v3186
      %3411 = vst.msk [vmem:[#allocation2 + $0x968] sm:$0xff] %vm2213, %v3187
      %3412 = vst.msk [vmem:[#allocation2 + $0x970] sm:$0xff] %vm2213, %v3188
      %3413 = vst.msk [vmem:[#allocation2 + $0x978] sm:$0xff] %vm2213, %v3189
      %3414 = vst.msk [vmem:[#allocation2 + $0x980] sm:$0xff] %vm2213, %v3190
      %3415 = vst.msk [vmem:[#allocation2 + $0x988] sm:$0xff] %vm2213, %v3191
      %3416 = vst.msk [vmem:[#allocation2 + $0x990] sm:$0xff] %vm2213, %v3192
      %3417 = vst.msk [vmem:[#allocation2 + $0x998] sm:$0xff] %vm2213, %v3193
      %3418 = vst.msk [vmem:[#allocation2 + $0x9a0] sm:$0xff] %vm2213, %v3194
      %3419 = vst.msk [vmem:[#allocation2 + $0x9a8] sm:$0xff] %vm2213, %v3195
      %3420 = vst.msk [vmem:[#allocation2 + $0x9b0] sm:$0xff] %vm2213, %v3196
      %3421 = vst.msk [vmem:[#allocation2 + $0x9b8] sm:$0xff] %vm2213, %v3197
      %3422 = vst.msk [vmem:[#allocation2 + $0x9c0] sm:$0xff] %vm2213, %v3198
      %3423 = vst.msk [vmem:[#allocation2 + $0x9c8] sm:$0xff] %vm2213, %v3199
      %3424 = vst.msk [vmem:[#allocation2 + $0x9d0] sm:$0xff] %vm2213, %v3200
      %3425 = vst.msk [vmem:[#allocation2 + $0x9d8] sm:$0xff] %vm2213, %v3201
      %3426 = vst.msk [vmem:[#allocation2 + $0x9e0] sm:$0xff] %vm2213, %v3202
      %3427 = vst.msk [vmem:[#allocation2 + $0x9e8] sm:$0xff] %vm2213, %v3203
      %3428 = vst.msk [vmem:[#allocation2 + $0x9f0] sm:$0xff] %vm2213, %v3204
      %3429 = vst.msk [vmem:[#allocation2 + $0x9f8] sm:$0xff] %vm2213, %v3205
      %3430 = vst.msk [vmem:[#allocation2 + $0xa00] sm:$0xff] %vm2213, %v3206
      %3431 = vst.msk [vmem:[#allocation2 + $0xa08] sm:$0xff] %vm2213, %v3207
      %3432 = vst.msk [vmem:[#allocation2 + $0xa10] sm:$0xff] %vm2213, %v3208
      %3433 = vst.msk [vmem:[#allocation2 + $0xa18] sm:$0xff] %vm2213, %v3209
      %3434 = vst.msk [vmem:[#allocation2 + $0xa20] sm:$0xff] %vm2213, %v3210
      %3435 = vst.msk [vmem:[#allocation2 + $0xa28] sm:$0xff] %vm2213, %v3211
      %3436 = vst.msk [vmem:[#allocation2 + $0xa30] sm:$0xff] %vm2213, %v3212
      %3437 = vst.msk [vmem:[#allocation2 + $0xa38] sm:$0xff] %vm2213, %v3213
      %3438 = vst.msk [vmem:[#allocation2 + $0xa40] sm:$0xff] %vm2213, %v3214
      %3439 = vst.msk [vmem:[#allocation2 + $0xa48] sm:$0xff] %vm2213, %v3215
      %3440 = vst.msk [vmem:[#allocation2 + $0xa50] sm:$0xff] %vm2213, %v3216
      %3441 = vst.msk [vmem:[#allocation2 + $0xa58] sm:$0xff] %vm2213, %v3217
      %3442 = vst.msk [vmem:[#allocation2 + $0xa60] sm:$0xff] %vm2213, %v3218
      %3443 = vst.msk [vmem:[#allocation2 + $0xa68] sm:$0xff] %vm2213, %v3219
      %3444 = vst.msk [vmem:[#allocation2 + $0xa70] sm:$0xff] %vm2213, %v3220
      %3445 = vst.msk [vmem:[#allocation2 + $0xa78] sm:$0xff] %vm2213, %v3221
      loop: start=0, step=1, limit=28
      $region41: #{conv_layer_forward.2} parent=35 // loop_pre_header
        _
      $region42: #{conv_layer_forward.2} parent=35 // loop_header
        %s3447 = sphi 0, %s3451
        %p3448 = scmp.ge.s32.totalorder %s3447, 28
      $region43: #{conv_layer_forward.2} parent=35 // loop_header_branch
        %3450 = sbr.rel (%p3448) target = $region47
      $region44: #{conv_layer_forward.2} parent=35 // loop_body
        %s3452 = smul.u32 %s3447, 128
        %s3453 = sshra.s32 %s3452, 4
        %s3454 = sand.u32 %s3452, 15
        %s3455 = smul.addr %s3453, 8
        %s3456 = scalar_lea.vmem [#allocation2], %s3455
        %v3457 = vld [vmem:[%s3456] sm:$0xff]
        %v3458 = vld [vmem:[%s3456 + $0x8] sm:$0xff]
        %v3459 = vld [vmem:[%s3456 + $0x10] sm:$0xff]
        %v3460 = vld [vmem:[%s3456 + $0x18] sm:$0xff]
        %v3461 = vld [vmem:[%s3456 + $0x20] sm:$0xff]
        %v3462 = vld [vmem:[%s3456 + $0x28] sm:$0xff]
        %v3463 = vld [vmem:[%s3456 + $0x30] sm:$0xff]
        %v3464 = vld [vmem:[%s3456 + $0x38] sm:$0xff]
        %v3465 = vld [vmem:[%s3] sm:$0xf]
        %v3466 = vld [vmem:[%s3 + $0x4] sm:$0xf]
        %v3467 = vld [vmem:[%s3 + $0x8] sm:$0x1]
        %s3468 = sadd.s32 %s3452, 96
        %s3469 = sshra.s32 %s3468, 4
        %s3470 = sand.u32 %s3468, 15
        %s3471 = smul.addr %s3469, 8
        %s3472 = scalar_lea.vmem [#allocation2], %s3471
        %v3473 = vld [vmem:[%s3472] sm:$0xff]
        %v3474 = vld [vmem:[%s3472 + $0x8] sm:$0xff]
        %v3475 = vld [vmem:[%s3472 + $0x10] sm:$0xff]
        %v3476 = vld [vmem:[%s3472 + $0x18] sm:$0xff]
        %v3477 = vld [vmem:[%s3472 + $0x20] sm:$0xff]
        %v3478 = vld [vmem:[%s3472 + $0x28] sm:$0xff]
        %v3479 = vld [vmem:[%s3472 + $0x30] sm:$0xff]
        %v3480 = vld [vmem:[%s3472 + $0x38] sm:$0xff]
        %s3481 = scalar_lea.vmem %s3, 12
        %v3482 = vld [vmem:[%s3481] sm:$0xf]
        %v3483 = vld [vmem:[%s3481 + $0x4] sm:$0xf]
        %v3484 = vld [vmem:[%s3481 + $0x8] sm:$0x1]
        %v3488 = vunpack.c.l.b16 %v3482
        %v3489 = vunpack.c.l.b16 %v3483
        %v3490 = vunpack.c.l.b16 %v3484
        %v3491 = vpack.c.b16 %v3489, %v3488
        %v3492 = vpack.c.b16 %v3490, %v3490
        %v3495 = vsel %vm2213, %v3473, 0
        %v3498 = vsel %vm2213, %v3474, 0
        %v3501 = vsel %vm2213, %v3475, 0
        %v3504 = vsel %vm2213, %v3476, 0
        %v3507 = vsel %vm2213, %v3477, 0
        %v3510 = vsel %vm2213, %v3478, 0
        %v3513 = vsel %vm2213, %v3479, 0
        %v3516 = vsel %vm2213, %v3480, 0
        %vm3518 = vcmask 1040384
        %v3520 = vsel %vm3518, %v3492, 0
        %3522 = vmatprep.subr.bf16.mxu0 0
        %3523 = vmatpush1.bf16.msra.mxu0 %v3491
        %3524 = vmatprep.subr.bf16.mxu0 0
        %3525 = vmatpush1.bf16.msra.mxu0 %v3520
        %3526 = vmatprep.subr.bf16.mxu0 0
        %3527 = vmatpush1.bf16.msra.mxu0 0
        %3528 = vmatprep.subr.bf16.mxu0 0
        %3529 = vmatpush1.bf16.msra.mxu0 0
        %3530 = vmatprep.subr.bf16.mxu0 0
        %3531 = vmatpush1.bf16.msra.mxu0 0
        %3532 = vmatprep.subr.bf16.mxu0 0
        %3533 = vmatpush1.bf16.msra.mxu0 0
        %3534 = vmatprep.subr.bf16.mxu0 0
        %3535 = vmatpush1.bf16.msra.mxu0 0
        %3536 = vmatprep.subr.bf16.mxu0 0
        %3537 = vmatpush1.bf16.msra.mxu0 0
        %3538 = vmatprep.subr.bf16.mxu0 0
        %3539 = vmatpush1.bf16.msra.mxu0 0
        %3540 = vmatprep.subr.bf16.mxu0 0
        %3541 = vmatpush1.bf16.msra.mxu0 0
        %3542 = vmatprep.subr.bf16.mxu0 0
        %3543 = vmatpush1.bf16.msra.mxu0 0
        %3544 = vmatprep.subr.bf16.mxu0 0
        %3545 = vmatpush1.bf16.msra.mxu0 0
        %3546 = vmatprep.subr.bf16.mxu0 0
        %3547 = vmatpush1.bf16.msra.mxu0 0
        %3548 = vmatprep.subr.bf16.mxu0 0
        %3549 = vmatpush1.bf16.msra.mxu0 0
        %3550 = vmatprep.subr.bf16.mxu0 0
        %3551 = vmatpush1.bf16.msra.mxu0 0
        %3552 = vmatprep.subr.bf16.mxu0 0
        %3553 = vmatpush1.bf16.msra.mxu0 0
        %3554 = vmatprep.mubr.bf16.mxu0 0
        %3555 = vmatmul.mubr.bf16.gmra.mrb[0].mxu0 %v3495
        %v3556 = vpop.f32.mrb[0].mxu0
        %v3557 = vadd.f32 0.0, %v3556
        %v3558 = vpop.f32.mrb[0].mxu0
        %v3559 = vpop.f32.mrb[0].mxu0
        %v3560 = vadd.f32 0.0, %v3559
        %v3561 = vpop.f32.mrb[0].mxu0
        %3562 = vmatprep.mubr.bf16.mxu0 0
        %3563 = vmatmul.mubr.bf16.gmra.mrb[0].mxu0 %v3498
        %v3564 = vpop.f32.mrb[0].mxu0
        %v3565 = vadd.f32 0.0, %v3564
        %v3566 = vpop.f32.mrb[0].mxu0
        %v3567 = vpop.f32.mrb[0].mxu0
        %v3568 = vadd.f32 0.0, %v3567
        %v3569 = vpop.f32.mrb[0].mxu0
        %3570 = vmatprep.mubr.bf16.mxu0 0
        %3571 = vmatmul.mubr.bf16.gmra.mrb[0].mxu0 %v3501
        %v3572 = vpop.f32.mrb[0].mxu0
        %v3573 = vadd.f32 0.0, %v3572
        %v3574 = vpop.f32.mrb[0].mxu0
        %v3575 = vpop.f32.mrb[0].mxu0
        %v3576 = vadd.f32 0.0, %v3575
        %v3577 = vpop.f32.mrb[0].mxu0
        %3578 = vmatprep.mubr.bf16.mxu0 0
        %3579 = vmatmul.mubr.bf16.gmra.mrb[0].mxu0 %v3504
        %v3580 = vpop.f32.mrb[0].mxu0
        %v3581 = vadd.f32 0.0, %v3580
        %v3582 = vpop.f32.mrb[0].mxu0
        %v3583 = vpop.f32.mrb[0].mxu0
        %v3584 = vadd.f32 0.0, %v3583
        %v3585 = vpop.f32.mrb[0].mxu0
        %3586 = vmatprep.mubr.bf16.mxu0 0
        %3587 = vmatmul.mubr.bf16.gmra.mrb[0].mxu0 %v3507
        %v3588 = vpop.f32.mrb[0].mxu0
        %v3589 = vadd.f32 0.0, %v3588
        %v3590 = vpop.f32.mrb[0].mxu0
        %v3591 = vpop.f32.mrb[0].mxu0
        %v3592 = vadd.f32 0.0, %v3591
        %v3593 = vpop.f32.mrb[0].mxu0
        %3594 = vmatprep.mubr.bf16.mxu0 0
        %3595 = vmatmul.mubr.bf16.gmra.mrb[0].mxu0 %v3510
        %v3596 = vpop.f32.mrb[0].mxu0
        %v3597 = vadd.f32 0.0, %v3596
        %v3598 = vpop.f32.mrb[0].mxu0
        %v3599 = vpop.f32.mrb[0].mxu0
        %v3600 = vadd.f32 0.0, %v3599
        %v3601 = vpop.f32.mrb[0].mxu0
        %3602 = vmatprep.mubr.bf16.mxu0 0
        %3603 = vmatmul.mubr.bf16.gmra.mrb[0].mxu0 %v3513
        %v3604 = vpop.f32.mrb[0].mxu0
        %v3605 = vadd.f32 0.0, %v3604
        %v3606 = vpop.f32.mrb[0].mxu0
        %v3607 = vpop.f32.mrb[0].mxu0
        %v3608 = vadd.f32 0.0, %v3607
        %v3609 = vpop.f32.mrb[0].mxu0
        %3610 = vmatprep.mubr.bf16.mxu0 0
        %3611 = vmatmul.mubr.bf16.gmra.mrb[0].mxu0 %v3516
        %v3612 = vpop.f32.mrb[0].mxu0
        %v3613 = vadd.f32 0.0, %v3612
        %v3614 = vpop.f32.mrb[0].mxu0
        %v3615 = vpop.f32.mrb[0].mxu0
        %v3616 = vadd.f32 0.0, %v3615
        %v3617 = vpop.f32.mrb[0].mxu0
        %3618 = vdwg.mxu0
        %v3622 = vunpack.c.l.b16 %v3465
        %v3623 = vunpack.c.l.b16 %v3466
        %v3624 = vunpack.c.l.b16 %v3467
        %v3625 = vpack.c.b16 %v3623, %v3622
        %v3626 = vpack.c.b16 %v3624, %v3624
        %v3629 = vsel %vm2213, %v3457, 0
        %v3632 = vsel %vm2213, %v3458, 0
        %v3635 = vsel %vm2213, %v3459, 0
        %v3638 = vsel %vm2213, %v3460, 0
        %v3641 = vsel %vm2213, %v3461, 0
        %v3644 = vsel %vm2213, %v3462, 0
        %v3647 = vsel %vm2213, %v3463, 0
        %v3650 = vsel %vm2213, %v3464, 0
        %v3653 = vsel %vm3518, %v3626, 0
        %3655 = vmatprep.subr.bf16.mxu0 0
        %3656 = vmatpush1.bf16.msra.mxu0 %v3625
        %3657 = vmatprep.subr.bf16.mxu0 0
        %3658 = vmatpush1.bf16.msra.mxu0 %v3653
        %3659 = vmatprep.subr.bf16.mxu0 0
        %3660 = vmatpush1.bf16.msra.mxu0 0
        %3661 = vmatprep.subr.bf16.mxu0 0
        %3662 = vmatpush1.bf16.msra.mxu0 0
        %3663 = vmatprep.subr.bf16.mxu0 0
        %3664 = vmatpush1.bf16.msra.mxu0 0
        %3665 = vmatprep.subr.bf16.mxu0 0
        %3666 = vmatpush1.bf16.msra.mxu0 0
        %3667 = vmatprep.subr.bf16.mxu0 0
        %3668 = vmatpush1.bf16.msra.mxu0 0
        %3669 = vmatprep.subr.bf16.mxu0 0
        %3670 = vmatpush1.bf16.msra.mxu0 0
        %3671 = vmatprep.subr.bf16.mxu0 0
        %3672 = vmatpush1.bf16.msra.mxu0 0
        %3673 = vmatprep.subr.bf16.mxu0 0
        %3674 = vmatpush1.bf16.msra.mxu0 0
        %3675 = vmatprep.subr.bf16.mxu0 0
        %3676 = vmatpush1.bf16.msra.mxu0 0
        %3677 = vmatprep.subr.bf16.mxu0 0
        %3678 = vmatpush1.bf16.msra.mxu0 0
        %3679 = vmatprep.subr.bf16.mxu0 0
        %3680 = vmatpush1.bf16.msra.mxu0 0
        %3681 = vmatprep.subr.bf16.mxu0 0
        %3682 = vmatpush1.bf16.msra.mxu0 0
        %3683 = vmatprep.subr.bf16.mxu0 0
        %3684 = vmatpush1.bf16.msra.mxu0 0
        %3685 = vmatprep.subr.bf16.mxu0 0
        %3686 = vmatpush1.bf16.msra.mxu0 0
        %3687 = vmatprep.mubr.bf16.mxu0 0
        %3688 = vmatmul.mubr.bf16.gmra.mrb[0].mxu0 %v3629
        %v3689 = vpop.f32.mrb[0].mxu0
        %v3690 = vadd.f32 %v3557, %v3689
        %v3691 = vpop.f32.mrb[0].mxu0
        %v3692 = vpop.f32.mrb[0].mxu0
        %v3693 = vadd.f32 %v3560, %v3692
        %v3694 = vpop.f32.mrb[0].mxu0
        %3695 = vmatprep.mubr.bf16.mxu0 0
        %3696 = vmatmul.mubr.bf16.gmra.mrb[0].mxu0 %v3632
        %v3697 = vpop.f32.mrb[0].mxu0
        %v3698 = vadd.f32 %v3565, %v3697
        %v3699 = vpop.f32.mrb[0].mxu0
        %v3700 = vpop.f32.mrb[0].mxu0
        %v3701 = vadd.f32 %v3568, %v3700
        %v3702 = vpop.f32.mrb[0].mxu0
        %3703 = vmatprep.mubr.bf16.mxu0 0
        %3704 = vmatmul.mubr.bf16.gmra.mrb[0].mxu0 %v3635
        %v3705 = vpop.f32.mrb[0].mxu0
        %v3706 = vadd.f32 %v3573, %v3705
        %v3707 = vpop.f32.mrb[0].mxu0
        %v3708 = vpop.f32.mrb[0].mxu0
        %v3709 = vadd.f32 %v3576, %v3708
        %v3710 = vpop.f32.mrb[0].mxu0
        %3711 = vmatprep.mubr.bf16.mxu0 0
        %3712 = vmatmul.mubr.bf16.gmra.mrb[0].mxu0 %v3638
        %v3713 = vpop.f32.mrb[0].mxu0
        %v3714 = vadd.f32 %v3581, %v3713
        %v3715 = vpop.f32.mrb[0].mxu0
        %v3716 = vpop.f32.mrb[0].mxu0
        %v3717 = vadd.f32 %v3584, %v3716
        %v3718 = vpop.f32.mrb[0].mxu0
        %3719 = vmatprep.mubr.bf16.mxu0 0
        %3720 = vmatmul.mubr.bf16.gmra.mrb[0].mxu0 %v3641
        %v3721 = vpop.f32.mrb[0].mxu0
        %v3722 = vadd.f32 %v3589, %v3721
        %v3723 = vpop.f32.mrb[0].mxu0
        %v3724 = vpop.f32.mrb[0].mxu0
        %v3725 = vadd.f32 %v3592, %v3724
        %v3726 = vpop.f32.mrb[0].mxu0
        %3727 = vmatprep.mubr.bf16.mxu0 0
        %3728 = vmatmul.mubr.bf16.gmra.mrb[0].mxu0 %v3644
        %v3729 = vpop.f32.mrb[0].mxu0
        %v3730 = vadd.f32 %v3597, %v3729
        %v3731 = vpop.f32.mrb[0].mxu0
        %v3732 = vpop.f32.mrb[0].mxu0
        %v3733 = vadd.f32 %v3600, %v3732
        %v3734 = vpop.f32.mrb[0].mxu0
        %3735 = vmatprep.mubr.bf16.mxu0 0
        %3736 = vmatmul.mubr.bf16.gmra.mrb[0].mxu0 %v3647
        %v3737 = vpop.f32.mrb[0].mxu0
        %v3738 = vadd.f32 %v3605, %v3737
        %v3739 = vpop.f32.mrb[0].mxu0
        %v3740 = vpop.f32.mrb[0].mxu0
        %v3741 = vadd.f32 %v3608, %v3740
        %v3742 = vpop.f32.mrb[0].mxu0
        %3743 = vmatprep.mubr.bf16.mxu0 0
        %3744 = vmatmul.mubr.bf16.gmra.mrb[0].mxu0 %v3650
        %v3745 = vpop.f32.mrb[0].mxu0
        %v3746 = vadd.f32 %v3613, %v3745
        %v3747 = vpop.f32.mrb[0].mxu0
        %v3748 = vpop.f32.mrb[0].mxu0
        %v3749 = vadd.f32 %v3616, %v3748
        %v3750 = vpop.f32.mrb[0].mxu0
        %3751 = vdwg.mxu0
        %s3752 = sadd.s32 %s3452, 192
        %s3753 = sshra.s32 %s3752, 4
        %s3754 = sand.u32 %s3752, 15
        %s3755 = smul.addr %s3753, 8
        %s3756 = scalar_lea.vmem [#allocation2], %s3755
        %v3757 = vld [vmem:[%s3756] sm:$0xff]
        %v3758 = vld [vmem:[%s3756 + $0x8] sm:$0xff]
        %v3759 = vld [vmem:[%s3756 + $0x10] sm:$0xff]
        %v3760 = vld [vmem:[%s3756 + $0x18] sm:$0xff]
        %v3761 = vld [vmem:[%s3756 + $0x20] sm:$0xff]
        %v3762 = vld [vmem:[%s3756 + $0x28] sm:$0xff]
        %v3763 = vld [vmem:[%s3756 + $0x30] sm:$0xff]
        %v3764 = vld [vmem:[%s3756 + $0x38] sm:$0xff]
        %s3765 = scalar_lea.vmem %s3, 24
        %v3766 = vld [vmem:[%s3765] sm:$0xf]
        %v3767 = vld [vmem:[%s3765 + $0x4] sm:$0xf]
        %v3768 = vld [vmem:[%s3765 + $0x8] sm:$0x1]
        %v3772 = vunpack.c.l.b16 %v3766
        %v3773 = vunpack.c.l.b16 %v3767
        %v3774 = vunpack.c.l.b16 %v3768
        %v3775 = vpack.c.b16 %v3773, %v3772
        %v3776 = vpack.c.b16 %v3774, %v3774
        %v3779 = vsel %vm2213, %v3757, 0
        %v3782 = vsel %vm2213, %v3758, 0
        %v3785 = vsel %vm2213, %v3759, 0
        %v3788 = vsel %vm2213, %v3760, 0
        %v3791 = vsel %vm2213, %v3761, 0
        %v3794 = vsel %vm2213, %v3762, 0
        %v3797 = vsel %vm2213, %v3763, 0
        %v3800 = vsel %vm2213, %v3764, 0
        %v3803 = vsel %vm3518, %v3776, 0
        %3805 = vmatprep.subr.bf16.mxu0 0
        %3806 = vmatpush1.bf16.msra.mxu0 %v3775
        %3807 = vmatprep.subr.bf16.mxu0 0
        %3808 = vmatpush1.bf16.msra.mxu0 %v3803
        %3809 = vmatprep.subr.bf16.mxu0 0
        %3810 = vmatpush1.bf16.msra.mxu0 0
        %3811 = vmatprep.subr.bf16.mxu0 0
        %3812 = vmatpush1.bf16.msra.mxu0 0
        %3813 = vmatprep.subr.bf16.mxu0 0
        %3814 = vmatpush1.bf16.msra.mxu0 0
        %3815 = vmatprep.subr.bf16.mxu0 0
        %3816 = vmatpush1.bf16.msra.mxu0 0
        %3817 = vmatprep.subr.bf16.mxu0 0
        %3818 = vmatpush1.bf16.msra.mxu0 0
        %3819 = vmatprep.subr.bf16.mxu0 0
        %3820 = vmatpush1.bf16.msra.mxu0 0
        %3821 = vmatprep.subr.bf16.mxu0 0
        %3822 = vmatpush1.bf16.msra.mxu0 0
        %3823 = vmatprep.subr.bf16.mxu0 0
        %3824 = vmatpush1.bf16.msra.mxu0 0
        %3825 = vmatprep.subr.bf16.mxu0 0
        %3826 = vmatpush1.bf16.msra.mxu0 0
        %3827 = vmatprep.subr.bf16.mxu0 0
        %3828 = vmatpush1.bf16.msra.mxu0 0
        %3829 = vmatprep.subr.bf16.mxu0 0
        %3830 = vmatpush1.bf16.msra.mxu0 0
        %3831 = vmatprep.subr.bf16.mxu0 0
        %3832 = vmatpush1.bf16.msra.mxu0 0
        %3833 = vmatprep.subr.bf16.mxu0 0
        %3834 = vmatpush1.bf16.msra.mxu0 0
        %3835 = vmatprep.subr.bf16.mxu0 0
        %3836 = vmatpush1.bf16.msra.mxu0 0
        %3837 = vmatprep.mubr.bf16.mxu0 0
        %3838 = vmatmul.mubr.bf16.gmra.mrb[0].mxu0 %v3779
        %v3839 = vpop.f32.mrb[0].mxu0
        %v3840 = vadd.f32 0.0, %v3839
        %v3841 = vpop.f32.mrb[0].mxu0
        %v3842 = vpop.f32.mrb[0].mxu0
        %v3843 = vadd.f32 0.0, %v3842
        %v3844 = vpop.f32.mrb[0].mxu0
        %3845 = vmatprep.mubr.bf16.mxu0 0
        %3846 = vmatmul.mubr.bf16.gmra.mrb[0].mxu0 %v3782
        %v3847 = vpop.f32.mrb[0].mxu0
        %v3848 = vadd.f32 0.0, %v3847
        %v3849 = vpop.f32.mrb[0].mxu0
        %v3850 = vpop.f32.mrb[0].mxu0
        %v3851 = vadd.f32 0.0, %v3850
        %v3852 = vpop.f32.mrb[0].mxu0
        %3853 = vmatprep.mubr.bf16.mxu0 0
        %3854 = vmatmul.mubr.bf16.gmra.mrb[0].mxu0 %v3785
        %v3855 = vpop.f32.mrb[0].mxu0
        %v3856 = vadd.f32 0.0, %v3855
        %v3857 = vpop.f32.mrb[0].mxu0
        %v3858 = vpop.f32.mrb[0].mxu0
        %v3859 = vadd.f32 0.0, %v3858
        %v3860 = vpop.f32.mrb[0].mxu0
        %3861 = vmatprep.mubr.bf16.mxu0 0
        %3862 = vmatmul.mubr.bf16.gmra.mrb[0].mxu0 %v3788
        %v3863 = vpop.f32.mrb[0].mxu0
        %v3864 = vadd.f32 0.0, %v3863
        %v3865 = vpop.f32.mrb[0].mxu0
        %v3866 = vpop.f32.mrb[0].mxu0
        %v3867 = vadd.f32 0.0, %v3866
        %v3868 = vpop.f32.mrb[0].mxu0
        %3869 = vmatprep.mubr.bf16.mxu0 0
        %3870 = vmatmul.mubr.bf16.gmra.mrb[0].mxu0 %v3791
        %v3871 = vpop.f32.mrb[0].mxu0
        %v3872 = vadd.f32 0.0, %v3871
        %v3873 = vpop.f32.mrb[0].mxu0
        %v3874 = vpop.f32.mrb[0].mxu0
        %v3875 = vadd.f32 0.0, %v3874
        %v3876 = vpop.f32.mrb[0].mxu0
        %3877 = vmatprep.mubr.bf16.mxu0 0
        %3878 = vmatmul.mubr.bf16.gmra.mrb[0].mxu0 %v3794
        %v3879 = vpop.f32.mrb[0].mxu0
        %v3880 = vadd.f32 0.0, %v3879
        %v3881 = vpop.f32.mrb[0].mxu0
        %v3882 = vpop.f32.mrb[0].mxu0
        %v3883 = vadd.f32 0.0, %v3882
        %v3884 = vpop.f32.mrb[0].mxu0
        %3885 = vmatprep.mubr.bf16.mxu0 0
        %3886 = vmatmul.mubr.bf16.gmra.mrb[0].mxu0 %v3797
        %v3887 = vpop.f32.mrb[0].mxu0
        %v3888 = vadd.f32 0.0, %v3887
        %v3889 = vpop.f32.mrb[0].mxu0
        %v3890 = vpop.f32.mrb[0].mxu0
        %v3891 = vadd.f32 0.0, %v3890
        %v3892 = vpop.f32.mrb[0].mxu0
        %3893 = vmatprep.mubr.bf16.mxu0 0
        %3894 = vmatmul.mubr.bf16.gmra.mrb[0].mxu0 %v3800
        %v3895 = vpop.f32.mrb[0].mxu0
        %v3896 = vadd.f32 0.0, %v3895
        %v3897 = vpop.f32.mrb[0].mxu0
        %v3898 = vpop.f32.mrb[0].mxu0
        %v3899 = vadd.f32 0.0, %v3898
        %v3900 = vpop.f32.mrb[0].mxu0
        %3901 = vdwg.mxu0
        %v3902 = vadd.f32 %v3690, %v3840
        %v3903 = vadd.f32 %v3693, %v3843
        %v3904 = vadd.f32 %v3698, %v3848
        %v3905 = vadd.f32 %v3701, %v3851
        %v3906 = vadd.f32 %v3706, %v3856
        %v3907 = vadd.f32 %v3709, %v3859
        %v3908 = vadd.f32 %v3714, %v3864
        %v3909 = vadd.f32 %v3717, %v3867
        %v3910 = vadd.f32 %v3722, %v3872
        %v3911 = vadd.f32 %v3725, %v3875
        %v3912 = vadd.f32 %v3730, %v3880
        %v3913 = vadd.f32 %v3733, %v3883
        %v3914 = vadd.f32 %v3738, %v3888
        %v3915 = vadd.f32 %v3741, %v3891
        %v3916 = vadd.f32 %v3746, %v3896
        %v3917 = vadd.f32 %v3749, %v3899
        %s3918 = sadd.s32 %s3452, 768
        %s3919 = sshra.s32 %s3918, 4
        %s3920 = sand.u32 %s3918, 15
        %s3921 = smul.addr %s3919, 8
        %s3922 = scalar_lea.vmem [#allocation2], %s3921
        %v3923 = vld [vmem:[%s3922] sm:$0xff]
        %v3924 = vld [vmem:[%s3922 + $0x8] sm:$0xff]
        %v3925 = vld [vmem:[%s3922 + $0x10] sm:$0xff]
        %v3926 = vld [vmem:[%s3922 + $0x18] sm:$0xff]
        %v3927 = vld [vmem:[%s3922 + $0x20] sm:$0xff]
        %v3928 = vld [vmem:[%s3922 + $0x28] sm:$0xff]
        %v3929 = vld [vmem:[%s3922 + $0x30] sm:$0xff]
        %v3930 = vld [vmem:[%s3922 + $0x38] sm:$0xff]
        %s3931 = scalar_lea.vmem %s3, 36
        %v3932 = vld [vmem:[%s3931] sm:$0xf]
        %v3933 = vld [vmem:[%s3931 + $0x4] sm:$0xf]
        %v3934 = vld [vmem:[%s3931 + $0x8] sm:$0x1]
        %v3938 = vunpack.c.l.b16 %v3932
        %v3939 = vunpack.c.l.b16 %v3933
        %v3940 = vunpack.c.l.b16 %v3934
        %v3941 = vpack.c.b16 %v3939, %v3938
        %v3942 = vpack.c.b16 %v3940, %v3940
        %v3945 = vsel %vm2213, %v3923, 0
        %v3948 = vsel %vm2213, %v3924, 0
        %v3951 = vsel %vm2213, %v3925, 0
        %v3954 = vsel %vm2213, %v3926, 0
        %v3957 = vsel %vm2213, %v3927, 0
        %v3960 = vsel %vm2213, %v3928, 0
        %v3963 = vsel %vm2213, %v3929, 0
        %v3966 = vsel %vm2213, %v3930, 0
        %v3969 = vsel %vm3518, %v3942, 0
        %3971 = vmatprep.subr.bf16.mxu0 0
        %3972 = vmatpush1.bf16.msra.mxu0 %v3941
        %3973 = vmatprep.subr.bf16.mxu0 0
        %3974 = vmatpush1.bf16.msra.mxu0 %v3969
        %3975 = vmatprep.subr.bf16.mxu0 0
        %3976 = vmatpush1.bf16.msra.mxu0 0
        %3977 = vmatprep.subr.bf16.mxu0 0
        %3978 = vmatpush1.bf16.msra.mxu0 0
        %3979 = vmatprep.subr.bf16.mxu0 0
        %3980 = vmatpush1.bf16.msra.mxu0 0
        %3981 = vmatprep.subr.bf16.mxu0 0
        %3982 = vmatpush1.bf16.msra.mxu0 0
        %3983 = vmatprep.subr.bf16.mxu0 0
        %3984 = vmatpush1.bf16.msra.mxu0 0
        %3985 = vmatprep.subr.bf16.mxu0 0
        %3986 = vmatpush1.bf16.msra.mxu0 0
        %3987 = vmatprep.subr.bf16.mxu0 0
        %3988 = vmatpush1.bf16.msra.mxu0 0
        %3989 = vmatprep.subr.bf16.mxu0 0
        %3990 = vmatpush1.bf16.msra.mxu0 0
        %3991 = vmatprep.subr.bf16.mxu0 0
        %3992 = vmatpush1.bf16.msra.mxu0 0
        %3993 = vmatprep.subr.bf16.mxu0 0
        %3994 = vmatpush1.bf16.msra.mxu0 0
        %3995 = vmatprep.subr.bf16.mxu0 0
        %3996 = vmatpush1.bf16.msra.mxu0 0
        %3997 = vmatprep.subr.bf16.mxu0 0
        %3998 = vmatpush1.bf16.msra.mxu0 0
        %3999 = vmatprep.subr.bf16.mxu0 0
        %4000 = vmatpush1.bf16.msra.mxu0 0
        %4001 = vmatprep.subr.bf16.mxu0 0
        %4002 = vmatpush1.bf16.msra.mxu0 0
        %4003 = vmatprep.mubr.bf16.mxu0 0
        %4004 = vmatmul.mubr.bf16.gmra.mrb[0].mxu0 %v3945
        %v4005 = vpop.f32.mrb[0].mxu0
        %v4006 = vadd.f32 0.0, %v4005
        %v4007 = vpop.f32.mrb[0].mxu0
        %v4008 = vpop.f32.mrb[0].mxu0
        %v4009 = vadd.f32 0.0, %v4008
        %v4010 = vpop.f32.mrb[0].mxu0
        %4011 = vmatprep.mubr.bf16.mxu0 0
        %4012 = vmatmul.mubr.bf16.gmra.mrb[0].mxu0 %v3948
        %v4013 = vpop.f32.mrb[0].mxu0
        %v4014 = vadd.f32 0.0, %v4013
        %v4015 = vpop.f32.mrb[0].mxu0
        %v4016 = vpop.f32.mrb[0].mxu0
        %v4017 = vadd.f32 0.0, %v4016
        %v4018 = vpop.f32.mrb[0].mxu0
        %4019 = vmatprep.mubr.bf16.mxu0 0
        %4020 = vmatmul.mubr.bf16.gmra.mrb[0].mxu0 %v3951
        %v4021 = vpop.f32.mrb[0].mxu0
        %v4022 = vadd.f32 0.0, %v4021
        %v4023 = vpop.f32.mrb[0].mxu0
        %v4024 = vpop.f32.mrb[0].mxu0
        %v4025 = vadd.f32 0.0, %v4024
        %v4026 = vpop.f32.mrb[0].mxu0
        %4027 = vmatprep.mubr.bf16.mxu0 0
        %4028 = vmatmul.mubr.bf16.gmra.mrb[0].mxu0 %v3954
        %v4029 = vpop.f32.mrb[0].mxu0
        %v4030 = vadd.f32 0.0, %v4029
        %v4031 = vpop.f32.mrb[0].mxu0
        %v4032 = vpop.f32.mrb[0].mxu0
        %v4033 = vadd.f32 0.0, %v4032
        %v4034 = vpop.f32.mrb[0].mxu0
        %4035 = vmatprep.mubr.bf16.mxu0 0
        %4036 = vmatmul.mubr.bf16.gmra.mrb[0].mxu0 %v3957
        %v4037 = vpop.f32.mrb[0].mxu0
        %v4038 = vadd.f32 0.0, %v4037
        %v4039 = vpop.f32.mrb[0].mxu0
        %v4040 = vpop.f32.mrb[0].mxu0
        %v4041 = vadd.f32 0.0, %v4040
        %v4042 = vpop.f32.mrb[0].mxu0
        %4043 = vmatprep.mubr.bf16.mxu0 0
        %4044 = vmatmul.mubr.bf16.gmra.mrb[0].mxu0 %v3960
        %v4045 = vpop.f32.mrb[0].mxu0
        %v4046 = vadd.f32 0.0, %v4045
        %v4047 = vpop.f32.mrb[0].mxu0
        %v4048 = vpop.f32.mrb[0].mxu0
        %v4049 = vadd.f32 0.0, %v4048
        %v4050 = vpop.f32.mrb[0].mxu0
        %4051 = vmatprep.mubr.bf16.mxu0 0
        %4052 = vmatmul.mubr.bf16.gmra.mrb[0].mxu0 %v3963
        %v4053 = vpop.f32.mrb[0].mxu0
        %v4054 = vadd.f32 0.0, %v4053
        %v4055 = vpop.f32.mrb[0].mxu0
        %v4056 = vpop.f32.mrb[0].mxu0
        %v4057 = vadd.f32 0.0, %v4056
        %v4058 = vpop.f32.mrb[0].mxu0
        %4059 = vmatprep.mubr.bf16.mxu0 0
        %4060 = vmatmul.mubr.bf16.gmra.mrb[0].mxu0 %v3966
        %v4061 = vpop.f32.mrb[0].mxu0
        %v4062 = vadd.f32 0.0, %v4061
        %v4063 = vpop.f32.mrb[0].mxu0
        %v4064 = vpop.f32.mrb[0].mxu0
        %v4065 = vadd.f32 0.0, %v4064
        %v4066 = vpop.f32.mrb[0].mxu0
        %4067 = vdwg.mxu0
        %v4068 = vadd.f32 %v3902, %v4006
        %v4069 = vadd.f32 %v3903, %v4009
        %v4070 = vadd.f32 %v3904, %v4014
        %v4071 = vadd.f32 %v3905, %v4017
        %v4072 = vadd.f32 %v3906, %v4022
        %v4073 = vadd.f32 %v3907, %v4025
        %v4074 = vadd.f32 %v3908, %v4030
        %v4075 = vadd.f32 %v3909, %v4033
        %v4076 = vadd.f32 %v3910, %v4038
        %v4077 = vadd.f32 %v3911, %v4041
        %v4078 = vadd.f32 %v3912, %v4046
        %v4079 = vadd.f32 %v3913, %v4049
        %v4080 = vadd.f32 %v3914, %v4054
        %v4081 = vadd.f32 %v3915, %v4057
        %v4082 = vadd.f32 %v3916, %v4062
        %v4083 = vadd.f32 %v3917, %v4065
        %s4084 = sadd.s32 %s3452, 864
        %s4085 = sshra.s32 %s4084, 4
        %s4086 = sand.u32 %s4084, 15
        %s4087 = smul.addr %s4085, 8
        %s4088 = scalar_lea.vmem [#allocation2], %s4087
        %v4089 = vld [vmem:[%s4088] sm:$0xff]
        %v4090 = vld [vmem:[%s4088 + $0x8] sm:$0xff]
        %v4091 = vld [vmem:[%s4088 + $0x10] sm:$0xff]
        %v4092 = vld [vmem:[%s4088 + $0x18] sm:$0xff]
        %v4093 = vld [vmem:[%s4088 + $0x20] sm:$0xff]
        %v4094 = vld [vmem:[%s4088 + $0x28] sm:$0xff]
        %v4095 = vld [vmem:[%s4088 + $0x30] sm:$0xff]
        %v4096 = vld [vmem:[%s4088 + $0x38] sm:$0xff]
        %s4097 = scalar_lea.vmem %s3, 48
        %v4098 = vld [vmem:[%s4097] sm:$0xf]
        %v4099 = vld [vmem:[%s4097 + $0x4] sm:$0xf]
        %v4100 = vld [vmem:[%s4097 + $0x8] sm:$0x1]
        %v4104 = vunpack.c.l.b16 %v4098
        %v4105 = vunpack.c.l.b16 %v4099
        %v4106 = vunpack.c.l.b16 %v4100
        %v4107 = vpack.c.b16 %v4105, %v4104
        %v4108 = vpack.c.b16 %v4106, %v4106
        %v4111 = vsel %vm2213, %v4089, 0
        %v4114 = vsel %vm2213, %v4090, 0
        %v4117 = vsel %vm2213, %v4091, 0
        %v4120 = vsel %vm2213, %v4092, 0
        %v4123 = vsel %vm2213, %v4093, 0
        %v4126 = vsel %vm2213, %v4094, 0
        %v4129 = vsel %vm2213, %v4095, 0
        %v4132 = vsel %vm2213, %v4096, 0
        %v4135 = vsel %vm3518, %v4108, 0
        %4137 = vmatprep.subr.bf16.mxu0 0
        %4138 = vmatpush1.bf16.msra.mxu0 %v4107
        %4139 = vmatprep.subr.bf16.mxu0 0
        %4140 = vmatpush1.bf16.msra.mxu0 %v4135
        %4141 = vmatprep.subr.bf16.mxu0 0
        %4142 = vmatpush1.bf16.msra.mxu0 0
        %4143 = vmatprep.subr.bf16.mxu0 0
        %4144 = vmatpush1.bf16.msra.mxu0 0
        %4145 = vmatprep.subr.bf16.mxu0 0
        %4146 = vmatpush1.bf16.msra.mxu0 0
        %4147 = vmatprep.subr.bf16.mxu0 0
        %4148 = vmatpush1.bf16.msra.mxu0 0
        %4149 = vmatprep.subr.bf16.mxu0 0
        %4150 = vmatpush1.bf16.msra.mxu0 0
        %4151 = vmatprep.subr.bf16.mxu0 0
        %4152 = vmatpush1.bf16.msra.mxu0 0
        %4153 = vmatprep.subr.bf16.mxu0 0
        %4154 = vmatpush1.bf16.msra.mxu0 0
        %4155 = vmatprep.subr.bf16.mxu0 0
        %4156 = vmatpush1.bf16.msra.mxu0 0
        %4157 = vmatprep.subr.bf16.mxu0 0
        %4158 = vmatpush1.bf16.msra.mxu0 0
        %4159 = vmatprep.subr.bf16.mxu0 0
        %4160 = vmatpush1.bf16.msra.mxu0 0
        %4161 = vmatprep.subr.bf16.mxu0 0
        %4162 = vmatpush1.bf16.msra.mxu0 0
        %4163 = vmatprep.subr.bf16.mxu0 0
        %4164 = vmatpush1.bf16.msra.mxu0 0
        %4165 = vmatprep.subr.bf16.mxu0 0
        %4166 = vmatpush1.bf16.msra.mxu0 0
        %4167 = vmatprep.subr.bf16.mxu0 0
        %4168 = vmatpush1.bf16.msra.mxu0 0
        %4169 = vmatprep.mubr.bf16.mxu0 0
        %4170 = vmatmul.mubr.bf16.gmra.mrb[0].mxu0 %v4111
        %v4171 = vpop.f32.mrb[0].mxu0
        %v4172 = vadd.f32 0.0, %v4171
        %v4173 = vpop.f32.mrb[0].mxu0
        %v4174 = vpop.f32.mrb[0].mxu0
        %v4175 = vadd.f32 0.0, %v4174
        %v4176 = vpop.f32.mrb[0].mxu0
        %4177 = vmatprep.mubr.bf16.mxu0 0
        %4178 = vmatmul.mubr.bf16.gmra.mrb[0].mxu0 %v4114
        %v4179 = vpop.f32.mrb[0].mxu0
        %v4180 = vadd.f32 0.0, %v4179
        %v4181 = vpop.f32.mrb[0].mxu0
        %v4182 = vpop.f32.mrb[0].mxu0
        %v4183 = vadd.f32 0.0, %v4182
        %v4184 = vpop.f32.mrb[0].mxu0
        %4185 = vmatprep.mubr.bf16.mxu0 0
        %4186 = vmatmul.mubr.bf16.gmra.mrb[0].mxu0 %v4117
        %v4187 = vpop.f32.mrb[0].mxu0
        %v4188 = vadd.f32 0.0, %v4187
        %v4189 = vpop.f32.mrb[0].mxu0
        %v4190 = vpop.f32.mrb[0].mxu0
        %v4191 = vadd.f32 0.0, %v4190
        %v4192 = vpop.f32.mrb[0].mxu0
        %4193 = vmatprep.mubr.bf16.mxu0 0
        %4194 = vmatmul.mubr.bf16.gmra.mrb[0].mxu0 %v4120
        %v4195 = vpop.f32.mrb[0].mxu0
        %v4196 = vadd.f32 0.0, %v4195
        %v4197 = vpop.f32.mrb[0].mxu0
        %v4198 = vpop.f32.mrb[0].mxu0
        %v4199 = vadd.f32 0.0, %v4198
        %v4200 = vpop.f32.mrb[0].mxu0
        %4201 = vmatprep.mubr.bf16.mxu0 0
        %4202 = vmatmul.mubr.bf16.gmra.mrb[0].mxu0 %v4123
        %v4203 = vpop.f32.mrb[0].mxu0
        %v4204 = vadd.f32 0.0, %v4203
        %v4205 = vpop.f32.mrb[0].mxu0
        %v4206 = vpop.f32.mrb[0].mxu0
        %v4207 = vadd.f32 0.0, %v4206
        %v4208 = vpop.f32.mrb[0].mxu0
        %4209 = vmatprep.mubr.bf16.mxu0 0
        %4210 = vmatmul.mubr.bf16.gmra.mrb[0].mxu0 %v4126
        %v4211 = vpop.f32.mrb[0].mxu0
        %v4212 = vadd.f32 0.0, %v4211
        %v4213 = vpop.f32.mrb[0].mxu0
        %v4214 = vpop.f32.mrb[0].mxu0
        %v4215 = vadd.f32 0.0, %v4214
        %v4216 = vpop.f32.mrb[0].mxu0
        %4217 = vmatprep.mubr.bf16.mxu0 0
        %4218 = vmatmul.mubr.bf16.gmra.mrb[0].mxu0 %v4129
        %v4219 = vpop.f32.mrb[0].mxu0
        %v4220 = vadd.f32 0.0, %v4219
        %v4221 = vpop.f32.mrb[0].mxu0
        %v4222 = vpop.f32.mrb[0].mxu0
        %v4223 = vadd.f32 0.0, %v4222
        %v4224 = vpop.f32.mrb[0].mxu0
        %4225 = vmatprep.mubr.bf16.mxu0 0
        %4226 = vmatmul.mubr.bf16.gmra.mrb[0].mxu0 %v4132
        %v4227 = vpop.f32.mrb[0].mxu0
        %v4228 = vadd.f32 0.0, %v4227
        %v4229 = vpop.f32.mrb[0].mxu0
        %v4230 = vpop.f32.mrb[0].mxu0
        %v4231 = vadd.f32 0.0, %v4230
        %v4232 = vpop.f32.mrb[0].mxu0
        %4233 = vdwg.mxu0
        %v4234 = vadd.f32 %v4068, %v4172
        %v4235 = vadd.f32 %v4069, %v4175
        %v4236 = vadd.f32 %v4070, %v4180
        %v4237 = vadd.f32 %v4071, %v4183
        %v4238 = vadd.f32 %v4072, %v4188
        %v4239 = vadd.f32 %v4073, %v4191
        %v4240 = vadd.f32 %v4074, %v4196
        %v4241 = vadd.f32 %v4075, %v4199
        %v4242 = vadd.f32 %v4076, %v4204
        %v4243 = vadd.f32 %v4077, %v4207
        %v4244 = vadd.f32 %v4078, %v4212
        %v4245 = vadd.f32 %v4079, %v4215
        %v4246 = vadd.f32 %v4080, %v4220
        %v4247 = vadd.f32 %v4081, %v4223
        %v4248 = vadd.f32 %v4082, %v4228
        %v4249 = vadd.f32 %v4083, %v4231
        %s4250 = sadd.s32 %s3452, 960
        %s4251 = sshra.s32 %s4250, 4
        %s4252 = sand.u32 %s4250, 15
        %s4253 = smul.addr %s4251, 8
        %s4254 = scalar_lea.vmem [#allocation2], %s4253
        %v4255 = vld [vmem:[%s4254] sm:$0xff]
        %v4256 = vld [vmem:[%s4254 + $0x8] sm:$0xff]
        %v4257 = vld [vmem:[%s4254 + $0x10] sm:$0xff]
        %v4258 = vld [vmem:[%s4254 + $0x18] sm:$0xff]
        %v4259 = vld [vmem:[%s4254 + $0x20] sm:$0xff]
        %v4260 = vld [vmem:[%s4254 + $0x28] sm:$0xff]
        %v4261 = vld [vmem:[%s4254 + $0x30] sm:$0xff]
        %v4262 = vld [vmem:[%s4254 + $0x38] sm:$0xff]
        %s4263 = scalar_lea.vmem %s3, 60
        %v4264 = vld [vmem:[%s4263] sm:$0xf]
        %v4265 = vld [vmem:[%s4263 + $0x4] sm:$0xf]
        %v4266 = vld [vmem:[%s4263 + $0x8] sm:$0x1]
        %v4270 = vunpack.c.l.b16 %v4264
        %v4271 = vunpack.c.l.b16 %v4265
        %v4272 = vunpack.c.l.b16 %v4266
        %v4273 = vpack.c.b16 %v4271, %v4270
        %v4274 = vpack.c.b16 %v4272, %v4272
        %v4277 = vsel %vm2213, %v4255, 0
        %v4280 = vsel %vm2213, %v4256, 0
        %v4283 = vsel %vm2213, %v4257, 0
        %v4286 = vsel %vm2213, %v4258, 0
        %v4289 = vsel %vm2213, %v4259, 0
        %v4292 = vsel %vm2213, %v4260, 0
        %v4295 = vsel %vm2213, %v4261, 0
        %v4298 = vsel %vm2213, %v4262, 0
        %v4301 = vsel %vm3518, %v4274, 0
        %4303 = vmatprep.subr.bf16.mxu0 0
        %4304 = vmatpush1.bf16.msra.mxu0 %v4273
        %4305 = vmatprep.subr.bf16.mxu0 0
        %4306 = vmatpush1.bf16.msra.mxu0 %v4301
        %4307 = vmatprep.subr.bf16.mxu0 0
        %4308 = vmatpush1.bf16.msra.mxu0 0
        %4309 = vmatprep.subr.bf16.mxu0 0
        %4310 = vmatpush1.bf16.msra.mxu0 0
        %4311 = vmatprep.subr.bf16.mxu0 0
        %4312 = vmatpush1.bf16.msra.mxu0 0
        %4313 = vmatprep.subr.bf16.mxu0 0
        %4314 = vmatpush1.bf16.msra.mxu0 0
        %4315 = vmatprep.subr.bf16.mxu0 0
        %4316 = vmatpush1.bf16.msra.mxu0 0
        %4317 = vmatprep.subr.bf16.mxu0 0
        %4318 = vmatpush1.bf16.msra.mxu0 0
        %4319 = vmatprep.subr.bf16.mxu0 0
        %4320 = vmatpush1.bf16.msra.mxu0 0
        %4321 = vmatprep.subr.bf16.mxu0 0
        %4322 = vmatpush1.bf16.msra.mxu0 0
        %4323 = vmatprep.subr.bf16.mxu0 0
        %4324 = vmatpush1.bf16.msra.mxu0 0
        %4325 = vmatprep.subr.bf16.mxu0 0
        %4326 = vmatpush1.bf16.msra.mxu0 0
        %4327 = vmatprep.subr.bf16.mxu0 0
        %4328 = vmatpush1.bf16.msra.mxu0 0
        %4329 = vmatprep.subr.bf16.mxu0 0
        %4330 = vmatpush1.bf16.msra.mxu0 0
        %4331 = vmatprep.subr.bf16.mxu0 0
        %4332 = vmatpush1.bf16.msra.mxu0 0
        %4333 = vmatprep.subr.bf16.mxu0 0
        %4334 = vmatpush1.bf16.msra.mxu0 0
        %4335 = vmatprep.mubr.bf16.mxu0 0
        %4336 = vmatmul.mubr.bf16.gmra.mrb[0].mxu0 %v4277
        %v4337 = vpop.f32.mrb[0].mxu0
        %v4338 = vadd.f32 0.0, %v4337
        %v4339 = vpop.f32.mrb[0].mxu0
        %v4340 = vpop.f32.mrb[0].mxu0
        %v4341 = vadd.f32 0.0, %v4340
        %v4342 = vpop.f32.mrb[0].mxu0
        %4343 = vmatprep.mubr.bf16.mxu0 0
        %4344 = vmatmul.mubr.bf16.gmra.mrb[0].mxu0 %v4280
        %v4345 = vpop.f32.mrb[0].mxu0
        %v4346 = vadd.f32 0.0, %v4345
        %v4347 = vpop.f32.mrb[0].mxu0
        %v4348 = vpop.f32.mrb[0].mxu0
        %v4349 = vadd.f32 0.0, %v4348
        %v4350 = vpop.f32.mrb[0].mxu0
        %4351 = vmatprep.mubr.bf16.mxu0 0
        %4352 = vmatmul.mubr.bf16.gmra.mrb[0].mxu0 %v4283
        %v4353 = vpop.f32.mrb[0].mxu0
        %v4354 = vadd.f32 0.0, %v4353
        %v4355 = vpop.f32.mrb[0].mxu0
        %v4356 = vpop.f32.mrb[0].mxu0
        %v4357 = vadd.f32 0.0, %v4356
        %v4358 = vpop.f32.mrb[0].mxu0
        %4359 = vmatprep.mubr.bf16.mxu0 0
        %4360 = vmatmul.mubr.bf16.gmra.mrb[0].mxu0 %v4286
        %v4361 = vpop.f32.mrb[0].mxu0
        %v4362 = vadd.f32 0.0, %v4361
        %v4363 = vpop.f32.mrb[0].mxu0
        %v4364 = vpop.f32.mrb[0].mxu0
        %v4365 = vadd.f32 0.0, %v4364
        %v4366 = vpop.f32.mrb[0].mxu0
        %4367 = vmatprep.mubr.bf16.mxu0 0
        %4368 = vmatmul.mubr.bf16.gmra.mrb[0].mxu0 %v4289
        %v4369 = vpop.f32.mrb[0].mxu0
        %v4370 = vadd.f32 0.0, %v4369
        %v4371 = vpop.f32.mrb[0].mxu0
        %v4372 = vpop.f32.mrb[0].mxu0
        %v4373 = vadd.f32 0.0, %v4372
        %v4374 = vpop.f32.mrb[0].mxu0
        %4375 = vmatprep.mubr.bf16.mxu0 0
        %4376 = vmatmul.mubr.bf16.gmra.mrb[0].mxu0 %v4292
        %v4377 = vpop.f32.mrb[0].mxu0
        %v4378 = vadd.f32 0.0, %v4377
        %v4379 = vpop.f32.mrb[0].mxu0
        %v4380 = vpop.f32.mrb[0].mxu0
        %v4381 = vadd.f32 0.0, %v4380
        %v4382 = vpop.f32.mrb[0].mxu0
        %4383 = vmatprep.mubr.bf16.mxu0 0
        %4384 = vmatmul.mubr.bf16.gmra.mrb[0].mxu0 %v4295
        %v4385 = vpop.f32.mrb[0].mxu0
        %v4386 = vadd.f32 0.0, %v4385
        %v4387 = vpop.f32.mrb[0].mxu0
        %v4388 = vpop.f32.mrb[0].mxu0
        %v4389 = vadd.f32 0.0, %v4388
        %v4390 = vpop.f32.mrb[0].mxu0
        %4391 = vmatprep.mubr.bf16.mxu0 0
        %4392 = vmatmul.mubr.bf16.gmra.mrb[0].mxu0 %v4298
        %v4393 = vpop.f32.mrb[0].mxu0
        %v4394 = vadd.f32 0.0, %v4393
        %v4395 = vpop.f32.mrb[0].mxu0
        %v4396 = vpop.f32.mrb[0].mxu0
        %v4397 = vadd.f32 0.0, %v4396
        %v4398 = vpop.f32.mrb[0].mxu0
        %4399 = vdwg.mxu0
        %v4400 = vadd.f32 %v4234, %v4338
        %v4401 = vadd.f32 %v4235, %v4341
        %v4402 = vadd.f32 %v4236, %v4346
        %v4403 = vadd.f32 %v4237, %v4349
        %v4404 = vadd.f32 %v4238, %v4354
        %v4405 = vadd.f32 %v4239, %v4357
        %v4406 = vadd.f32 %v4240, %v4362
        %v4407 = vadd.f32 %v4241, %v4365
        %v4408 = vadd.f32 %v4242, %v4370
        %v4409 = vadd.f32 %v4243, %v4373
        %v4410 = vadd.f32 %v4244, %v4378
        %v4411 = vadd.f32 %v4245, %v4381
        %v4412 = vadd.f32 %v4246, %v4386
        %v4413 = vadd.f32 %v4247, %v4389
        %v4414 = vadd.f32 %v4248, %v4394
        %v4415 = vadd.f32 %v4249, %v4397
        %s4416 = sadd.s32 %s3452, 1536
        %s4417 = sshra.s32 %s4416, 4
        %s4418 = sand.u32 %s4416, 15
        %s4419 = smul.addr %s4417, 8
        %s4420 = scalar_lea.vmem [#allocation2], %s4419
        %v4421 = vld [vmem:[%s4420] sm:$0xff]
        %v4422 = vld [vmem:[%s4420 + $0x8] sm:$0xff]
        %v4423 = vld [vmem:[%s4420 + $0x10] sm:$0xff]
        %v4424 = vld [vmem:[%s4420 + $0x18] sm:$0xff]
        %v4425 = vld [vmem:[%s4420 + $0x20] sm:$0xff]
        %v4426 = vld [vmem:[%s4420 + $0x28] sm:$0xff]
        %v4427 = vld [vmem:[%s4420 + $0x30] sm:$0xff]
        %v4428 = vld [vmem:[%s4420 + $0x38] sm:$0xff]
        %s4429 = scalar_lea.vmem %s3, 72
        %v4430 = vld [vmem:[%s4429] sm:$0xf]
        %v4431 = vld [vmem:[%s4429 + $0x4] sm:$0xf]
        %v4432 = vld [vmem:[%s4429 + $0x8] sm:$0x1]
        %v4436 = vunpack.c.l.b16 %v4430
        %v4437 = vunpack.c.l.b16 %v4431
        %v4438 = vunpack.c.l.b16 %v4432
        %v4439 = vpack.c.b16 %v4437, %v4436
        %v4440 = vpack.c.b16 %v4438, %v4438
        %v4443 = vsel %vm2213, %v4421, 0
        %v4446 = vsel %vm2213, %v4422, 0
        %v4449 = vsel %vm2213, %v4423, 0
        %v4452 = vsel %vm2213, %v4424, 0
        %v4455 = vsel %vm2213, %v4425, 0
        %v4458 = vsel %vm2213, %v4426, 0
        %v4461 = vsel %vm2213, %v4427, 0
        %v4464 = vsel %vm2213, %v4428, 0
        %v4467 = vsel %vm3518, %v4440, 0
        %4469 = vmatprep.subr.bf16.mxu0 0
        %4470 = vmatpush1.bf16.msra.mxu0 %v4439
        %4471 = vmatprep.subr.bf16.mxu0 0
        %4472 = vmatpush1.bf16.msra.mxu0 %v4467
        %4473 = vmatprep.subr.bf16.mxu0 0
        %4474 = vmatpush1.bf16.msra.mxu0 0
        %4475 = vmatprep.subr.bf16.mxu0 0
        %4476 = vmatpush1.bf16.msra.mxu0 0
        %4477 = vmatprep.subr.bf16.mxu0 0
        %4478 = vmatpush1.bf16.msra.mxu0 0
        %4479 = vmatprep.subr.bf16.mxu0 0
        %4480 = vmatpush1.bf16.msra.mxu0 0
        %4481 = vmatprep.subr.bf16.mxu0 0
        %4482 = vmatpush1.bf16.msra.mxu0 0
        %4483 = vmatprep.subr.bf16.mxu0 0
        %4484 = vmatpush1.bf16.msra.mxu0 0
        %4485 = vmatprep.subr.bf16.mxu0 0
        %4486 = vmatpush1.bf16.msra.mxu0 0
        %4487 = vmatprep.subr.bf16.mxu0 0
        %4488 = vmatpush1.bf16.msra.mxu0 0
        %4489 = vmatprep.subr.bf16.mxu0 0
        %4490 = vmatpush1.bf16.msra.mxu0 0
        %4491 = vmatprep.subr.bf16.mxu0 0
        %4492 = vmatpush1.bf16.msra.mxu0 0
        %4493 = vmatprep.subr.bf16.mxu0 0
        %4494 = vmatpush1.bf16.msra.mxu0 0
        %4495 = vmatprep.subr.bf16.mxu0 0
        %4496 = vmatpush1.bf16.msra.mxu0 0
        %4497 = vmatprep.subr.bf16.mxu0 0
        %4498 = vmatpush1.bf16.msra.mxu0 0
        %4499 = vmatprep.subr.bf16.mxu0 0
        %4500 = vmatpush1.bf16.msra.mxu0 0
        %4501 = vmatprep.mubr.bf16.mxu0 0
        %4502 = vmatmul.mubr.bf16.gmra.mrb[0].mxu0 %v4443
        %v4503 = vpop.f32.mrb[0].mxu0
        %v4504 = vadd.f32 0.0, %v4503
        %v4505 = vpop.f32.mrb[0].mxu0
        %v4506 = vpop.f32.mrb[0].mxu0
        %v4507 = vadd.f32 0.0, %v4506
        %v4508 = vpop.f32.mrb[0].mxu0
        %4509 = vmatprep.mubr.bf16.mxu0 0
        %4510 = vmatmul.mubr.bf16.gmra.mrb[0].mxu0 %v4446
        %v4511 = vpop.f32.mrb[0].mxu0
        %v4512 = vadd.f32 0.0, %v4511
        %v4513 = vpop.f32.mrb[0].mxu0
        %v4514 = vpop.f32.mrb[0].mxu0
        %v4515 = vadd.f32 0.0, %v4514
        %v4516 = vpop.f32.mrb[0].mxu0
        %4517 = vmatprep.mubr.bf16.mxu0 0
        %4518 = vmatmul.mubr.bf16.gmra.mrb[0].mxu0 %v4449
        %v4519 = vpop.f32.mrb[0].mxu0
        %v4520 = vadd.f32 0.0, %v4519
        %v4521 = vpop.f32.mrb[0].mxu0
        %v4522 = vpop.f32.mrb[0].mxu0
        %v4523 = vadd.f32 0.0, %v4522
        %v4524 = vpop.f32.mrb[0].mxu0
        %4525 = vmatprep.mubr.bf16.mxu0 0
        %4526 = vmatmul.mubr.bf16.gmra.mrb[0].mxu0 %v4452
        %v4527 = vpop.f32.mrb[0].mxu0
        %v4528 = vadd.f32 0.0, %v4527
        %v4529 = vpop.f32.mrb[0].mxu0
        %v4530 = vpop.f32.mrb[0].mxu0
        %v4531 = vadd.f32 0.0, %v4530
        %v4532 = vpop.f32.mrb[0].mxu0
        %4533 = vmatprep.mubr.bf16.mxu0 0
        %4534 = vmatmul.mubr.bf16.gmra.mrb[0].mxu0 %v4455
        %v4535 = vpop.f32.mrb[0].mxu0
        %v4536 = vadd.f32 0.0, %v4535
        %v4537 = vpop.f32.mrb[0].mxu0
        %v4538 = vpop.f32.mrb[0].mxu0
        %v4539 = vadd.f32 0.0, %v4538
        %v4540 = vpop.f32.mrb[0].mxu0
        %4541 = vmatprep.mubr.bf16.mxu0 0
        %4542 = vmatmul.mubr.bf16.gmra.mrb[0].mxu0 %v4458
        %v4543 = vpop.f32.mrb[0].mxu0
        %v4544 = vadd.f32 0.0, %v4543
        %v4545 = vpop.f32.mrb[0].mxu0
        %v4546 = vpop.f32.mrb[0].mxu0
        %v4547 = vadd.f32 0.0, %v4546
        %v4548 = vpop.f32.mrb[0].mxu0
        %4549 = vmatprep.mubr.bf16.mxu0 0
        %4550 = vmatmul.mubr.bf16.gmra.mrb[0].mxu0 %v4461
        %v4551 = vpop.f32.mrb[0].mxu0
        %v4552 = vadd.f32 0.0, %v4551
        %v4553 = vpop.f32.mrb[0].mxu0
        %v4554 = vpop.f32.mrb[0].mxu0
        %v4555 = vadd.f32 0.0, %v4554
        %v4556 = vpop.f32.mrb[0].mxu0
        %4557 = vmatprep.mubr.bf16.mxu0 0
        %4558 = vmatmul.mubr.bf16.gmra.mrb[0].mxu0 %v4464
        %v4559 = vpop.f32.mrb[0].mxu0
        %v4560 = vadd.f32 0.0, %v4559
        %v4561 = vpop.f32.mrb[0].mxu0
        %v4562 = vpop.f32.mrb[0].mxu0
        %v4563 = vadd.f32 0.0, %v4562
        %v4564 = vpop.f32.mrb[0].mxu0
        %4565 = vdwg.mxu0
        %v4566 = vadd.f32 %v4400, %v4504
        %v4567 = vadd.f32 %v4401, %v4507
        %v4568 = vadd.f32 %v4402, %v4512
        %v4569 = vadd.f32 %v4403, %v4515
        %v4570 = vadd.f32 %v4404, %v4520
        %v4571 = vadd.f32 %v4405, %v4523
        %v4572 = vadd.f32 %v4406, %v4528
        %v4573 = vadd.f32 %v4407, %v4531
        %v4574 = vadd.f32 %v4408, %v4536
        %v4575 = vadd.f32 %v4409, %v4539
        %v4576 = vadd.f32 %v4410, %v4544
        %v4577 = vadd.f32 %v4411, %v4547
        %v4578 = vadd.f32 %v4412, %v4552
        %v4579 = vadd.f32 %v4413, %v4555
        %v4580 = vadd.f32 %v4414, %v4560
        %v4581 = vadd.f32 %v4415, %v4563
        %s4582 = sadd.s32 %s3452, 1632
        %s4583 = sshra.s32 %s4582, 4
        %s4584 = sand.u32 %s4582, 15
        %s4585 = smul.addr %s4583, 8
        %s4586 = scalar_lea.vmem [#allocation2], %s4585
        %v4587 = vld [vmem:[%s4586] sm:$0xff]
        %v4588 = vld [vmem:[%s4586 + $0x8] sm:$0xff]
        %v4589 = vld [vmem:[%s4586 + $0x10] sm:$0xff]
        %v4590 = vld [vmem:[%s4586 + $0x18] sm:$0xff]
        %v4591 = vld [vmem:[%s4586 + $0x20] sm:$0xff]
        %v4592 = vld [vmem:[%s4586 + $0x28] sm:$0xff]
        %v4593 = vld [vmem:[%s4586 + $0x30] sm:$0xff]
        %v4594 = vld [vmem:[%s4586 + $0x38] sm:$0xff]
        %s4595 = scalar_lea.vmem %s3, 84
        %v4596 = vld [vmem:[%s4595] sm:$0xf]
        %v4597 = vld [vmem:[%s4595 + $0x4] sm:$0xf]
        %v4598 = vld [vmem:[%s4595 + $0x8] sm:$0x1]
        %v4602 = vunpack.c.l.b16 %v4596
        %v4603 = vunpack.c.l.b16 %v4597
        %v4604 = vunpack.c.l.b16 %v4598
        %v4605 = vpack.c.b16 %v4603, %v4602
        %v4606 = vpack.c.b16 %v4604, %v4604
        %v4609 = vsel %vm2213, %v4587, 0
        %v4612 = vsel %vm2213, %v4588, 0
        %v4615 = vsel %vm2213, %v4589, 0
        %v4618 = vsel %vm2213, %v4590, 0
        %v4621 = vsel %vm2213, %v4591, 0
        %v4624 = vsel %vm2213, %v4592, 0
        %v4627 = vsel %vm2213, %v4593, 0
        %v4630 = vsel %vm2213, %v4594, 0
        %v4633 = vsel %vm3518, %v4606, 0
        %4635 = vmatprep.subr.bf16.mxu0 0
        %4636 = vmatpush1.bf16.msra.mxu0 %v4605
        %4637 = vmatprep.subr.bf16.mxu0 0
        %4638 = vmatpush1.bf16.msra.mxu0 %v4633
        %4639 = vmatprep.subr.bf16.mxu0 0
        %4640 = vmatpush1.bf16.msra.mxu0 0
        %4641 = vmatprep.subr.bf16.mxu0 0
        %4642 = vmatpush1.bf16.msra.mxu0 0
        %4643 = vmatprep.subr.bf16.mxu0 0
        %4644 = vmatpush1.bf16.msra.mxu0 0
        %4645 = vmatprep.subr.bf16.mxu0 0
        %4646 = vmatpush1.bf16.msra.mxu0 0
        %4647 = vmatprep.subr.bf16.mxu0 0
        %4648 = vmatpush1.bf16.msra.mxu0 0
        %4649 = vmatprep.subr.bf16.mxu0 0
        %4650 = vmatpush1.bf16.msra.mxu0 0
        %4651 = vmatprep.subr.bf16.mxu0 0
        %4652 = vmatpush1.bf16.msra.mxu0 0
        %4653 = vmatprep.subr.bf16.mxu0 0
        %4654 = vmatpush1.bf16.msra.mxu0 0
        %4655 = vmatprep.subr.bf16.mxu0 0
        %4656 = vmatpush1.bf16.msra.mxu0 0
        %4657 = vmatprep.subr.bf16.mxu0 0
        %4658 = vmatpush1.bf16.msra.mxu0 0
        %4659 = vmatprep.subr.bf16.mxu0 0
        %4660 = vmatpush1.bf16.msra.mxu0 0
        %4661 = vmatprep.subr.bf16.mxu0 0
        %4662 = vmatpush1.bf16.msra.mxu0 0
        %4663 = vmatprep.subr.bf16.mxu0 0
        %4664 = vmatpush1.bf16.msra.mxu0 0
        %4665 = vmatprep.subr.bf16.mxu0 0
        %4666 = vmatpush1.bf16.msra.mxu0 0
        %4667 = vmatprep.mubr.bf16.mxu0 0
        %4668 = vmatmul.mubr.bf16.gmra.mrb[0].mxu0 %v4609
        %v4669 = vpop.f32.mrb[0].mxu0
        %v4670 = vadd.f32 0.0, %v4669
        %v4671 = vpop.f32.mrb[0].mxu0
        %v4672 = vpop.f32.mrb[0].mxu0
        %v4673 = vadd.f32 0.0, %v4672
        %v4674 = vpop.f32.mrb[0].mxu0
        %4675 = vmatprep.mubr.bf16.mxu0 0
        %4676 = vmatmul.mubr.bf16.gmra.mrb[0].mxu0 %v4612
        %v4677 = vpop.f32.mrb[0].mxu0
        %v4678 = vadd.f32 0.0, %v4677
        %v4679 = vpop.f32.mrb[0].mxu0
        %v4680 = vpop.f32.mrb[0].mxu0
        %v4681 = vadd.f32 0.0, %v4680
        %v4682 = vpop.f32.mrb[0].mxu0
        %4683 = vmatprep.mubr.bf16.mxu0 0
        %4684 = vmatmul.mubr.bf16.gmra.mrb[0].mxu0 %v4615
        %v4685 = vpop.f32.mrb[0].mxu0
        %v4686 = vadd.f32 0.0, %v4685
        %v4687 = vpop.f32.mrb[0].mxu0
        %v4688 = vpop.f32.mrb[0].mxu0
        %v4689 = vadd.f32 0.0, %v4688
        %v4690 = vpop.f32.mrb[0].mxu0
        %4691 = vmatprep.mubr.bf16.mxu0 0
        %4692 = vmatmul.mubr.bf16.gmra.mrb[0].mxu0 %v4618
        %v4693 = vpop.f32.mrb[0].mxu0
        %v4694 = vadd.f32 0.0, %v4693
        %v4695 = vpop.f32.mrb[0].mxu0
        %v4696 = vpop.f32.mrb[0].mxu0
        %v4697 = vadd.f32 0.0, %v4696
        %v4698 = vpop.f32.mrb[0].mxu0
        %4699 = vmatprep.mubr.bf16.mxu0 0
        %4700 = vmatmul.mubr.bf16.gmra.mrb[0].mxu0 %v4621
        %v4701 = vpop.f32.mrb[0].mxu0
        %v4702 = vadd.f32 0.0, %v4701
        %v4703 = vpop.f32.mrb[0].mxu0
        %v4704 = vpop.f32.mrb[0].mxu0
        %v4705 = vadd.f32 0.0, %v4704
        %v4706 = vpop.f32.mrb[0].mxu0
        %4707 = vmatprep.mubr.bf16.mxu0 0
        %4708 = vmatmul.mubr.bf16.gmra.mrb[0].mxu0 %v4624
        %v4709 = vpop.f32.mrb[0].mxu0
        %v4710 = vadd.f32 0.0, %v4709
        %v4711 = vpop.f32.mrb[0].mxu0
        %v4712 = vpop.f32.mrb[0].mxu0
        %v4713 = vadd.f32 0.0, %v4712
        %v4714 = vpop.f32.mrb[0].mxu0
        %4715 = vmatprep.mubr.bf16.mxu0 0
        %4716 = vmatmul.mubr.bf16.gmra.mrb[0].mxu0 %v4627
        %v4717 = vpop.f32.mrb[0].mxu0
        %v4718 = vadd.f32 0.0, %v4717
        %v4719 = vpop.f32.mrb[0].mxu0
        %v4720 = vpop.f32.mrb[0].mxu0
        %v4721 = vadd.f32 0.0, %v4720
        %v4722 = vpop.f32.mrb[0].mxu0
        %4723 = vmatprep.mubr.bf16.mxu0 0
        %4724 = vmatmul.mubr.bf16.gmra.mrb[0].mxu0 %v4630
        %v4725 = vpop.f32.mrb[0].mxu0
        %v4726 = vadd.f32 0.0, %v4725
        %v4727 = vpop.f32.mrb[0].mxu0
        %v4728 = vpop.f32.mrb[0].mxu0
        %v4729 = vadd.f32 0.0, %v4728
        %v4730 = vpop.f32.mrb[0].mxu0
        %4731 = vdwg.mxu0
        %v4732 = vadd.f32 %v4566, %v4670
        %v4733 = vadd.f32 %v4567, %v4673
        %v4734 = vadd.f32 %v4568, %v4678
        %v4735 = vadd.f32 %v4569, %v4681
        %v4736 = vadd.f32 %v4570, %v4686
        %v4737 = vadd.f32 %v4571, %v4689
        %v4738 = vadd.f32 %v4572, %v4694
        %v4739 = vadd.f32 %v4573, %v4697
        %v4740 = vadd.f32 %v4574, %v4702
        %v4741 = vadd.f32 %v4575, %v4705
        %v4742 = vadd.f32 %v4576, %v4710
        %v4743 = vadd.f32 %v4577, %v4713
        %v4744 = vadd.f32 %v4578, %v4718
        %v4745 = vadd.f32 %v4579, %v4721
        %v4746 = vadd.f32 %v4580, %v4726
        %v4747 = vadd.f32 %v4581, %v4729
        %s4748 = sadd.s32 %s3452, 1728
        %s4749 = sshra.s32 %s4748, 4
        %s4750 = sand.u32 %s4748, 15
        %s4751 = smul.addr %s4749, 8
        %s4752 = scalar_lea.vmem [#allocation2], %s4751
        %v4753 = vld [vmem:[%s4752] sm:$0xff]
        %v4754 = vld [vmem:[%s4752 + $0x8] sm:$0xff]
        %v4755 = vld [vmem:[%s4752 + $0x10] sm:$0xff]
        %v4756 = vld [vmem:[%s4752 + $0x18] sm:$0xff]
        %v4757 = vld [vmem:[%s4752 + $0x20] sm:$0xff]
        %v4758 = vld [vmem:[%s4752 + $0x28] sm:$0xff]
        %v4759 = vld [vmem:[%s4752 + $0x30] sm:$0xff]
        %v4760 = vld [vmem:[%s4752 + $0x38] sm:$0xff]
        %s4761 = scalar_lea.vmem %s3, 96
        %v4762 = vld [vmem:[%s4761] sm:$0xf]
        %v4763 = vld [vmem:[%s4761 + $0x4] sm:$0xf]
        %v4764 = vld [vmem:[%s4761 + $0x8] sm:$0x1]
        %v4768 = vunpack.c.l.b16 %v4762
        %v4769 = vunpack.c.l.b16 %v4763
        %v4770 = vunpack.c.l.b16 %v4764
        %v4771 = vpack.c.b16 %v4769, %v4768
        %v4772 = vpack.c.b16 %v4770, %v4770
        %v4775 = vsel %vm2213, %v4753, 0
        %v4778 = vsel %vm2213, %v4754, 0
        %v4781 = vsel %vm2213, %v4755, 0
        %v4784 = vsel %vm2213, %v4756, 0
        %v4787 = vsel %vm2213, %v4757, 0
        %v4790 = vsel %vm2213, %v4758, 0
        %v4793 = vsel %vm2213, %v4759, 0
        %v4796 = vsel %vm2213, %v4760, 0
        %v4799 = vsel %vm3518, %v4772, 0
        %4801 = vmatprep.subr.bf16.mxu0 0
        %4802 = vmatpush1.bf16.msra.mxu0 %v4771
        %4803 = vmatprep.subr.bf16.mxu0 0
        %4804 = vmatpush1.bf16.msra.mxu0 %v4799
        %4805 = vmatprep.subr.bf16.mxu0 0
        %4806 = vmatpush1.bf16.msra.mxu0 0
        %4807 = vmatprep.subr.bf16.mxu0 0
        %4808 = vmatpush1.bf16.msra.mxu0 0
        %4809 = vmatprep.subr.bf16.mxu0 0
        %4810 = vmatpush1.bf16.msra.mxu0 0
        %4811 = vmatprep.subr.bf16.mxu0 0
        %4812 = vmatpush1.bf16.msra.mxu0 0
        %4813 = vmatprep.subr.bf16.mxu0 0
        %4814 = vmatpush1.bf16.msra.mxu0 0
        %4815 = vmatprep.subr.bf16.mxu0 0
        %4816 = vmatpush1.bf16.msra.mxu0 0
        %4817 = vmatprep.subr.bf16.mxu0 0
        %4818 = vmatpush1.bf16.msra.mxu0 0
        %4819 = vmatprep.subr.bf16.mxu0 0
        %4820 = vmatpush1.bf16.msra.mxu0 0
        %4821 = vmatprep.subr.bf16.mxu0 0
        %4822 = vmatpush1.bf16.msra.mxu0 0
        %4823 = vmatprep.subr.bf16.mxu0 0
        %4824 = vmatpush1.bf16.msra.mxu0 0
        %4825 = vmatprep.subr.bf16.mxu0 0
        %4826 = vmatpush1.bf16.msra.mxu0 0
        %4827 = vmatprep.subr.bf16.mxu0 0
        %4828 = vmatpush1.bf16.msra.mxu0 0
        %4829 = vmatprep.subr.bf16.mxu0 0
        %4830 = vmatpush1.bf16.msra.mxu0 0
        %4831 = vmatprep.subr.bf16.mxu0 0
        %4832 = vmatpush1.bf16.msra.mxu0 0
        %4833 = vmatprep.mubr.bf16.mxu0 0
        %4834 = vmatmul.mubr.bf16.gmra.mrb[0].mxu0 %v4775
        %v4835 = vpop.f32.mrb[0].mxu0
        %v4836 = vadd.f32 0.0, %v4835
        %v4837 = vpop.f32.mrb[0].mxu0
        %v4838 = vpop.f32.mrb[0].mxu0
        %v4839 = vadd.f32 0.0, %v4838
        %v4840 = vpop.f32.mrb[0].mxu0
        %4841 = vmatprep.mubr.bf16.mxu0 0
        %4842 = vmatmul.mubr.bf16.gmra.mrb[0].mxu0 %v4778
        %v4843 = vpop.f32.mrb[0].mxu0
        %v4844 = vadd.f32 0.0, %v4843
        %v4845 = vpop.f32.mrb[0].mxu0
        %v4846 = vpop.f32.mrb[0].mxu0
        %v4847 = vadd.f32 0.0, %v4846
        %v4848 = vpop.f32.mrb[0].mxu0
        %4849 = vmatprep.mubr.bf16.mxu0 0
        %4850 = vmatmul.mubr.bf16.gmra.mrb[0].mxu0 %v4781
        %v4851 = vpop.f32.mrb[0].mxu0
        %v4852 = vadd.f32 0.0, %v4851
        %v4853 = vpop.f32.mrb[0].mxu0
        %v4854 = vpop.f32.mrb[0].mxu0
        %v4855 = vadd.f32 0.0, %v4854
        %v4856 = vpop.f32.mrb[0].mxu0
        %4857 = vmatprep.mubr.bf16.mxu0 0
        %4858 = vmatmul.mubr.bf16.gmra.mrb[0].mxu0 %v4784
        %v4859 = vpop.f32.mrb[0].mxu0
        %v4860 = vadd.f32 0.0, %v4859
        %v4861 = vpop.f32.mrb[0].mxu0
        %v4862 = vpop.f32.mrb[0].mxu0
        %v4863 = vadd.f32 0.0, %v4862
        %v4864 = vpop.f32.mrb[0].mxu0
        %4865 = vmatprep.mubr.bf16.mxu0 0
        %4866 = vmatmul.mubr.bf16.gmra.mrb[0].mxu0 %v4787
        %v4867 = vpop.f32.mrb[0].mxu0
        %v4868 = vadd.f32 0.0, %v4867
        %v4869 = vpop.f32.mrb[0].mxu0
        %v4870 = vpop.f32.mrb[0].mxu0
        %v4871 = vadd.f32 0.0, %v4870
        %v4872 = vpop.f32.mrb[0].mxu0
        %4873 = vmatprep.mubr.bf16.mxu0 0
        %4874 = vmatmul.mubr.bf16.gmra.mrb[0].mxu0 %v4790
        %v4875 = vpop.f32.mrb[0].mxu0
        %v4876 = vadd.f32 0.0, %v4875
        %v4877 = vpop.f32.mrb[0].mxu0
        %v4878 = vpop.f32.mrb[0].mxu0
        %v4879 = vadd.f32 0.0, %v4878
        %v4880 = vpop.f32.mrb[0].mxu0
        %4881 = vmatprep.mubr.bf16.mxu0 0
        %4882 = vmatmul.mubr.bf16.gmra.mrb[0].mxu0 %v4793
        %v4883 = vpop.f32.mrb[0].mxu0
        %v4884 = vadd.f32 0.0, %v4883
        %v4885 = vpop.f32.mrb[0].mxu0
        %v4886 = vpop.f32.mrb[0].mxu0
        %v4887 = vadd.f32 0.0, %v4886
        %v4888 = vpop.f32.mrb[0].mxu0
        %4889 = vmatprep.mubr.bf16.mxu0 0
        %4890 = vmatmul.mubr.bf16.gmra.mrb[0].mxu0 %v4796
        %v4891 = vpop.f32.mrb[0].mxu0
        %v4892 = vadd.f32 0.0, %v4891
        %v4893 = vpop.f32.mrb[0].mxu0
        %v4894 = vpop.f32.mrb[0].mxu0
        %v4895 = vadd.f32 0.0, %v4894
        %v4896 = vpop.f32.mrb[0].mxu0
        %4897 = vdwg.mxu0
        %v4898 = vadd.f32 %v4732, %v4836
        %v4899 = vadd.f32 %v4733, %v4839
        %v4900 = vadd.f32 %v4734, %v4844
        %v4901 = vadd.f32 %v4735, %v4847
        %v4902 = vadd.f32 %v4736, %v4852
        %v4903 = vadd.f32 %v4737, %v4855
        %v4904 = vadd.f32 %v4738, %v4860
        %v4905 = vadd.f32 %v4739, %v4863
        %v4906 = vadd.f32 %v4740, %v4868
        %v4907 = vadd.f32 %v4741, %v4871
        %v4908 = vadd.f32 %v4742, %v4876
        %v4909 = vadd.f32 %v4743, %v4879
        %v4910 = vadd.f32 %v4744, %v4884
        %v4911 = vadd.f32 %v4745, %v4887
        %v4912 = vadd.f32 %v4746, %v4892
        %v4913 = vadd.f32 %v4747, %v4895
        %s4914 = scalar_lea.vmem %s404, %s3452
        %vm4915 = vcmask 31744
        %4916 = vst.msk [vmem:[%s4914] sm:$0xff] %vm4915, %v4898
        %4917 = vst.msk [vmem:[%s4914 + $0x8] sm:$0xff] %vm4915, %v4899
        %4918 = vst.msk [vmem:[%s4914 + $0x10] sm:$0xff] %vm4915, %v4900
        %4919 = vst.msk [vmem:[%s4914 + $0x18] sm:$0xff] %vm4915, %v4901
        %4920 = vst.msk [vmem:[%s4914 + $0x20] sm:$0xff] %vm4915, %v4902
        %4921 = vst.msk [vmem:[%s4914 + $0x28] sm:$0xff] %vm4915, %v4903
        %4922 = vst.msk [vmem:[%s4914 + $0x30] sm:$0xff] %vm4915, %v4904
        %4923 = vst.msk [vmem:[%s4914 + $0x38] sm:$0xff] %vm4915, %v4905
        %4924 = vst.msk [vmem:[%s4914 + $0x40] sm:$0xff] %vm4915, %v4906
        %4925 = vst.msk [vmem:[%s4914 + $0x48] sm:$0xff] %vm4915, %v4907
        %4926 = vst.msk [vmem:[%s4914 + $0x50] sm:$0xff] %vm4915, %v4908
        %4927 = vst.msk [vmem:[%s4914 + $0x58] sm:$0xff] %vm4915, %v4909
        %4928 = vst.msk [vmem:[%s4914 + $0x60] sm:$0xff] %vm4915, %v4910
        %4929 = vst.msk [vmem:[%s4914 + $0x68] sm:$0xff] %vm4915, %v4911
        %4930 = vst.msk [vmem:[%s4914 + $0x70] sm:$0xff] %vm4915, %v4912
        %4931 = vst.msk [vmem:[%s4914 + $0x78] sm:$0xff] %vm4915, %v4913
        %s4932 = scalar_lea.vmem %s394, %s3452
        %v4933 = vld [vmem:[%s4932] sm:$0xff]
        %v4934 = vld [vmem:[%s4932 + $0x8] sm:$0xff]
        %v4935 = vld [vmem:[%s4932 + $0x10] sm:$0xff]
        %v4936 = vld [vmem:[%s4932 + $0x18] sm:$0xff]
        %v4937 = vld [vmem:[%s4932 + $0x20] sm:$0xff]
        %v4938 = vld [vmem:[%s4932 + $0x28] sm:$0xff]
        %v4939 = vld [vmem:[%s4932 + $0x30] sm:$0xff]
        %v4940 = vld [vmem:[%s4932 + $0x38] sm:$0xff]
        %v4941 = vld [vmem:[%s4932 + $0x40] sm:$0xff]
        %v4942 = vld [vmem:[%s4932 + $0x48] sm:$0xff]
        %v4943 = vld [vmem:[%s4932 + $0x50] sm:$0xff]
        %v4944 = vld [vmem:[%s4932 + $0x58] sm:$0xff]
        %v4945 = vld [vmem:[%s4932 + $0x60] sm:$0xff]
        %v4946 = vld [vmem:[%s4932 + $0x68] sm:$0xff]
        %v4947 = vld [vmem:[%s4932 + $0x70] sm:$0xff]
        %v4948 = vld [vmem:[%s4932 + $0x78] sm:$0xff]
        %4950 = vset.pattern.permute.xlu0 0
        %4951 = vperm.xlu0 %4950, %v4933
        %v4952 = vpop.permute.xlu0 %4951
        %4955 = vset.pattern.permute.xlu0 0
        %4956 = vperm.xlu0 %4955, %v4934
        %v4957 = vpop.permute.xlu0 %4956
        %4960 = vset.pattern.permute.xlu0 0
        %4961 = vperm.xlu0 %4960, %v4935
        %v4962 = vpop.permute.xlu0 %4961
        %4965 = vset.pattern.permute.xlu0 0
        %4966 = vperm.xlu0 %4965, %v4936
        %v4967 = vpop.permute.xlu0 %4966
        %4970 = vset.pattern.permute.xlu0 0
        %4971 = vperm.xlu0 %4970, %v4937
        %v4972 = vpop.permute.xlu0 %4971
        %4975 = vset.pattern.permute.xlu0 0
        %4976 = vperm.xlu0 %4975, %v4938
        %v4977 = vpop.permute.xlu0 %4976
        %4980 = vset.pattern.permute.xlu0 0
        %4981 = vperm.xlu0 %4980, %v4939
        %v4982 = vpop.permute.xlu0 %4981
        %4985 = vset.pattern.permute.xlu0 0
        %4986 = vperm.xlu0 %4985, %v4940
        %v4987 = vpop.permute.xlu0 %4986
        %4990 = vset.pattern.permute.xlu0 0
        %4991 = vperm.xlu0 %4990, %v4941
        %v4992 = vpop.permute.xlu0 %4991
        %4995 = vset.pattern.permute.xlu0 0
        %4996 = vperm.xlu0 %4995, %v4942
        %v4997 = vpop.permute.xlu0 %4996
        %5000 = vset.pattern.permute.xlu0 0
        %5001 = vperm.xlu0 %5000, %v4943
        %v5002 = vpop.permute.xlu0 %5001
        %5005 = vset.pattern.permute.xlu0 0
        %5006 = vperm.xlu0 %5005, %v4944
        %v5007 = vpop.permute.xlu0 %5006
        %5010 = vset.pattern.permute.xlu0 0
        %5011 = vperm.xlu0 %5010, %v4945
        %v5012 = vpop.permute.xlu0 %5011
        %5015 = vset.pattern.permute.xlu0 0
        %5016 = vperm.xlu0 %5015, %v4946
        %v5017 = vpop.permute.xlu0 %5016
        %5020 = vset.pattern.permute.xlu0 0
        %5021 = vperm.xlu0 %5020, %v4947
        %v5022 = vpop.permute.xlu0 %5021
        %5025 = vset.pattern.permute.xlu0 0
        %5026 = vperm.xlu0 %5025, %v4948
        %v5027 = vpop.permute.xlu0 %5026
        %v5029 = vmul.f32 %v4898, %v4952
        %v5030 = vmul.f32 %v4899, %v4957
        %v5031 = vmul.f32 %v4900, %v4962
        %v5032 = vmul.f32 %v4901, %v4967
        %v5033 = vmul.f32 %v4902, %v4972
        %v5034 = vmul.f32 %v4903, %v4977
        %v5035 = vmul.f32 %v4904, %v4982
        %v5036 = vmul.f32 %v4905, %v4987
        %v5037 = vmul.f32 %v4906, %v4992
        %v5038 = vmul.f32 %v4907, %v4997
        %v5039 = vmul.f32 %v4908, %v5002
        %v5040 = vmul.f32 %v4909, %v5007
        %v5041 = vmul.f32 %v4910, %v5012
        %v5042 = vmul.f32 %v4911, %v5017
        %v5043 = vmul.f32 %v4912, %v5022
        %v5044 = vmul.f32 %v4913, %v5027
        %v5045 = vld [vmem:[%s410] sm:$0x1]
        %v5046 = vadd.f32 %v5029, %v5030
        %v5047 = vadd.f32 %v5046, %v5031
        %v5048 = vadd.f32 %v5047, %v5032
        %v5049 = vadd.f32 %v5048, %v5033
        %v5050 = vadd.f32 %v5049, %v5034
        %v5051 = vadd.f32 %v5050, %v5035
        %v5052 = vadd.f32 %v5051, %v5036
        %v5053 = vadd.f32 %v5052, %v5037
        %v5054 = vadd.f32 %v5053, %v5038
        %v5055 = vadd.f32 %v5054, %v5039
        %v5056 = vadd.f32 %v5055, %v5040
        %v5057 = vadd.f32 %v5056, %v5041
        %v5058 = vadd.f32 %v5057, %v5042
        %v5059 = vadd.f32 %v5058, %v5043
        %v5060 = vadd.f32 %v5059, %v5044
        %v5061 = vrot.slane %v5060, 4
        %v5062 = vadd.f32 %v5060, %v5061
        %v5063 = vrot.slane %v5062, 2
        %v5064 = vadd.f32 %v5062, %v5063
        %v5065 = vrot.slane %v5064, 1
        %v5066 = vadd.f32 %v5064, %v5065
        %v5067 = vadd.f32 %v5045, %v5066
        %5068 = vst [vmem:[%s410] sm:$0x1] %v5067
        %v5069 = vld [vmem:[%s413] sm:$0x1]
        %v5070 = vmul.f32 %v5029, %v4898
        %v5071 = vmul.f32 %v5030, %v4899
        %v5072 = vmul.f32 %v5031, %v4900
        %v5073 = vmul.f32 %v5032, %v4901
        %v5074 = vmul.f32 %v5033, %v4902
        %v5075 = vmul.f32 %v5034, %v4903
        %v5076 = vmul.f32 %v5035, %v4904
        %v5077 = vmul.f32 %v5036, %v4905
        %v5078 = vmul.f32 %v5037, %v4906
        %v5079 = vmul.f32 %v5038, %v4907
        %v5080 = vmul.f32 %v5039, %v4908
        %v5081 = vmul.f32 %v5040, %v4909
        %v5082 = vmul.f32 %v5041, %v4910
        %v5083 = vmul.f32 %v5042, %v4911
        %v5084 = vmul.f32 %v5043, %v4912
        %v5085 = vmul.f32 %v5044, %v4913
        %v5086 = vadd.f32 %v5070, %v5071
        %v5087 = vadd.f32 %v5086, %v5072
        %v5088 = vadd.f32 %v5087, %v5073
        %v5089 = vadd.f32 %v5088, %v5074
        %v5090 = vadd.f32 %v5089, %v5075
        %v5091 = vadd.f32 %v5090, %v5076
        %v5092 = vadd.f32 %v5091, %v5077
        %v5093 = vadd.f32 %v5092, %v5078
        %v5094 = vadd.f32 %v5093, %v5079
        %v5095 = vadd.f32 %v5094, %v5080
        %v5096 = vadd.f32 %v5095, %v5081
        %v5097 = vadd.f32 %v5096, %v5082
        %v5098 = vadd.f32 %v5097, %v5083
        %v5099 = vadd.f32 %v5098, %v5084
        %v5100 = vadd.f32 %v5099, %v5085
        %v5101 = vrot.slane %v5100, 4
        %v5102 = vadd.f32 %v5100, %v5101
        %v5103 = vrot.slane %v5102, 2
        %v5104 = vadd.f32 %v5102, %v5103
        %v5105 = vrot.slane %v5104, 1
        %v5106 = vadd.f32 %v5104, %v5105
        %v5107 = vadd.f32 %v5069, %v5106
        %5108 = vst [vmem:[%s413] sm:$0x1] %v5107
      $region45: #{conv_layer_forward.2} parent=35 // loop_footer
        %s3451 = sadd.s32 1, %s3447
      $region46: #{conv_layer_forward.2} parent=35 // loop_footer_branch
        %3446 = sbr.rel target = $region42
      $region47: #{conv_layer_forward.2} parent=35 // loop_exit
        _
      %s5109 = smul.u32 %s22, 2
      %s5110 = sadd.s32 %s5109, %s23
      %s5111 = smul.u32 448, %s5110
      %p5112 = scmp.lt.s32.totalorder %s5111, 1791
      %s5113 = scalar_select %p5112, %s5111, 1791
      %s5114 = smul.addr %s5113, 8
      %s5115 = scalar_lea.vmem %s4, %s5114
      %p5116 = scmp.lt.s32.totalorder %s22, 1
      %s5117 = scalar_select %p5116, %s22, 1
      %s5118 = scalar_lea.vmem %s5, %s5117
      %p5119 = scmp.lt.s32.totalorder %s22, 1
      %s5120 = scalar_select %p5119, %s22, 1
      %s5121 = scalar_lea.vmem %s6, %s5120
      // Predicated region
      $region48: #{conv_layer_forward.2} parent=35 // pred_check
        %p5122 = pneg %p167
      $region49: #{conv_layer_forward.2} parent=35 // pred_check_branch
        %5124 = sbr.rel (%p5122) target = $region51
      $region50: #{conv_layer_forward.2} parent=35 // pred_region
        %s5125 = smul.u32 %s22, 2
        %s5126 = sadd.s32 %s5125, %s23
        %s5127 = smul.u32 448, %s5126
      $region51: #{conv_layer_forward.2} parent=35 // pred_fallthru
        _
      // Predicated region
      $region52: #{conv_layer_forward.2} parent=35 // pred_check
        %p5128 = pneg %p193
      $region53: #{conv_layer_forward.2} parent=35 // pred_check_branch
        %5130 = sbr.rel (%p5128) target = $region55
      $region54: #{conv_layer_forward.2} parent=35 // pred_region
        _
      $region55: #{conv_layer_forward.2} parent=35 // pred_fallthru
        _
      // Predicated region
      $region56: #{conv_layer_forward.2} parent=35 // pred_check
        %p5131 = pneg %p219
      $region57: #{conv_layer_forward.2} parent=35 // pred_check_branch
        %5133 = sbr.rel (%p5131) target = $region59
      $region58: #{conv_layer_forward.2} parent=35 // pred_region
        _
      $region59: #{conv_layer_forward.2} parent=35 // pred_fallthru
        _
    $region36: #{conv_layer_forward.2} parent=5 // pred_fallthru
      _
    %p5134 = scmp.le.s32.totalorder 2, %s13
    // Predicated region
    $region60: #{conv_layer_forward.2} parent=5 // pred_check
      %p5135 = pneg %p5134
    $region61: #{conv_layer_forward.2} parent=5 // pred_check_branch
      %5137 = sbr.rel (%p5135) target = $region63
    $region62: #{conv_layer_forward.2} parent=5 // pred_region
      %s5138 = ssub.s32 %s13, 2
      // Predicated region
      $region64: #{conv_layer_forward.2} parent=62 // pred_check
        %p5139 = pneg %p173
      $region65: #{conv_layer_forward.2} parent=62 // pred_check_branch
        %5141 = sbr.rel (%p5139) target = $region67
      $region66: #{conv_layer_forward.2} parent=62 // pred_region
        %s5142 = smul.u32 %s24, 2
        %s5143 = sadd.s32 %s5142, %s25
        %s5144 = smul.u32 448, %s5143
        %p5145 = scmp.lt.s32.totalorder %s5144, 1791
        %s5146 = scalar_select %p5145, %s5144, 1791
        %s5147 = smul.addr %s5146, 8
        %s5148 = scalar_lea.vmem %s4, %s5147
      $region67: #{conv_layer_forward.2} parent=62 // pred_fallthru
        _
      // Predicated region
      $region68: #{conv_layer_forward.2} parent=62 // pred_check
        %p5149 = pneg %p199
      $region69: #{conv_layer_forward.2} parent=62 // pred_check_branch
        %5151 = sbr.rel (%p5149) target = $region71
      $region70: #{conv_layer_forward.2} parent=62 // pred_region
        %p5152 = scmp.lt.s32.totalorder %s24, 1
        %s5153 = scalar_select %p5152, %s24, 1
        %s5154 = scalar_lea.vmem %s5, %s5153
      $region71: #{conv_layer_forward.2} parent=62 // pred_fallthru
        _
      // Predicated region
      $region72: #{conv_layer_forward.2} parent=62 // pred_check
        %p5155 = pneg %p225
      $region73: #{conv_layer_forward.2} parent=62 // pred_check_branch
        %5157 = sbr.rel (%p5155) target = $region75
      $region74: #{conv_layer_forward.2} parent=62 // pred_region
        %p5158 = scmp.lt.s32.totalorder %s24, 1
        %s5159 = scalar_select %p5158, %s24, 1
        %s5160 = scalar_lea.vmem %s6, %s5159
      $region75: #{conv_layer_forward.2} parent=62 // pred_fallthru
        _
    $region63: #{conv_layer_forward.2} parent=5 // pred_fallthru
      _
  $region6: #{conv_layer_forward.2} parent=0 // loop_footer
    %s17 = sadd.s32 1, %s13
  $region7: #{conv_layer_forward.2} parent=0 // loop_footer_branch
    %12 = sbr.rel target = $region3
  $region8: #{conv_layer_forward.2} parent=0 // loop_exit
    _

</llo_original>
